<compile_context>
chip_gen: v6e
topology: v6e:2x2x1
jax: 0.10.0
libtpu: 0.0.40
codegen_flags: <defaults>
</compile_context>

<pallas_src>
import functools

import jax
import jax.numpy as jnp
from jax import lax
from jax.experimental import pallas as pl
from jax.experimental.pallas import tpu as pltpu


def _round_up(x, m):
    return ((x + m - 1) // m) * m


def _conv_out_size(size, k, stride, pad):
    return (size + 2 * pad - k) // stride + 1


# ----------------------------- Pallas kernels --------------------------------
def _matmul_shift_kernel(x_ref, w_ref, shift_ref, o_ref, *, relu):
    """(TILE_M, K) @ (K, N) on the MXU, f32 accumulate, + shift, optional ReLU."""
    y = jnp.dot(x_ref[...], w_ref[...], preferred_element_type=jnp.float32)
    y = y + shift_ref[...]
    if relu:
        y = jnp.maximum(y, 0.0)
    o_ref[...] = y.astype(o_ref.dtype)


def matmul_shift(x, w, shift, *, relu, out_dtype=jnp.bfloat16, tile_m=256):
    """ReLU?((x @ w) + shift), tiled over rows.  x:(M,K)  w:(K,N)  shift:(N,)."""
    M, K = x.shape
    K2, N = w.shape
    assert K == K2
    x = x.astype(jnp.bfloat16)
    w = w.astype(jnp.bfloat16)
    shift = shift.reshape(1, N).astype(jnp.float32)

    tm = min(tile_m, _round_up(M, 8))          # multiple of 8 sublanes
    m_pad = _round_up(M, tm)
    if m_pad != M:
        x = jnp.pad(x, ((0, m_pad - M), (0, 0)))

    out = pl.pallas_call(
        functools.partial(_matmul_shift_kernel, relu=relu),
        out_shape=jax.ShapeDtypeStruct((m_pad, N), out_dtype),
        grid=(m_pad // tm,),
        in_specs=[
            pl.BlockSpec((tm, K), lambda i: (i, 0)),
            pl.BlockSpec((K, N), lambda i: (0, 0)),
            pl.BlockSpec((1, N), lambda i: (0, 0)),
        ],
        out_specs=pl.BlockSpec((tm, N), lambda i: (i, 0)),
        compiler_params=pltpu.CompilerParams(
            dimension_semantics=("parallel",)),
    )(x, w, shift)
    return out[:M] if m_pad != M else out


def _fused_fc_kernel(x_ref, w1_ref, b1_ref, w2_ref, b2_ref, w3_ref, b3_ref,
                     w4_ref, b4_ref, o_ref):
    """All four FC layers in one kernel; intermediates never leave VMEM."""
    h = jnp.dot(x_ref[...], w1_ref[...], preferred_element_type=jnp.float32)
    h = jnp.maximum(h + b1_ref[...], 0.0).astype(jnp.bfloat16)
    h = jnp.dot(h, w2_ref[...], preferred_element_type=jnp.float32)
    h = jnp.maximum(h + b2_ref[...], 0.0).astype(jnp.bfloat16)
    h = jnp.dot(h, w3_ref[...], preferred_element_type=jnp.float32)
    h = jnp.maximum(h + b3_ref[...], 0.0).astype(jnp.bfloat16)
    h = jnp.dot(h, w4_ref[...], preferred_element_type=jnp.float32)
    o_ref[...] = h + b4_ref[...]


def fused_fc(x, fc_w, fc_b):
    """Dropout(eval) -> [Linear+ReLU]x3 -> Linear as a single pallas_call.

    x: (M, D0).  fc_w[i]: (Di, Di+1) bf16.  fc_b[i]: (1, Di+1) f32.
    Returns (M, D4) f32; D4 is already padded to 128 lanes by weight prep.
    """
    M, D0 = x.shape
    m_pad = _round_up(max(M, 8), 8)
    if m_pad != M:
        x = jnp.pad(x, ((0, m_pad - M), (0, 0)))
    n_out = fc_w[-1].shape[1]

    args = [x.astype(jnp.bfloat16)]
    in_specs = [pl.BlockSpec((m_pad, D0), lambda i: (0, 0))]
    for w, b in zip(fc_w, fc_b):
        args += [w, b]
        in_specs += [pl.BlockSpec(w.shape, lambda i: (0, 0)),
                     pl.BlockSpec(b.shape, lambda i: (0, 0))]

    out = pl.pallas_call(
        _fused_fc_kernel,
        out_shape=jax.ShapeDtypeStruct((m_pad, n_out), jnp.float32),
        grid=(1,),
        in_specs=in_specs,
        out_specs=pl.BlockSpec((m_pad, n_out), lambda i: (0, 0)),
        compiler_params=pltpu.CompilerParams(
            dimension_semantics=("arbitrary",)),
    )(*args)
    return out[:M]


# ------------------------------ parameter prep -------------------------------
def prepare_params(conv_params, fc_params, conv_out_hw, eps=1e-5):
    """Fold BN into conv weights, permute FC1, pad FC4, cast weights to bf16."""
    conv_w, conv_shift = [], []
    for wgt, bias, gamma, beta, mean, var in conv_params:
        cout, cin, kh, kw = wgt.shape
        scale = gamma / jnp.sqrt(var + eps)                    # (cout,)
        shift = beta + (bias - mean) * scale                   # (cout,)
        # (Cout, Cin*kh*kw) -> (Cin*kh*kw, Cout); row order (c, ki, kj) matches
        # conv_general_dilated_patches' feature ordering.
        w_mat = wgt.reshape(cout, cin * kh * kw).T
        conv_w.append((w_mat * scale[None, :]).astype(jnp.bfloat16))
        conv_shift.append(shift.astype(jnp.float32))

    (w1, b1), (w2, b2), (w3, b3), (w4, b4) = fc_params
    c4 = conv_params[-1][0].shape[0]
    h4, ww4 = conv_out_hw
    # Permute FC1 columns from PyTorch's (C, H, W) flatten order to (H, W, C),
    # so the conv output flattens naturally with no activation transpose.
    w1p = (w1.reshape(w1.shape[0], c4, h4, ww4)
             .transpose(0, 2, 3, 1).reshape(w1.shape[0], -1))
    # Zero-pad the last Linear to 128 output lanes (lane-dense store).
    n_act = w4.shape[0]
    n_pad = _round_up(max(n_act, 128), 128)
    w4p = jnp.zeros((n_pad, w4.shape[1]), w4.dtype).at[:n_act].set(w4)
    b4p = jnp.zeros((n_pad,), b4.dtype).at[:n_act].set(b4)

    fc_w = [jnp.asarray(m.T, jnp.bfloat16) for m in (w1p, w2, w3, w4p)]
    fc_b = [b.reshape(1, -1).astype(jnp.float32) for b in (b1, b2, b3, b4p)]
    return conv_w, conv_shift, fc_w, fc_b


def init_params(key, input_shape, num_actions):
    c, h, w = input_shape
    layer_cfg = [  # (cin, cout, k, stride, pad) -- matches QNetwork.__init__
        (c, 32, 8, 4, 2),
        (32, 64, 6, 3, 1),
        (64, 128, 4, 2, 1),
        (128, 128, 3, 1, 1),
    ]
    keys = jax.random.split(key, 32)
    ki = 0
    conv_params = []
    hh, ww = h, w
    for cin, cout, k, s, p in layer_cfg:
        wgt = 0.05 * jax.random.normal(keys[ki], (cout, cin, k, k), jnp.float32); ki += 1
        bias = 0.05 * jax.random.normal(keys[ki], (cout,), jnp.float32); ki += 1
        gamma = 1.0 + 0.1 * jax.random.normal(keys[ki], (cout,), jnp.float32); ki += 1
        beta = 0.1 * jax.random.normal(keys[ki], (cout,), jnp.float32); ki += 1
        mean = jnp.zeros((cout,), jnp.float32)
        var = jnp.ones((cout,), jnp.float32)
        conv_params.append((wgt, bias, gamma, beta, mean, var))
        hh = _conv_out_size(hh, k, s, p)
        ww = _conv_out_size(ww, k, s, p)
    linear_input_size = 128 * hh * ww

    fc_dims = [(linear_input_size, 1024), (1024, 512), (512, 256),
               (256, num_actions)]
    fc_params = []
    for din, dout in fc_dims:
        wgt = 0.05 * jax.random.normal(keys[ki], (dout, din), jnp.float32); ki += 1
        bias = 0.05 * jax.random.normal(keys[ki], (dout,), jnp.float32); ki += 1
        fc_params.append((wgt, bias))

    conv_cfg = tuple((k, s, p) for (_, _, k, s, p) in layer_cfg)
    return conv_params, fc_params, conv_cfg, (hh, ww)


# --------------------------------- forward -----------------------------------
@functools.partial(jax.jit, static_argnames=("conv_cfg", "num_actions"))
def qnetwork_forward(x_nchw, conv_w, conv_shift, fc_w, fc_b, *,
                     conv_cfg, num_actions):
    """Full QNetwork forward.  conv_cfg: static tuple of (k, stride, pad)."""
    # NCHW -> NHWC; bf16 activations through the conv stack.
    x = jnp.transpose(x_nchw, (0, 2, 3, 1)).astype(jnp.bfloat16)
    for w_mat, shift, (k, s, p) in zip(conv_w, conv_shift, conv_cfg):
        n = x.shape[0]
        # im2col glue: (N, Hout, Wout, Cin*k*k), feature order (c, ki, kj).
        patches = lax.conv_general_dilated_patches(
            x, filter_shape=(k, k), window_strides=(s, s),
            padding=((p, p), (p, p)),
            dimension_numbers=("NHWC", "HWIO", "NHWC"))
        hout, wout = patches.shape[1], patches.shape[2]
        cols = patches.reshape(n * hout * wout, patches.shape[3])
        y = matmul_shift(cols, w_mat, shift, relu=True, out_dtype=jnp.bfloat16)
        x = y.reshape(n, hout, wout, w_mat.shape[1])
    # Flatten in (H, W, C) order; FC1's columns were pre-permuted to match
    # PyTorch's NCHW x.view(N, -1), so no activation transpose is needed.
    n, hh, ww, cc = x.shape
    x_flat = x.reshape(n, hh * ww * cc)
    q = fused_fc(x_flat, fc_w, fc_b)            # (n, 128) lane-dense output
    return q[:, :num_actions]


if __name__ == "__main__":
    key = jax.random.PRNGKey(0)
    k_param, k_in = jax.random.split(key)

    batch, c, h, w = 2, 4, 64, 64     # small Atari-style stacked-frame input
    num_actions = 6

    conv_params, fc_params, conv_cfg, conv_out_hw = init_params(
        k_param, (c, h, w), num_actions)
    conv_w, conv_shift, fc_w, fc_b = prepare_params(
        conv_params, fc_params, conv_out_hw)

    x = jax.random.normal(k_in, (batch, c, h, w), jnp.float32)

    q_values = qnetwork_forward(x, conv_w, conv_shift, fc_w, fc_b,
                                conv_cfg=conv_cfg, num_actions=num_actions)
    q_values = jax.block_until_ready(q_values)

    assert q_values.shape == (batch, num_actions), q_values.shape
    assert bool(jnp.all(jnp.isfinite(q_values)))
    print("KERNEL_OK")
</pallas_src>

<mosaic_0001>
module attributes {stable_mosaic.version = 11 : i64} {
  func.func @_matmul_shift_kernel(%arg0: i32, %arg1: memref<256x256xbf16, #tpu.memory_space<vmem>>, %arg2: memref<256x32xbf16, #tpu.memory_space<vmem>>, %arg3: memref<1x32xf32, #tpu.memory_space<vmem>>, %arg4: memref<256x32xbf16, #tpu.memory_space<vmem>>) attributes {dimension_semantics = [#tpu.dimension_semantics<parallel>], iteration_bounds = array<i64: 2>, scalar_prefetch = 0 : i64, scratch_operands = 0 : i64, tpu.core_type = #tpu.core_type<tc>, window_params = [{transform_indices = @transform_0, window_bounds = array<i64: 256, 256>}, {pipeline_mode = #tpu.pipeline_mode<synchronous>, transform_indices = @transform_1, window_bounds = array<i64: 256, 32>}, {pipeline_mode = #tpu.pipeline_mode<synchronous>, transform_indices = @transform_2, window_bounds = array<i64: 1, 32>}, {transform_indices = @transform_3, window_bounds = array<i64: 256, 32>}]} {
    %c0 = arith.constant 0 : index
    %c0_0 = arith.constant 0 : index
    %0 = vector.load %arg1[%c0, %c0_0] : memref<256x256xbf16, #tpu.memory_space<vmem>>, vector<256x256xbf16>
    %c0_1 = arith.constant 0 : index
    %c0_2 = arith.constant 0 : index
    %1 = vector.load %arg2[%c0_1, %c0_2] : memref<256x32xbf16, #tpu.memory_space<vmem>>, vector<256x32xbf16>
    %cst = arith.constant dense<0.000000e+00> : vector<256x32xf32>
    %2 = tpu.matmul %0, %1, %cst {dimension_numbers = #tpu.dot_dimension_numbers<[1], [0], [0], [1], [0, 0, 1, 1], [], []>} : vector<256x256xbf16>, vector<256x32xbf16>, vector<256x32xf32> -> vector<256x32xf32>
    %c0_3 = arith.constant 0 : index
    %c0_4 = arith.constant 0 : index
    %3 = vector.load %arg3[%c0_3, %c0_4] : memref<1x32xf32, #tpu.memory_space<vmem>>, vector<1x32xf32>
    %4 = vector.broadcast %3 : vector<1x32xf32> to vector<256x32xf32>
    %5 = arith.addf %2, %4 : vector<256x32xf32>
    %cst_5 = arith.constant 0.000000e+00 : f32
    %6 = vector.broadcast %cst_5 : f32 to vector<256x32xf32>
    %7 = arith.maximumf %5, %6 : vector<256x32xf32>
    %8 = arith.truncf %7 : vector<256x32xf32> to vector<256x32xbf16>
    %c0_6 = arith.constant 0 : index
    %c0_7 = arith.constant 0 : index
    %9 = vector.load %arg4[%c0_6, %c0_7] : memref<256x32xbf16, #tpu.memory_space<vmem>>, vector<256x32xbf16>
    tpu.vector_store %arg4[%c0_6, %c0_7], %8 {strides = array<i32>} : memref<256x32xbf16, #tpu.memory_space<vmem>>, vector<256x32xbf16>,
    return
  }
  func.func @transform_0(%arg0: i32) -> (i32, i32) {
    %c0_i32 = arith.constant 0 : i32
    %c0_i32_0 = arith.constant 0 : i32
    return %arg0, %c0_i32 : i32, i32
  }
  func.func @transform_1(%arg0: i32) -> (i32, i32) {
    %c0_i32 = arith.constant 0 : i32
    %c0_i32_0 = arith.constant 0 : i32
    %c0_i32_1 = arith.constant 0 : i32
    return %c0_i32, %c0_i32_0 : i32, i32
  }
  func.func @transform_2(%arg0: i32) -> (i32, i32) {
    %c0_i32 = arith.constant 0 : i32
    %c0_i32_0 = arith.constant 0 : i32
    %c0_i32_1 = arith.constant 0 : i32
    return %c0_i32, %c0_i32_0 : i32, i32
  }
  func.func @transform_3(%arg0: i32) -> (i32, i32) {
    %c0_i32 = arith.constant 0 : i32
    %c0_i32_0 = arith.constant 0 : i32
    return %arg0, %c0_i32 : i32, i32
  }
}

module attributes {stable_mosaic.version = 11 : i64} {
  func.func @_matmul_shift_kernel(%arg0: i32, %arg1: memref<56x1152xbf16, #tpu.memory_space<vmem>>, %arg2: memref<1152x64xbf16, #tpu.memory_space<vmem>>, %arg3: memref<1x64xf32, #tpu.memory_space<vmem>>, %arg4: memref<56x64xbf16, #tpu.memory_space<vmem>>) attributes {dimension_semantics = [#tpu.dimension_semantics<parallel>], iteration_bounds = array<i64: 1>, scalar_prefetch = 0 : i64, scratch_operands = 0 : i64, tpu.core_type = #tpu.core_type<tc>, window_params = [{transform_indices = @transform_0, window_bounds = array<i64: 56, 1152>}, {pipeline_mode = #tpu.pipeline_mode<synchronous>, transform_indices = @transform_1, window_bounds = array<i64: 1152, 64>}, {pipeline_mode = #tpu.pipeline_mode<synchronous>, transform_indices = @transform_2, window_bounds = array<i64: 1, 64>}, {transform_indices = @transform_3, window_bounds = array<i64: 56, 64>}]} {
    %c0 = arith.constant 0 : index
    %c0_0 = arith.constant 0 : index
    %0 = vector.load %arg1[%c0, %c0_0] : memref<56x1152xbf16, #tpu.memory_space<vmem>>, vector<56x1152xbf16>
    %c0_1 = arith.constant 0 : index
    %c0_2 = arith.constant 0 : index
    %1 = vector.load %arg2[%c0_1, %c0_2] : memref<1152x64xbf16, #tpu.memory_space<vmem>>, vector<1152x64xbf16>
    %cst = arith.constant dense<0.000000e+00> : vector<56x64xf32>
    %2 = tpu.matmul %0, %1, %cst {dimension_numbers = #tpu.dot_dimension_numbers<[1], [0], [0], [1], [0, 0, 1, 1], [], []>} : vector<56x1152xbf16>, vector<1152x64xbf16>, vector<56x64xf32> -> vector<56x64xf32>
    %c0_3 = arith.constant 0 : index
    %c0_4 = arith.constant 0 : index
    %3 = vector.load %arg3[%c0_3, %c0_4] : memref<1x64xf32, #tpu.memory_space<vmem>>, vector<1x64xf32>
    %4 = vector.broadcast %3 : vector<1x64xf32> to vector<56x64xf32>
    %5 = arith.addf %2, %4 : vector<56x64xf32>
    %cst_5 = arith.constant 0.000000e+00 : f32
    %6 = vector.broadcast %cst_5 : f32 to vector<56x64xf32>
    %7 = arith.maximumf %5, %6 : vector<56x64xf32>
    %8 = arith.truncf %7 : vector<56x64xf32> to vector<56x64xbf16>
    %c0_6 = arith.constant 0 : index
    %c0_7 = arith.constant 0 : index
    %9 = vector.load %arg4[%c0_6, %c0_7] : memref<56x64xbf16, #tpu.memory_space<vmem>>, vector<56x64xbf16>
    tpu.vector_store %arg4[%c0_6, %c0_7], %8 {strides = array<i32>} : memref<56x64xbf16, #tpu.memory_space<vmem>>, vector<56x64xbf16>,
    return
  }
  func.func @transform_0(%arg0: i32) -> (i32, i32) {
    %c0_i32 = arith.constant 0 : i32
    %c0_i32_0 = arith.constant 0 : i32
    return %arg0, %c0_i32 : i32, i32
  }
  func.func @transform_1(%arg0: i32) -> (i32, i32) {
    %c0_i32 = arith.constant 0 : i32
    %c0_i32_0 = arith.constant 0 : i32
    %c0_i32_1 = arith.constant 0 : i32
    return %c0_i32, %c0_i32_0 : i32, i32
  }
  func.func @transform_2(%arg0: i32) -> (i32, i32) {
    %c0_i32 = arith.constant 0 : i32
    %c0_i32_0 = arith.constant 0 : i32
    %c0_i32_1 = arith.constant 0 : i32
    return %c0_i32, %c0_i32_0 : i32, i32
  }
  func.func @transform_3(%arg0: i32) -> (i32, i32) {
    %c0_i32 = arith.constant 0 : i32
    %c0_i32_0 = arith.constant 0 : i32
    return %arg0, %c0_i32 : i32, i32
  }
}

module attributes {stable_mosaic.version = 11 : i64} {
  func.func @_matmul_shift_kernel(%arg0: i32, %arg1: memref<8x1024xbf16, #tpu.memory_space<vmem>>, %arg2: memref<1024x128xbf16, #tpu.memory_space<vmem>>, %arg3: memref<1x128xf32, #tpu.memory_space<vmem>>, %arg4: memref<8x128xbf16, #tpu.memory_space<vmem>>) attributes {dimension_semantics = [#tpu.dimension_semantics<parallel>], iteration_bounds = array<i64: 1>, scalar_prefetch = 0 : i64, scratch_operands = 0 : i64, tpu.core_type = #tpu.core_type<tc>, window_params = [{transform_indices = @transform_0, window_bounds = array<i64: 8, 1024>}, {pipeline_mode = #tpu.pipeline_mode<synchronous>, transform_indices = @transform_1, window_bounds = array<i64: 1024, 128>}, {pipeline_mode = #tpu.pipeline_mode<synchronous>, transform_indices = @transform_2, window_bounds = array<i64: 1, 128>}, {transform_indices = @transform_3, window_bounds = array<i64: 8, 128>}]} {
    %c0 = arith.constant 0 : index
    %c0_0 = arith.constant 0 : index
    %0 = vector.load %arg1[%c0, %c0_0] : memref<8x1024xbf16, #tpu.memory_space<vmem>>, vector<8x1024xbf16>
    %c0_1 = arith.constant 0 : index
    %c0_2 = arith.constant 0 : index
    %1 = vector.load %arg2[%c0_1, %c0_2] : memref<1024x128xbf16, #tpu.memory_space<vmem>>, vector<1024x128xbf16>
    %cst = arith.constant dense<0.000000e+00> : vector<8x128xf32>
    %2 = tpu.matmul %0, %1, %cst {dimension_numbers = #tpu.dot_dimension_numbers<[1], [0], [0], [1], [0, 0, 1, 1], [], []>} : vector<8x1024xbf16>, vector<1024x128xbf16>, vector<8x128xf32> -> vector<8x128xf32>
    %c0_3 = arith.constant 0 : index
    %c0_4 = arith.constant 0 : index
    %3 = vector.load %arg3[%c0_3, %c0_4] : memref<1x128xf32, #tpu.memory_space<vmem>>, vector<1x128xf32>
    %4 = vector.broadcast %3 : vector<1x128xf32> to vector<8x128xf32>
    %5 = arith.addf %2, %4 : vector<8x128xf32>
    %cst_5 = arith.constant 0.000000e+00 : f32
    %6 = vector.broadcast %cst_5 : f32 to vector<8x128xf32>
    %7 = arith.maximumf %5, %6 : vector<8x128xf32>
    %8 = arith.truncf %7 : vector<8x128xf32> to vector<8x128xbf16>
    %c0_6 = arith.constant 0 : index
    %c0_7 = arith.constant 0 : index
    %9 = vector.load %arg4[%c0_6, %c0_7] : memref<8x128xbf16, #tpu.memory_space<vmem>>, vector<8x128xbf16>
    tpu.vector_store %arg4[%c0_6, %c0_7], %8 {strides = array<i32>} : memref<8x128xbf16, #tpu.memory_space<vmem>>, vector<8x128xbf16>,
    return
  }
  func.func @transform_0(%arg0: i32) -> (i32, i32) {
    %c0_i32 = arith.constant 0 : i32
    %c0_i32_0 = arith.constant 0 : i32
    return %arg0, %c0_i32 : i32, i32
  }
  func.func @transform_1(%arg0: i32) -> (i32, i32) {
    %c0_i32 = arith.constant 0 : i32
    %c0_i32_0 = arith.constant 0 : i32
    %c0_i32_1 = arith.constant 0 : i32
    return %c0_i32, %c0_i32_0 : i32, i32
  }
  func.func @transform_2(%arg0: i32) -> (i32, i32) {
    %c0_i32 = arith.constant 0 : i32
    %c0_i32_0 = arith.constant 0 : i32
    %c0_i32_1 = arith.constant 0 : i32
    return %c0_i32, %c0_i32_0 : i32, i32
  }
  func.func @transform_3(%arg0: i32) -> (i32, i32) {
    %c0_i32 = arith.constant 0 : i32
    %c0_i32_0 = arith.constant 0 : i32
    return %arg0, %c0_i32 : i32, i32
  }
}

module attributes {stable_mosaic.version = 11 : i64} {
  func.func @_matmul_shift_kernel(%arg0: i32, %arg1: memref<8x1152xbf16, #tpu.memory_space<vmem>>, %arg2: memref<1152x128xbf16, #tpu.memory_space<vmem>>, %arg3: memref<1x128xf32, #tpu.memory_space<vmem>>, %arg4: memref<8x128xbf16, #tpu.memory_space<vmem>>) attributes {dimension_semantics = [#tpu.dimension_semantics<parallel>], iteration_bounds = array<i64: 1>, scalar_prefetch = 0 : i64, scratch_operands = 0 : i64, tpu.core_type = #tpu.core_type<tc>, window_params = [{transform_indices = @transform_0, window_bounds = array<i64: 8, 1152>}, {pipeline_mode = #tpu.pipeline_mode<synchronous>, transform_indices = @transform_1, window_bounds = array<i64: 1152, 128>}, {pipeline_mode = #tpu.pipeline_mode<synchronous>, transform_indices = @transform_2, window_bounds = array<i64: 1, 128>}, {transform_indices = @transform_3, window_bounds = array<i64: 8, 128>}]} {
    %c0 = arith.constant 0 : index
    %c0_0 = arith.constant 0 : index
    %0 = vector.load %arg1[%c0, %c0_0] : memref<8x1152xbf16, #tpu.memory_space<vmem>>, vector<8x1152xbf16>
    %c0_1 = arith.constant 0 : index
    %c0_2 = arith.constant 0 : index
    %1 = vector.load %arg2[%c0_1, %c0_2] : memref<1152x128xbf16, #tpu.memory_space<vmem>>, vector<1152x128xbf16>
    %cst = arith.constant dense<0.000000e+00> : vector<8x128xf32>
    %2 = tpu.matmul %0, %1, %cst {dimension_numbers = #tpu.dot_dimension_numbers<[1], [0], [0], [1], [0, 0, 1, 1], [], []>} : vector<8x1152xbf16>, vector<1152x128xbf16>, vector<8x128xf32> -> vector<8x128xf32>
    %c0_3 = arith.constant 0 : index
    %c0_4 = arith.constant 0 : index
    %3 = vector.load %arg3[%c0_3, %c0_4] : memref<1x128xf32, #tpu.memory_space<vmem>>, vector<1x128xf32>
    %4 = vector.broadcast %3 : vector<1x128xf32> to vector<8x128xf32>
    %5 = arith.addf %2, %4 : vector<8x128xf32>
    %cst_5 = arith.constant 0.000000e+00 : f32
    %6 = vector.broadcast %cst_5 : f32 to vector<8x128xf32>
    %7 = arith.maximumf %5, %6 : vector<8x128xf32>
    %8 = arith.truncf %7 : vector<8x128xf32> to vector<8x128xbf16>
    %c0_6 = arith.constant 0 : index
    %c0_7 = arith.constant 0 : index
    %9 = vector.load %arg4[%c0_6, %c0_7] : memref<8x128xbf16, #tpu.memory_space<vmem>>, vector<8x128xbf16>
    tpu.vector_store %arg4[%c0_6, %c0_7], %8 {strides = array<i32>} : memref<8x128xbf16, #tpu.memory_space<vmem>>, vector<8x128xbf16>,
    return
  }
  func.func @transform_0(%arg0: i32) -> (i32, i32) {
    %c0_i32 = arith.constant 0 : i32
    %c0_i32_0 = arith.constant 0 : i32
    return %arg0, %c0_i32 : i32, i32
  }
  func.func @transform_1(%arg0: i32) -> (i32, i32) {
    %c0_i32 = arith.constant 0 : i32
    %c0_i32_0 = arith.constant 0 : i32
    %c0_i32_1 = arith.constant 0 : i32
    return %c0_i32, %c0_i32_0 : i32, i32
  }
  func.func @transform_2(%arg0: i32) -> (i32, i32) {
    %c0_i32 = arith.constant 0 : i32
    %c0_i32_0 = arith.constant 0 : i32
    %c0_i32_1 = arith.constant 0 : i32
    return %c0_i32, %c0_i32_0 : i32, i32
  }
  func.func @transform_3(%arg0: i32) -> (i32, i32) {
    %c0_i32 = arith.constant 0 : i32
    %c0_i32_0 = arith.constant 0 : i32
    return %arg0, %c0_i32 : i32, i32
  }
}

module attributes {stable_mosaic.version = 11 : i64} {
  func.func @_fused_fc_kernel(%arg0: i32, %arg1: memref<8x512xbf16, #tpu.memory_space<vmem>>, %arg2: memref<512x1024xbf16, #tpu.memory_space<vmem>>, %arg3: memref<1x1024xf32, #tpu.memory_space<vmem>>, %arg4: memref<1024x512xbf16, #tpu.memory_space<vmem>>, %arg5: memref<1x512xf32, #tpu.memory_space<vmem>>, %arg6: memref<512x256xbf16, #tpu.memory_space<vmem>>, %arg7: memref<1x256xf32, #tpu.memory_space<vmem>>, %arg8: memref<256x128xbf16, #tpu.memory_space<vmem>>, %arg9: memref<1x128xf32, #tpu.memory_space<vmem>>, %arg10: memref<8x128xf32, #tpu.memory_space<vmem>>) attributes {dimension_semantics = [#tpu.dimension_semantics<arbitrary>], iteration_bounds = array<i64: 1>, scalar_prefetch = 0 : i64, scratch_operands = 0 : i64, tpu.core_type = #tpu.core_type<tc>, window_params = [{pipeline_mode = #tpu.pipeline_mode<synchronous>, transform_indices = @transform_0, window_bounds = array<i64: 8, 512>}, {pipeline_mode = #tpu.pipeline_mode<synchronous>, transform_indices = @transform_1, window_bounds = array<i64: 512, 1024>}, {pipeline_mode = #tpu.pipeline_mode<synchronous>, transform_indices = @transform_2, window_bounds = array<i64: 1, 1024>}, {pipeline_mode = #tpu.pipeline_mode<synchronous>, transform_indices = @transform_3, window_bounds = array<i64: 1024, 512>}, {pipeline_mode = #tpu.pipeline_mode<synchronous>, transform_indices = @transform_4, window_bounds = array<i64: 1, 512>}, {pipeline_mode = #tpu.pipeline_mode<synchronous>, transform_indices = @transform_5, window_bounds = array<i64: 512, 256>}, {pipeline_mode = #tpu.pipeline_mode<synchronous>, transform_indices = @transform_6, window_bounds = array<i64: 1, 256>}, {pipeline_mode = #tpu.pipeline_mode<synchronous>, transform_indices = @transform_7, window_bounds = array<i64: 256, 128>}, {pipeline_mode = #tpu.pipeline_mode<synchronous>, transform_indices = @transform_8, window_bounds = array<i64: 1, 128>}, {pipeline_mode = #tpu.pipeline_mode<synchronous>, transform_indices = @transform_9, window_bounds = array<i64: 8, 128>}]} {
    %c0 = arith.constant 0 : index
    %c0_0 = arith.constant 0 : index
    %0 = vector.load %arg1[%c0, %c0_0] : memref<8x512xbf16, #tpu.memory_space<vmem>>, vector<8x512xbf16>
    %c0_1 = arith.constant 0 : index
    %c0_2 = arith.constant 0 : index
    %1 = vector.load %arg2[%c0_1, %c0_2] : memref<512x1024xbf16, #tpu.memory_space<vmem>>, vector<512x1024xbf16>
    %cst = arith.constant dense<0.000000e+00> : vector<8x1024xf32>
    %2 = tpu.matmul %0, %1, %cst {dimension_numbers = #tpu.dot_dimension_numbers<[1], [0], [0], [1], [0, 0, 1, 1], [], []>} : vector<8x512xbf16>, vector<512x1024xbf16>, vector<8x1024xf32> -> vector<8x1024xf32>
    %c0_3 = arith.constant 0 : index
    %c0_4 = arith.constant 0 : index
    %3 = vector.load %arg3[%c0_3, %c0_4] : memref<1x1024xf32, #tpu.memory_space<vmem>>, vector<1x1024xf32>
    %4 = vector.broadcast %3 : vector<1x1024xf32> to vector<8x1024xf32>
    %5 = arith.addf %2, %4 : vector<8x1024xf32>
    %cst_5 = arith.constant 0.000000e+00 : f32
    %6 = vector.broadcast %cst_5 : f32 to vector<8x1024xf32>
    %7 = arith.maximumf %5, %6 : vector<8x1024xf32>
    %8 = arith.truncf %7 : vector<8x1024xf32> to vector<8x1024xbf16>
    %c0_6 = arith.constant 0 : index
    %c0_7 = arith.constant 0 : index
    %9 = vector.load %arg4[%c0_6, %c0_7] : memref<1024x512xbf16, #tpu.memory_space<vmem>>, vector<1024x512xbf16>
    %cst_8 = arith.constant dense<0.000000e+00> : vector<8x512xf32>
    %10 = tpu.matmul %8, %9, %cst_8 {dimension_numbers = #tpu.dot_dimension_numbers<[1], [0], [0], [1], [0, 0, 1, 1], [], []>} : vector<8x1024xbf16>, vector<1024x512xbf16>, vector<8x512xf32> -> vector<8x512xf32>
    %c0_9 = arith.constant 0 : index
    %c0_10 = arith.constant 0 : index
    %11 = vector.load %arg5[%c0_9, %c0_10] : memref<1x512xf32, #tpu.memory_space<vmem>>, vector<1x512xf32>
    %12 = vector.broadcast %11 : vector<1x512xf32> to vector<8x512xf32>
    %13 = arith.addf %10, %12 : vector<8x512xf32>
    %cst_11 = arith.constant 0.000000e+00 : f32
    %14 = vector.broadcast %cst_11 : f32 to vector<8x512xf32>
    %15 = arith.maximumf %13, %14 : vector<8x512xf32>
    %16 = arith.truncf %15 : vector<8x512xf32> to vector<8x512xbf16>
    %c0_12 = arith.constant 0 : index
    %c0_13 = arith.constant 0 : index
    %17 = vector.load %arg6[%c0_12, %c0_13] : memref<512x256xbf16, #tpu.memory_space<vmem>>, vector<512x256xbf16>
    %cst_14 = arith.constant dense<0.000000e+00> : vector<8x256xf32>
    %18 = tpu.matmul %16, %17, %cst_14 {dimension_numbers = #tpu.dot_dimension_numbers<[1], [0], [0], [1], [0, 0, 1, 1], [], []>} : vector<8x512xbf16>, vector<512x256xbf16>, vector<8x256xf32> -> vector<8x256xf32>
    %c0_15 = arith.constant 0 : index
    %c0_16 = arith.constant 0 : index
    %19 = vector.load %arg7[%c0_15, %c0_16] : memref<1x256xf32, #tpu.memory_space<vmem>>, vector<1x256xf32>
    %20 = vector.broadcast %19 : vector<1x256xf32> to vector<8x256xf32>
    %21 = arith.addf %18, %20 : vector<8x256xf32>
    %cst_17 = arith.constant 0.000000e+00 : f32
    %22 = vector.broadcast %cst_17 : f32 to vector<8x256xf32>
    %23 = arith.maximumf %21, %22 : vector<8x256xf32>
    %24 = arith.truncf %23 : vector<8x256xf32> to vector<8x256xbf16>
    %c0_18 = arith.constant 0 : index
    %c0_19 = arith.constant 0 : index
    %25 = vector.load %arg8[%c0_18, %c0_19] : memref<256x128xbf16, #tpu.memory_space<vmem>>, vector<256x128xbf16>
    %cst_20 = arith.constant dense<0.000000e+00> : vector<8x128xf32>
    %26 = tpu.matmul %24, %25, %cst_20 {dimension_numbers = #tpu.dot_dimension_numbers<[1], [0], [0], [1], [0, 0, 1, 1], [], []>} : vector<8x256xbf16>, vector<256x128xbf16>, vector<8x128xf32> -> vector<8x128xf32>
    %c0_21 = arith.constant 0 : index
    %c0_22 = arith.constant 0 : index
    %27 = vector.load %arg9[%c0_21, %c0_22] : memref<1x128xf32, #tpu.memory_space<vmem>>, vector<1x128xf32>
    %28 = vector.broadcast %27 : vector<1x128xf32> to vector<8x128xf32>
    %29 = arith.addf %26, %28 : vector<8x128xf32>
    %c0_23 = arith.constant 0 : index
    %c0_24 = arith.constant 0 : index
    %30 = vector.load %arg10[%c0_23, %c0_24] : memref<8x128xf32, #tpu.memory_space<vmem>>, vector<8x128xf32>
    tpu.vector_store %arg10[%c0_23, %c0_24], %29 {strides = array<i32>} : memref<8x128xf32, #tpu.memory_space<vmem>>, vector<8x128xf32>,
    return
  }
  func.func @transform_0(%arg0: i32) -> (i32, i32) {
    %c0_i32 = arith.constant 0 : i32
    %c0_i32_0 = arith.constant 0 : i32
    %c0_i32_1 = arith.constant 0 : i32
    return %c0_i32, %c0_i32_0 : i32, i32
  }
  func.func @transform_1(%arg0: i32) -> (i32, i32) {
    %c0_i32 = arith.constant 0 : i32
    %c0_i32_0 = arith.constant 0 : i32
    %c0_i32_1 = arith.constant 0 : i32
    return %c0_i32, %c0_i32_0 : i32, i32
  }
  func.func @transform_2(%arg0: i32) -> (i32, i32) {
    %c0_i32 = arith.constant 0 : i32
    %c0_i32_0 = arith.constant 0 : i32
    %c0_i32_1 = arith.constant 0 : i32
    return %c0_i32, %c0_i32_0 : i32, i32
  }
  func.func @transform_3(%arg0: i32) -> (i32, i32) {
    %c0_i32 = arith.constant 0 : i32
    %c0_i32_0 = arith.constant 0 : i32
    %c0_i32_1 = arith.constant 0 : i32
    return %c0_i32, %c0_i32_0 : i32, i32
  }
  func.func @transform_4(%arg0: i32) -> (i32, i32) {
    %c0_i32 = arith.constant 0 : i32
    %c0_i32_0 = arith.constant 0 : i32
    %c0_i32_1 = arith.constant 0 : i32
    return %c0_i32, %c0_i32_0 : i32, i32
  }
  func.func @transform_5(%arg0: i32) -> (i32, i32) {
    %c0_i32 = arith.constant 0 : i32
    %c0_i32_0 = arith.constant 0 : i32
    %c0_i32_1 = arith.constant 0 : i32
    return %c0_i32, %c0_i32_0 : i32, i32
  }
  func.func @transform_6(%arg0: i32) -> (i32, i32) {
    %c0_i32 = arith.constant 0 : i32
    %c0_i32_0 = arith.constant 0 : i32
    %c0_i32_1 = arith.constant 0 : i32
    return %c0_i32, %c0_i32_0 : i32, i32
  }
  func.func @transform_7(%arg0: i32) -> (i32, i32) {
    %c0_i32 = arith.constant 0 : i32
    %c0_i32_0 = arith.constant 0 : i32
    %c0_i32_1 = arith.constant 0 : i32
    return %c0_i32, %c0_i32_0 : i32, i32
  }
  func.func @transform_8(%arg0: i32) -> (i32, i32) {
    %c0_i32 = arith.constant 0 : i32
    %c0_i32_0 = arith.constant 0 : i32
    %c0_i32_1 = arith.constant 0 : i32
    return %c0_i32, %c0_i32_0 : i32, i32
  }
  func.func @transform_9(%arg0: i32) -> (i32, i32) {
    %c0_i32 = arith.constant 0 : i32
    %c0_i32_0 = arith.constant 0 : i32
    %c0_i32_1 = arith.constant 0 : i32
    return %c0_i32, %c0_i32_0 : i32, i32
  }
}

</mosaic_0001>

<llo_original>
// kernel: qnetwork_forward.5
$region0: #{qnetwork_forward.5}
  #allocation0 [shape = 'u32[]', space=smem, size = 0x4, offset = 0x4, fixed_abs, tag = 'smem constant byte address 0x4 - core index']
  #allocation1 [shape = 'u32[144,128]{1,0:T(1,128)}', space=vmem, size = 0x12000, scoped, tag = 'internal scratch']
  %s0 = inlined_call_operand.vmem [shape: bf16[512,256], index: 0, kind: input, shape index: {}]
  %s1 = inlined_call_operand.vmem [shape: bf16[256,32], index: 1, kind: input, shape index: {}]
  %s2 = inlined_call_operand.vmem [shape: f32[1,32], index: 2, kind: input, shape index: {}]
  %s3 = inlined_call_operand.vmem [shape: bf16[512,32], index: 3, kind: output, shape index: {}]
  %s4 = sld [smem:[#allocation0]]
  $region45: #{qnetwork_forward.5} parent=0
    _
  %s6 = ssub.s32 1, %s4
  %s7 = scalar_select 0, %s6, %s4
  loop: start=0, step=1, limit=4
  $region2: #{qnetwork_forward.5} parent=0 // loop_pre_header
    _
  $region3: #{qnetwork_forward.5} parent=0 // loop_header
    %s9 = sphi 0, %s13
    %p10 = scmp.ge.s32.totalorder %s9, 4
    %s19 = sphi 0, %s21
    %s22 = sphi 0, %s19
    %s23 = sphi 0, %s22
    %s39 = sphi 0, %s23
    %s43 = sphi 0, %s43
    %s45 = sphi 0, %s43
    %s46 = sphi 0, %s45
    %s60 = sphi 0, %s46
    %s64 = sphi 0, %s64
    %s66 = sphi 0, %s64
    %s67 = sphi 0, %s66
    %s81 = sphi 0, %s67
    %s87 = sphi 0, %s89
    %s90 = sphi 0, %s87
    %s91 = sphi 0, %s90
    %s107 = sphi 0, %s91
  $region4: #{qnetwork_forward.5} parent=0 // loop_header_branch
    %12 = sbr.rel (%p10) target = $region8
  $region5: #{qnetwork_forward.5} parent=0 // loop_body
    %s14 = ssub.s32 %s9, 1
    %s15 = ssub.s32 %s9, 2
    %s16 = sadd.s32 %s9, 1
    %s17 = ssub.s32 %s9, %s16
    %p18 = scmp.eq.s32.totalorder %s17, 0
    %s20 = sadd.s32 %s19, 1
    %s21 = scalar_select %p18, %s19, %s20
    %p24 = pneg %p18
    %p25 = scmp.eq.s32.totalorder %s9, 1
    %p26 = por %p24, %p25
    %p27 = scmp.ne.s32.totalorder %s19, %s22
    %p28 = scmp.eq.s32.totalorder %s9, 0
    %p29 = por %p27, %p28
    %p30 = scmp.ne.s32.totalorder %s19, %s22
    %p31 = scmp.eq.s32.totalorder %s14, 1
    %p32 = por %p30, %p31
    %p33 = scmp.ne.s32.totalorder %s22, %s23
    %p34 = scmp.eq.s32.totalorder %s14, 0
    %p35 = por %p33, %p34
    %p36 = scmp.ne.s32.totalorder %s22, %s23
    %p37 = scmp.eq.s32.totalorder %s15, 1
    %p38 = por %p36, %p37
    %p40 = scmp.ne.s32.totalorder %s23, %s39
    %p41 = scmp.eq.s32.totalorder %s15, 0
    %p42 = por %p40, %p41
    %s44 = sadd.s32 %s43, 1
    %p47 = scmp.eq.s32.totalorder %s9, 1
    %p48 = scmp.ne.s32.totalorder %s43, %s45
    %p49 = scmp.eq.s32.totalorder %s9, 0
    %p50 = por %p48, %p49
    %p51 = scmp.ne.s32.totalorder %s43, %s45
    %p52 = scmp.eq.s32.totalorder %s14, 1
    %p53 = por %p51, %p52
    %p54 = scmp.ne.s32.totalorder %s45, %s46
    %p55 = scmp.eq.s32.totalorder %s14, 0
    %p56 = por %p54, %p55
    %p57 = scmp.ne.s32.totalorder %s45, %s46
    %p58 = scmp.eq.s32.totalorder %s15, 1
    %p59 = por %p57, %p58
    %p61 = scmp.ne.s32.totalorder %s46, %s60
    %p62 = scmp.eq.s32.totalorder %s15, 0
    %p63 = por %p61, %p62
    %s65 = sadd.s32 %s64, 1
    %p68 = scmp.eq.s32.totalorder %s9, 1
    %p69 = scmp.ne.s32.totalorder %s64, %s66
    %p70 = scmp.eq.s32.totalorder %s9, 0
    %p71 = por %p69, %p70
    %p72 = scmp.ne.s32.totalorder %s64, %s66
    %p73 = scmp.eq.s32.totalorder %s14, 1
    %p74 = por %p72, %p73
    %p75 = scmp.ne.s32.totalorder %s66, %s67
    %p76 = scmp.eq.s32.totalorder %s14, 0
    %p77 = por %p75, %p76
    %p78 = scmp.ne.s32.totalorder %s66, %s67
    %p79 = scmp.eq.s32.totalorder %s15, 1
    %p80 = por %p78, %p79
    %p82 = scmp.ne.s32.totalorder %s67, %s81
    %p83 = scmp.eq.s32.totalorder %s15, 0
    %p84 = por %p82, %p83
    %s85 = ssub.s32 %s9, %s16
    %p86 = scmp.eq.s32.totalorder %s85, 0
    %s88 = sadd.s32 %s87, 1
    %s89 = scalar_select %p86, %s87, %s88
    %p92 = pneg %p86
    %p93 = scmp.eq.s32.totalorder %s9, 1
    %p94 = por %p92, %p93
    %p95 = scmp.ne.s32.totalorder %s87, %s90
    %p96 = scmp.eq.s32.totalorder %s9, 0
    %p97 = por %p95, %p96
    %p98 = scmp.ne.s32.totalorder %s87, %s90
    %p99 = scmp.eq.s32.totalorder %s14, 1
    %p100 = por %p98, %p99
    %p101 = scmp.ne.s32.totalorder %s90, %s91
    %p102 = scmp.eq.s32.totalorder %s14, 0
    %p103 = por %p101, %p102
    %p104 = scmp.ne.s32.totalorder %s90, %s91
    %p105 = scmp.eq.s32.totalorder %s15, 1
    %p106 = por %p104, %p105
    %p108 = scmp.ne.s32.totalorder %s91, %s107
    %p109 = scmp.eq.s32.totalorder %s15, 0
    %p110 = por %p108, %p109
    %p111 = scmp.le.s32.totalorder 1, %s9
    %p112 = scmp.lt.s32.totalorder %s9, 3
    %p113 = pnand %p111, %p112
    %p114 = pneg %p113
    // Predicated region
    $region9: #{qnetwork_forward.5} parent=5 // pred_check
      _
    $region10: #{qnetwork_forward.5} parent=5 // pred_check_branch
      %116 = sbr.rel (%p113) target = $region12
    $region11: #{qnetwork_forward.5} parent=5 // pred_region
      %s117 = ssub.s32 %s9, 1
      // Predicated region
      $region13: #{qnetwork_forward.5} parent=11 // pred_check
        %p118 = pneg %p56
      $region14: #{qnetwork_forward.5} parent=11 // pred_check_branch
        %120 = sbr.rel (%p118) target = $region16
      $region15: #{qnetwork_forward.5} parent=11 // pred_region
        _
      $region16: #{qnetwork_forward.5} parent=11 // pred_fallthru
        _
      // Predicated region
      $region17: #{qnetwork_forward.5} parent=11 // pred_check
        %p121 = pneg %p77
      $region18: #{qnetwork_forward.5} parent=11 // pred_check_branch
        %123 = sbr.rel (%p121) target = $region20
      $region19: #{qnetwork_forward.5} parent=11 // pred_region
        _
      $region20: #{qnetwork_forward.5} parent=11 // pred_fallthru
        _
    $region12: #{qnetwork_forward.5} parent=5 // pred_fallthru
      _
    %p124 = scmp.lt.s32.totalorder %s9, 2
    // Predicated region
    $region21: #{qnetwork_forward.5} parent=5 // pred_check
      %p125 = pneg %p124
    $region22: #{qnetwork_forward.5} parent=5 // pred_check_branch
      %127 = sbr.rel (%p125) target = $region24
    $region23: #{qnetwork_forward.5} parent=5 // pred_region
      // Predicated region
      $region25: #{qnetwork_forward.5} parent=23 // pred_check
        %p128 = pneg %p29
      $region26: #{qnetwork_forward.5} parent=23 // pred_check_branch
        %130 = sbr.rel (%p128) target = $region28
      $region27: #{qnetwork_forward.5} parent=23 // pred_region
        %s131 = smul.u32 32, %s9
        %p132 = scmp.lt.s32.totalorder %s131, 63
        %s133 = scalar_select %p132, %s131, 63
        %s134 = smul.addr %s133, 2
        %s135 = smul.addr %s134, 4
        %s136 = scalar_lea.vmem %s0, %s135
        %s137 = smul.u32 32, %s9
      $region28: #{qnetwork_forward.5} parent=23 // pred_fallthru
        _
    $region24: #{qnetwork_forward.5} parent=5 // pred_fallthru
      _
    %p138 = scmp.le.s32.totalorder 1, %s9
    %p139 = scmp.lt.s32.totalorder %s9, 3
    %p140 = pnand %p138, %p139
    %p141 = pneg %p140
    // Predicated region
    $region29: #{qnetwork_forward.5} parent=5 // pred_check
      _
    $region30: #{qnetwork_forward.5} parent=5 // pred_check_branch
      %143 = sbr.rel (%p140) target = $region32
    $region31: #{qnetwork_forward.5} parent=5 // pred_region
      %s144 = ssub.s32 %s9, 1
      %s145 = smul.u32 32, %s14
      %p146 = scmp.lt.s32.totalorder %s145, 63
      %s147 = scalar_select %p146, %s145, 63
      %s148 = smul.addr %s147, 2
      %s149 = smul.addr %s148, 4
      %s150 = scalar_lea.vmem %s0, %s149
      %p151 = pneg %p35
      %p152 = pneg %p32
      %p153 = pneg %p56
      %p154 = pneg %p53
      %p155 = pneg %p77
      %p156 = pneg %p74
      %p157 = pneg %p103
      %p158 = pneg %p100
      %s159 = smul.u32 32, %s14
      %p160 = scmp.lt.s32.totalorder %s159, 63
      %s161 = scalar_select %p160, %s159, 63
      %s162 = smul.addr %s161, 4
      %s163 = scalar_lea.vmem %s3, %s162
      %s164 = smul.u32 32, %s14
      %p165 = scmp.lt.s32.totalorder %s164, 63
      %s166 = scalar_select %p165, %s164, 63
      %s167 = smul.addr %s166, 2
      %s168 = smul.addr %s167, 4
      %s169 = scalar_lea.vmem %s0, %s168
      %s170 = smul.u32 32, %s14
      %s171 = smul.u32 32, %s14
      %p172 = scmp.lt.s32.totalorder %s171, 63
      %s173 = scalar_select %p172, %s171, 63
      %s174 = smul.addr %s173, 4
      %s175 = scalar_lea.vmem %s3, %s174
      %s176 = smul.u32 32, %s14
      %v178 = vld [vmem:[%s169] sm:$0xff]
      %v179 = vld [vmem:[%s169 + $0x8] sm:$0xff]
      %v180 = vld [vmem:[%s169 + $0x10] sm:$0xff]
      %v181 = vld [vmem:[%s169 + $0x18] sm:$0xff]
      %v182 = vld [vmem:[%s169 + $0x20] sm:$0xff]
      %v183 = vld [vmem:[%s169 + $0x28] sm:$0xff]
      %v184 = vld [vmem:[%s169 + $0x30] sm:$0xff]
      %v185 = vld [vmem:[%s169 + $0x38] sm:$0xff]
      %v186 = vld [vmem:[%s169 + $0x40] sm:$0xff]
      %v187 = vld [vmem:[%s169 + $0x48] sm:$0xff]
      %v188 = vld [vmem:[%s169 + $0x50] sm:$0xff]
      %v189 = vld [vmem:[%s169 + $0x58] sm:$0xff]
      %v190 = vld [vmem:[%s169 + $0x60] sm:$0xff]
      %v191 = vld [vmem:[%s169 + $0x68] sm:$0xff]
      %v192 = vld [vmem:[%s169 + $0x70] sm:$0xff]
      %v193 = vld [vmem:[%s169 + $0x78] sm:$0xff]
      %v194 = vld [vmem:[%s169 + $0x80] sm:$0xff]
      %v195 = vld [vmem:[%s169 + $0x88] sm:$0xff]
      %v196 = vld [vmem:[%s169 + $0x90] sm:$0xff]
      %v197 = vld [vmem:[%s169 + $0x98] sm:$0xff]
      %v198 = vld [vmem:[%s169 + $0xa0] sm:$0xff]
      %v199 = vld [vmem:[%s169 + $0xa8] sm:$0xff]
      %v200 = vld [vmem:[%s169 + $0xb0] sm:$0xff]
      %v201 = vld [vmem:[%s169 + $0xb8] sm:$0xff]
      %v202 = vld [vmem:[%s169 + $0xc0] sm:$0xff]
      %v203 = vld [vmem:[%s169 + $0xc8] sm:$0xff]
      %v204 = vld [vmem:[%s169 + $0xd0] sm:$0xff]
      %v205 = vld [vmem:[%s169 + $0xd8] sm:$0xff]
      %v206 = vld [vmem:[%s169 + $0xe0] sm:$0xff]
      %v207 = vld [vmem:[%s169 + $0xe8] sm:$0xff]
      %v208 = vld [vmem:[%s169 + $0xf0] sm:$0xff]
      %v209 = vld [vmem:[%s169 + $0xf8] sm:$0xff]
      %v210 = vld [vmem:[%s1] sm:$0xf]
      %v211 = vld [vmem:[%s1 + $0x4] sm:$0xf]
      %v212 = vld [vmem:[%s1 + $0x8] sm:$0xf]
      %v213 = vld [vmem:[%s1 + $0xc] sm:$0xf]
      %v214 = vld [vmem:[%s1 + $0x10] sm:$0xf]
      %v215 = vld [vmem:[%s1 + $0x14] sm:$0xf]
      %v216 = vld [vmem:[%s1 + $0x18] sm:$0xf]
      %v217 = vld [vmem:[%s1 + $0x1c] sm:$0xf]
      %v218 = vld [vmem:[%s1 + $0x20] sm:$0xf]
      %v219 = vld [vmem:[%s1 + $0x24] sm:$0xf]
      %v220 = vld [vmem:[%s1 + $0x28] sm:$0xf]
      %v221 = vld [vmem:[%s1 + $0x2c] sm:$0xf]
      %v222 = vld [vmem:[%s1 + $0x30] sm:$0xf]
      %v223 = vld [vmem:[%s1 + $0x34] sm:$0xf]
      %v224 = vld [vmem:[%s1 + $0x38] sm:$0xf]
      %v225 = vld [vmem:[%s1 + $0x3c] sm:$0xf]
      %v226 = vld [vmem:[%s1 + $0x40] sm:$0xf]
      %v227 = vld [vmem:[%s1 + $0x44] sm:$0xf]
      %v228 = vld [vmem:[%s1 + $0x48] sm:$0xf]
      %v229 = vld [vmem:[%s1 + $0x4c] sm:$0xf]
      %v230 = vld [vmem:[%s1 + $0x50] sm:$0xf]
      %v231 = vld [vmem:[%s1 + $0x54] sm:$0xf]
      %v232 = vld [vmem:[%s1 + $0x58] sm:$0xf]
      %v233 = vld [vmem:[%s1 + $0x5c] sm:$0xf]
      %v234 = vld [vmem:[%s1 + $0x60] sm:$0xf]
      %v235 = vld [vmem:[%s1 + $0x64] sm:$0xf]
      %v236 = vld [vmem:[%s1 + $0x68] sm:$0xf]
      %v237 = vld [vmem:[%s1 + $0x6c] sm:$0xf]
      %v238 = vld [vmem:[%s1 + $0x70] sm:$0xf]
      %v239 = vld [vmem:[%s1 + $0x74] sm:$0xf]
      %v240 = vld [vmem:[%s1 + $0x78] sm:$0xf]
      %v241 = vld [vmem:[%s1 + $0x7c] sm:$0xf]
      %v242 = vld [vmem:[%s2] sm:$0x1]
      %v244 = vlaneseq
      %v245 = vshrl.u32 %v244, 7
      %v246 = vsub.s32 0, %v245
      %v247 = vrot.slane %v242, %v246
      %v281 = vunpack.c.l.b16 %v178
      %v282 = vunpack.c.h.b16 %v178
      %v283 = vunpack.c.l.b16 %v179
      %v284 = vunpack.c.h.b16 %v179
      %v285 = vunpack.c.l.b16 %v180
      %v286 = vunpack.c.h.b16 %v180
      %v287 = vunpack.c.l.b16 %v181
      %v288 = vunpack.c.h.b16 %v181
      %v289 = vunpack.c.l.b16 %v182
      %v290 = vunpack.c.h.b16 %v182
      %v291 = vunpack.c.l.b16 %v183
      %v292 = vunpack.c.h.b16 %v183
      %v293 = vunpack.c.l.b16 %v184
      %v294 = vunpack.c.h.b16 %v184
      %v295 = vunpack.c.l.b16 %v185
      %v296 = vunpack.c.h.b16 %v185
      %v297 = vunpack.c.l.b16 %v186
      %v298 = vunpack.c.h.b16 %v186
      %v299 = vunpack.c.l.b16 %v187
      %v300 = vunpack.c.h.b16 %v187
      %v301 = vunpack.c.l.b16 %v188
      %v302 = vunpack.c.h.b16 %v188
      %v303 = vunpack.c.l.b16 %v189
      %v304 = vunpack.c.h.b16 %v189
      %v305 = vunpack.c.l.b16 %v190
      %v306 = vunpack.c.h.b16 %v190
      %v307 = vunpack.c.l.b16 %v191
      %v308 = vunpack.c.h.b16 %v191
      %v309 = vunpack.c.l.b16 %v192
      %v310 = vunpack.c.h.b16 %v192
      %v311 = vunpack.c.l.b16 %v193
      %v312 = vunpack.c.h.b16 %v193
      %v313 = vunpack.c.l.b16 %v194
      %v314 = vunpack.c.h.b16 %v194
      %v315 = vunpack.c.l.b16 %v195
      %v316 = vunpack.c.h.b16 %v195
      %v317 = vunpack.c.l.b16 %v196
      %v318 = vunpack.c.h.b16 %v196
      %v319 = vunpack.c.l.b16 %v197
      %v320 = vunpack.c.h.b16 %v197
      %v321 = vunpack.c.l.b16 %v198
      %v322 = vunpack.c.h.b16 %v198
      %v323 = vunpack.c.l.b16 %v199
      %v324 = vunpack.c.h.b16 %v199
      %v325 = vunpack.c.l.b16 %v200
      %v326 = vunpack.c.h.b16 %v200
      %v327 = vunpack.c.l.b16 %v201
      %v328 = vunpack.c.h.b16 %v201
      %v329 = vunpack.c.l.b16 %v202
      %v330 = vunpack.c.h.b16 %v202
      %v331 = vunpack.c.l.b16 %v203
      %v332 = vunpack.c.h.b16 %v203
      %v333 = vunpack.c.l.b16 %v204
      %v334 = vunpack.c.h.b16 %v204
      %v335 = vunpack.c.l.b16 %v205
      %v336 = vunpack.c.h.b16 %v205
      %v337 = vunpack.c.l.b16 %v206
      %v338 = vunpack.c.h.b16 %v206
      %v339 = vunpack.c.l.b16 %v207
      %v340 = vunpack.c.h.b16 %v207
      %v341 = vunpack.c.l.b16 %v208
      %v342 = vunpack.c.h.b16 %v208
      %v343 = vunpack.c.l.b16 %v209
      %v344 = vunpack.c.h.b16 %v209
      %v345 = vpack.c.b16 %v283, %v281
      %v346 = vpack.c.b16 %v284, %v282
      %v347 = vpack.c.b16 %v287, %v285
      %v348 = vpack.c.b16 %v288, %v286
      %v349 = vpack.c.b16 %v291, %v289
      %v350 = vpack.c.b16 %v292, %v290
      %v351 = vpack.c.b16 %v295, %v293
      %v352 = vpack.c.b16 %v296, %v294
      %v353 = vpack.c.b16 %v299, %v297
      %v354 = vpack.c.b16 %v300, %v298
      %v355 = vpack.c.b16 %v303, %v301
      %v356 = vpack.c.b16 %v304, %v302
      %v357 = vpack.c.b16 %v307, %v305
      %v358 = vpack.c.b16 %v308, %v306
      %v359 = vpack.c.b16 %v311, %v309
      %v360 = vpack.c.b16 %v312, %v310
      %v361 = vpack.c.b16 %v315, %v313
      %v362 = vpack.c.b16 %v316, %v314
      %v363 = vpack.c.b16 %v319, %v317
      %v364 = vpack.c.b16 %v320, %v318
      %v365 = vpack.c.b16 %v323, %v321
      %v366 = vpack.c.b16 %v324, %v322
      %v367 = vpack.c.b16 %v327, %v325
      %v368 = vpack.c.b16 %v328, %v326
      %v369 = vpack.c.b16 %v331, %v329
      %v370 = vpack.c.b16 %v332, %v330
      %v371 = vpack.c.b16 %v335, %v333
      %v372 = vpack.c.b16 %v336, %v334
      %v373 = vpack.c.b16 %v339, %v337
      %v374 = vpack.c.b16 %v340, %v338
      %v375 = vpack.c.b16 %v343, %v341
      %v376 = vpack.c.b16 %v344, %v342
      %v441 = vunpack.c.l.b16 %v210
      %v442 = vunpack.c.l.b16 %v211
      %v443 = vunpack.c.l.b16 %v212
      %v444 = vunpack.c.l.b16 %v213
      %v445 = vunpack.c.l.b16 %v214
      %v446 = vunpack.c.l.b16 %v215
      %v447 = vunpack.c.l.b16 %v216
      %v448 = vunpack.c.l.b16 %v217
      %v449 = vunpack.c.l.b16 %v218
      %v450 = vunpack.c.l.b16 %v219
      %v451 = vunpack.c.l.b16 %v220
      %v452 = vunpack.c.l.b16 %v221
      %v453 = vunpack.c.l.b16 %v222
      %v454 = vunpack.c.l.b16 %v223
      %v455 = vunpack.c.l.b16 %v224
      %v456 = vunpack.c.l.b16 %v225
      %v457 = vunpack.c.l.b16 %v226
      %v458 = vunpack.c.l.b16 %v227
      %v459 = vunpack.c.l.b16 %v228
      %v460 = vunpack.c.l.b16 %v229
      %v461 = vunpack.c.l.b16 %v230
      %v462 = vunpack.c.l.b16 %v231
      %v463 = vunpack.c.l.b16 %v232
      %v464 = vunpack.c.l.b16 %v233
      %v465 = vunpack.c.l.b16 %v234
      %v466 = vunpack.c.l.b16 %v235
      %v467 = vunpack.c.l.b16 %v236
      %v468 = vunpack.c.l.b16 %v237
      %v469 = vunpack.c.l.b16 %v238
      %v470 = vunpack.c.l.b16 %v239
      %v471 = vunpack.c.l.b16 %v240
      %v472 = vunpack.c.l.b16 %v241
      %v473 = vpack.c.b16 %v442, %v441
      %v474 = vpack.c.b16 %v444, %v443
      %v475 = vpack.c.b16 %v446, %v445
      %v476 = vpack.c.b16 %v448, %v447
      %v477 = vpack.c.b16 %v450, %v449
      %v478 = vpack.c.b16 %v452, %v451
      %v479 = vpack.c.b16 %v454, %v453
      %v480 = vpack.c.b16 %v456, %v455
      %v481 = vpack.c.b16 %v458, %v457
      %v482 = vpack.c.b16 %v460, %v459
      %v483 = vpack.c.b16 %v462, %v461
      %v484 = vpack.c.b16 %v464, %v463
      %v485 = vpack.c.b16 %v466, %v465
      %v486 = vpack.c.b16 %v468, %v467
      %v487 = vpack.c.b16 %v470, %v469
      %v488 = vpack.c.b16 %v472, %v471
      %505 = vmatprep.subr.bf16.mxu0 0
      %506 = vmatpush1.bf16.msra.mxu0 %v480
      %507 = vmatprep.subr.bf16.mxu0 0
      %508 = vmatpush1.bf16.msra.mxu0 %v479
      %509 = vmatprep.subr.bf16.mxu0 0
      %510 = vmatpush1.bf16.msra.mxu0 %v478
      %511 = vmatprep.subr.bf16.mxu0 0
      %512 = vmatpush1.bf16.msra.mxu0 %v477
      %513 = vmatprep.subr.bf16.mxu0 0
      %514 = vmatpush1.bf16.msra.mxu0 %v476
      %515 = vmatprep.subr.bf16.mxu0 0
      %516 = vmatpush1.bf16.msra.mxu0 %v475
      %517 = vmatprep.subr.bf16.mxu0 0
      %518 = vmatpush1.bf16.msra.mxu0 %v474
      %519 = vmatprep.subr.bf16.mxu0 0
      %520 = vmatpush1.bf16.msra.mxu0 %v473
      %521 = vmatprep.subr.bf16.mxu0 0
      %522 = vmatpush2.bf16.msra.mxu0 %v488
      %523 = vmatprep.subr.bf16.mxu0 0
      %524 = vmatpush2.bf16.msra.mxu0 %v487
      %525 = vmatprep.subr.bf16.mxu0 0
      %526 = vmatpush2.bf16.msra.mxu0 %v486
      %527 = vmatprep.subr.bf16.mxu0 0
      %528 = vmatpush2.bf16.msra.mxu0 %v485
      %529 = vmatprep.subr.bf16.mxu0 0
      %530 = vmatpush2.bf16.msra.mxu0 %v484
      %531 = vmatprep.subr.bf16.mxu0 0
      %532 = vmatpush2.bf16.msra.mxu0 %v483
      %533 = vmatprep.subr.bf16.mxu0 0
      %534 = vmatpush2.bf16.msra.mxu0 %v482
      %535 = vmatprep.subr.bf16.mxu0 0
      %536 = vmatpush2.bf16.msra.mxu0 %v481
      %537 = vmatprep.mubr.bf16.mxu0 %v346
      %538 = vmatmul.mubr.bf16.gmra.mxu0 %v345
      %v539 = vpop.f32.mrf.mxu0
      %v540 = vadd.f32 %v247, %v539
      %v541 = vpop.f32.mrf.mxu0
      %v542 = vpop.f32.mrf.mxu0
      %v543 = vadd.f32 %v247, %v542
      %v544 = vpop.f32.mrf.mxu0
      %545 = vmatprep.mubr.bf16.mxu0 %v348
      %546 = vmatmul.mubr.bf16.gmra.mxu0 %v347
      %v547 = vpop.f32.mrf.mxu0
      %v548 = vadd.f32 %v247, %v547
      %v549 = vpop.f32.mrf.mxu0
      %v550 = vpop.f32.mrf.mxu0
      %v551 = vadd.f32 %v247, %v550
      %v552 = vpop.f32.mrf.mxu0
      %553 = vmatprep.mubr.bf16.mxu0 %v350
      %554 = vmatmul.mubr.bf16.gmra.mxu0 %v349
      %v555 = vpop.f32.mrf.mxu0
      %v556 = vadd.f32 %v247, %v555
      %v557 = vpop.f32.mrf.mxu0
      %v558 = vpop.f32.mrf.mxu0
      %v559 = vadd.f32 %v247, %v558
      %v560 = vpop.f32.mrf.mxu0
      %561 = vmatprep.mubr.bf16.mxu0 %v352
      %562 = vmatmul.mubr.bf16.gmra.mxu0 %v351
      %v563 = vpop.f32.mrf.mxu0
      %v564 = vadd.f32 %v247, %v563
      %v565 = vpop.f32.mrf.mxu0
      %v566 = vpop.f32.mrf.mxu0
      %v567 = vadd.f32 %v247, %v566
      %v568 = vpop.f32.mrf.mxu0
      %569 = vmatprep.mubr.bf16.mxu0 %v354
      %570 = vmatmul.mubr.bf16.gmra.mxu0 %v353
      %v571 = vpop.f32.mrf.mxu0
      %v572 = vadd.f32 %v247, %v571
      %v573 = vpop.f32.mrf.mxu0
      %v574 = vpop.f32.mrf.mxu0
      %v575 = vadd.f32 %v247, %v574
      %v576 = vpop.f32.mrf.mxu0
      %577 = vmatprep.mubr.bf16.mxu0 %v356
      %578 = vmatmul.mubr.bf16.gmra.mxu0 %v355
      %v579 = vpop.f32.mrf.mxu0
      %v580 = vadd.f32 %v247, %v579
      %v581 = vpop.f32.mrf.mxu0
      %v582 = vpop.f32.mrf.mxu0
      %v583 = vadd.f32 %v247, %v582
      %v584 = vpop.f32.mrf.mxu0
      %585 = vmatprep.mubr.bf16.mxu0 %v358
      %586 = vmatmul.mubr.bf16.gmra.mxu0 %v357
      %v587 = vpop.f32.mrf.mxu0
      %v588 = vadd.f32 %v247, %v587
      %v589 = vpop.f32.mrf.mxu0
      %v590 = vpop.f32.mrf.mxu0
      %v591 = vadd.f32 %v247, %v590
      %v592 = vpop.f32.mrf.mxu0
      %593 = vmatprep.mubr.bf16.mxu0 %v360
      %594 = vmatmul.mubr.bf16.gmra.mxu0 %v359
      %v595 = vpop.f32.mrf.mxu0
      %v596 = vadd.f32 %v247, %v595
      %v597 = vpop.f32.mrf.mxu0
      %v598 = vpop.f32.mrf.mxu0
      %v599 = vadd.f32 %v247, %v598
      %v600 = vpop.f32.mrf.mxu0
      %601 = vmatprep.mubr.bf16.mxu0 %v362
      %602 = vmatmul.mubr.bf16.gmra.mxu0 %v361
      %v603 = vpop.f32.mrf.mxu0
      %v604 = vadd.f32 %v247, %v603
      %v605 = vpop.f32.mrf.mxu0
      %v606 = vpop.f32.mrf.mxu0
      %v607 = vadd.f32 %v247, %v606
      %v608 = vpop.f32.mrf.mxu0
      %609 = vmatprep.mubr.bf16.mxu0 %v364
      %610 = vmatmul.mubr.bf16.gmra.mxu0 %v363
      %v611 = vpop.f32.mrf.mxu0
      %v612 = vadd.f32 %v247, %v611
      %v613 = vpop.f32.mrf.mxu0
      %v614 = vpop.f32.mrf.mxu0
      %v615 = vadd.f32 %v247, %v614
      %v616 = vpop.f32.mrf.mxu0
      %617 = vmatprep.mubr.bf16.mxu0 %v366
      %618 = vmatmul.mubr.bf16.gmra.mxu0 %v365
      %v619 = vpop.f32.mrf.mxu0
      %v620 = vadd.f32 %v247, %v619
      %v621 = vpop.f32.mrf.mxu0
      %v622 = vpop.f32.mrf.mxu0
      %v623 = vadd.f32 %v247, %v622
      %v624 = vpop.f32.mrf.mxu0
      %625 = vmatprep.mubr.bf16.mxu0 %v368
      %626 = vmatmul.mubr.bf16.gmra.mxu0 %v367
      %v627 = vpop.f32.mrf.mxu0
      %v628 = vadd.f32 %v247, %v627
      %v629 = vpop.f32.mrf.mxu0
      %v630 = vpop.f32.mrf.mxu0
      %v631 = vadd.f32 %v247, %v630
      %v632 = vpop.f32.mrf.mxu0
      %633 = vmatprep.mubr.bf16.mxu0 %v370
      %634 = vmatmul.mubr.bf16.gmra.mxu0 %v369
      %v635 = vpop.f32.mrf.mxu0
      %v636 = vadd.f32 %v247, %v635
      %v637 = vpop.f32.mrf.mxu0
      %v638 = vpop.f32.mrf.mxu0
      %v639 = vadd.f32 %v247, %v638
      %v640 = vpop.f32.mrf.mxu0
      %641 = vmatprep.mubr.bf16.mxu0 %v372
      %642 = vmatmul.mubr.bf16.gmra.mxu0 %v371
      %v643 = vpop.f32.mrf.mxu0
      %v644 = vadd.f32 %v247, %v643
      %v645 = vpop.f32.mrf.mxu0
      %v646 = vpop.f32.mrf.mxu0
      %v647 = vadd.f32 %v247, %v646
      %v648 = vpop.f32.mrf.mxu0
      %649 = vmatprep.mubr.bf16.mxu0 %v374
      %650 = vmatmul.mubr.bf16.gmra.mxu0 %v373
      %v651 = vpop.f32.mrf.mxu0
      %v652 = vadd.f32 %v247, %v651
      %v653 = vpop.f32.mrf.mxu0
      %v654 = vpop.f32.mrf.mxu0
      %v655 = vadd.f32 %v247, %v654
      %v656 = vpop.f32.mrf.mxu0
      %657 = vmatprep.mubr.bf16.mxu0 %v376
      %658 = vmatmul.mubr.bf16.gmra.mxu0 %v375
      %v659 = vpop.f32.mrf.mxu0
      %v660 = vadd.f32 %v247, %v659
      %v661 = vpop.f32.mrf.mxu0
      %v662 = vpop.f32.mrf.mxu0
      %v663 = vadd.f32 %v247, %v662
      %v664 = vpop.f32.mrf.mxu0
      %665 = vdwg.mxu0
      %v666 = vmax.f32 %v540, 0.0
      %v667 = vmax.f32 %v543, 0.0
      %v668 = vmax.f32 %v548, 0.0
      %v669 = vmax.f32 %v551, 0.0
      %v670 = vmax.f32 %v556, 0.0
      %v671 = vmax.f32 %v559, 0.0
      %v672 = vmax.f32 %v564, 0.0
      %v673 = vmax.f32 %v567, 0.0
      %v674 = vmax.f32 %v572, 0.0
      %v675 = vmax.f32 %v575, 0.0
      %v676 = vmax.f32 %v580, 0.0
      %v677 = vmax.f32 %v583, 0.0
      %v678 = vmax.f32 %v588, 0.0
      %v679 = vmax.f32 %v591, 0.0
      %v680 = vmax.f32 %v596, 0.0
      %v681 = vmax.f32 %v599, 0.0
      %v682 = vmax.f32 %v604, 0.0
      %v683 = vmax.f32 %v607, 0.0
      %v684 = vmax.f32 %v612, 0.0
      %v685 = vmax.f32 %v615, 0.0
      %v686 = vmax.f32 %v620, 0.0
      %v687 = vmax.f32 %v623, 0.0
      %v688 = vmax.f32 %v628, 0.0
      %v689 = vmax.f32 %v631, 0.0
      %v690 = vmax.f32 %v636, 0.0
      %v691 = vmax.f32 %v639, 0.0
      %v692 = vmax.f32 %v644, 0.0
      %v693 = vmax.f32 %v647, 0.0
      %v694 = vmax.f32 %v652, 0.0
      %v695 = vmax.f32 %v655, 0.0
      %v696 = vmax.f32 %v660, 0.0
      %v697 = vmax.f32 %v663, 0.0
      %v698 = vpack.c.bf16 %v667, %v666
      %v699 = vpack.c.bf16 %v669, %v668
      %v700 = vpack.c.bf16 %v671, %v670
      %v701 = vpack.c.bf16 %v673, %v672
      %v702 = vpack.c.bf16 %v675, %v674
      %v703 = vpack.c.bf16 %v677, %v676
      %v704 = vpack.c.bf16 %v679, %v678
      %v705 = vpack.c.bf16 %v681, %v680
      %v706 = vpack.c.bf16 %v683, %v682
      %v707 = vpack.c.bf16 %v685, %v684
      %v708 = vpack.c.bf16 %v687, %v686
      %v709 = vpack.c.bf16 %v689, %v688
      %v710 = vpack.c.bf16 %v691, %v690
      %v711 = vpack.c.bf16 %v693, %v692
      %v712 = vpack.c.bf16 %v695, %v694
      %v713 = vpack.c.bf16 %v697, %v696
      %v730 = vunpack.c.l.b16 %v698
      %v731 = vunpack.c.h.b16 %v698
      %v732 = vunpack.c.l.b16 %v699
      %v733 = vunpack.c.h.b16 %v699
      %v734 = vunpack.c.l.b16 %v700
      %v735 = vunpack.c.h.b16 %v700
      %v736 = vunpack.c.l.b16 %v701
      %v737 = vunpack.c.h.b16 %v701
      %v738 = vunpack.c.l.b16 %v702
      %v739 = vunpack.c.h.b16 %v702
      %v740 = vunpack.c.l.b16 %v703
      %v741 = vunpack.c.h.b16 %v703
      %v742 = vunpack.c.l.b16 %v704
      %v743 = vunpack.c.h.b16 %v704
      %v744 = vunpack.c.l.b16 %v705
      %v745 = vunpack.c.h.b16 %v705
      %v746 = vunpack.c.l.b16 %v706
      %v747 = vunpack.c.h.b16 %v706
      %v748 = vunpack.c.l.b16 %v707
      %v749 = vunpack.c.h.b16 %v707
      %v750 = vunpack.c.l.b16 %v708
      %v751 = vunpack.c.h.b16 %v708
      %v752 = vunpack.c.l.b16 %v709
      %v753 = vunpack.c.h.b16 %v709
      %v754 = vunpack.c.l.b16 %v710
      %v755 = vunpack.c.h.b16 %v710
      %v756 = vunpack.c.l.b16 %v711
      %v757 = vunpack.c.h.b16 %v711
      %v758 = vunpack.c.l.b16 %v712
      %v759 = vunpack.c.h.b16 %v712
      %v760 = vunpack.c.l.b16 %v713
      %v761 = vunpack.c.h.b16 %v713
      %v762 = vpack.c.b16 %v730, %v730
      %v763 = vpack.c.b16 %v731, %v731
      %v764 = vpack.c.b16 %v732, %v732
      %v765 = vpack.c.b16 %v733, %v733
      %v766 = vpack.c.b16 %v734, %v734
      %v767 = vpack.c.b16 %v735, %v735
      %v768 = vpack.c.b16 %v736, %v736
      %v769 = vpack.c.b16 %v737, %v737
      %v770 = vpack.c.b16 %v738, %v738
      %v771 = vpack.c.b16 %v739, %v739
      %v772 = vpack.c.b16 %v740, %v740
      %v773 = vpack.c.b16 %v741, %v741
      %v774 = vpack.c.b16 %v742, %v742
      %v775 = vpack.c.b16 %v743, %v743
      %v776 = vpack.c.b16 %v744, %v744
      %v777 = vpack.c.b16 %v745, %v745
      %v778 = vpack.c.b16 %v746, %v746
      %v779 = vpack.c.b16 %v747, %v747
      %v780 = vpack.c.b16 %v748, %v748
      %v781 = vpack.c.b16 %v749, %v749
      %v782 = vpack.c.b16 %v750, %v750
      %v783 = vpack.c.b16 %v751, %v751
      %v784 = vpack.c.b16 %v752, %v752
      %v785 = vpack.c.b16 %v753, %v753
      %v786 = vpack.c.b16 %v754, %v754
      %v787 = vpack.c.b16 %v755, %v755
      %v788 = vpack.c.b16 %v756, %v756
      %v789 = vpack.c.b16 %v757, %v757
      %v790 = vpack.c.b16 %v758, %v758
      %v791 = vpack.c.b16 %v759, %v759
      %v792 = vpack.c.b16 %v760, %v760
      %v793 = vpack.c.b16 %v761, %v761
      %vm826 = vcmask 257024
      %827 = vst.msk [vmem:[%s175] sm:$0xf] %vm826, %v762
      %828 = vst.msk [vmem:[%s175 + $0x4] sm:$0xf] %vm826, %v763
      %829 = vst.msk [vmem:[%s175 + $0x8] sm:$0xf] %vm826, %v764
      %830 = vst.msk [vmem:[%s175 + $0xc] sm:$0xf] %vm826, %v765
      %831 = vst.msk [vmem:[%s175 + $0x10] sm:$0xf] %vm826, %v766
      %832 = vst.msk [vmem:[%s175 + $0x14] sm:$0xf] %vm826, %v767
      %833 = vst.msk [vmem:[%s175 + $0x18] sm:$0xf] %vm826, %v768
      %834 = vst.msk [vmem:[%s175 + $0x1c] sm:$0xf] %vm826, %v769
      %835 = vst.msk [vmem:[%s175 + $0x20] sm:$0xf] %vm826, %v770
      %836 = vst.msk [vmem:[%s175 + $0x24] sm:$0xf] %vm826, %v771
      %837 = vst.msk [vmem:[%s175 + $0x28] sm:$0xf] %vm826, %v772
      %838 = vst.msk [vmem:[%s175 + $0x2c] sm:$0xf] %vm826, %v773
      %839 = vst.msk [vmem:[%s175 + $0x30] sm:$0xf] %vm826, %v774
      %840 = vst.msk [vmem:[%s175 + $0x34] sm:$0xf] %vm826, %v775
      %841 = vst.msk [vmem:[%s175 + $0x38] sm:$0xf] %vm826, %v776
      %842 = vst.msk [vmem:[%s175 + $0x3c] sm:$0xf] %vm826, %v777
      %843 = vst.msk [vmem:[%s175 + $0x40] sm:$0xf] %vm826, %v778
      %844 = vst.msk [vmem:[%s175 + $0x44] sm:$0xf] %vm826, %v779
      %845 = vst.msk [vmem:[%s175 + $0x48] sm:$0xf] %vm826, %v780
      %846 = vst.msk [vmem:[%s175 + $0x4c] sm:$0xf] %vm826, %v781
      %847 = vst.msk [vmem:[%s175 + $0x50] sm:$0xf] %vm826, %v782
      %848 = vst.msk [vmem:[%s175 + $0x54] sm:$0xf] %vm826, %v783
      %849 = vst.msk [vmem:[%s175 + $0x58] sm:$0xf] %vm826, %v784
      %850 = vst.msk [vmem:[%s175 + $0x5c] sm:$0xf] %vm826, %v785
      %851 = vst.msk [vmem:[%s175 + $0x60] sm:$0xf] %vm826, %v786
      %852 = vst.msk [vmem:[%s175 + $0x64] sm:$0xf] %vm826, %v787
      %853 = vst.msk [vmem:[%s175 + $0x68] sm:$0xf] %vm826, %v788
      %854 = vst.msk [vmem:[%s175 + $0x6c] sm:$0xf] %vm826, %v789
      %855 = vst.msk [vmem:[%s175 + $0x70] sm:$0xf] %vm826, %v790
      %856 = vst.msk [vmem:[%s175 + $0x74] sm:$0xf] %vm826, %v791
      %857 = vst.msk [vmem:[%s175 + $0x78] sm:$0xf] %vm826, %v792
      %858 = vst.msk [vmem:[%s175 + $0x7c] sm:$0xf] %vm826, %v793
      %s859 = smul.u32 32, %s14
      %p860 = scmp.lt.s32.totalorder %s859, 63
      %s861 = scalar_select %p860, %s859, 63
      %s862 = smul.addr %s861, 4
      %s863 = scalar_lea.vmem %s3, %s862
      // Predicated region
      $region33: #{qnetwork_forward.5} parent=31 // pred_check
        %p864 = pneg %p100
      $region34: #{qnetwork_forward.5} parent=31 // pred_check_branch
        %866 = sbr.rel (%p864) target = $region36
      $region35: #{qnetwork_forward.5} parent=31 // pred_region
        %s867 = smul.u32 32, %s14
      $region36: #{qnetwork_forward.5} parent=31 // pred_fallthru
        _
    $region32: #{qnetwork_forward.5} parent=5 // pred_fallthru
      _
    %p868 = scmp.le.s32.totalorder 2, %s9
    // Predicated region
    $region37: #{qnetwork_forward.5} parent=5 // pred_check
      %p869 = pneg %p868
    $region38: #{qnetwork_forward.5} parent=5 // pred_check_branch
      %871 = sbr.rel (%p869) target = $region40
    $region39: #{qnetwork_forward.5} parent=5 // pred_region
      %s872 = ssub.s32 %s9, 2
      // Predicated region
      $region41: #{qnetwork_forward.5} parent=39 // pred_check
        %p873 = pneg %p106
      $region42: #{qnetwork_forward.5} parent=39 // pred_check_branch
        %875 = sbr.rel (%p873) target = $region44
      $region43: #{qnetwork_forward.5} parent=39 // pred_region
        %s876 = smul.u32 32, %s15
        %p877 = scmp.lt.s32.totalorder %s876, 63
        %s878 = scalar_select %p877, %s876, 63
        %s879 = smul.addr %s878, 4
        %s880 = scalar_lea.vmem %s3, %s879
      $region44: #{qnetwork_forward.5} parent=39 // pred_fallthru
        _
    $region40: #{qnetwork_forward.5} parent=5 // pred_fallthru
      _
  $region6: #{qnetwork_forward.5} parent=0 // loop_footer
    %s13 = sadd.s32 1, %s9
  $region7: #{qnetwork_forward.5} parent=0 // loop_footer_branch
    %8 = sbr.rel target = $region3
  $region8: #{qnetwork_forward.5} parent=0 // loop_exit
    _

// kernel: qnetwork_forward.6
$region0: #{qnetwork_forward.6}
  #allocation0 [shape = 'u32[]', space=smem, size = 0x4, offset = 0x4, fixed_abs, tag = 'smem constant byte address 0x4 - core index']
  #allocation1 [shape = 'u32[144,128]{1,0:T(1,128)}', space=vmem, size = 0x12000, scoped, tag = 'internal scratch']
  %s0 = inlined_call_operand.vmem [shape: bf16[56,1152], index: 0, kind: input, shape index: {}]
  %s1 = inlined_call_operand.vmem [shape: bf16[1152,64], index: 1, kind: input, shape index: {}]
  %s2 = inlined_call_operand.vmem [shape: f32[1,64], index: 2, kind: input, shape index: {}]
  %s3 = inlined_call_operand.vmem [shape: bf16[56,64], index: 3, kind: output, shape index: {}]
  %s4 = sld [smem:[#allocation0]]
  $region22: #{qnetwork_forward.6} parent=0
    _
  %s6 = ssub.s32 1, %s4
  %s7 = scalar_select 0, %s6, %s4
  // Predicated region
  $region2: #{qnetwork_forward.6} parent=0 // pred_check
    _
  $region3: #{qnetwork_forward.6} parent=0 // pred_check_branch
    %9 = sbr.rel (0) target = $region5
  $region4: #{qnetwork_forward.6} parent=0 // pred_region
    _
  $region5: #{qnetwork_forward.6} parent=0 // pred_fallthru
    _
  // Predicated region
  $region6: #{qnetwork_forward.6} parent=0 // pred_check
    _
  $region7: #{qnetwork_forward.6} parent=0 // pred_check_branch
    %11 = sbr.rel (0) target = $region9
  $region8: #{qnetwork_forward.6} parent=0 // pred_region
    _
  $region9: #{qnetwork_forward.6} parent=0 // pred_fallthru
    _
  // Predicated region
  $region10: #{qnetwork_forward.6} parent=0 // pred_check
    _
  $region11: #{qnetwork_forward.6} parent=0 // pred_check_branch
    %13 = sbr.rel (0) target = $region13
  $region12: #{qnetwork_forward.6} parent=0 // pred_region
    _
  $region13: #{qnetwork_forward.6} parent=0 // pred_fallthru
    _
  %v15 = vld [vmem:[%s0] sm:$0xff]
  %v16 = vld [vmem:[%s0 + $0x8] sm:$0xff]
  %v17 = vld [vmem:[%s0 + $0x10] sm:$0xff]
  %v18 = vld [vmem:[%s0 + $0x18] sm:$0xff]
  %v19 = vld [vmem:[%s0 + $0x20] sm:$0xf]
  %v20 = vld [vmem:[%s0 + $0x24] sm:$0xff]
  %v21 = vld [vmem:[%s0 + $0x2c] sm:$0xff]
  %v22 = vld [vmem:[%s0 + $0x34] sm:$0xff]
  %v23 = vld [vmem:[%s0 + $0x3c] sm:$0xff]
  %v24 = vld [vmem:[%s0 + $0x44] sm:$0xf]
  %v25 = vld [vmem:[%s0 + $0x48] sm:$0xff]
  %v26 = vld [vmem:[%s0 + $0x50] sm:$0xff]
  %v27 = vld [vmem:[%s0 + $0x58] sm:$0xff]
  %v28 = vld [vmem:[%s0 + $0x60] sm:$0xff]
  %v29 = vld [vmem:[%s0 + $0x68] sm:$0xf]
  %v30 = vld [vmem:[%s0 + $0x6c] sm:$0xff]
  %v31 = vld [vmem:[%s0 + $0x74] sm:$0xff]
  %v32 = vld [vmem:[%s0 + $0x7c] sm:$0xff]
  %v33 = vld [vmem:[%s0 + $0x84] sm:$0xff]
  %v34 = vld [vmem:[%s0 + $0x8c] sm:$0xf]
  %v35 = vld [vmem:[%s0 + $0x90] sm:$0xff]
  %v36 = vld [vmem:[%s0 + $0x98] sm:$0xff]
  %v37 = vld [vmem:[%s0 + $0xa0] sm:$0xff]
  %v38 = vld [vmem:[%s0 + $0xa8] sm:$0xff]
  %v39 = vld [vmem:[%s0 + $0xb0] sm:$0xf]
  %v40 = vld [vmem:[%s0 + $0xb4] sm:$0xff]
  %v41 = vld [vmem:[%s0 + $0xbc] sm:$0xff]
  %v42 = vld [vmem:[%s0 + $0xc4] sm:$0xff]
  %v43 = vld [vmem:[%s0 + $0xcc] sm:$0xff]
  %v44 = vld [vmem:[%s0 + $0xd4] sm:$0xf]
  %v45 = vld [vmem:[%s0 + $0xd8] sm:$0xff]
  %v46 = vld [vmem:[%s0 + $0xe0] sm:$0xff]
  %v47 = vld [vmem:[%s0 + $0xe8] sm:$0xff]
  %v48 = vld [vmem:[%s0 + $0xf0] sm:$0xff]
  %v49 = vld [vmem:[%s0 + $0xf8] sm:$0xf]
  %v50 = vld [vmem:[%s1] sm:$0xf]
  %v51 = vld [vmem:[%s1 + $0x4] sm:$0xf]
  %v52 = vld [vmem:[%s1 + $0x8] sm:$0xf]
  %v53 = vld [vmem:[%s1 + $0xc] sm:$0xf]
  %v54 = vld [vmem:[%s1 + $0x10] sm:$0xf]
  %v55 = vld [vmem:[%s1 + $0x14] sm:$0xf]
  %v56 = vld [vmem:[%s1 + $0x18] sm:$0xf]
  %v57 = vld [vmem:[%s1 + $0x1c] sm:$0xf]
  %v58 = vld [vmem:[%s1 + $0x20] sm:$0xf]
  %v59 = vld [vmem:[%s1 + $0x24] sm:$0xf]
  %v60 = vld [vmem:[%s1 + $0x28] sm:$0xf]
  %v61 = vld [vmem:[%s1 + $0x2c] sm:$0xf]
  %v62 = vld [vmem:[%s1 + $0x30] sm:$0xf]
  %v63 = vld [vmem:[%s1 + $0x34] sm:$0xf]
  %v64 = vld [vmem:[%s1 + $0x38] sm:$0xf]
  %v65 = vld [vmem:[%s1 + $0x3c] sm:$0xf]
  %v66 = vld [vmem:[%s1 + $0x40] sm:$0xf]
  %v67 = vld [vmem:[%s1 + $0x44] sm:$0xf]
  %v68 = vld [vmem:[%s1 + $0x48] sm:$0xf]
  %v69 = vld [vmem:[%s1 + $0x4c] sm:$0xf]
  %v70 = vld [vmem:[%s1 + $0x50] sm:$0xf]
  %v71 = vld [vmem:[%s1 + $0x54] sm:$0xf]
  %v72 = vld [vmem:[%s1 + $0x58] sm:$0xf]
  %v73 = vld [vmem:[%s1 + $0x5c] sm:$0xf]
  %v74 = vld [vmem:[%s1 + $0x60] sm:$0xf]
  %v75 = vld [vmem:[%s1 + $0x64] sm:$0xf]
  %v76 = vld [vmem:[%s1 + $0x68] sm:$0xf]
  %v77 = vld [vmem:[%s1 + $0x6c] sm:$0xf]
  %v78 = vld [vmem:[%s1 + $0x70] sm:$0xf]
  %v79 = vld [vmem:[%s1 + $0x74] sm:$0xf]
  %v80 = vld [vmem:[%s1 + $0x78] sm:$0xf]
  %v81 = vld [vmem:[%s1 + $0x7c] sm:$0xf]
  %v82 = vld [vmem:[%s1 + $0x80] sm:$0xf]
  %v83 = vld [vmem:[%s1 + $0x84] sm:$0xf]
  %v84 = vld [vmem:[%s1 + $0x88] sm:$0xf]
  %v85 = vld [vmem:[%s1 + $0x8c] sm:$0xf]
  %v86 = vld [vmem:[%s1 + $0x90] sm:$0xf]
  %v87 = vld [vmem:[%s1 + $0x94] sm:$0xf]
  %v88 = vld [vmem:[%s1 + $0x98] sm:$0xf]
  %v89 = vld [vmem:[%s1 + $0x9c] sm:$0xf]
  %v90 = vld [vmem:[%s1 + $0xa0] sm:$0xf]
  %v91 = vld [vmem:[%s1 + $0xa4] sm:$0xf]
  %v92 = vld [vmem:[%s1 + $0xa8] sm:$0xf]
  %v93 = vld [vmem:[%s1 + $0xac] sm:$0xf]
  %v94 = vld [vmem:[%s1 + $0xb0] sm:$0xf]
  %v95 = vld [vmem:[%s1 + $0xb4] sm:$0xf]
  %v96 = vld [vmem:[%s1 + $0xb8] sm:$0xf]
  %v97 = vld [vmem:[%s1 + $0xbc] sm:$0xf]
  %v98 = vld [vmem:[%s1 + $0xc0] sm:$0xf]
  %v99 = vld [vmem:[%s1 + $0xc4] sm:$0xf]
  %v100 = vld [vmem:[%s1 + $0xc8] sm:$0xf]
  %v101 = vld [vmem:[%s1 + $0xcc] sm:$0xf]
  %v102 = vld [vmem:[%s1 + $0xd0] sm:$0xf]
  %v103 = vld [vmem:[%s1 + $0xd4] sm:$0xf]
  %v104 = vld [vmem:[%s1 + $0xd8] sm:$0xf]
  %v105 = vld [vmem:[%s1 + $0xdc] sm:$0xf]
  %v106 = vld [vmem:[%s1 + $0xe0] sm:$0xf]
  %v107 = vld [vmem:[%s1 + $0xe4] sm:$0xf]
  %v108 = vld [vmem:[%s1 + $0xe8] sm:$0xf]
  %v109 = vld [vmem:[%s1 + $0xec] sm:$0xf]
  %v110 = vld [vmem:[%s1 + $0xf0] sm:$0xf]
  %v111 = vld [vmem:[%s1 + $0xf4] sm:$0xf]
  %v112 = vld [vmem:[%s1 + $0xf8] sm:$0xf]
  %v113 = vld [vmem:[%s1 + $0xfc] sm:$0xf]
  %v114 = vld [vmem:[%s1 + $0x100] sm:$0xf]
  %v115 = vld [vmem:[%s1 + $0x104] sm:$0xf]
  %v116 = vld [vmem:[%s1 + $0x108] sm:$0xf]
  %v117 = vld [vmem:[%s1 + $0x10c] sm:$0xf]
  %v118 = vld [vmem:[%s1 + $0x110] sm:$0xf]
  %v119 = vld [vmem:[%s1 + $0x114] sm:$0xf]
  %v120 = vld [vmem:[%s1 + $0x118] sm:$0xf]
  %v121 = vld [vmem:[%s1 + $0x11c] sm:$0xf]
  %v122 = vld [vmem:[%s1 + $0x120] sm:$0xf]
  %v123 = vld [vmem:[%s1 + $0x124] sm:$0xf]
  %v124 = vld [vmem:[%s1 + $0x128] sm:$0xf]
  %v125 = vld [vmem:[%s1 + $0x12c] sm:$0xf]
  %v126 = vld [vmem:[%s1 + $0x130] sm:$0xf]
  %v127 = vld [vmem:[%s1 + $0x134] sm:$0xf]
  %v128 = vld [vmem:[%s1 + $0x138] sm:$0xf]
  %v129 = vld [vmem:[%s1 + $0x13c] sm:$0xf]
  %v130 = vld [vmem:[%s1 + $0x140] sm:$0xf]
  %v131 = vld [vmem:[%s1 + $0x144] sm:$0xf]
  %v132 = vld [vmem:[%s1 + $0x148] sm:$0xf]
  %v133 = vld [vmem:[%s1 + $0x14c] sm:$0xf]
  %v134 = vld [vmem:[%s1 + $0x150] sm:$0xf]
  %v135 = vld [vmem:[%s1 + $0x154] sm:$0xf]
  %v136 = vld [vmem:[%s1 + $0x158] sm:$0xf]
  %v137 = vld [vmem:[%s1 + $0x15c] sm:$0xf]
  %v138 = vld [vmem:[%s1 + $0x160] sm:$0xf]
  %v139 = vld [vmem:[%s1 + $0x164] sm:$0xf]
  %v140 = vld [vmem:[%s1 + $0x168] sm:$0xf]
  %v141 = vld [vmem:[%s1 + $0x16c] sm:$0xf]
  %v142 = vld [vmem:[%s1 + $0x170] sm:$0xf]
  %v143 = vld [vmem:[%s1 + $0x174] sm:$0xf]
  %v144 = vld [vmem:[%s1 + $0x178] sm:$0xf]
  %v145 = vld [vmem:[%s1 + $0x17c] sm:$0xf]
  %v146 = vld [vmem:[%s1 + $0x180] sm:$0xf]
  %v147 = vld [vmem:[%s1 + $0x184] sm:$0xf]
  %v148 = vld [vmem:[%s1 + $0x188] sm:$0xf]
  %v149 = vld [vmem:[%s1 + $0x18c] sm:$0xf]
  %v150 = vld [vmem:[%s1 + $0x190] sm:$0xf]
  %v151 = vld [vmem:[%s1 + $0x194] sm:$0xf]
  %v152 = vld [vmem:[%s1 + $0x198] sm:$0xf]
  %v153 = vld [vmem:[%s1 + $0x19c] sm:$0xf]
  %v154 = vld [vmem:[%s1 + $0x1a0] sm:$0xf]
  %v155 = vld [vmem:[%s1 + $0x1a4] sm:$0xf]
  %v156 = vld [vmem:[%s1 + $0x1a8] sm:$0xf]
  %v157 = vld [vmem:[%s1 + $0x1ac] sm:$0xf]
  %v158 = vld [vmem:[%s1 + $0x1b0] sm:$0xf]
  %v159 = vld [vmem:[%s1 + $0x1b4] sm:$0xf]
  %v160 = vld [vmem:[%s1 + $0x1b8] sm:$0xf]
  %v161 = vld [vmem:[%s1 + $0x1bc] sm:$0xf]
  %v162 = vld [vmem:[%s1 + $0x1c0] sm:$0xf]
  %v163 = vld [vmem:[%s1 + $0x1c4] sm:$0xf]
  %v164 = vld [vmem:[%s1 + $0x1c8] sm:$0xf]
  %v165 = vld [vmem:[%s1 + $0x1cc] sm:$0xf]
  %v166 = vld [vmem:[%s1 + $0x1d0] sm:$0xf]
  %v167 = vld [vmem:[%s1 + $0x1d4] sm:$0xf]
  %v168 = vld [vmem:[%s1 + $0x1d8] sm:$0xf]
  %v169 = vld [vmem:[%s1 + $0x1dc] sm:$0xf]
  %v170 = vld [vmem:[%s1 + $0x1e0] sm:$0xf]
  %v171 = vld [vmem:[%s1 + $0x1e4] sm:$0xf]
  %v172 = vld [vmem:[%s1 + $0x1e8] sm:$0xf]
  %v173 = vld [vmem:[%s1 + $0x1ec] sm:$0xf]
  %v174 = vld [vmem:[%s1 + $0x1f0] sm:$0xf]
  %v175 = vld [vmem:[%s1 + $0x1f4] sm:$0xf]
  %v176 = vld [vmem:[%s1 + $0x1f8] sm:$0xf]
  %v177 = vld [vmem:[%s1 + $0x1fc] sm:$0xf]
  %v178 = vld [vmem:[%s1 + $0x200] sm:$0xf]
  %v179 = vld [vmem:[%s1 + $0x204] sm:$0xf]
  %v180 = vld [vmem:[%s1 + $0x208] sm:$0xf]
  %v181 = vld [vmem:[%s1 + $0x20c] sm:$0xf]
  %v182 = vld [vmem:[%s1 + $0x210] sm:$0xf]
  %v183 = vld [vmem:[%s1 + $0x214] sm:$0xf]
  %v184 = vld [vmem:[%s1 + $0x218] sm:$0xf]
  %v185 = vld [vmem:[%s1 + $0x21c] sm:$0xf]
  %v186 = vld [vmem:[%s1 + $0x220] sm:$0xf]
  %v187 = vld [vmem:[%s1 + $0x224] sm:$0xf]
  %v188 = vld [vmem:[%s1 + $0x228] sm:$0xf]
  %v189 = vld [vmem:[%s1 + $0x22c] sm:$0xf]
  %v190 = vld [vmem:[%s1 + $0x230] sm:$0xf]
  %v191 = vld [vmem:[%s1 + $0x234] sm:$0xf]
  %v192 = vld [vmem:[%s1 + $0x238] sm:$0xf]
  %v193 = vld [vmem:[%s1 + $0x23c] sm:$0xf]
  %v194 = vld [vmem:[%s2] sm:$0x1]
  %v196 = vlaneseq
  %v197 = vshrl.u32 %v196, 7
  %v198 = vsub.s32 0, %v197
  %v199 = vrot.slane %v194, %v198
  %v236 = vunpack.c.l.b16 %v15
  %v237 = vunpack.c.h.b16 %v15
  %v238 = vunpack.c.l.b16 %v16
  %v239 = vunpack.c.h.b16 %v16
  %v240 = vunpack.c.l.b16 %v17
  %v241 = vunpack.c.h.b16 %v17
  %v242 = vunpack.c.l.b16 %v18
  %v243 = vunpack.c.h.b16 %v18
  %v244 = vunpack.c.l.b16 %v19
  %v245 = vunpack.c.l.b16 %v20
  %v246 = vunpack.c.h.b16 %v20
  %v247 = vunpack.c.l.b16 %v21
  %v248 = vunpack.c.h.b16 %v21
  %v249 = vunpack.c.l.b16 %v22
  %v250 = vunpack.c.h.b16 %v22
  %v251 = vunpack.c.l.b16 %v23
  %v252 = vunpack.c.h.b16 %v23
  %v253 = vunpack.c.l.b16 %v24
  %v254 = vunpack.c.l.b16 %v25
  %v255 = vunpack.c.h.b16 %v25
  %v256 = vunpack.c.l.b16 %v26
  %v257 = vunpack.c.h.b16 %v26
  %v258 = vunpack.c.l.b16 %v27
  %v259 = vunpack.c.h.b16 %v27
  %v260 = vunpack.c.l.b16 %v28
  %v261 = vunpack.c.h.b16 %v28
  %v262 = vunpack.c.l.b16 %v29
  %v263 = vunpack.c.l.b16 %v30
  %v264 = vunpack.c.h.b16 %v30
  %v265 = vunpack.c.l.b16 %v31
  %v266 = vunpack.c.h.b16 %v31
  %v267 = vunpack.c.l.b16 %v32
  %v268 = vunpack.c.h.b16 %v32
  %v269 = vunpack.c.l.b16 %v33
  %v270 = vunpack.c.h.b16 %v33
  %v271 = vunpack.c.l.b16 %v34
  %v272 = vunpack.c.l.b16 %v35
  %v273 = vunpack.c.h.b16 %v35
  %v274 = vunpack.c.l.b16 %v36
  %v275 = vunpack.c.h.b16 %v36
  %v276 = vunpack.c.l.b16 %v37
  %v277 = vunpack.c.h.b16 %v37
  %v278 = vunpack.c.l.b16 %v38
  %v279 = vunpack.c.h.b16 %v38
  %v280 = vunpack.c.l.b16 %v39
  %v281 = vunpack.c.l.b16 %v40
  %v282 = vunpack.c.h.b16 %v40
  %v283 = vunpack.c.l.b16 %v41
  %v284 = vunpack.c.h.b16 %v41
  %v285 = vunpack.c.l.b16 %v42
  %v286 = vunpack.c.h.b16 %v42
  %v287 = vunpack.c.l.b16 %v43
  %v288 = vunpack.c.h.b16 %v43
  %v289 = vunpack.c.l.b16 %v44
  %v290 = vunpack.c.l.b16 %v45
  %v291 = vunpack.c.h.b16 %v45
  %v292 = vunpack.c.l.b16 %v46
  %v293 = vunpack.c.h.b16 %v46
  %v294 = vunpack.c.l.b16 %v47
  %v295 = vunpack.c.h.b16 %v47
  %v296 = vunpack.c.l.b16 %v48
  %v297 = vunpack.c.h.b16 %v48
  %v298 = vunpack.c.l.b16 %v49
  %v299 = vpack.c.b16 %v245, %v236
  %v300 = vpack.c.b16 %v246, %v237
  %v301 = vpack.c.b16 %v247, %v238
  %v302 = vpack.c.b16 %v248, %v239
  %v303 = vpack.c.b16 %v249, %v240
  %v304 = vpack.c.b16 %v250, %v241
  %v305 = vpack.c.b16 %v251, %v242
  %v306 = vpack.c.b16 %v252, %v243
  %v307 = vpack.c.b16 %v253, %v244
  %v308 = vpack.c.b16 %v263, %v254
  %v309 = vpack.c.b16 %v264, %v255
  %v310 = vpack.c.b16 %v265, %v256
  %v311 = vpack.c.b16 %v266, %v257
  %v312 = vpack.c.b16 %v267, %v258
  %v313 = vpack.c.b16 %v268, %v259
  %v314 = vpack.c.b16 %v269, %v260
  %v315 = vpack.c.b16 %v270, %v261
  %v316 = vpack.c.b16 %v271, %v262
  %v317 = vpack.c.b16 %v281, %v272
  %v318 = vpack.c.b16 %v282, %v273
  %v319 = vpack.c.b16 %v283, %v274
  %v320 = vpack.c.b16 %v284, %v275
  %v321 = vpack.c.b16 %v285, %v276
  %v322 = vpack.c.b16 %v286, %v277
  %v323 = vpack.c.b16 %v287, %v278
  %v324 = vpack.c.b16 %v288, %v279
  %v325 = vpack.c.b16 %v289, %v280
  %v326 = vpack.c.b16 %v290, %v290
  %v327 = vpack.c.b16 %v291, %v291
  %v328 = vpack.c.b16 %v292, %v292
  %v329 = vpack.c.b16 %v293, %v293
  %v330 = vpack.c.b16 %v294, %v294
  %v331 = vpack.c.b16 %v295, %v295
  %v332 = vpack.c.b16 %v296, %v296
  %v333 = vpack.c.b16 %v297, %v297
  %v334 = vpack.c.b16 %v298, %v298
  %v515 = vunpack.c.l.b16 %v50
  %v516 = vunpack.c.l.b16 %v51
  %v517 = vunpack.c.l.b16 %v52
  %v518 = vunpack.c.l.b16 %v53
  %v519 = vunpack.c.l.b16 %v54
  %v520 = vunpack.c.l.b16 %v55
  %v521 = vunpack.c.l.b16 %v56
  %v522 = vunpack.c.l.b16 %v57
  %v523 = vunpack.c.l.b16 %v58
  %v524 = vunpack.c.l.b16 %v59
  %v525 = vunpack.c.l.b16 %v60
  %v526 = vunpack.c.l.b16 %v61
  %v527 = vunpack.c.l.b16 %v62
  %v528 = vunpack.c.l.b16 %v63
  %v529 = vunpack.c.l.b16 %v64
  %v530 = vunpack.c.l.b16 %v65
  %v531 = vunpack.c.l.b16 %v66
  %v532 = vunpack.c.l.b16 %v67
  %v533 = vunpack.c.l.b16 %v68
  %v534 = vunpack.c.l.b16 %v69
  %v535 = vunpack.c.l.b16 %v70
  %v536 = vunpack.c.l.b16 %v71
  %v537 = vunpack.c.l.b16 %v72
  %v538 = vunpack.c.l.b16 %v73
  %v539 = vunpack.c.l.b16 %v74
  %v540 = vunpack.c.l.b16 %v75
  %v541 = vunpack.c.l.b16 %v76
  %v542 = vunpack.c.l.b16 %v77
  %v543 = vunpack.c.l.b16 %v78
  %v544 = vunpack.c.l.b16 %v79
  %v545 = vunpack.c.l.b16 %v80
  %v546 = vunpack.c.l.b16 %v81
  %v547 = vunpack.c.l.b16 %v82
  %v548 = vunpack.c.l.b16 %v83
  %v549 = vunpack.c.l.b16 %v84
  %v550 = vunpack.c.l.b16 %v85
  %v551 = vunpack.c.l.b16 %v86
  %v552 = vunpack.c.l.b16 %v87
  %v553 = vunpack.c.l.b16 %v88
  %v554 = vunpack.c.l.b16 %v89
  %v555 = vunpack.c.l.b16 %v90
  %v556 = vunpack.c.l.b16 %v91
  %v557 = vunpack.c.l.b16 %v92
  %v558 = vunpack.c.l.b16 %v93
  %v559 = vunpack.c.l.b16 %v94
  %v560 = vunpack.c.l.b16 %v95
  %v561 = vunpack.c.l.b16 %v96
  %v562 = vunpack.c.l.b16 %v97
  %v563 = vunpack.c.l.b16 %v98
  %v564 = vunpack.c.l.b16 %v99
  %v565 = vunpack.c.l.b16 %v100
  %v566 = vunpack.c.l.b16 %v101
  %v567 = vunpack.c.l.b16 %v102
  %v568 = vunpack.c.l.b16 %v103
  %v569 = vunpack.c.l.b16 %v104
  %v570 = vunpack.c.l.b16 %v105
  %v571 = vunpack.c.l.b16 %v106
  %v572 = vunpack.c.l.b16 %v107
  %v573 = vunpack.c.l.b16 %v108
  %v574 = vunpack.c.l.b16 %v109
  %v575 = vunpack.c.l.b16 %v110
  %v576 = vunpack.c.l.b16 %v111
  %v577 = vunpack.c.l.b16 %v112
  %v578 = vunpack.c.l.b16 %v113
  %v579 = vunpack.c.l.b16 %v114
  %v580 = vunpack.c.l.b16 %v115
  %v581 = vunpack.c.l.b16 %v116
  %v582 = vunpack.c.l.b16 %v117
  %v583 = vunpack.c.l.b16 %v118
  %v584 = vunpack.c.l.b16 %v119
  %v585 = vunpack.c.l.b16 %v120
  %v586 = vunpack.c.l.b16 %v121
  %v587 = vunpack.c.l.b16 %v122
  %v588 = vunpack.c.l.b16 %v123
  %v589 = vunpack.c.l.b16 %v124
  %v590 = vunpack.c.l.b16 %v125
  %v591 = vunpack.c.l.b16 %v126
  %v592 = vunpack.c.l.b16 %v127
  %v593 = vunpack.c.l.b16 %v128
  %v594 = vunpack.c.l.b16 %v129
  %v595 = vunpack.c.l.b16 %v130
  %v596 = vunpack.c.l.b16 %v131
  %v597 = vunpack.c.l.b16 %v132
  %v598 = vunpack.c.l.b16 %v133
  %v599 = vunpack.c.l.b16 %v134
  %v600 = vunpack.c.l.b16 %v135
  %v601 = vunpack.c.l.b16 %v136
  %v602 = vunpack.c.l.b16 %v137
  %v603 = vunpack.c.l.b16 %v138
  %v604 = vunpack.c.l.b16 %v139
  %v605 = vunpack.c.l.b16 %v140
  %v606 = vunpack.c.l.b16 %v141
  %v607 = vunpack.c.l.b16 %v142
  %v608 = vunpack.c.l.b16 %v143
  %v609 = vunpack.c.l.b16 %v144
  %v610 = vunpack.c.l.b16 %v145
  %v611 = vunpack.c.l.b16 %v146
  %v612 = vunpack.c.l.b16 %v147
  %v613 = vunpack.c.l.b16 %v148
  %v614 = vunpack.c.l.b16 %v149
  %v615 = vunpack.c.l.b16 %v150
  %v616 = vunpack.c.l.b16 %v151
  %v617 = vunpack.c.l.b16 %v152
  %v618 = vunpack.c.l.b16 %v153
  %v619 = vunpack.c.l.b16 %v154
  %v620 = vunpack.c.l.b16 %v155
  %v621 = vunpack.c.l.b16 %v156
  %v622 = vunpack.c.l.b16 %v157
  %v623 = vunpack.c.l.b16 %v158
  %v624 = vunpack.c.l.b16 %v159
  %v625 = vunpack.c.l.b16 %v160
  %v626 = vunpack.c.l.b16 %v161
  %v627 = vunpack.c.l.b16 %v162
  %v628 = vunpack.c.l.b16 %v163
  %v629 = vunpack.c.l.b16 %v164
  %v630 = vunpack.c.l.b16 %v165
  %v631 = vunpack.c.l.b16 %v166
  %v632 = vunpack.c.l.b16 %v167
  %v633 = vunpack.c.l.b16 %v168
  %v634 = vunpack.c.l.b16 %v169
  %v635 = vunpack.c.l.b16 %v170
  %v636 = vunpack.c.l.b16 %v171
  %v637 = vunpack.c.l.b16 %v172
  %v638 = vunpack.c.l.b16 %v173
  %v639 = vunpack.c.l.b16 %v174
  %v640 = vunpack.c.l.b16 %v175
  %v641 = vunpack.c.l.b16 %v176
  %v642 = vunpack.c.l.b16 %v177
  %v643 = vunpack.c.l.b16 %v178
  %v644 = vunpack.c.l.b16 %v179
  %v645 = vunpack.c.l.b16 %v180
  %v646 = vunpack.c.l.b16 %v181
  %v647 = vunpack.c.l.b16 %v182
  %v648 = vunpack.c.l.b16 %v183
  %v649 = vunpack.c.l.b16 %v184
  %v650 = vunpack.c.l.b16 %v185
  %v651 = vunpack.c.l.b16 %v186
  %v652 = vunpack.c.l.b16 %v187
  %v653 = vunpack.c.l.b16 %v188
  %v654 = vunpack.c.l.b16 %v189
  %v655 = vunpack.c.l.b16 %v190
  %v656 = vunpack.c.l.b16 %v191
  %v657 = vunpack.c.l.b16 %v192
  %v658 = vunpack.c.l.b16 %v193
  %v659 = vpack.c.b16 %v516, %v515
  %v660 = vpack.c.b16 %v518, %v517
  %v661 = vpack.c.b16 %v520, %v519
  %v662 = vpack.c.b16 %v522, %v521
  %v663 = vpack.c.b16 %v524, %v523
  %v664 = vpack.c.b16 %v526, %v525
  %v665 = vpack.c.b16 %v528, %v527
  %v666 = vpack.c.b16 %v530, %v529
  %v667 = vpack.c.b16 %v532, %v531
  %v668 = vpack.c.b16 %v534, %v533
  %v669 = vpack.c.b16 %v536, %v535
  %v670 = vpack.c.b16 %v538, %v537
  %v671 = vpack.c.b16 %v540, %v539
  %v672 = vpack.c.b16 %v542, %v541
  %v673 = vpack.c.b16 %v544, %v543
  %v674 = vpack.c.b16 %v546, %v545
  %v675 = vpack.c.b16 %v548, %v547
  %v676 = vpack.c.b16 %v550, %v549
  %v677 = vpack.c.b16 %v552, %v551
  %v678 = vpack.c.b16 %v554, %v553
  %v679 = vpack.c.b16 %v556, %v555
  %v680 = vpack.c.b16 %v558, %v557
  %v681 = vpack.c.b16 %v560, %v559
  %v682 = vpack.c.b16 %v562, %v561
  %v683 = vpack.c.b16 %v564, %v563
  %v684 = vpack.c.b16 %v566, %v565
  %v685 = vpack.c.b16 %v568, %v567
  %v686 = vpack.c.b16 %v570, %v569
  %v687 = vpack.c.b16 %v572, %v571
  %v688 = vpack.c.b16 %v574, %v573
  %v689 = vpack.c.b16 %v576, %v575
  %v690 = vpack.c.b16 %v578, %v577
  %v691 = vpack.c.b16 %v580, %v579
  %v692 = vpack.c.b16 %v582, %v581
  %v693 = vpack.c.b16 %v584, %v583
  %v694 = vpack.c.b16 %v586, %v585
  %v695 = vpack.c.b16 %v588, %v587
  %v696 = vpack.c.b16 %v590, %v589
  %v697 = vpack.c.b16 %v592, %v591
  %v698 = vpack.c.b16 %v594, %v593
  %v699 = vpack.c.b16 %v596, %v595
  %v700 = vpack.c.b16 %v598, %v597
  %v701 = vpack.c.b16 %v600, %v599
  %v702 = vpack.c.b16 %v602, %v601
  %v703 = vpack.c.b16 %v604, %v603
  %v704 = vpack.c.b16 %v606, %v605
  %v705 = vpack.c.b16 %v608, %v607
  %v706 = vpack.c.b16 %v610, %v609
  %v707 = vpack.c.b16 %v612, %v611
  %v708 = vpack.c.b16 %v614, %v613
  %v709 = vpack.c.b16 %v616, %v615
  %v710 = vpack.c.b16 %v618, %v617
  %v711 = vpack.c.b16 %v620, %v619
  %v712 = vpack.c.b16 %v622, %v621
  %v713 = vpack.c.b16 %v624, %v623
  %v714 = vpack.c.b16 %v626, %v625
  %v715 = vpack.c.b16 %v628, %v627
  %v716 = vpack.c.b16 %v630, %v629
  %v717 = vpack.c.b16 %v632, %v631
  %v718 = vpack.c.b16 %v634, %v633
  %v719 = vpack.c.b16 %v636, %v635
  %v720 = vpack.c.b16 %v638, %v637
  %v721 = vpack.c.b16 %v640, %v639
  %v722 = vpack.c.b16 %v642, %v641
  %v723 = vpack.c.b16 %v644, %v643
  %v724 = vpack.c.b16 %v646, %v645
  %v725 = vpack.c.b16 %v648, %v647
  %v726 = vpack.c.b16 %v650, %v649
  %v727 = vpack.c.b16 %v652, %v651
  %v728 = vpack.c.b16 %v654, %v653
  %v729 = vpack.c.b16 %v656, %v655
  %v730 = vpack.c.b16 %v658, %v657
  %803 = vmatprep.subr.bf16.mxu0 0
  %804 = vmatpush1.bf16.msra.mxu0 %v666
  %805 = vmatprep.subr.bf16.mxu0 0
  %806 = vmatpush1.bf16.msra.mxu0 %v665
  %807 = vmatprep.subr.bf16.mxu0 0
  %808 = vmatpush1.bf16.msra.mxu0 %v664
  %809 = vmatprep.subr.bf16.mxu0 0
  %810 = vmatpush1.bf16.msra.mxu0 %v663
  %811 = vmatprep.subr.bf16.mxu0 0
  %812 = vmatpush1.bf16.msra.mxu0 %v662
  %813 = vmatprep.subr.bf16.mxu0 0
  %814 = vmatpush1.bf16.msra.mxu0 %v661
  %815 = vmatprep.subr.bf16.mxu0 0
  %816 = vmatpush1.bf16.msra.mxu0 %v660
  %817 = vmatprep.subr.bf16.mxu0 0
  %818 = vmatpush1.bf16.msra.mxu0 %v659
  %819 = vmatprep.subr.bf16.mxu0 0
  %820 = vmatpush2.bf16.msra.mxu0 %v674
  %821 = vmatprep.subr.bf16.mxu0 0
  %822 = vmatpush2.bf16.msra.mxu0 %v673
  %823 = vmatprep.subr.bf16.mxu0 0
  %824 = vmatpush2.bf16.msra.mxu0 %v672
  %825 = vmatprep.subr.bf16.mxu0 0
  %826 = vmatpush2.bf16.msra.mxu0 %v671
  %827 = vmatprep.subr.bf16.mxu0 0
  %828 = vmatpush2.bf16.msra.mxu0 %v670
  %829 = vmatprep.subr.bf16.mxu0 0
  %830 = vmatpush2.bf16.msra.mxu0 %v669
  %831 = vmatprep.subr.bf16.mxu0 0
  %832 = vmatpush2.bf16.msra.mxu0 %v668
  %833 = vmatprep.subr.bf16.mxu0 0
  %834 = vmatpush2.bf16.msra.mxu0 %v667
  %835 = vmatprep.mubr.bf16.mxu0 %v300
  %836 = vmatmul.mubr.bf16.gmra.mxu0 %v299
  %v837 = vpop.f32.mrf.mxu0
  %v838 = vadd.f32 %v199, %v837
  %v839 = vpop.f32.mrf.mxu0
  %v840 = vpop.f32.mrf.mxu0
  %v841 = vadd.f32 %v199, %v840
  %v842 = vpop.f32.mrf.mxu0
  %843 = vmatprep.mubr.bf16.mxu0 %v309
  %844 = vmatmul.mubr.bf16.gmra.mxu0 %v308
  %v845 = vpop.f32.mrf.mxu0
  %v846 = vadd.f32 %v199, %v845
  %v847 = vpop.f32.mrf.mxu0
  %v848 = vpop.f32.mrf.mxu0
  %v849 = vadd.f32 %v199, %v848
  %v850 = vpop.f32.mrf.mxu0
  %851 = vmatprep.mubr.bf16.mxu0 %v318
  %852 = vmatmul.mubr.bf16.gmra.mxu0 %v317
  %v853 = vpop.f32.mrf.mxu0
  %v854 = vadd.f32 %v199, %v853
  %v855 = vpop.f32.mrf.mxu0
  %v856 = vpop.f32.mrf.mxu0
  %v857 = vadd.f32 %v199, %v856
  %v858 = vpop.f32.mrf.mxu0
  %859 = vmatprep.mubr.bf16.mxu0 %v327
  %860 = vmatmul.mubr.bf16.gmra.mxu0 %v326
  %v861 = vpop.f32.mrf.mxu0
  %v862 = vadd.f32 %v199, %v861
  %v863 = vpop.f32.mrf.mxu0
  %v864 = vpop.f32.mrf.mxu0
  %v865 = vpop.f32.mrf.mxu0
  %866 = vdwg.mxu0
  %867 = vmatprep.subr.bf16.mxu0 0
  %868 = vmatpush1.bf16.msra.mxu0 %v682
  %869 = vmatprep.subr.bf16.mxu0 0
  %870 = vmatpush1.bf16.msra.mxu0 %v681
  %871 = vmatprep.subr.bf16.mxu0 0
  %872 = vmatpush1.bf16.msra.mxu0 %v680
  %873 = vmatprep.subr.bf16.mxu0 0
  %874 = vmatpush1.bf16.msra.mxu0 %v679
  %875 = vmatprep.subr.bf16.mxu0 0
  %876 = vmatpush1.bf16.msra.mxu0 %v678
  %877 = vmatprep.subr.bf16.mxu0 0
  %878 = vmatpush1.bf16.msra.mxu0 %v677
  %879 = vmatprep.subr.bf16.mxu0 0
  %880 = vmatpush1.bf16.msra.mxu0 %v676
  %881 = vmatprep.subr.bf16.mxu0 0
  %882 = vmatpush1.bf16.msra.mxu0 %v675
  %883 = vmatprep.subr.bf16.mxu0 0
  %884 = vmatpush2.bf16.msra.mxu0 %v690
  %885 = vmatprep.subr.bf16.mxu0 0
  %886 = vmatpush2.bf16.msra.mxu0 %v689
  %887 = vmatprep.subr.bf16.mxu0 0
  %888 = vmatpush2.bf16.msra.mxu0 %v688
  %889 = vmatprep.subr.bf16.mxu0 0
  %890 = vmatpush2.bf16.msra.mxu0 %v687
  %891 = vmatprep.subr.bf16.mxu0 0
  %892 = vmatpush2.bf16.msra.mxu0 %v686
  %893 = vmatprep.subr.bf16.mxu0 0
  %894 = vmatpush2.bf16.msra.mxu0 %v685
  %895 = vmatprep.subr.bf16.mxu0 0
  %896 = vmatpush2.bf16.msra.mxu0 %v684
  %897 = vmatprep.subr.bf16.mxu0 0
  %898 = vmatpush2.bf16.msra.mxu0 %v683
  %899 = vmatprep.mubr.bf16.mxu0 %v302
  %900 = vmatmul.mubr.bf16.gmra.mxu0 %v301
  %v901 = vpop.f32.mrf.mxu0
  %v902 = vadd.f32 %v838, %v901
  %v903 = vpop.f32.mrf.mxu0
  %v904 = vpop.f32.mrf.mxu0
  %v905 = vadd.f32 %v841, %v904
  %v906 = vpop.f32.mrf.mxu0
  %907 = vmatprep.mubr.bf16.mxu0 %v311
  %908 = vmatmul.mubr.bf16.gmra.mxu0 %v310
  %v909 = vpop.f32.mrf.mxu0
  %v910 = vadd.f32 %v846, %v909
  %v911 = vpop.f32.mrf.mxu0
  %v912 = vpop.f32.mrf.mxu0
  %v913 = vadd.f32 %v849, %v912
  %v914 = vpop.f32.mrf.mxu0
  %915 = vmatprep.mubr.bf16.mxu0 %v320
  %916 = vmatmul.mubr.bf16.gmra.mxu0 %v319
  %v917 = vpop.f32.mrf.mxu0
  %v918 = vadd.f32 %v854, %v917
  %v919 = vpop.f32.mrf.mxu0
  %v920 = vpop.f32.mrf.mxu0
  %v921 = vadd.f32 %v857, %v920
  %v922 = vpop.f32.mrf.mxu0
  %923 = vmatprep.mubr.bf16.mxu0 %v329
  %924 = vmatmul.mubr.bf16.gmra.mxu0 %v328
  %v925 = vpop.f32.mrf.mxu0
  %v926 = vadd.f32 %v862, %v925
  %v927 = vpop.f32.mrf.mxu0
  %v928 = vpop.f32.mrf.mxu0
  %v929 = vpop.f32.mrf.mxu0
  %930 = vdwg.mxu0
  %931 = vmatprep.subr.bf16.mxu0 0
  %932 = vmatpush1.bf16.msra.mxu0 %v698
  %933 = vmatprep.subr.bf16.mxu0 0
  %934 = vmatpush1.bf16.msra.mxu0 %v697
  %935 = vmatprep.subr.bf16.mxu0 0
  %936 = vmatpush1.bf16.msra.mxu0 %v696
  %937 = vmatprep.subr.bf16.mxu0 0
  %938 = vmatpush1.bf16.msra.mxu0 %v695
  %939 = vmatprep.subr.bf16.mxu0 0
  %940 = vmatpush1.bf16.msra.mxu0 %v694
  %941 = vmatprep.subr.bf16.mxu0 0
  %942 = vmatpush1.bf16.msra.mxu0 %v693
  %943 = vmatprep.subr.bf16.mxu0 0
  %944 = vmatpush1.bf16.msra.mxu0 %v692
  %945 = vmatprep.subr.bf16.mxu0 0
  %946 = vmatpush1.bf16.msra.mxu0 %v691
  %947 = vmatprep.subr.bf16.mxu0 0
  %948 = vmatpush2.bf16.msra.mxu0 %v706
  %949 = vmatprep.subr.bf16.mxu0 0
  %950 = vmatpush2.bf16.msra.mxu0 %v705
  %951 = vmatprep.subr.bf16.mxu0 0
  %952 = vmatpush2.bf16.msra.mxu0 %v704
  %953 = vmatprep.subr.bf16.mxu0 0
  %954 = vmatpush2.bf16.msra.mxu0 %v703
  %955 = vmatprep.subr.bf16.mxu0 0
  %956 = vmatpush2.bf16.msra.mxu0 %v702
  %957 = vmatprep.subr.bf16.mxu0 0
  %958 = vmatpush2.bf16.msra.mxu0 %v701
  %959 = vmatprep.subr.bf16.mxu0 0
  %960 = vmatpush2.bf16.msra.mxu0 %v700
  %961 = vmatprep.subr.bf16.mxu0 0
  %962 = vmatpush2.bf16.msra.mxu0 %v699
  %963 = vmatprep.mubr.bf16.mxu0 %v304
  %964 = vmatmul.mubr.bf16.gmra.mxu0 %v303
  %v965 = vpop.f32.mrf.mxu0
  %v966 = vadd.f32 %v902, %v965
  %v967 = vpop.f32.mrf.mxu0
  %v968 = vpop.f32.mrf.mxu0
  %v969 = vadd.f32 %v905, %v968
  %v970 = vpop.f32.mrf.mxu0
  %971 = vmatprep.mubr.bf16.mxu0 %v313
  %972 = vmatmul.mubr.bf16.gmra.mxu0 %v312
  %v973 = vpop.f32.mrf.mxu0
  %v974 = vadd.f32 %v910, %v973
  %v975 = vpop.f32.mrf.mxu0
  %v976 = vpop.f32.mrf.mxu0
  %v977 = vadd.f32 %v913, %v976
  %v978 = vpop.f32.mrf.mxu0
  %979 = vmatprep.mubr.bf16.mxu0 %v322
  %980 = vmatmul.mubr.bf16.gmra.mxu0 %v321
  %v981 = vpop.f32.mrf.mxu0
  %v982 = vadd.f32 %v918, %v981
  %v983 = vpop.f32.mrf.mxu0
  %v984 = vpop.f32.mrf.mxu0
  %v985 = vadd.f32 %v921, %v984
  %v986 = vpop.f32.mrf.mxu0
  %987 = vmatprep.mubr.bf16.mxu0 %v331
  %988 = vmatmul.mubr.bf16.gmra.mxu0 %v330
  %v989 = vpop.f32.mrf.mxu0
  %v990 = vadd.f32 %v926, %v989
  %v991 = vpop.f32.mrf.mxu0
  %v992 = vpop.f32.mrf.mxu0
  %v993 = vpop.f32.mrf.mxu0
  %994 = vdwg.mxu0
  %995 = vmatprep.subr.bf16.mxu0 0
  %996 = vmatpush1.bf16.msra.mxu0 %v714
  %997 = vmatprep.subr.bf16.mxu0 0
  %998 = vmatpush1.bf16.msra.mxu0 %v713
  %999 = vmatprep.subr.bf16.mxu0 0
  %1000 = vmatpush1.bf16.msra.mxu0 %v712
  %1001 = vmatprep.subr.bf16.mxu0 0
  %1002 = vmatpush1.bf16.msra.mxu0 %v711
  %1003 = vmatprep.subr.bf16.mxu0 0
  %1004 = vmatpush1.bf16.msra.mxu0 %v710
  %1005 = vmatprep.subr.bf16.mxu0 0
  %1006 = vmatpush1.bf16.msra.mxu0 %v709
  %1007 = vmatprep.subr.bf16.mxu0 0
  %1008 = vmatpush1.bf16.msra.mxu0 %v708
  %1009 = vmatprep.subr.bf16.mxu0 0
  %1010 = vmatpush1.bf16.msra.mxu0 %v707
  %1011 = vmatprep.subr.bf16.mxu0 0
  %1012 = vmatpush2.bf16.msra.mxu0 %v722
  %1013 = vmatprep.subr.bf16.mxu0 0
  %1014 = vmatpush2.bf16.msra.mxu0 %v721
  %1015 = vmatprep.subr.bf16.mxu0 0
  %1016 = vmatpush2.bf16.msra.mxu0 %v720
  %1017 = vmatprep.subr.bf16.mxu0 0
  %1018 = vmatpush2.bf16.msra.mxu0 %v719
  %1019 = vmatprep.subr.bf16.mxu0 0
  %1020 = vmatpush2.bf16.msra.mxu0 %v718
  %1021 = vmatprep.subr.bf16.mxu0 0
  %1022 = vmatpush2.bf16.msra.mxu0 %v717
  %1023 = vmatprep.subr.bf16.mxu0 0
  %1024 = vmatpush2.bf16.msra.mxu0 %v716
  %1025 = vmatprep.subr.bf16.mxu0 0
  %1026 = vmatpush2.bf16.msra.mxu0 %v715
  %1027 = vmatprep.mubr.bf16.mxu0 %v306
  %1028 = vmatmul.mubr.bf16.gmra.mxu0 %v305
  %v1029 = vpop.f32.mrf.mxu0
  %v1030 = vadd.f32 %v966, %v1029
  %v1031 = vpop.f32.mrf.mxu0
  %v1032 = vpop.f32.mrf.mxu0
  %v1033 = vadd.f32 %v969, %v1032
  %v1034 = vpop.f32.mrf.mxu0
  %1035 = vmatprep.mubr.bf16.mxu0 %v315
  %1036 = vmatmul.mubr.bf16.gmra.mxu0 %v314
  %v1037 = vpop.f32.mrf.mxu0
  %v1038 = vadd.f32 %v974, %v1037
  %v1039 = vpop.f32.mrf.mxu0
  %v1040 = vpop.f32.mrf.mxu0
  %v1041 = vadd.f32 %v977, %v1040
  %v1042 = vpop.f32.mrf.mxu0
  %1043 = vmatprep.mubr.bf16.mxu0 %v324
  %1044 = vmatmul.mubr.bf16.gmra.mxu0 %v323
  %v1045 = vpop.f32.mrf.mxu0
  %v1046 = vadd.f32 %v982, %v1045
  %v1047 = vpop.f32.mrf.mxu0
  %v1048 = vpop.f32.mrf.mxu0
  %v1049 = vadd.f32 %v985, %v1048
  %v1050 = vpop.f32.mrf.mxu0
  %1051 = vmatprep.mubr.bf16.mxu0 %v333
  %1052 = vmatmul.mubr.bf16.gmra.mxu0 %v332
  %v1053 = vpop.f32.mrf.mxu0
  %v1054 = vadd.f32 %v990, %v1053
  %v1055 = vpop.f32.mrf.mxu0
  %v1056 = vpop.f32.mrf.mxu0
  %v1057 = vpop.f32.mrf.mxu0
  %1058 = vdwg.mxu0
  %1059 = vmatprep.subr.bf16.mxu0 0
  %1060 = vmatpush1.bf16.msra.mxu0 %v730
  %1061 = vmatprep.subr.bf16.mxu0 0
  %1062 = vmatpush1.bf16.msra.mxu0 %v729
  %1063 = vmatprep.subr.bf16.mxu0 0
  %1064 = vmatpush1.bf16.msra.mxu0 %v728
  %1065 = vmatprep.subr.bf16.mxu0 0
  %1066 = vmatpush1.bf16.msra.mxu0 %v727
  %1067 = vmatprep.subr.bf16.mxu0 0
  %1068 = vmatpush1.bf16.msra.mxu0 %v726
  %1069 = vmatprep.subr.bf16.mxu0 0
  %1070 = vmatpush1.bf16.msra.mxu0 %v725
  %1071 = vmatprep.subr.bf16.mxu0 0
  %1072 = vmatpush1.bf16.msra.mxu0 %v724
  %1073 = vmatprep.subr.bf16.mxu0 0
  %1074 = vmatpush1.bf16.msra.mxu0 %v723
  %1075 = vmatprep.subr.bf16.mxu0 0
  %1076 = vmatpush2.bf16.msra.mxu0 0
  %1077 = vmatprep.subr.bf16.mxu0 0
  %1078 = vmatpush2.bf16.msra.mxu0 0
  %1079 = vmatprep.subr.bf16.mxu0 0
  %1080 = vmatpush2.bf16.msra.mxu0 0
  %1081 = vmatprep.subr.bf16.mxu0 0
  %1082 = vmatpush2.bf16.msra.mxu0 0
  %1083 = vmatprep.subr.bf16.mxu0 0
  %1084 = vmatpush2.bf16.msra.mxu0 0
  %1085 = vmatprep.subr.bf16.mxu0 0
  %1086 = vmatpush2.bf16.msra.mxu0 0
  %1087 = vmatprep.subr.bf16.mxu0 0
  %1088 = vmatpush2.bf16.msra.mxu0 0
  %1089 = vmatprep.subr.bf16.mxu0 0
  %1090 = vmatpush2.bf16.msra.mxu0 0
  %1091 = vmatprep.mubr.bf16.mxu0 0
  %1092 = vmatmul.mubr.bf16.gmra.mxu0 %v307
  %v1093 = vpop.f32.mrf.mxu0
  %v1094 = vadd.f32 %v1030, %v1093
  %v1095 = vpop.f32.mrf.mxu0
  %v1096 = vpop.f32.mrf.mxu0
  %v1097 = vadd.f32 %v1033, %v1096
  %v1098 = vpop.f32.mrf.mxu0
  %1099 = vmatprep.mubr.bf16.mxu0 0
  %1100 = vmatmul.mubr.bf16.gmra.mxu0 %v316
  %v1101 = vpop.f32.mrf.mxu0
  %v1102 = vadd.f32 %v1038, %v1101
  %v1103 = vpop.f32.mrf.mxu0
  %v1104 = vpop.f32.mrf.mxu0
  %v1105 = vadd.f32 %v1041, %v1104
  %v1106 = vpop.f32.mrf.mxu0
  %1107 = vmatprep.mubr.bf16.mxu0 0
  %1108 = vmatmul.mubr.bf16.gmra.mxu0 %v325
  %v1109 = vpop.f32.mrf.mxu0
  %v1110 = vadd.f32 %v1046, %v1109
  %v1111 = vpop.f32.mrf.mxu0
  %v1112 = vpop.f32.mrf.mxu0
  %v1113 = vadd.f32 %v1049, %v1112
  %v1114 = vpop.f32.mrf.mxu0
  %1115 = vmatprep.mubr.bf16.mxu0 0
  %1116 = vmatmul.mubr.bf16.gmra.mxu0 %v334
  %v1117 = vpop.f32.mrf.mxu0
  %v1118 = vadd.f32 %v1054, %v1117
  %v1119 = vpop.f32.mrf.mxu0
  %v1120 = vpop.f32.mrf.mxu0
  %v1121 = vpop.f32.mrf.mxu0
  %1122 = vdwg.mxu0
  %v1123 = vmax.f32 %v1094, 0.0
  %v1124 = vmax.f32 %v1097, 0.0
  %v1125 = vmax.f32 %v1102, 0.0
  %v1126 = vmax.f32 %v1105, 0.0
  %v1127 = vmax.f32 %v1110, 0.0
  %v1128 = vmax.f32 %v1113, 0.0
  %v1129 = vmax.f32 %v1118, 0.0
  %v1130 = vpack.c.bf16 %v1124, %v1123
  %v1131 = vpack.c.bf16 %v1126, %v1125
  %v1132 = vpack.c.bf16 %v1128, %v1127
  %v1133 = vpack.c.bf16 %v1129, %v1129
  %v1138 = vunpack.c.l.b16 %v1130
  %v1139 = vunpack.c.h.b16 %v1130
  %v1140 = vunpack.c.l.b16 %v1131
  %v1141 = vunpack.c.h.b16 %v1131
  %v1142 = vunpack.c.l.b16 %v1132
  %v1143 = vunpack.c.h.b16 %v1132
  %v1144 = vunpack.c.l.b16 %v1133
  %v1145 = vpack.c.b16 %v1138, %v1138
  %v1146 = vpack.c.b16 %v1139, %v1139
  %v1147 = vpack.c.b16 %v1140, %v1140
  %v1148 = vpack.c.b16 %v1141, %v1141
  %v1149 = vpack.c.b16 %v1142, %v1142
  %v1150 = vpack.c.b16 %v1143, %v1143
  %v1151 = vpack.c.b16 %v1144, %v1144
  %vm1159 = vcmask 519168
  %1160 = vst.msk [vmem:[%s3] sm:$0xf] %vm1159, %v1145
  %1161 = vst.msk [vmem:[%s3 + $0x4] sm:$0xf] %vm1159, %v1146
  %1162 = vst.msk [vmem:[%s3 + $0x8] sm:$0xf] %vm1159, %v1147
  %1163 = vst.msk [vmem:[%s3 + $0xc] sm:$0xf] %vm1159, %v1148
  %1164 = vst.msk [vmem:[%s3 + $0x10] sm:$0xf] %vm1159, %v1149
  %1165 = vst.msk [vmem:[%s3 + $0x14] sm:$0xf] %vm1159, %v1150
  %1166 = vst.msk [vmem:[%s3 + $0x18] sm:$0xf] %vm1159, %v1151
  // Predicated region
  $region14: #{qnetwork_forward.6} parent=0 // pred_check
    _
  $region15: #{qnetwork_forward.6} parent=0 // pred_check_branch
    %1168 = sbr.rel (0) target = $region17
  $region16: #{qnetwork_forward.6} parent=0 // pred_region
    _
  $region17: #{qnetwork_forward.6} parent=0 // pred_fallthru
    _
  // Predicated region
  $region18: #{qnetwork_forward.6} parent=0 // pred_check
    _
  $region19: #{qnetwork_forward.6} parent=0 // pred_check_branch
    %1170 = sbr.rel (0) target = $region21
  $region20: #{qnetwork_forward.6} parent=0 // pred_region
    _
  $region21: #{qnetwork_forward.6} parent=0 // pred_fallthru
    _

// kernel: qnetwork_forward.7
$region0: #{qnetwork_forward.7}
  #allocation0 [shape = 'u32[]', space=smem, size = 0x4, offset = 0x4, fixed_abs, tag = 'smem constant byte address 0x4 - core index']
  #allocation1 [shape = 'u32[144,128]{1,0:T(1,128)}', space=vmem, size = 0x12000, scoped, tag = 'internal scratch']
  %s0 = inlined_call_operand.vmem [shape: bf16[8,1024], index: 0, kind: input, shape index: {}]
  %s1 = inlined_call_operand.vmem [shape: bf16[1024,128], index: 1, kind: input, shape index: {}]
  %s2 = inlined_call_operand.vmem [shape: f32[1,128], index: 2, kind: input, shape index: {}]
  %s3 = inlined_call_operand.vmem [shape: bf16[8,128], index: 3, kind: output, shape index: {}]
  %s4 = sld [smem:[#allocation0]]
  $region22: #{qnetwork_forward.7} parent=0
    _
  %s6 = ssub.s32 1, %s4
  %s7 = scalar_select 0, %s6, %s4
  // Predicated region
  $region2: #{qnetwork_forward.7} parent=0 // pred_check
    _
  $region3: #{qnetwork_forward.7} parent=0 // pred_check_branch
    %9 = sbr.rel (0) target = $region5
  $region4: #{qnetwork_forward.7} parent=0 // pred_region
    _
  $region5: #{qnetwork_forward.7} parent=0 // pred_fallthru
    _
  // Predicated region
  $region6: #{qnetwork_forward.7} parent=0 // pred_check
    _
  $region7: #{qnetwork_forward.7} parent=0 // pred_check_branch
    %11 = sbr.rel (0) target = $region9
  $region8: #{qnetwork_forward.7} parent=0 // pred_region
    _
  $region9: #{qnetwork_forward.7} parent=0 // pred_fallthru
    _
  // Predicated region
  $region10: #{qnetwork_forward.7} parent=0 // pred_check
    _
  $region11: #{qnetwork_forward.7} parent=0 // pred_check_branch
    %13 = sbr.rel (0) target = $region13
  $region12: #{qnetwork_forward.7} parent=0 // pred_region
    _
  $region13: #{qnetwork_forward.7} parent=0 // pred_fallthru
    _
  %v15 = vld [vmem:[%s0] sm:$0xff]
  %v16 = vld [vmem:[%s0 + $0x8] sm:$0xff]
  %v17 = vld [vmem:[%s0 + $0x10] sm:$0xff]
  %v18 = vld [vmem:[%s0 + $0x18] sm:$0xff]
  %v19 = vld [vmem:[%s1] sm:$0xf]
  %v20 = vld [vmem:[%s1 + $0x4] sm:$0xf]
  %v21 = vld [vmem:[%s1 + $0x8] sm:$0xf]
  %v22 = vld [vmem:[%s1 + $0xc] sm:$0xf]
  %v23 = vld [vmem:[%s1 + $0x10] sm:$0xf]
  %v24 = vld [vmem:[%s1 + $0x14] sm:$0xf]
  %v25 = vld [vmem:[%s1 + $0x18] sm:$0xf]
  %v26 = vld [vmem:[%s1 + $0x1c] sm:$0xf]
  %v27 = vld [vmem:[%s1 + $0x20] sm:$0xf]
  %v28 = vld [vmem:[%s1 + $0x24] sm:$0xf]
  %v29 = vld [vmem:[%s1 + $0x28] sm:$0xf]
  %v30 = vld [vmem:[%s1 + $0x2c] sm:$0xf]
  %v31 = vld [vmem:[%s1 + $0x30] sm:$0xf]
  %v32 = vld [vmem:[%s1 + $0x34] sm:$0xf]
  %v33 = vld [vmem:[%s1 + $0x38] sm:$0xf]
  %v34 = vld [vmem:[%s1 + $0x3c] sm:$0xf]
  %v35 = vld [vmem:[%s1 + $0x40] sm:$0xf]
  %v36 = vld [vmem:[%s1 + $0x44] sm:$0xf]
  %v37 = vld [vmem:[%s1 + $0x48] sm:$0xf]
  %v38 = vld [vmem:[%s1 + $0x4c] sm:$0xf]
  %v39 = vld [vmem:[%s1 + $0x50] sm:$0xf]
  %v40 = vld [vmem:[%s1 + $0x54] sm:$0xf]
  %v41 = vld [vmem:[%s1 + $0x58] sm:$0xf]
  %v42 = vld [vmem:[%s1 + $0x5c] sm:$0xf]
  %v43 = vld [vmem:[%s1 + $0x60] sm:$0xf]
  %v44 = vld [vmem:[%s1 + $0x64] sm:$0xf]
  %v45 = vld [vmem:[%s1 + $0x68] sm:$0xf]
  %v46 = vld [vmem:[%s1 + $0x6c] sm:$0xf]
  %v47 = vld [vmem:[%s1 + $0x70] sm:$0xf]
  %v48 = vld [vmem:[%s1 + $0x74] sm:$0xf]
  %v49 = vld [vmem:[%s1 + $0x78] sm:$0xf]
  %v50 = vld [vmem:[%s1 + $0x7c] sm:$0xf]
  %v51 = vld [vmem:[%s1 + $0x80] sm:$0xf]
  %v52 = vld [vmem:[%s1 + $0x84] sm:$0xf]
  %v53 = vld [vmem:[%s1 + $0x88] sm:$0xf]
  %v54 = vld [vmem:[%s1 + $0x8c] sm:$0xf]
  %v55 = vld [vmem:[%s1 + $0x90] sm:$0xf]
  %v56 = vld [vmem:[%s1 + $0x94] sm:$0xf]
  %v57 = vld [vmem:[%s1 + $0x98] sm:$0xf]
  %v58 = vld [vmem:[%s1 + $0x9c] sm:$0xf]
  %v59 = vld [vmem:[%s1 + $0xa0] sm:$0xf]
  %v60 = vld [vmem:[%s1 + $0xa4] sm:$0xf]
  %v61 = vld [vmem:[%s1 + $0xa8] sm:$0xf]
  %v62 = vld [vmem:[%s1 + $0xac] sm:$0xf]
  %v63 = vld [vmem:[%s1 + $0xb0] sm:$0xf]
  %v64 = vld [vmem:[%s1 + $0xb4] sm:$0xf]
  %v65 = vld [vmem:[%s1 + $0xb8] sm:$0xf]
  %v66 = vld [vmem:[%s1 + $0xbc] sm:$0xf]
  %v67 = vld [vmem:[%s1 + $0xc0] sm:$0xf]
  %v68 = vld [vmem:[%s1 + $0xc4] sm:$0xf]
  %v69 = vld [vmem:[%s1 + $0xc8] sm:$0xf]
  %v70 = vld [vmem:[%s1 + $0xcc] sm:$0xf]
  %v71 = vld [vmem:[%s1 + $0xd0] sm:$0xf]
  %v72 = vld [vmem:[%s1 + $0xd4] sm:$0xf]
  %v73 = vld [vmem:[%s1 + $0xd8] sm:$0xf]
  %v74 = vld [vmem:[%s1 + $0xdc] sm:$0xf]
  %v75 = vld [vmem:[%s1 + $0xe0] sm:$0xf]
  %v76 = vld [vmem:[%s1 + $0xe4] sm:$0xf]
  %v77 = vld [vmem:[%s1 + $0xe8] sm:$0xf]
  %v78 = vld [vmem:[%s1 + $0xec] sm:$0xf]
  %v79 = vld [vmem:[%s1 + $0xf0] sm:$0xf]
  %v80 = vld [vmem:[%s1 + $0xf4] sm:$0xf]
  %v81 = vld [vmem:[%s1 + $0xf8] sm:$0xf]
  %v82 = vld [vmem:[%s1 + $0xfc] sm:$0xf]
  %v83 = vld [vmem:[%s1 + $0x100] sm:$0xf]
  %v84 = vld [vmem:[%s1 + $0x104] sm:$0xf]
  %v85 = vld [vmem:[%s1 + $0x108] sm:$0xf]
  %v86 = vld [vmem:[%s1 + $0x10c] sm:$0xf]
  %v87 = vld [vmem:[%s1 + $0x110] sm:$0xf]
  %v88 = vld [vmem:[%s1 + $0x114] sm:$0xf]
  %v89 = vld [vmem:[%s1 + $0x118] sm:$0xf]
  %v90 = vld [vmem:[%s1 + $0x11c] sm:$0xf]
  %v91 = vld [vmem:[%s1 + $0x120] sm:$0xf]
  %v92 = vld [vmem:[%s1 + $0x124] sm:$0xf]
  %v93 = vld [vmem:[%s1 + $0x128] sm:$0xf]
  %v94 = vld [vmem:[%s1 + $0x12c] sm:$0xf]
  %v95 = vld [vmem:[%s1 + $0x130] sm:$0xf]
  %v96 = vld [vmem:[%s1 + $0x134] sm:$0xf]
  %v97 = vld [vmem:[%s1 + $0x138] sm:$0xf]
  %v98 = vld [vmem:[%s1 + $0x13c] sm:$0xf]
  %v99 = vld [vmem:[%s1 + $0x140] sm:$0xf]
  %v100 = vld [vmem:[%s1 + $0x144] sm:$0xf]
  %v101 = vld [vmem:[%s1 + $0x148] sm:$0xf]
  %v102 = vld [vmem:[%s1 + $0x14c] sm:$0xf]
  %v103 = vld [vmem:[%s1 + $0x150] sm:$0xf]
  %v104 = vld [vmem:[%s1 + $0x154] sm:$0xf]
  %v105 = vld [vmem:[%s1 + $0x158] sm:$0xf]
  %v106 = vld [vmem:[%s1 + $0x15c] sm:$0xf]
  %v107 = vld [vmem:[%s1 + $0x160] sm:$0xf]
  %v108 = vld [vmem:[%s1 + $0x164] sm:$0xf]
  %v109 = vld [vmem:[%s1 + $0x168] sm:$0xf]
  %v110 = vld [vmem:[%s1 + $0x16c] sm:$0xf]
  %v111 = vld [vmem:[%s1 + $0x170] sm:$0xf]
  %v112 = vld [vmem:[%s1 + $0x174] sm:$0xf]
  %v113 = vld [vmem:[%s1 + $0x178] sm:$0xf]
  %v114 = vld [vmem:[%s1 + $0x17c] sm:$0xf]
  %v115 = vld [vmem:[%s1 + $0x180] sm:$0xf]
  %v116 = vld [vmem:[%s1 + $0x184] sm:$0xf]
  %v117 = vld [vmem:[%s1 + $0x188] sm:$0xf]
  %v118 = vld [vmem:[%s1 + $0x18c] sm:$0xf]
  %v119 = vld [vmem:[%s1 + $0x190] sm:$0xf]
  %v120 = vld [vmem:[%s1 + $0x194] sm:$0xf]
  %v121 = vld [vmem:[%s1 + $0x198] sm:$0xf]
  %v122 = vld [vmem:[%s1 + $0x19c] sm:$0xf]
  %v123 = vld [vmem:[%s1 + $0x1a0] sm:$0xf]
  %v124 = vld [vmem:[%s1 + $0x1a4] sm:$0xf]
  %v125 = vld [vmem:[%s1 + $0x1a8] sm:$0xf]
  %v126 = vld [vmem:[%s1 + $0x1ac] sm:$0xf]
  %v127 = vld [vmem:[%s1 + $0x1b0] sm:$0xf]
  %v128 = vld [vmem:[%s1 + $0x1b4] sm:$0xf]
  %v129 = vld [vmem:[%s1 + $0x1b8] sm:$0xf]
  %v130 = vld [vmem:[%s1 + $0x1bc] sm:$0xf]
  %v131 = vld [vmem:[%s1 + $0x1c0] sm:$0xf]
  %v132 = vld [vmem:[%s1 + $0x1c4] sm:$0xf]
  %v133 = vld [vmem:[%s1 + $0x1c8] sm:$0xf]
  %v134 = vld [vmem:[%s1 + $0x1cc] sm:$0xf]
  %v135 = vld [vmem:[%s1 + $0x1d0] sm:$0xf]
  %v136 = vld [vmem:[%s1 + $0x1d4] sm:$0xf]
  %v137 = vld [vmem:[%s1 + $0x1d8] sm:$0xf]
  %v138 = vld [vmem:[%s1 + $0x1dc] sm:$0xf]
  %v139 = vld [vmem:[%s1 + $0x1e0] sm:$0xf]
  %v140 = vld [vmem:[%s1 + $0x1e4] sm:$0xf]
  %v141 = vld [vmem:[%s1 + $0x1e8] sm:$0xf]
  %v142 = vld [vmem:[%s1 + $0x1ec] sm:$0xf]
  %v143 = vld [vmem:[%s1 + $0x1f0] sm:$0xf]
  %v144 = vld [vmem:[%s1 + $0x1f4] sm:$0xf]
  %v145 = vld [vmem:[%s1 + $0x1f8] sm:$0xf]
  %v146 = vld [vmem:[%s1 + $0x1fc] sm:$0xf]
  %v147 = vld [vmem:[%s2] sm:$0x1]
  %v149 = vlaneseq
  %v150 = vshrl.u32 %v149, 7
  %v151 = vsub.s32 0, %v150
  %v152 = vrot.slane %v147, %v151
  %v158 = vunpack.c.l.b16 %v15
  %v159 = vunpack.c.h.b16 %v15
  %v160 = vunpack.c.l.b16 %v16
  %v161 = vunpack.c.h.b16 %v16
  %v162 = vunpack.c.l.b16 %v17
  %v163 = vunpack.c.h.b16 %v17
  %v164 = vunpack.c.l.b16 %v18
  %v165 = vunpack.c.h.b16 %v18
  %v166 = vpack.c.b16 %v158, %v158
  %v167 = vpack.c.b16 %v159, %v159
  %v168 = vpack.c.b16 %v160, %v160
  %v169 = vpack.c.b16 %v161, %v161
  %v170 = vpack.c.b16 %v162, %v162
  %v171 = vpack.c.b16 %v163, %v163
  %v172 = vpack.c.b16 %v164, %v164
  %v173 = vpack.c.b16 %v165, %v165
  %v310 = vunpack.c.l.b16 %v19
  %v311 = vunpack.c.l.b16 %v20
  %v312 = vunpack.c.l.b16 %v21
  %v313 = vunpack.c.l.b16 %v22
  %v314 = vunpack.c.l.b16 %v23
  %v315 = vunpack.c.l.b16 %v24
  %v316 = vunpack.c.l.b16 %v25
  %v317 = vunpack.c.l.b16 %v26
  %v318 = vunpack.c.l.b16 %v27
  %v319 = vunpack.c.l.b16 %v28
  %v320 = vunpack.c.l.b16 %v29
  %v321 = vunpack.c.l.b16 %v30
  %v322 = vunpack.c.l.b16 %v31
  %v323 = vunpack.c.l.b16 %v32
  %v324 = vunpack.c.l.b16 %v33
  %v325 = vunpack.c.l.b16 %v34
  %v326 = vunpack.c.l.b16 %v35
  %v327 = vunpack.c.l.b16 %v36
  %v328 = vunpack.c.l.b16 %v37
  %v329 = vunpack.c.l.b16 %v38
  %v330 = vunpack.c.l.b16 %v39
  %v331 = vunpack.c.l.b16 %v40
  %v332 = vunpack.c.l.b16 %v41
  %v333 = vunpack.c.l.b16 %v42
  %v334 = vunpack.c.l.b16 %v43
  %v335 = vunpack.c.l.b16 %v44
  %v336 = vunpack.c.l.b16 %v45
  %v337 = vunpack.c.l.b16 %v46
  %v338 = vunpack.c.l.b16 %v47
  %v339 = vunpack.c.l.b16 %v48
  %v340 = vunpack.c.l.b16 %v49
  %v341 = vunpack.c.l.b16 %v50
  %v342 = vunpack.c.l.b16 %v51
  %v343 = vunpack.c.l.b16 %v52
  %v344 = vunpack.c.l.b16 %v53
  %v345 = vunpack.c.l.b16 %v54
  %v346 = vunpack.c.l.b16 %v55
  %v347 = vunpack.c.l.b16 %v56
  %v348 = vunpack.c.l.b16 %v57
  %v349 = vunpack.c.l.b16 %v58
  %v350 = vunpack.c.l.b16 %v59
  %v351 = vunpack.c.l.b16 %v60
  %v352 = vunpack.c.l.b16 %v61
  %v353 = vunpack.c.l.b16 %v62
  %v354 = vunpack.c.l.b16 %v63
  %v355 = vunpack.c.l.b16 %v64
  %v356 = vunpack.c.l.b16 %v65
  %v357 = vunpack.c.l.b16 %v66
  %v358 = vunpack.c.l.b16 %v67
  %v359 = vunpack.c.l.b16 %v68
  %v360 = vunpack.c.l.b16 %v69
  %v361 = vunpack.c.l.b16 %v70
  %v362 = vunpack.c.l.b16 %v71
  %v363 = vunpack.c.l.b16 %v72
  %v364 = vunpack.c.l.b16 %v73
  %v365 = vunpack.c.l.b16 %v74
  %v366 = vunpack.c.l.b16 %v75
  %v367 = vunpack.c.l.b16 %v76
  %v368 = vunpack.c.l.b16 %v77
  %v369 = vunpack.c.l.b16 %v78
  %v370 = vunpack.c.l.b16 %v79
  %v371 = vunpack.c.l.b16 %v80
  %v372 = vunpack.c.l.b16 %v81
  %v373 = vunpack.c.l.b16 %v82
  %v374 = vunpack.c.l.b16 %v83
  %v375 = vunpack.c.l.b16 %v84
  %v376 = vunpack.c.l.b16 %v85
  %v377 = vunpack.c.l.b16 %v86
  %v378 = vunpack.c.l.b16 %v87
  %v379 = vunpack.c.l.b16 %v88
  %v380 = vunpack.c.l.b16 %v89
  %v381 = vunpack.c.l.b16 %v90
  %v382 = vunpack.c.l.b16 %v91
  %v383 = vunpack.c.l.b16 %v92
  %v384 = vunpack.c.l.b16 %v93
  %v385 = vunpack.c.l.b16 %v94
  %v386 = vunpack.c.l.b16 %v95
  %v387 = vunpack.c.l.b16 %v96
  %v388 = vunpack.c.l.b16 %v97
  %v389 = vunpack.c.l.b16 %v98
  %v390 = vunpack.c.l.b16 %v99
  %v391 = vunpack.c.l.b16 %v100
  %v392 = vunpack.c.l.b16 %v101
  %v393 = vunpack.c.l.b16 %v102
  %v394 = vunpack.c.l.b16 %v103
  %v395 = vunpack.c.l.b16 %v104
  %v396 = vunpack.c.l.b16 %v105
  %v397 = vunpack.c.l.b16 %v106
  %v398 = vunpack.c.l.b16 %v107
  %v399 = vunpack.c.l.b16 %v108
  %v400 = vunpack.c.l.b16 %v109
  %v401 = vunpack.c.l.b16 %v110
  %v402 = vunpack.c.l.b16 %v111
  %v403 = vunpack.c.l.b16 %v112
  %v404 = vunpack.c.l.b16 %v113
  %v405 = vunpack.c.l.b16 %v114
  %v406 = vunpack.c.l.b16 %v115
  %v407 = vunpack.c.l.b16 %v116
  %v408 = vunpack.c.l.b16 %v117
  %v409 = vunpack.c.l.b16 %v118
  %v410 = vunpack.c.l.b16 %v119
  %v411 = vunpack.c.l.b16 %v120
  %v412 = vunpack.c.l.b16 %v121
  %v413 = vunpack.c.l.b16 %v122
  %v414 = vunpack.c.l.b16 %v123
  %v415 = vunpack.c.l.b16 %v124
  %v416 = vunpack.c.l.b16 %v125
  %v417 = vunpack.c.l.b16 %v126
  %v418 = vunpack.c.l.b16 %v127
  %v419 = vunpack.c.l.b16 %v128
  %v420 = vunpack.c.l.b16 %v129
  %v421 = vunpack.c.l.b16 %v130
  %v422 = vunpack.c.l.b16 %v131
  %v423 = vunpack.c.l.b16 %v132
  %v424 = vunpack.c.l.b16 %v133
  %v425 = vunpack.c.l.b16 %v134
  %v426 = vunpack.c.l.b16 %v135
  %v427 = vunpack.c.l.b16 %v136
  %v428 = vunpack.c.l.b16 %v137
  %v429 = vunpack.c.l.b16 %v138
  %v430 = vunpack.c.l.b16 %v139
  %v431 = vunpack.c.l.b16 %v140
  %v432 = vunpack.c.l.b16 %v141
  %v433 = vunpack.c.l.b16 %v142
  %v434 = vunpack.c.l.b16 %v143
  %v435 = vunpack.c.l.b16 %v144
  %v436 = vunpack.c.l.b16 %v145
  %v437 = vunpack.c.l.b16 %v146
  %v438 = vpack.c.b16 %v311, %v310
  %v439 = vpack.c.b16 %v313, %v312
  %v440 = vpack.c.b16 %v315, %v314
  %v441 = vpack.c.b16 %v317, %v316
  %v442 = vpack.c.b16 %v319, %v318
  %v443 = vpack.c.b16 %v321, %v320
  %v444 = vpack.c.b16 %v323, %v322
  %v445 = vpack.c.b16 %v325, %v324
  %v446 = vpack.c.b16 %v327, %v326
  %v447 = vpack.c.b16 %v329, %v328
  %v448 = vpack.c.b16 %v331, %v330
  %v449 = vpack.c.b16 %v333, %v332
  %v450 = vpack.c.b16 %v335, %v334
  %v451 = vpack.c.b16 %v337, %v336
  %v452 = vpack.c.b16 %v339, %v338
  %v453 = vpack.c.b16 %v341, %v340
  %v454 = vpack.c.b16 %v343, %v342
  %v455 = vpack.c.b16 %v345, %v344
  %v456 = vpack.c.b16 %v347, %v346
  %v457 = vpack.c.b16 %v349, %v348
  %v458 = vpack.c.b16 %v351, %v350
  %v459 = vpack.c.b16 %v353, %v352
  %v460 = vpack.c.b16 %v355, %v354
  %v461 = vpack.c.b16 %v357, %v356
  %v462 = vpack.c.b16 %v359, %v358
  %v463 = vpack.c.b16 %v361, %v360
  %v464 = vpack.c.b16 %v363, %v362
  %v465 = vpack.c.b16 %v365, %v364
  %v466 = vpack.c.b16 %v367, %v366
  %v467 = vpack.c.b16 %v369, %v368
  %v468 = vpack.c.b16 %v371, %v370
  %v469 = vpack.c.b16 %v373, %v372
  %v470 = vpack.c.b16 %v375, %v374
  %v471 = vpack.c.b16 %v377, %v376
  %v472 = vpack.c.b16 %v379, %v378
  %v473 = vpack.c.b16 %v381, %v380
  %v474 = vpack.c.b16 %v383, %v382
  %v475 = vpack.c.b16 %v385, %v384
  %v476 = vpack.c.b16 %v387, %v386
  %v477 = vpack.c.b16 %v389, %v388
  %v478 = vpack.c.b16 %v391, %v390
  %v479 = vpack.c.b16 %v393, %v392
  %v480 = vpack.c.b16 %v395, %v394
  %v481 = vpack.c.b16 %v397, %v396
  %v482 = vpack.c.b16 %v399, %v398
  %v483 = vpack.c.b16 %v401, %v400
  %v484 = vpack.c.b16 %v403, %v402
  %v485 = vpack.c.b16 %v405, %v404
  %v486 = vpack.c.b16 %v407, %v406
  %v487 = vpack.c.b16 %v409, %v408
  %v488 = vpack.c.b16 %v411, %v410
  %v489 = vpack.c.b16 %v413, %v412
  %v490 = vpack.c.b16 %v415, %v414
  %v491 = vpack.c.b16 %v417, %v416
  %v492 = vpack.c.b16 %v419, %v418
  %v493 = vpack.c.b16 %v421, %v420
  %v494 = vpack.c.b16 %v423, %v422
  %v495 = vpack.c.b16 %v425, %v424
  %v496 = vpack.c.b16 %v427, %v426
  %v497 = vpack.c.b16 %v429, %v428
  %v498 = vpack.c.b16 %v431, %v430
  %v499 = vpack.c.b16 %v433, %v432
  %v500 = vpack.c.b16 %v435, %v434
  %v501 = vpack.c.b16 %v437, %v436
  %566 = vmatprep.subr.bf16.mxu0 0
  %567 = vmatpush1.bf16.msra.mxu0 %v445
  %568 = vmatprep.subr.bf16.mxu0 0
  %569 = vmatpush1.bf16.msra.mxu0 %v444
  %570 = vmatprep.subr.bf16.mxu0 0
  %571 = vmatpush1.bf16.msra.mxu0 %v443
  %572 = vmatprep.subr.bf16.mxu0 0
  %573 = vmatpush1.bf16.msra.mxu0 %v442
  %574 = vmatprep.subr.bf16.mxu0 0
  %575 = vmatpush1.bf16.msra.mxu0 %v441
  %576 = vmatprep.subr.bf16.mxu0 0
  %577 = vmatpush1.bf16.msra.mxu0 %v440
  %578 = vmatprep.subr.bf16.mxu0 0
  %579 = vmatpush1.bf16.msra.mxu0 %v439
  %580 = vmatprep.subr.bf16.mxu0 0
  %581 = vmatpush1.bf16.msra.mxu0 %v438
  %582 = vmatprep.subr.bf16.mxu0 0
  %583 = vmatpush2.bf16.msra.mxu0 %v453
  %584 = vmatprep.subr.bf16.mxu0 0
  %585 = vmatpush2.bf16.msra.mxu0 %v452
  %586 = vmatprep.subr.bf16.mxu0 0
  %587 = vmatpush2.bf16.msra.mxu0 %v451
  %588 = vmatprep.subr.bf16.mxu0 0
  %589 = vmatpush2.bf16.msra.mxu0 %v450
  %590 = vmatprep.subr.bf16.mxu0 0
  %591 = vmatpush2.bf16.msra.mxu0 %v449
  %592 = vmatprep.subr.bf16.mxu0 0
  %593 = vmatpush2.bf16.msra.mxu0 %v448
  %594 = vmatprep.subr.bf16.mxu0 0
  %595 = vmatpush2.bf16.msra.mxu0 %v447
  %596 = vmatprep.subr.bf16.mxu0 0
  %597 = vmatpush2.bf16.msra.mxu0 %v446
  %598 = vmatprep.mubr.bf16.mxu0 %v167
  %599 = vmatmul.mubr.bf16.gmra.mxu0 %v166
  %v600 = vpop.f32.mrf.mxu0
  %v601 = vadd.f32 %v152, %v600
  %v602 = vpop.f32.mrf.mxu0
  %v603 = vpop.f32.mrf.mxu0
  %v604 = vpop.f32.mrf.mxu0
  %605 = vdwg.mxu0
  %606 = vmatprep.subr.bf16.mxu0 0
  %607 = vmatpush1.bf16.msra.mxu0 %v461
  %608 = vmatprep.subr.bf16.mxu0 0
  %609 = vmatpush1.bf16.msra.mxu0 %v460
  %610 = vmatprep.subr.bf16.mxu0 0
  %611 = vmatpush1.bf16.msra.mxu0 %v459
  %612 = vmatprep.subr.bf16.mxu0 0
  %613 = vmatpush1.bf16.msra.mxu0 %v458
  %614 = vmatprep.subr.bf16.mxu0 0
  %615 = vmatpush1.bf16.msra.mxu0 %v457
  %616 = vmatprep.subr.bf16.mxu0 0
  %617 = vmatpush1.bf16.msra.mxu0 %v456
  %618 = vmatprep.subr.bf16.mxu0 0
  %619 = vmatpush1.bf16.msra.mxu0 %v455
  %620 = vmatprep.subr.bf16.mxu0 0
  %621 = vmatpush1.bf16.msra.mxu0 %v454
  %622 = vmatprep.subr.bf16.mxu0 0
  %623 = vmatpush2.bf16.msra.mxu0 %v469
  %624 = vmatprep.subr.bf16.mxu0 0
  %625 = vmatpush2.bf16.msra.mxu0 %v468
  %626 = vmatprep.subr.bf16.mxu0 0
  %627 = vmatpush2.bf16.msra.mxu0 %v467
  %628 = vmatprep.subr.bf16.mxu0 0
  %629 = vmatpush2.bf16.msra.mxu0 %v466
  %630 = vmatprep.subr.bf16.mxu0 0
  %631 = vmatpush2.bf16.msra.mxu0 %v465
  %632 = vmatprep.subr.bf16.mxu0 0
  %633 = vmatpush2.bf16.msra.mxu0 %v464
  %634 = vmatprep.subr.bf16.mxu0 0
  %635 = vmatpush2.bf16.msra.mxu0 %v463
  %636 = vmatprep.subr.bf16.mxu0 0
  %637 = vmatpush2.bf16.msra.mxu0 %v462
  %638 = vmatprep.mubr.bf16.mxu0 %v169
  %639 = vmatmul.mubr.bf16.gmra.mxu0 %v168
  %v640 = vpop.f32.mrf.mxu0
  %v641 = vadd.f32 %v601, %v640
  %v642 = vpop.f32.mrf.mxu0
  %v643 = vpop.f32.mrf.mxu0
  %v644 = vpop.f32.mrf.mxu0
  %645 = vdwg.mxu0
  %646 = vmatprep.subr.bf16.mxu0 0
  %647 = vmatpush1.bf16.msra.mxu0 %v477
  %648 = vmatprep.subr.bf16.mxu0 0
  %649 = vmatpush1.bf16.msra.mxu0 %v476
  %650 = vmatprep.subr.bf16.mxu0 0
  %651 = vmatpush1.bf16.msra.mxu0 %v475
  %652 = vmatprep.subr.bf16.mxu0 0
  %653 = vmatpush1.bf16.msra.mxu0 %v474
  %654 = vmatprep.subr.bf16.mxu0 0
  %655 = vmatpush1.bf16.msra.mxu0 %v473
  %656 = vmatprep.subr.bf16.mxu0 0
  %657 = vmatpush1.bf16.msra.mxu0 %v472
  %658 = vmatprep.subr.bf16.mxu0 0
  %659 = vmatpush1.bf16.msra.mxu0 %v471
  %660 = vmatprep.subr.bf16.mxu0 0
  %661 = vmatpush1.bf16.msra.mxu0 %v470
  %662 = vmatprep.subr.bf16.mxu0 0
  %663 = vmatpush2.bf16.msra.mxu0 %v485
  %664 = vmatprep.subr.bf16.mxu0 0
  %665 = vmatpush2.bf16.msra.mxu0 %v484
  %666 = vmatprep.subr.bf16.mxu0 0
  %667 = vmatpush2.bf16.msra.mxu0 %v483
  %668 = vmatprep.subr.bf16.mxu0 0
  %669 = vmatpush2.bf16.msra.mxu0 %v482
  %670 = vmatprep.subr.bf16.mxu0 0
  %671 = vmatpush2.bf16.msra.mxu0 %v481
  %672 = vmatprep.subr.bf16.mxu0 0
  %673 = vmatpush2.bf16.msra.mxu0 %v480
  %674 = vmatprep.subr.bf16.mxu0 0
  %675 = vmatpush2.bf16.msra.mxu0 %v479
  %676 = vmatprep.subr.bf16.mxu0 0
  %677 = vmatpush2.bf16.msra.mxu0 %v478
  %678 = vmatprep.mubr.bf16.mxu0 %v171
  %679 = vmatmul.mubr.bf16.gmra.mxu0 %v170
  %v680 = vpop.f32.mrf.mxu0
  %v681 = vadd.f32 %v641, %v680
  %v682 = vpop.f32.mrf.mxu0
  %v683 = vpop.f32.mrf.mxu0
  %v684 = vpop.f32.mrf.mxu0
  %685 = vdwg.mxu0
  %686 = vmatprep.subr.bf16.mxu0 0
  %687 = vmatpush1.bf16.msra.mxu0 %v493
  %688 = vmatprep.subr.bf16.mxu0 0
  %689 = vmatpush1.bf16.msra.mxu0 %v492
  %690 = vmatprep.subr.bf16.mxu0 0
  %691 = vmatpush1.bf16.msra.mxu0 %v491
  %692 = vmatprep.subr.bf16.mxu0 0
  %693 = vmatpush1.bf16.msra.mxu0 %v490
  %694 = vmatprep.subr.bf16.mxu0 0
  %695 = vmatpush1.bf16.msra.mxu0 %v489
  %696 = vmatprep.subr.bf16.mxu0 0
  %697 = vmatpush1.bf16.msra.mxu0 %v488
  %698 = vmatprep.subr.bf16.mxu0 0
  %699 = vmatpush1.bf16.msra.mxu0 %v487
  %700 = vmatprep.subr.bf16.mxu0 0
  %701 = vmatpush1.bf16.msra.mxu0 %v486
  %702 = vmatprep.subr.bf16.mxu0 0
  %703 = vmatpush2.bf16.msra.mxu0 %v501
  %704 = vmatprep.subr.bf16.mxu0 0
  %705 = vmatpush2.bf16.msra.mxu0 %v500
  %706 = vmatprep.subr.bf16.mxu0 0
  %707 = vmatpush2.bf16.msra.mxu0 %v499
  %708 = vmatprep.subr.bf16.mxu0 0
  %709 = vmatpush2.bf16.msra.mxu0 %v498
  %710 = vmatprep.subr.bf16.mxu0 0
  %711 = vmatpush2.bf16.msra.mxu0 %v497
  %712 = vmatprep.subr.bf16.mxu0 0
  %713 = vmatpush2.bf16.msra.mxu0 %v496
  %714 = vmatprep.subr.bf16.mxu0 0
  %715 = vmatpush2.bf16.msra.mxu0 %v495
  %716 = vmatprep.subr.bf16.mxu0 0
  %717 = vmatpush2.bf16.msra.mxu0 %v494
  %718 = vmatprep.mubr.bf16.mxu0 %v173
  %719 = vmatmul.mubr.bf16.gmra.mxu0 %v172
  %v720 = vpop.f32.mrf.mxu0
  %v721 = vadd.f32 %v681, %v720
  %v722 = vpop.f32.mrf.mxu0
  %v723 = vpop.f32.mrf.mxu0
  %v724 = vpop.f32.mrf.mxu0
  %725 = vdwg.mxu0
  %v726 = vmax.f32 %v721, 0.0
  %v727 = vpack.c.bf16 %v726, %v726
  %728 = vst [vmem:[%s3] sm:$0xf] %v727
  // Predicated region
  $region14: #{qnetwork_forward.7} parent=0 // pred_check
    _
  $region15: #{qnetwork_forward.7} parent=0 // pred_check_branch
    %730 = sbr.rel (0) target = $region17
  $region16: #{qnetwork_forward.7} parent=0 // pred_region
    _
  $region17: #{qnetwork_forward.7} parent=0 // pred_fallthru
    _
  // Predicated region
  $region18: #{qnetwork_forward.7} parent=0 // pred_check
    _
  $region19: #{qnetwork_forward.7} parent=0 // pred_check_branch
    %732 = sbr.rel (0) target = $region21
  $region20: #{qnetwork_forward.7} parent=0 // pred_region
    _
  $region21: #{qnetwork_forward.7} parent=0 // pred_fallthru
    _

// kernel: qnetwork_forward.8
$region0: #{qnetwork_forward.8}
  #allocation0 [shape = 'u32[]', space=smem, size = 0x4, offset = 0x4, fixed_abs, tag = 'smem constant byte address 0x4 - core index']
  #allocation1 [shape = 'u32[144,128]{1,0:T(1,128)}', space=vmem, size = 0x12000, scoped, tag = 'internal scratch']
  %s0 = inlined_call_operand.vmem [shape: bf16[8,1152], index: 0, kind: input, shape index: {}]
  %s1 = inlined_call_operand.vmem [shape: bf16[1152,128], index: 1, kind: input, shape index: {}]
  %s2 = inlined_call_operand.vmem [shape: f32[1,128], index: 2, kind: input, shape index: {}]
  %s3 = inlined_call_operand.vmem [shape: bf16[8,128], index: 3, kind: output, shape index: {}]
  %s4 = sld [smem:[#allocation0]]
  $region22: #{qnetwork_forward.8} parent=0
    _
  %s6 = ssub.s32 1, %s4
  %s7 = scalar_select 0, %s6, %s4
  // Predicated region
  $region2: #{qnetwork_forward.8} parent=0 // pred_check
    _
  $region3: #{qnetwork_forward.8} parent=0 // pred_check_branch
    %9 = sbr.rel (0) target = $region5
  $region4: #{qnetwork_forward.8} parent=0 // pred_region
    _
  $region5: #{qnetwork_forward.8} parent=0 // pred_fallthru
    _
  // Predicated region
  $region6: #{qnetwork_forward.8} parent=0 // pred_check
    _
  $region7: #{qnetwork_forward.8} parent=0 // pred_check_branch
    %11 = sbr.rel (0) target = $region9
  $region8: #{qnetwork_forward.8} parent=0 // pred_region
    _
  $region9: #{qnetwork_forward.8} parent=0 // pred_fallthru
    _
  // Predicated region
  $region10: #{qnetwork_forward.8} parent=0 // pred_check
    _
  $region11: #{qnetwork_forward.8} parent=0 // pred_check_branch
    %13 = sbr.rel (0) target = $region13
  $region12: #{qnetwork_forward.8} parent=0 // pred_region
    _
  $region13: #{qnetwork_forward.8} parent=0 // pred_fallthru
    _
  %v15 = vld [vmem:[%s0] sm:$0xff]
  %v16 = vld [vmem:[%s0 + $0x8] sm:$0xff]
  %v17 = vld [vmem:[%s0 + $0x10] sm:$0xff]
  %v18 = vld [vmem:[%s0 + $0x18] sm:$0xff]
  %v19 = vld [vmem:[%s0 + $0x20] sm:$0xf]
  %v20 = vld [vmem:[%s1] sm:$0xf]
  %v21 = vld [vmem:[%s1 + $0x4] sm:$0xf]
  %v22 = vld [vmem:[%s1 + $0x8] sm:$0xf]
  %v23 = vld [vmem:[%s1 + $0xc] sm:$0xf]
  %v24 = vld [vmem:[%s1 + $0x10] sm:$0xf]
  %v25 = vld [vmem:[%s1 + $0x14] sm:$0xf]
  %v26 = vld [vmem:[%s1 + $0x18] sm:$0xf]
  %v27 = vld [vmem:[%s1 + $0x1c] sm:$0xf]
  %v28 = vld [vmem:[%s1 + $0x20] sm:$0xf]
  %v29 = vld [vmem:[%s1 + $0x24] sm:$0xf]
  %v30 = vld [vmem:[%s1 + $0x28] sm:$0xf]
  %v31 = vld [vmem:[%s1 + $0x2c] sm:$0xf]
  %v32 = vld [vmem:[%s1 + $0x30] sm:$0xf]
  %v33 = vld [vmem:[%s1 + $0x34] sm:$0xf]
  %v34 = vld [vmem:[%s1 + $0x38] sm:$0xf]
  %v35 = vld [vmem:[%s1 + $0x3c] sm:$0xf]
  %v36 = vld [vmem:[%s1 + $0x40] sm:$0xf]
  %v37 = vld [vmem:[%s1 + $0x44] sm:$0xf]
  %v38 = vld [vmem:[%s1 + $0x48] sm:$0xf]
  %v39 = vld [vmem:[%s1 + $0x4c] sm:$0xf]
  %v40 = vld [vmem:[%s1 + $0x50] sm:$0xf]
  %v41 = vld [vmem:[%s1 + $0x54] sm:$0xf]
  %v42 = vld [vmem:[%s1 + $0x58] sm:$0xf]
  %v43 = vld [vmem:[%s1 + $0x5c] sm:$0xf]
  %v44 = vld [vmem:[%s1 + $0x60] sm:$0xf]
  %v45 = vld [vmem:[%s1 + $0x64] sm:$0xf]
  %v46 = vld [vmem:[%s1 + $0x68] sm:$0xf]
  %v47 = vld [vmem:[%s1 + $0x6c] sm:$0xf]
  %v48 = vld [vmem:[%s1 + $0x70] sm:$0xf]
  %v49 = vld [vmem:[%s1 + $0x74] sm:$0xf]
  %v50 = vld [vmem:[%s1 + $0x78] sm:$0xf]
  %v51 = vld [vmem:[%s1 + $0x7c] sm:$0xf]
  %v52 = vld [vmem:[%s1 + $0x80] sm:$0xf]
  %v53 = vld [vmem:[%s1 + $0x84] sm:$0xf]
  %v54 = vld [vmem:[%s1 + $0x88] sm:$0xf]
  %v55 = vld [vmem:[%s1 + $0x8c] sm:$0xf]
  %v56 = vld [vmem:[%s1 + $0x90] sm:$0xf]
  %v57 = vld [vmem:[%s1 + $0x94] sm:$0xf]
  %v58 = vld [vmem:[%s1 + $0x98] sm:$0xf]
  %v59 = vld [vmem:[%s1 + $0x9c] sm:$0xf]
  %v60 = vld [vmem:[%s1 + $0xa0] sm:$0xf]
  %v61 = vld [vmem:[%s1 + $0xa4] sm:$0xf]
  %v62 = vld [vmem:[%s1 + $0xa8] sm:$0xf]
  %v63 = vld [vmem:[%s1 + $0xac] sm:$0xf]
  %v64 = vld [vmem:[%s1 + $0xb0] sm:$0xf]
  %v65 = vld [vmem:[%s1 + $0xb4] sm:$0xf]
  %v66 = vld [vmem:[%s1 + $0xb8] sm:$0xf]
  %v67 = vld [vmem:[%s1 + $0xbc] sm:$0xf]
  %v68 = vld [vmem:[%s1 + $0xc0] sm:$0xf]
  %v69 = vld [vmem:[%s1 + $0xc4] sm:$0xf]
  %v70 = vld [vmem:[%s1 + $0xc8] sm:$0xf]
  %v71 = vld [vmem:[%s1 + $0xcc] sm:$0xf]
  %v72 = vld [vmem:[%s1 + $0xd0] sm:$0xf]
  %v73 = vld [vmem:[%s1 + $0xd4] sm:$0xf]
  %v74 = vld [vmem:[%s1 + $0xd8] sm:$0xf]
  %v75 = vld [vmem:[%s1 + $0xdc] sm:$0xf]
  %v76 = vld [vmem:[%s1 + $0xe0] sm:$0xf]
  %v77 = vld [vmem:[%s1 + $0xe4] sm:$0xf]
  %v78 = vld [vmem:[%s1 + $0xe8] sm:$0xf]
  %v79 = vld [vmem:[%s1 + $0xec] sm:$0xf]
  %v80 = vld [vmem:[%s1 + $0xf0] sm:$0xf]
  %v81 = vld [vmem:[%s1 + $0xf4] sm:$0xf]
  %v82 = vld [vmem:[%s1 + $0xf8] sm:$0xf]
  %v83 = vld [vmem:[%s1 + $0xfc] sm:$0xf]
  %v84 = vld [vmem:[%s1 + $0x100] sm:$0xf]
  %v85 = vld [vmem:[%s1 + $0x104] sm:$0xf]
  %v86 = vld [vmem:[%s1 + $0x108] sm:$0xf]
  %v87 = vld [vmem:[%s1 + $0x10c] sm:$0xf]
  %v88 = vld [vmem:[%s1 + $0x110] sm:$0xf]
  %v89 = vld [vmem:[%s1 + $0x114] sm:$0xf]
  %v90 = vld [vmem:[%s1 + $0x118] sm:$0xf]
  %v91 = vld [vmem:[%s1 + $0x11c] sm:$0xf]
  %v92 = vld [vmem:[%s1 + $0x120] sm:$0xf]
  %v93 = vld [vmem:[%s1 + $0x124] sm:$0xf]
  %v94 = vld [vmem:[%s1 + $0x128] sm:$0xf]
  %v95 = vld [vmem:[%s1 + $0x12c] sm:$0xf]
  %v96 = vld [vmem:[%s1 + $0x130] sm:$0xf]
  %v97 = vld [vmem:[%s1 + $0x134] sm:$0xf]
  %v98 = vld [vmem:[%s1 + $0x138] sm:$0xf]
  %v99 = vld [vmem:[%s1 + $0x13c] sm:$0xf]
  %v100 = vld [vmem:[%s1 + $0x140] sm:$0xf]
  %v101 = vld [vmem:[%s1 + $0x144] sm:$0xf]
  %v102 = vld [vmem:[%s1 + $0x148] sm:$0xf]
  %v103 = vld [vmem:[%s1 + $0x14c] sm:$0xf]
  %v104 = vld [vmem:[%s1 + $0x150] sm:$0xf]
  %v105 = vld [vmem:[%s1 + $0x154] sm:$0xf]
  %v106 = vld [vmem:[%s1 + $0x158] sm:$0xf]
  %v107 = vld [vmem:[%s1 + $0x15c] sm:$0xf]
  %v108 = vld [vmem:[%s1 + $0x160] sm:$0xf]
  %v109 = vld [vmem:[%s1 + $0x164] sm:$0xf]
  %v110 = vld [vmem:[%s1 + $0x168] sm:$0xf]
  %v111 = vld [vmem:[%s1 + $0x16c] sm:$0xf]
  %v112 = vld [vmem:[%s1 + $0x170] sm:$0xf]
  %v113 = vld [vmem:[%s1 + $0x174] sm:$0xf]
  %v114 = vld [vmem:[%s1 + $0x178] sm:$0xf]
  %v115 = vld [vmem:[%s1 + $0x17c] sm:$0xf]
  %v116 = vld [vmem:[%s1 + $0x180] sm:$0xf]
  %v117 = vld [vmem:[%s1 + $0x184] sm:$0xf]
  %v118 = vld [vmem:[%s1 + $0x188] sm:$0xf]
  %v119 = vld [vmem:[%s1 + $0x18c] sm:$0xf]
  %v120 = vld [vmem:[%s1 + $0x190] sm:$0xf]
  %v121 = vld [vmem:[%s1 + $0x194] sm:$0xf]
  %v122 = vld [vmem:[%s1 + $0x198] sm:$0xf]
  %v123 = vld [vmem:[%s1 + $0x19c] sm:$0xf]
  %v124 = vld [vmem:[%s1 + $0x1a0] sm:$0xf]
  %v125 = vld [vmem:[%s1 + $0x1a4] sm:$0xf]
  %v126 = vld [vmem:[%s1 + $0x1a8] sm:$0xf]
  %v127 = vld [vmem:[%s1 + $0x1ac] sm:$0xf]
  %v128 = vld [vmem:[%s1 + $0x1b0] sm:$0xf]
  %v129 = vld [vmem:[%s1 + $0x1b4] sm:$0xf]
  %v130 = vld [vmem:[%s1 + $0x1b8] sm:$0xf]
  %v131 = vld [vmem:[%s1 + $0x1bc] sm:$0xf]
  %v132 = vld [vmem:[%s1 + $0x1c0] sm:$0xf]
  %v133 = vld [vmem:[%s1 + $0x1c4] sm:$0xf]
  %v134 = vld [vmem:[%s1 + $0x1c8] sm:$0xf]
  %v135 = vld [vmem:[%s1 + $0x1cc] sm:$0xf]
  %v136 = vld [vmem:[%s1 + $0x1d0] sm:$0xf]
  %v137 = vld [vmem:[%s1 + $0x1d4] sm:$0xf]
  %v138 = vld [vmem:[%s1 + $0x1d8] sm:$0xf]
  %v139 = vld [vmem:[%s1 + $0x1dc] sm:$0xf]
  %v140 = vld [vmem:[%s1 + $0x1e0] sm:$0xf]
  %v141 = vld [vmem:[%s1 + $0x1e4] sm:$0xf]
  %v142 = vld [vmem:[%s1 + $0x1e8] sm:$0xf]
  %v143 = vld [vmem:[%s1 + $0x1ec] sm:$0xf]
  %v144 = vld [vmem:[%s1 + $0x1f0] sm:$0xf]
  %v145 = vld [vmem:[%s1 + $0x1f4] sm:$0xf]
  %v146 = vld [vmem:[%s1 + $0x1f8] sm:$0xf]
  %v147 = vld [vmem:[%s1 + $0x1fc] sm:$0xf]
  %v148 = vld [vmem:[%s1 + $0x200] sm:$0xf]
  %v149 = vld [vmem:[%s1 + $0x204] sm:$0xf]
  %v150 = vld [vmem:[%s1 + $0x208] sm:$0xf]
  %v151 = vld [vmem:[%s1 + $0x20c] sm:$0xf]
  %v152 = vld [vmem:[%s1 + $0x210] sm:$0xf]
  %v153 = vld [vmem:[%s1 + $0x214] sm:$0xf]
  %v154 = vld [vmem:[%s1 + $0x218] sm:$0xf]
  %v155 = vld [vmem:[%s1 + $0x21c] sm:$0xf]
  %v156 = vld [vmem:[%s1 + $0x220] sm:$0xf]
  %v157 = vld [vmem:[%s1 + $0x224] sm:$0xf]
  %v158 = vld [vmem:[%s1 + $0x228] sm:$0xf]
  %v159 = vld [vmem:[%s1 + $0x22c] sm:$0xf]
  %v160 = vld [vmem:[%s1 + $0x230] sm:$0xf]
  %v161 = vld [vmem:[%s1 + $0x234] sm:$0xf]
  %v162 = vld [vmem:[%s1 + $0x238] sm:$0xf]
  %v163 = vld [vmem:[%s1 + $0x23c] sm:$0xf]
  %v164 = vld [vmem:[%s2] sm:$0x1]
  %v166 = vlaneseq
  %v167 = vshrl.u32 %v166, 7
  %v168 = vsub.s32 0, %v167
  %v169 = vrot.slane %v164, %v168
  %v176 = vunpack.c.l.b16 %v15
  %v177 = vunpack.c.h.b16 %v15
  %v178 = vunpack.c.l.b16 %v16
  %v179 = vunpack.c.h.b16 %v16
  %v180 = vunpack.c.l.b16 %v17
  %v181 = vunpack.c.h.b16 %v17
  %v182 = vunpack.c.l.b16 %v18
  %v183 = vunpack.c.h.b16 %v18
  %v184 = vunpack.c.l.b16 %v19
  %v185 = vpack.c.b16 %v176, %v176
  %v186 = vpack.c.b16 %v177, %v177
  %v187 = vpack.c.b16 %v178, %v178
  %v188 = vpack.c.b16 %v179, %v179
  %v189 = vpack.c.b16 %v180, %v180
  %v190 = vpack.c.b16 %v181, %v181
  %v191 = vpack.c.b16 %v182, %v182
  %v192 = vpack.c.b16 %v183, %v183
  %v193 = vpack.c.b16 %v184, %v184
  %v347 = vunpack.c.l.b16 %v20
  %v348 = vunpack.c.l.b16 %v21
  %v349 = vunpack.c.l.b16 %v22
  %v350 = vunpack.c.l.b16 %v23
  %v351 = vunpack.c.l.b16 %v24
  %v352 = vunpack.c.l.b16 %v25
  %v353 = vunpack.c.l.b16 %v26
  %v354 = vunpack.c.l.b16 %v27
  %v355 = vunpack.c.l.b16 %v28
  %v356 = vunpack.c.l.b16 %v29
  %v357 = vunpack.c.l.b16 %v30
  %v358 = vunpack.c.l.b16 %v31
  %v359 = vunpack.c.l.b16 %v32
  %v360 = vunpack.c.l.b16 %v33
  %v361 = vunpack.c.l.b16 %v34
  %v362 = vunpack.c.l.b16 %v35
  %v363 = vunpack.c.l.b16 %v36
  %v364 = vunpack.c.l.b16 %v37
  %v365 = vunpack.c.l.b16 %v38
  %v366 = vunpack.c.l.b16 %v39
  %v367 = vunpack.c.l.b16 %v40
  %v368 = vunpack.c.l.b16 %v41
  %v369 = vunpack.c.l.b16 %v42
  %v370 = vunpack.c.l.b16 %v43
  %v371 = vunpack.c.l.b16 %v44
  %v372 = vunpack.c.l.b16 %v45
  %v373 = vunpack.c.l.b16 %v46
  %v374 = vunpack.c.l.b16 %v47
  %v375 = vunpack.c.l.b16 %v48
  %v376 = vunpack.c.l.b16 %v49
  %v377 = vunpack.c.l.b16 %v50
  %v378 = vunpack.c.l.b16 %v51
  %v379 = vunpack.c.l.b16 %v52
  %v380 = vunpack.c.l.b16 %v53
  %v381 = vunpack.c.l.b16 %v54
  %v382 = vunpack.c.l.b16 %v55
  %v383 = vunpack.c.l.b16 %v56
  %v384 = vunpack.c.l.b16 %v57
  %v385 = vunpack.c.l.b16 %v58
  %v386 = vunpack.c.l.b16 %v59
  %v387 = vunpack.c.l.b16 %v60
  %v388 = vunpack.c.l.b16 %v61
  %v389 = vunpack.c.l.b16 %v62
  %v390 = vunpack.c.l.b16 %v63
  %v391 = vunpack.c.l.b16 %v64
  %v392 = vunpack.c.l.b16 %v65
  %v393 = vunpack.c.l.b16 %v66
  %v394 = vunpack.c.l.b16 %v67
  %v395 = vunpack.c.l.b16 %v68
  %v396 = vunpack.c.l.b16 %v69
  %v397 = vunpack.c.l.b16 %v70
  %v398 = vunpack.c.l.b16 %v71
  %v399 = vunpack.c.l.b16 %v72
  %v400 = vunpack.c.l.b16 %v73
  %v401 = vunpack.c.l.b16 %v74
  %v402 = vunpack.c.l.b16 %v75
  %v403 = vunpack.c.l.b16 %v76
  %v404 = vunpack.c.l.b16 %v77
  %v405 = vunpack.c.l.b16 %v78
  %v406 = vunpack.c.l.b16 %v79
  %v407 = vunpack.c.l.b16 %v80
  %v408 = vunpack.c.l.b16 %v81
  %v409 = vunpack.c.l.b16 %v82
  %v410 = vunpack.c.l.b16 %v83
  %v411 = vunpack.c.l.b16 %v84
  %v412 = vunpack.c.l.b16 %v85
  %v413 = vunpack.c.l.b16 %v86
  %v414 = vunpack.c.l.b16 %v87
  %v415 = vunpack.c.l.b16 %v88
  %v416 = vunpack.c.l.b16 %v89
  %v417 = vunpack.c.l.b16 %v90
  %v418 = vunpack.c.l.b16 %v91
  %v419 = vunpack.c.l.b16 %v92
  %v420 = vunpack.c.l.b16 %v93
  %v421 = vunpack.c.l.b16 %v94
  %v422 = vunpack.c.l.b16 %v95
  %v423 = vunpack.c.l.b16 %v96
  %v424 = vunpack.c.l.b16 %v97
  %v425 = vunpack.c.l.b16 %v98
  %v426 = vunpack.c.l.b16 %v99
  %v427 = vunpack.c.l.b16 %v100
  %v428 = vunpack.c.l.b16 %v101
  %v429 = vunpack.c.l.b16 %v102
  %v430 = vunpack.c.l.b16 %v103
  %v431 = vunpack.c.l.b16 %v104
  %v432 = vunpack.c.l.b16 %v105
  %v433 = vunpack.c.l.b16 %v106
  %v434 = vunpack.c.l.b16 %v107
  %v435 = vunpack.c.l.b16 %v108
  %v436 = vunpack.c.l.b16 %v109
  %v437 = vunpack.c.l.b16 %v110
  %v438 = vunpack.c.l.b16 %v111
  %v439 = vunpack.c.l.b16 %v112
  %v440 = vunpack.c.l.b16 %v113
  %v441 = vunpack.c.l.b16 %v114
  %v442 = vunpack.c.l.b16 %v115
  %v443 = vunpack.c.l.b16 %v116
  %v444 = vunpack.c.l.b16 %v117
  %v445 = vunpack.c.l.b16 %v118
  %v446 = vunpack.c.l.b16 %v119
  %v447 = vunpack.c.l.b16 %v120
  %v448 = vunpack.c.l.b16 %v121
  %v449 = vunpack.c.l.b16 %v122
  %v450 = vunpack.c.l.b16 %v123
  %v451 = vunpack.c.l.b16 %v124
  %v452 = vunpack.c.l.b16 %v125
  %v453 = vunpack.c.l.b16 %v126
  %v454 = vunpack.c.l.b16 %v127
  %v455 = vunpack.c.l.b16 %v128
  %v456 = vunpack.c.l.b16 %v129
  %v457 = vunpack.c.l.b16 %v130
  %v458 = vunpack.c.l.b16 %v131
  %v459 = vunpack.c.l.b16 %v132
  %v460 = vunpack.c.l.b16 %v133
  %v461 = vunpack.c.l.b16 %v134
  %v462 = vunpack.c.l.b16 %v135
  %v463 = vunpack.c.l.b16 %v136
  %v464 = vunpack.c.l.b16 %v137
  %v465 = vunpack.c.l.b16 %v138
  %v466 = vunpack.c.l.b16 %v139
  %v467 = vunpack.c.l.b16 %v140
  %v468 = vunpack.c.l.b16 %v141
  %v469 = vunpack.c.l.b16 %v142
  %v470 = vunpack.c.l.b16 %v143
  %v471 = vunpack.c.l.b16 %v144
  %v472 = vunpack.c.l.b16 %v145
  %v473 = vunpack.c.l.b16 %v146
  %v474 = vunpack.c.l.b16 %v147
  %v475 = vunpack.c.l.b16 %v148
  %v476 = vunpack.c.l.b16 %v149
  %v477 = vunpack.c.l.b16 %v150
  %v478 = vunpack.c.l.b16 %v151
  %v479 = vunpack.c.l.b16 %v152
  %v480 = vunpack.c.l.b16 %v153
  %v481 = vunpack.c.l.b16 %v154
  %v482 = vunpack.c.l.b16 %v155
  %v483 = vunpack.c.l.b16 %v156
  %v484 = vunpack.c.l.b16 %v157
  %v485 = vunpack.c.l.b16 %v158
  %v486 = vunpack.c.l.b16 %v159
  %v487 = vunpack.c.l.b16 %v160
  %v488 = vunpack.c.l.b16 %v161
  %v489 = vunpack.c.l.b16 %v162
  %v490 = vunpack.c.l.b16 %v163
  %v491 = vpack.c.b16 %v348, %v347
  %v492 = vpack.c.b16 %v350, %v349
  %v493 = vpack.c.b16 %v352, %v351
  %v494 = vpack.c.b16 %v354, %v353
  %v495 = vpack.c.b16 %v356, %v355
  %v496 = vpack.c.b16 %v358, %v357
  %v497 = vpack.c.b16 %v360, %v359
  %v498 = vpack.c.b16 %v362, %v361
  %v499 = vpack.c.b16 %v364, %v363
  %v500 = vpack.c.b16 %v366, %v365
  %v501 = vpack.c.b16 %v368, %v367
  %v502 = vpack.c.b16 %v370, %v369
  %v503 = vpack.c.b16 %v372, %v371
  %v504 = vpack.c.b16 %v374, %v373
  %v505 = vpack.c.b16 %v376, %v375
  %v506 = vpack.c.b16 %v378, %v377
  %v507 = vpack.c.b16 %v380, %v379
  %v508 = vpack.c.b16 %v382, %v381
  %v509 = vpack.c.b16 %v384, %v383
  %v510 = vpack.c.b16 %v386, %v385
  %v511 = vpack.c.b16 %v388, %v387
  %v512 = vpack.c.b16 %v390, %v389
  %v513 = vpack.c.b16 %v392, %v391
  %v514 = vpack.c.b16 %v394, %v393
  %v515 = vpack.c.b16 %v396, %v395
  %v516 = vpack.c.b16 %v398, %v397
  %v517 = vpack.c.b16 %v400, %v399
  %v518 = vpack.c.b16 %v402, %v401
  %v519 = vpack.c.b16 %v404, %v403
  %v520 = vpack.c.b16 %v406, %v405
  %v521 = vpack.c.b16 %v408, %v407
  %v522 = vpack.c.b16 %v410, %v409
  %v523 = vpack.c.b16 %v412, %v411
  %v524 = vpack.c.b16 %v414, %v413
  %v525 = vpack.c.b16 %v416, %v415
  %v526 = vpack.c.b16 %v418, %v417
  %v527 = vpack.c.b16 %v420, %v419
  %v528 = vpack.c.b16 %v422, %v421
  %v529 = vpack.c.b16 %v424, %v423
  %v530 = vpack.c.b16 %v426, %v425
  %v531 = vpack.c.b16 %v428, %v427
  %v532 = vpack.c.b16 %v430, %v429
  %v533 = vpack.c.b16 %v432, %v431
  %v534 = vpack.c.b16 %v434, %v433
  %v535 = vpack.c.b16 %v436, %v435
  %v536 = vpack.c.b16 %v438, %v437
  %v537 = vpack.c.b16 %v440, %v439
  %v538 = vpack.c.b16 %v442, %v441
  %v539 = vpack.c.b16 %v444, %v443
  %v540 = vpack.c.b16 %v446, %v445
  %v541 = vpack.c.b16 %v448, %v447
  %v542 = vpack.c.b16 %v450, %v449
  %v543 = vpack.c.b16 %v452, %v451
  %v544 = vpack.c.b16 %v454, %v453
  %v545 = vpack.c.b16 %v456, %v455
  %v546 = vpack.c.b16 %v458, %v457
  %v547 = vpack.c.b16 %v460, %v459
  %v548 = vpack.c.b16 %v462, %v461
  %v549 = vpack.c.b16 %v464, %v463
  %v550 = vpack.c.b16 %v466, %v465
  %v551 = vpack.c.b16 %v468, %v467
  %v552 = vpack.c.b16 %v470, %v469
  %v553 = vpack.c.b16 %v472, %v471
  %v554 = vpack.c.b16 %v474, %v473
  %v555 = vpack.c.b16 %v476, %v475
  %v556 = vpack.c.b16 %v478, %v477
  %v557 = vpack.c.b16 %v480, %v479
  %v558 = vpack.c.b16 %v482, %v481
  %v559 = vpack.c.b16 %v484, %v483
  %v560 = vpack.c.b16 %v486, %v485
  %v561 = vpack.c.b16 %v488, %v487
  %v562 = vpack.c.b16 %v490, %v489
  %635 = vmatprep.subr.bf16.mxu0 0
  %636 = vmatpush1.bf16.msra.mxu0 %v498
  %637 = vmatprep.subr.bf16.mxu0 0
  %638 = vmatpush1.bf16.msra.mxu0 %v497
  %639 = vmatprep.subr.bf16.mxu0 0
  %640 = vmatpush1.bf16.msra.mxu0 %v496
  %641 = vmatprep.subr.bf16.mxu0 0
  %642 = vmatpush1.bf16.msra.mxu0 %v495
  %643 = vmatprep.subr.bf16.mxu0 0
  %644 = vmatpush1.bf16.msra.mxu0 %v494
  %645 = vmatprep.subr.bf16.mxu0 0
  %646 = vmatpush1.bf16.msra.mxu0 %v493
  %647 = vmatprep.subr.bf16.mxu0 0
  %648 = vmatpush1.bf16.msra.mxu0 %v492
  %649 = vmatprep.subr.bf16.mxu0 0
  %650 = vmatpush1.bf16.msra.mxu0 %v491
  %651 = vmatprep.subr.bf16.mxu0 0
  %652 = vmatpush2.bf16.msra.mxu0 %v506
  %653 = vmatprep.subr.bf16.mxu0 0
  %654 = vmatpush2.bf16.msra.mxu0 %v505
  %655 = vmatprep.subr.bf16.mxu0 0
  %656 = vmatpush2.bf16.msra.mxu0 %v504
  %657 = vmatprep.subr.bf16.mxu0 0
  %658 = vmatpush2.bf16.msra.mxu0 %v503
  %659 = vmatprep.subr.bf16.mxu0 0
  %660 = vmatpush2.bf16.msra.mxu0 %v502
  %661 = vmatprep.subr.bf16.mxu0 0
  %662 = vmatpush2.bf16.msra.mxu0 %v501
  %663 = vmatprep.subr.bf16.mxu0 0
  %664 = vmatpush2.bf16.msra.mxu0 %v500
  %665 = vmatprep.subr.bf16.mxu0 0
  %666 = vmatpush2.bf16.msra.mxu0 %v499
  %667 = vmatprep.mubr.bf16.mxu0 %v186
  %668 = vmatmul.mubr.bf16.gmra.mxu0 %v185
  %v669 = vpop.f32.mrf.mxu0
  %v670 = vadd.f32 %v169, %v669
  %v671 = vpop.f32.mrf.mxu0
  %v672 = vpop.f32.mrf.mxu0
  %v673 = vpop.f32.mrf.mxu0
  %674 = vdwg.mxu0
  %675 = vmatprep.subr.bf16.mxu0 0
  %676 = vmatpush1.bf16.msra.mxu0 %v514
  %677 = vmatprep.subr.bf16.mxu0 0
  %678 = vmatpush1.bf16.msra.mxu0 %v513
  %679 = vmatprep.subr.bf16.mxu0 0
  %680 = vmatpush1.bf16.msra.mxu0 %v512
  %681 = vmatprep.subr.bf16.mxu0 0
  %682 = vmatpush1.bf16.msra.mxu0 %v511
  %683 = vmatprep.subr.bf16.mxu0 0
  %684 = vmatpush1.bf16.msra.mxu0 %v510
  %685 = vmatprep.subr.bf16.mxu0 0
  %686 = vmatpush1.bf16.msra.mxu0 %v509
  %687 = vmatprep.subr.bf16.mxu0 0
  %688 = vmatpush1.bf16.msra.mxu0 %v508
  %689 = vmatprep.subr.bf16.mxu0 0
  %690 = vmatpush1.bf16.msra.mxu0 %v507
  %691 = vmatprep.subr.bf16.mxu0 0
  %692 = vmatpush2.bf16.msra.mxu0 %v522
  %693 = vmatprep.subr.bf16.mxu0 0
  %694 = vmatpush2.bf16.msra.mxu0 %v521
  %695 = vmatprep.subr.bf16.mxu0 0
  %696 = vmatpush2.bf16.msra.mxu0 %v520
  %697 = vmatprep.subr.bf16.mxu0 0
  %698 = vmatpush2.bf16.msra.mxu0 %v519
  %699 = vmatprep.subr.bf16.mxu0 0
  %700 = vmatpush2.bf16.msra.mxu0 %v518
  %701 = vmatprep.subr.bf16.mxu0 0
  %702 = vmatpush2.bf16.msra.mxu0 %v517
  %703 = vmatprep.subr.bf16.mxu0 0
  %704 = vmatpush2.bf16.msra.mxu0 %v516
  %705 = vmatprep.subr.bf16.mxu0 0
  %706 = vmatpush2.bf16.msra.mxu0 %v515
  %707 = vmatprep.mubr.bf16.mxu0 %v188
  %708 = vmatmul.mubr.bf16.gmra.mxu0 %v187
  %v709 = vpop.f32.mrf.mxu0
  %v710 = vadd.f32 %v670, %v709
  %v711 = vpop.f32.mrf.mxu0
  %v712 = vpop.f32.mrf.mxu0
  %v713 = vpop.f32.mrf.mxu0
  %714 = vdwg.mxu0
  %715 = vmatprep.subr.bf16.mxu0 0
  %716 = vmatpush1.bf16.msra.mxu0 %v530
  %717 = vmatprep.subr.bf16.mxu0 0
  %718 = vmatpush1.bf16.msra.mxu0 %v529
  %719 = vmatprep.subr.bf16.mxu0 0
  %720 = vmatpush1.bf16.msra.mxu0 %v528
  %721 = vmatprep.subr.bf16.mxu0 0
  %722 = vmatpush1.bf16.msra.mxu0 %v527
  %723 = vmatprep.subr.bf16.mxu0 0
  %724 = vmatpush1.bf16.msra.mxu0 %v526
  %725 = vmatprep.subr.bf16.mxu0 0
  %726 = vmatpush1.bf16.msra.mxu0 %v525
  %727 = vmatprep.subr.bf16.mxu0 0
  %728 = vmatpush1.bf16.msra.mxu0 %v524
  %729 = vmatprep.subr.bf16.mxu0 0
  %730 = vmatpush1.bf16.msra.mxu0 %v523
  %731 = vmatprep.subr.bf16.mxu0 0
  %732 = vmatpush2.bf16.msra.mxu0 %v538
  %733 = vmatprep.subr.bf16.mxu0 0
  %734 = vmatpush2.bf16.msra.mxu0 %v537
  %735 = vmatprep.subr.bf16.mxu0 0
  %736 = vmatpush2.bf16.msra.mxu0 %v536
  %737 = vmatprep.subr.bf16.mxu0 0
  %738 = vmatpush2.bf16.msra.mxu0 %v535
  %739 = vmatprep.subr.bf16.mxu0 0
  %740 = vmatpush2.bf16.msra.mxu0 %v534
  %741 = vmatprep.subr.bf16.mxu0 0
  %742 = vmatpush2.bf16.msra.mxu0 %v533
  %743 = vmatprep.subr.bf16.mxu0 0
  %744 = vmatpush2.bf16.msra.mxu0 %v532
  %745 = vmatprep.subr.bf16.mxu0 0
  %746 = vmatpush2.bf16.msra.mxu0 %v531
  %747 = vmatprep.mubr.bf16.mxu0 %v190
  %748 = vmatmul.mubr.bf16.gmra.mxu0 %v189
  %v749 = vpop.f32.mrf.mxu0
  %v750 = vadd.f32 %v710, %v749
  %v751 = vpop.f32.mrf.mxu0
  %v752 = vpop.f32.mrf.mxu0
  %v753 = vpop.f32.mrf.mxu0
  %754 = vdwg.mxu0
  %755 = vmatprep.subr.bf16.mxu0 0
  %756 = vmatpush1.bf16.msra.mxu0 %v546
  %757 = vmatprep.subr.bf16.mxu0 0
  %758 = vmatpush1.bf16.msra.mxu0 %v545
  %759 = vmatprep.subr.bf16.mxu0 0
  %760 = vmatpush1.bf16.msra.mxu0 %v544
  %761 = vmatprep.subr.bf16.mxu0 0
  %762 = vmatpush1.bf16.msra.mxu0 %v543
  %763 = vmatprep.subr.bf16.mxu0 0
  %764 = vmatpush1.bf16.msra.mxu0 %v542
  %765 = vmatprep.subr.bf16.mxu0 0
  %766 = vmatpush1.bf16.msra.mxu0 %v541
  %767 = vmatprep.subr.bf16.mxu0 0
  %768 = vmatpush1.bf16.msra.mxu0 %v540
  %769 = vmatprep.subr.bf16.mxu0 0
  %770 = vmatpush1.bf16.msra.mxu0 %v539
  %771 = vmatprep.subr.bf16.mxu0 0
  %772 = vmatpush2.bf16.msra.mxu0 %v554
  %773 = vmatprep.subr.bf16.mxu0 0
  %774 = vmatpush2.bf16.msra.mxu0 %v553
  %775 = vmatprep.subr.bf16.mxu0 0
  %776 = vmatpush2.bf16.msra.mxu0 %v552
  %777 = vmatprep.subr.bf16.mxu0 0
  %778 = vmatpush2.bf16.msra.mxu0 %v551
  %779 = vmatprep.subr.bf16.mxu0 0
  %780 = vmatpush2.bf16.msra.mxu0 %v550
  %781 = vmatprep.subr.bf16.mxu0 0
  %782 = vmatpush2.bf16.msra.mxu0 %v549
  %783 = vmatprep.subr.bf16.mxu0 0
  %784 = vmatpush2.bf16.msra.mxu0 %v548
  %785 = vmatprep.subr.bf16.mxu0 0
  %786 = vmatpush2.bf16.msra.mxu0 %v547
  %787 = vmatprep.mubr.bf16.mxu0 %v192
  %788 = vmatmul.mubr.bf16.gmra.mxu0 %v191
  %v789 = vpop.f32.mrf.mxu0
  %v790 = vadd.f32 %v750, %v789
  %v791 = vpop.f32.mrf.mxu0
  %v792 = vpop.f32.mrf.mxu0
  %v793 = vpop.f32.mrf.mxu0
  %794 = vdwg.mxu0
  %795 = vmatprep.subr.bf16.mxu0 0
  %796 = vmatpush1.bf16.msra.mxu0 %v562
  %797 = vmatprep.subr.bf16.mxu0 0
  %798 = vmatpush1.bf16.msra.mxu0 %v561
  %799 = vmatprep.subr.bf16.mxu0 0
  %800 = vmatpush1.bf16.msra.mxu0 %v560
  %801 = vmatprep.subr.bf16.mxu0 0
  %802 = vmatpush1.bf16.msra.mxu0 %v559
  %803 = vmatprep.subr.bf16.mxu0 0
  %804 = vmatpush1.bf16.msra.mxu0 %v558
  %805 = vmatprep.subr.bf16.mxu0 0
  %806 = vmatpush1.bf16.msra.mxu0 %v557
  %807 = vmatprep.subr.bf16.mxu0 0
  %808 = vmatpush1.bf16.msra.mxu0 %v556
  %809 = vmatprep.subr.bf16.mxu0 0
  %810 = vmatpush1.bf16.msra.mxu0 %v555
  %811 = vmatprep.subr.bf16.mxu0 0
  %812 = vmatpush2.bf16.msra.mxu0 0
  %813 = vmatprep.subr.bf16.mxu0 0
  %814 = vmatpush2.bf16.msra.mxu0 0
  %815 = vmatprep.subr.bf16.mxu0 0
  %816 = vmatpush2.bf16.msra.mxu0 0
  %817 = vmatprep.subr.bf16.mxu0 0
  %818 = vmatpush2.bf16.msra.mxu0 0
  %819 = vmatprep.subr.bf16.mxu0 0
  %820 = vmatpush2.bf16.msra.mxu0 0
  %821 = vmatprep.subr.bf16.mxu0 0
  %822 = vmatpush2.bf16.msra.mxu0 0
  %823 = vmatprep.subr.bf16.mxu0 0
  %824 = vmatpush2.bf16.msra.mxu0 0
  %825 = vmatprep.subr.bf16.mxu0 0
  %826 = vmatpush2.bf16.msra.mxu0 0
  %827 = vmatprep.mubr.bf16.mxu0 0
  %828 = vmatmul.mubr.bf16.gmra.mxu0 %v193
  %v829 = vpop.f32.mrf.mxu0
  %v830 = vadd.f32 %v790, %v829
  %v831 = vpop.f32.mrf.mxu0
  %v832 = vpop.f32.mrf.mxu0
  %v833 = vpop.f32.mrf.mxu0
  %834 = vdwg.mxu0
  %v835 = vmax.f32 %v830, 0.0
  %v836 = vpack.c.bf16 %v835, %v835
  %837 = vst [vmem:[%s3] sm:$0xf] %v836
  // Predicated region
  $region14: #{qnetwork_forward.8} parent=0 // pred_check
    _
  $region15: #{qnetwork_forward.8} parent=0 // pred_check_branch
    %839 = sbr.rel (0) target = $region17
  $region16: #{qnetwork_forward.8} parent=0 // pred_region
    _
  $region17: #{qnetwork_forward.8} parent=0 // pred_fallthru
    _
  // Predicated region
  $region18: #{qnetwork_forward.8} parent=0 // pred_check
    _
  $region19: #{qnetwork_forward.8} parent=0 // pred_check_branch
    %841 = sbr.rel (0) target = $region21
  $region20: #{qnetwork_forward.8} parent=0 // pred_region
    _
  $region21: #{qnetwork_forward.8} parent=0 // pred_fallthru
    _

// kernel: qnetwork_forward.9
$region0: #{qnetwork_forward.9}
  #allocation0 [shape = 'u32[]', space=smem, size = 0x4, offset = 0x4, fixed_abs, tag = 'smem constant byte address 0x4 - core index']
  #allocation1 [shape = 'u32[144,128]{1,0:T(1,128)}', space=vmem, size = 0x12000, scoped, tag = 'internal scratch']
  %s0 = inlined_call_operand.vmem [shape: bf16[8,512], index: 0, kind: input, shape index: {}]
  %s1 = inlined_call_operand.vmem [shape: bf16[512,1024], index: 1, kind: input, shape index: {}]
  %s2 = inlined_call_operand.vmem [shape: f32[1,1024], index: 2, kind: input, shape index: {}]
  %s3 = inlined_call_operand.vmem [shape: bf16[1024,512], index: 3, kind: input, shape index: {}]
  %s4 = inlined_call_operand.vmem [shape: f32[1,512], index: 4, kind: input, shape index: {}]
  %s5 = inlined_call_operand.vmem [shape: bf16[512,256], index: 5, kind: input, shape index: {}]
  %s6 = inlined_call_operand.vmem [shape: f32[1,256], index: 6, kind: input, shape index: {}]
  %s7 = inlined_call_operand.vmem [shape: bf16[256,128], index: 7, kind: input, shape index: {}]
  %s8 = inlined_call_operand.vmem [shape: f32[1,128], index: 8, kind: input, shape index: {}]
  %s9 = inlined_call_operand.vmem [shape: f32[8,128], index: 9, kind: output, shape index: {}]
  %s10 = sld [smem:[#allocation0]]
  $region46: #{qnetwork_forward.9} parent=0
    _
  %s12 = ssub.s32 1, %s10
  %s13 = scalar_select 0, %s12, %s10
  // Predicated region
  $region2: #{qnetwork_forward.9} parent=0 // pred_check
    _
  $region3: #{qnetwork_forward.9} parent=0 // pred_check_branch
    %15 = sbr.rel (0) target = $region5
  $region4: #{qnetwork_forward.9} parent=0 // pred_region
    _
  $region5: #{qnetwork_forward.9} parent=0 // pred_fallthru
    _
  // Predicated region
  $region6: #{qnetwork_forward.9} parent=0 // pred_check
    _
  $region7: #{qnetwork_forward.9} parent=0 // pred_check_branch
    %17 = sbr.rel (0) target = $region9
  $region8: #{qnetwork_forward.9} parent=0 // pred_region
    _
  $region9: #{qnetwork_forward.9} parent=0 // pred_fallthru
    _
  // Predicated region
  $region10: #{qnetwork_forward.9} parent=0 // pred_check
    _
  $region11: #{qnetwork_forward.9} parent=0 // pred_check_branch
    %19 = sbr.rel (0) target = $region13
  $region12: #{qnetwork_forward.9} parent=0 // pred_region
    _
  $region13: #{qnetwork_forward.9} parent=0 // pred_fallthru
    _
  // Predicated region
  $region14: #{qnetwork_forward.9} parent=0 // pred_check
    _
  $region15: #{qnetwork_forward.9} parent=0 // pred_check_branch
    %21 = sbr.rel (0) target = $region17
  $region16: #{qnetwork_forward.9} parent=0 // pred_region
    _
  $region17: #{qnetwork_forward.9} parent=0 // pred_fallthru
    _
  // Predicated region
  $region18: #{qnetwork_forward.9} parent=0 // pred_check
    _
  $region19: #{qnetwork_forward.9} parent=0 // pred_check_branch
    %23 = sbr.rel (0) target = $region21
  $region20: #{qnetwork_forward.9} parent=0 // pred_region
    _
  $region21: #{qnetwork_forward.9} parent=0 // pred_fallthru
    _
  // Predicated region
  $region22: #{qnetwork_forward.9} parent=0 // pred_check
    _
  $region23: #{qnetwork_forward.9} parent=0 // pred_check_branch
    %25 = sbr.rel (0) target = $region25
  $region24: #{qnetwork_forward.9} parent=0 // pred_region
    _
  $region25: #{qnetwork_forward.9} parent=0 // pred_fallthru
    _
  // Predicated region
  $region26: #{qnetwork_forward.9} parent=0 // pred_check
    _
  $region27: #{qnetwork_forward.9} parent=0 // pred_check_branch
    %27 = sbr.rel (0) target = $region29
  $region28: #{qnetwork_forward.9} parent=0 // pred_region
    _
  $region29: #{qnetwork_forward.9} parent=0 // pred_fallthru
    _
  // Predicated region
  $region30: #{qnetwork_forward.9} parent=0 // pred_check
    _
  $region31: #{qnetwork_forward.9} parent=0 // pred_check_branch
    %29 = sbr.rel (0) target = $region33
  $region32: #{qnetwork_forward.9} parent=0 // pred_region
    _
  $region33: #{qnetwork_forward.9} parent=0 // pred_fallthru
    _
  // Predicated region
  $region34: #{qnetwork_forward.9} parent=0 // pred_check
    _
  $region35: #{qnetwork_forward.9} parent=0 // pred_check_branch
    %31 = sbr.rel (0) target = $region37
  $region36: #{qnetwork_forward.9} parent=0 // pred_region
    _
  $region37: #{qnetwork_forward.9} parent=0 // pred_fallthru
    _
  %v33 = vld [vmem:[%s0] sm:$0xff]
  %v34 = vld [vmem:[%s0 + $0x8] sm:$0xff]
  %v35 = vld [vmem:[%s1] sm:$0xff]
  %v36 = vld [vmem:[%s1 + $0x8] sm:$0xff]
  %v37 = vld [vmem:[%s1 + $0x10] sm:$0xff]
  %v38 = vld [vmem:[%s1 + $0x18] sm:$0xff]
  %v39 = vld [vmem:[%s1 + $0x20] sm:$0xff]
  %v40 = vld [vmem:[%s1 + $0x28] sm:$0xff]
  %v41 = vld [vmem:[%s1 + $0x30] sm:$0xff]
  %v42 = vld [vmem:[%s1 + $0x38] sm:$0xff]
  %v43 = vld [vmem:[%s1 + $0x40] sm:$0xff]
  %v44 = vld [vmem:[%s1 + $0x48] sm:$0xff]
  %v45 = vld [vmem:[%s1 + $0x50] sm:$0xff]
  %v46 = vld [vmem:[%s1 + $0x58] sm:$0xff]
  %v47 = vld [vmem:[%s1 + $0x60] sm:$0xff]
  %v48 = vld [vmem:[%s1 + $0x68] sm:$0xff]
  %v49 = vld [vmem:[%s1 + $0x70] sm:$0xff]
  %v50 = vld [vmem:[%s1 + $0x78] sm:$0xff]
  %v51 = vld [vmem:[%s1 + $0x80] sm:$0xff]
  %v52 = vld [vmem:[%s1 + $0x88] sm:$0xff]
  %v53 = vld [vmem:[%s1 + $0x90] sm:$0xff]
  %v54 = vld [vmem:[%s1 + $0x98] sm:$0xff]
  %v55 = vld [vmem:[%s1 + $0xa0] sm:$0xff]
  %v56 = vld [vmem:[%s1 + $0xa8] sm:$0xff]
  %v57 = vld [vmem:[%s1 + $0xb0] sm:$0xff]
  %v58 = vld [vmem:[%s1 + $0xb8] sm:$0xff]
  %v59 = vld [vmem:[%s1 + $0xc0] sm:$0xff]
  %v60 = vld [vmem:[%s1 + $0xc8] sm:$0xff]
  %v61 = vld [vmem:[%s1 + $0xd0] sm:$0xff]
  %v62 = vld [vmem:[%s1 + $0xd8] sm:$0xff]
  %v63 = vld [vmem:[%s1 + $0xe0] sm:$0xff]
  %v64 = vld [vmem:[%s1 + $0xe8] sm:$0xff]
  %v65 = vld [vmem:[%s1 + $0xf0] sm:$0xff]
  %v66 = vld [vmem:[%s1 + $0xf8] sm:$0xff]
  %v67 = vld [vmem:[%s1 + $0x100] sm:$0xff]
  %v68 = vld [vmem:[%s1 + $0x108] sm:$0xff]
  %v69 = vld [vmem:[%s1 + $0x110] sm:$0xff]
  %v70 = vld [vmem:[%s1 + $0x118] sm:$0xff]
  %v71 = vld [vmem:[%s1 + $0x120] sm:$0xff]
  %v72 = vld [vmem:[%s1 + $0x128] sm:$0xff]
  %v73 = vld [vmem:[%s1 + $0x130] sm:$0xff]
  %v74 = vld [vmem:[%s1 + $0x138] sm:$0xff]
  %v75 = vld [vmem:[%s1 + $0x140] sm:$0xff]
  %v76 = vld [vmem:[%s1 + $0x148] sm:$0xff]
  %v77 = vld [vmem:[%s1 + $0x150] sm:$0xff]
  %v78 = vld [vmem:[%s1 + $0x158] sm:$0xff]
  %v79 = vld [vmem:[%s1 + $0x160] sm:$0xff]
  %v80 = vld [vmem:[%s1 + $0x168] sm:$0xff]
  %v81 = vld [vmem:[%s1 + $0x170] sm:$0xff]
  %v82 = vld [vmem:[%s1 + $0x178] sm:$0xff]
  %v83 = vld [vmem:[%s1 + $0x180] sm:$0xff]
  %v84 = vld [vmem:[%s1 + $0x188] sm:$0xff]
  %v85 = vld [vmem:[%s1 + $0x190] sm:$0xff]
  %v86 = vld [vmem:[%s1 + $0x198] sm:$0xff]
  %v87 = vld [vmem:[%s1 + $0x1a0] sm:$0xff]
  %v88 = vld [vmem:[%s1 + $0x1a8] sm:$0xff]
  %v89 = vld [vmem:[%s1 + $0x1b0] sm:$0xff]
  %v90 = vld [vmem:[%s1 + $0x1b8] sm:$0xff]
  %v91 = vld [vmem:[%s1 + $0x1c0] sm:$0xff]
  %v92 = vld [vmem:[%s1 + $0x1c8] sm:$0xff]
  %v93 = vld [vmem:[%s1 + $0x1d0] sm:$0xff]
  %v94 = vld [vmem:[%s1 + $0x1d8] sm:$0xff]
  %v95 = vld [vmem:[%s1 + $0x1e0] sm:$0xff]
  %v96 = vld [vmem:[%s1 + $0x1e8] sm:$0xff]
  %v97 = vld [vmem:[%s1 + $0x1f0] sm:$0xff]
  %v98 = vld [vmem:[%s1 + $0x1f8] sm:$0xff]
  %v99 = vld [vmem:[%s1 + $0x200] sm:$0xff]
  %v100 = vld [vmem:[%s1 + $0x208] sm:$0xff]
  %v101 = vld [vmem:[%s1 + $0x210] sm:$0xff]
  %v102 = vld [vmem:[%s1 + $0x218] sm:$0xff]
  %v103 = vld [vmem:[%s1 + $0x220] sm:$0xff]
  %v104 = vld [vmem:[%s1 + $0x228] sm:$0xff]
  %v105 = vld [vmem:[%s1 + $0x230] sm:$0xff]
  %v106 = vld [vmem:[%s1 + $0x238] sm:$0xff]
  %v107 = vld [vmem:[%s1 + $0x240] sm:$0xff]
  %v108 = vld [vmem:[%s1 + $0x248] sm:$0xff]
  %v109 = vld [vmem:[%s1 + $0x250] sm:$0xff]
  %v110 = vld [vmem:[%s1 + $0x258] sm:$0xff]
  %v111 = vld [vmem:[%s1 + $0x260] sm:$0xff]
  %v112 = vld [vmem:[%s1 + $0x268] sm:$0xff]
  %v113 = vld [vmem:[%s1 + $0x270] sm:$0xff]
  %v114 = vld [vmem:[%s1 + $0x278] sm:$0xff]
  %v115 = vld [vmem:[%s1 + $0x280] sm:$0xff]
  %v116 = vld [vmem:[%s1 + $0x288] sm:$0xff]
  %v117 = vld [vmem:[%s1 + $0x290] sm:$0xff]
  %v118 = vld [vmem:[%s1 + $0x298] sm:$0xff]
  %v119 = vld [vmem:[%s1 + $0x2a0] sm:$0xff]
  %v120 = vld [vmem:[%s1 + $0x2a8] sm:$0xff]
  %v121 = vld [vmem:[%s1 + $0x2b0] sm:$0xff]
  %v122 = vld [vmem:[%s1 + $0x2b8] sm:$0xff]
  %v123 = vld [vmem:[%s1 + $0x2c0] sm:$0xff]
  %v124 = vld [vmem:[%s1 + $0x2c8] sm:$0xff]
  %v125 = vld [vmem:[%s1 + $0x2d0] sm:$0xff]
  %v126 = vld [vmem:[%s1 + $0x2d8] sm:$0xff]
  %v127 = vld [vmem:[%s1 + $0x2e0] sm:$0xff]
  %v128 = vld [vmem:[%s1 + $0x2e8] sm:$0xff]
  %v129 = vld [vmem:[%s1 + $0x2f0] sm:$0xff]
  %v130 = vld [vmem:[%s1 + $0x2f8] sm:$0xff]
  %v131 = vld [vmem:[%s1 + $0x300] sm:$0xff]
  %v132 = vld [vmem:[%s1 + $0x308] sm:$0xff]
  %v133 = vld [vmem:[%s1 + $0x310] sm:$0xff]
  %v134 = vld [vmem:[%s1 + $0x318] sm:$0xff]
  %v135 = vld [vmem:[%s1 + $0x320] sm:$0xff]
  %v136 = vld [vmem:[%s1 + $0x328] sm:$0xff]
  %v137 = vld [vmem:[%s1 + $0x330] sm:$0xff]
  %v138 = vld [vmem:[%s1 + $0x338] sm:$0xff]
  %v139 = vld [vmem:[%s1 + $0x340] sm:$0xff]
  %v140 = vld [vmem:[%s1 + $0x348] sm:$0xff]
  %v141 = vld [vmem:[%s1 + $0x350] sm:$0xff]
  %v142 = vld [vmem:[%s1 + $0x358] sm:$0xff]
  %v143 = vld [vmem:[%s1 + $0x360] sm:$0xff]
  %v144 = vld [vmem:[%s1 + $0x368] sm:$0xff]
  %v145 = vld [vmem:[%s1 + $0x370] sm:$0xff]
  %v146 = vld [vmem:[%s1 + $0x378] sm:$0xff]
  %v147 = vld [vmem:[%s1 + $0x380] sm:$0xff]
  %v148 = vld [vmem:[%s1 + $0x388] sm:$0xff]
  %v149 = vld [vmem:[%s1 + $0x390] sm:$0xff]
  %v150 = vld [vmem:[%s1 + $0x398] sm:$0xff]
  %v151 = vld [vmem:[%s1 + $0x3a0] sm:$0xff]
  %v152 = vld [vmem:[%s1 + $0x3a8] sm:$0xff]
  %v153 = vld [vmem:[%s1 + $0x3b0] sm:$0xff]
  %v154 = vld [vmem:[%s1 + $0x3b8] sm:$0xff]
  %v155 = vld [vmem:[%s1 + $0x3c0] sm:$0xff]
  %v156 = vld [vmem:[%s1 + $0x3c8] sm:$0xff]
  %v157 = vld [vmem:[%s1 + $0x3d0] sm:$0xff]
  %v158 = vld [vmem:[%s1 + $0x3d8] sm:$0xff]
  %v159 = vld [vmem:[%s1 + $0x3e0] sm:$0xff]
  %v160 = vld [vmem:[%s1 + $0x3e8] sm:$0xff]
  %v161 = vld [vmem:[%s1 + $0x3f0] sm:$0xff]
  %v162 = vld [vmem:[%s1 + $0x3f8] sm:$0xff]
  %v163 = vld [vmem:[%s1 + $0x400] sm:$0xff]
  %v164 = vld [vmem:[%s1 + $0x408] sm:$0xff]
  %v165 = vld [vmem:[%s1 + $0x410] sm:$0xff]
  %v166 = vld [vmem:[%s1 + $0x418] sm:$0xff]
  %v167 = vld [vmem:[%s1 + $0x420] sm:$0xff]
  %v168 = vld [vmem:[%s1 + $0x428] sm:$0xff]
  %v169 = vld [vmem:[%s1 + $0x430] sm:$0xff]
  %v170 = vld [vmem:[%s1 + $0x438] sm:$0xff]
  %v171 = vld [vmem:[%s1 + $0x440] sm:$0xff]
  %v172 = vld [vmem:[%s1 + $0x448] sm:$0xff]
  %v173 = vld [vmem:[%s1 + $0x450] sm:$0xff]
  %v174 = vld [vmem:[%s1 + $0x458] sm:$0xff]
  %v175 = vld [vmem:[%s1 + $0x460] sm:$0xff]
  %v176 = vld [vmem:[%s1 + $0x468] sm:$0xff]
  %v177 = vld [vmem:[%s1 + $0x470] sm:$0xff]
  %v178 = vld [vmem:[%s1 + $0x478] sm:$0xff]
  %v179 = vld [vmem:[%s1 + $0x480] sm:$0xff]
  %v180 = vld [vmem:[%s1 + $0x488] sm:$0xff]
  %v181 = vld [vmem:[%s1 + $0x490] sm:$0xff]
  %v182 = vld [vmem:[%s1 + $0x498] sm:$0xff]
  %v183 = vld [vmem:[%s1 + $0x4a0] sm:$0xff]
  %v184 = vld [vmem:[%s1 + $0x4a8] sm:$0xff]
  %v185 = vld [vmem:[%s1 + $0x4b0] sm:$0xff]
  %v186 = vld [vmem:[%s1 + $0x4b8] sm:$0xff]
  %v187 = vld [vmem:[%s1 + $0x4c0] sm:$0xff]
  %v188 = vld [vmem:[%s1 + $0x4c8] sm:$0xff]
  %v189 = vld [vmem:[%s1 + $0x4d0] sm:$0xff]
  %v190 = vld [vmem:[%s1 + $0x4d8] sm:$0xff]
  %v191 = vld [vmem:[%s1 + $0x4e0] sm:$0xff]
  %v192 = vld [vmem:[%s1 + $0x4e8] sm:$0xff]
  %v193 = vld [vmem:[%s1 + $0x4f0] sm:$0xff]
  %v194 = vld [vmem:[%s1 + $0x4f8] sm:$0xff]
  %v195 = vld [vmem:[%s1 + $0x500] sm:$0xff]
  %v196 = vld [vmem:[%s1 + $0x508] sm:$0xff]
  %v197 = vld [vmem:[%s1 + $0x510] sm:$0xff]
  %v198 = vld [vmem:[%s1 + $0x518] sm:$0xff]
  %v199 = vld [vmem:[%s1 + $0x520] sm:$0xff]
  %v200 = vld [vmem:[%s1 + $0x528] sm:$0xff]
  %v201 = vld [vmem:[%s1 + $0x530] sm:$0xff]
  %v202 = vld [vmem:[%s1 + $0x538] sm:$0xff]
  %v203 = vld [vmem:[%s1 + $0x540] sm:$0xff]
  %v204 = vld [vmem:[%s1 + $0x548] sm:$0xff]
  %v205 = vld [vmem:[%s1 + $0x550] sm:$0xff]
  %v206 = vld [vmem:[%s1 + $0x558] sm:$0xff]
  %v207 = vld [vmem:[%s1 + $0x560] sm:$0xff]
  %v208 = vld [vmem:[%s1 + $0x568] sm:$0xff]
  %v209 = vld [vmem:[%s1 + $0x570] sm:$0xff]
  %v210 = vld [vmem:[%s1 + $0x578] sm:$0xff]
  %v211 = vld [vmem:[%s1 + $0x580] sm:$0xff]
  %v212 = vld [vmem:[%s1 + $0x588] sm:$0xff]
  %v213 = vld [vmem:[%s1 + $0x590] sm:$0xff]
  %v214 = vld [vmem:[%s1 + $0x598] sm:$0xff]
  %v215 = vld [vmem:[%s1 + $0x5a0] sm:$0xff]
  %v216 = vld [vmem:[%s1 + $0x5a8] sm:$0xff]
  %v217 = vld [vmem:[%s1 + $0x5b0] sm:$0xff]
  %v218 = vld [vmem:[%s1 + $0x5b8] sm:$0xff]
  %v219 = vld [vmem:[%s1 + $0x5c0] sm:$0xff]
  %v220 = vld [vmem:[%s1 + $0x5c8] sm:$0xff]
  %v221 = vld [vmem:[%s1 + $0x5d0] sm:$0xff]
  %v222 = vld [vmem:[%s1 + $0x5d8] sm:$0xff]
  %v223 = vld [vmem:[%s1 + $0x5e0] sm:$0xff]
  %v224 = vld [vmem:[%s1 + $0x5e8] sm:$0xff]
  %v225 = vld [vmem:[%s1 + $0x5f0] sm:$0xff]
  %v226 = vld [vmem:[%s1 + $0x5f8] sm:$0xff]
  %v227 = vld [vmem:[%s1 + $0x600] sm:$0xff]
  %v228 = vld [vmem:[%s1 + $0x608] sm:$0xff]
  %v229 = vld [vmem:[%s1 + $0x610] sm:$0xff]
  %v230 = vld [vmem:[%s1 + $0x618] sm:$0xff]
  %v231 = vld [vmem:[%s1 + $0x620] sm:$0xff]
  %v232 = vld [vmem:[%s1 + $0x628] sm:$0xff]
  %v233 = vld [vmem:[%s1 + $0x630] sm:$0xff]
  %v234 = vld [vmem:[%s1 + $0x638] sm:$0xff]
  %v235 = vld [vmem:[%s1 + $0x640] sm:$0xff]
  %v236 = vld [vmem:[%s1 + $0x648] sm:$0xff]
  %v237 = vld [vmem:[%s1 + $0x650] sm:$0xff]
  %v238 = vld [vmem:[%s1 + $0x658] sm:$0xff]
  %v239 = vld [vmem:[%s1 + $0x660] sm:$0xff]
  %v240 = vld [vmem:[%s1 + $0x668] sm:$0xff]
  %v241 = vld [vmem:[%s1 + $0x670] sm:$0xff]
  %v242 = vld [vmem:[%s1 + $0x678] sm:$0xff]
  %v243 = vld [vmem:[%s1 + $0x680] sm:$0xff]
  %v244 = vld [vmem:[%s1 + $0x688] sm:$0xff]
  %v245 = vld [vmem:[%s1 + $0x690] sm:$0xff]
  %v246 = vld [vmem:[%s1 + $0x698] sm:$0xff]
  %v247 = vld [vmem:[%s1 + $0x6a0] sm:$0xff]
  %v248 = vld [vmem:[%s1 + $0x6a8] sm:$0xff]
  %v249 = vld [vmem:[%s1 + $0x6b0] sm:$0xff]
  %v250 = vld [vmem:[%s1 + $0x6b8] sm:$0xff]
  %v251 = vld [vmem:[%s1 + $0x6c0] sm:$0xff]
  %v252 = vld [vmem:[%s1 + $0x6c8] sm:$0xff]
  %v253 = vld [vmem:[%s1 + $0x6d0] sm:$0xff]
  %v254 = vld [vmem:[%s1 + $0x6d8] sm:$0xff]
  %v255 = vld [vmem:[%s1 + $0x6e0] sm:$0xff]
  %v256 = vld [vmem:[%s1 + $0x6e8] sm:$0xff]
  %v257 = vld [vmem:[%s1 + $0x6f0] sm:$0xff]
  %v258 = vld [vmem:[%s1 + $0x6f8] sm:$0xff]
  %v259 = vld [vmem:[%s1 + $0x700] sm:$0xff]
  %v260 = vld [vmem:[%s1 + $0x708] sm:$0xff]
  %v261 = vld [vmem:[%s1 + $0x710] sm:$0xff]
  %v262 = vld [vmem:[%s1 + $0x718] sm:$0xff]
  %v263 = vld [vmem:[%s1 + $0x720] sm:$0xff]
  %v264 = vld [vmem:[%s1 + $0x728] sm:$0xff]
  %v265 = vld [vmem:[%s1 + $0x730] sm:$0xff]
  %v266 = vld [vmem:[%s1 + $0x738] sm:$0xff]
  %v267 = vld [vmem:[%s1 + $0x740] sm:$0xff]
  %v268 = vld [vmem:[%s1 + $0x748] sm:$0xff]
  %v269 = vld [vmem:[%s1 + $0x750] sm:$0xff]
  %v270 = vld [vmem:[%s1 + $0x758] sm:$0xff]
  %v271 = vld [vmem:[%s1 + $0x760] sm:$0xff]
  %v272 = vld [vmem:[%s1 + $0x768] sm:$0xff]
  %v273 = vld [vmem:[%s1 + $0x770] sm:$0xff]
  %v274 = vld [vmem:[%s1 + $0x778] sm:$0xff]
  %v275 = vld [vmem:[%s1 + $0x780] sm:$0xff]
  %v276 = vld [vmem:[%s1 + $0x788] sm:$0xff]
  %v277 = vld [vmem:[%s1 + $0x790] sm:$0xff]
  %v278 = vld [vmem:[%s1 + $0x798] sm:$0xff]
  %v279 = vld [vmem:[%s1 + $0x7a0] sm:$0xff]
  %v280 = vld [vmem:[%s1 + $0x7a8] sm:$0xff]
  %v281 = vld [vmem:[%s1 + $0x7b0] sm:$0xff]
  %v282 = vld [vmem:[%s1 + $0x7b8] sm:$0xff]
  %v283 = vld [vmem:[%s1 + $0x7c0] sm:$0xff]
  %v284 = vld [vmem:[%s1 + $0x7c8] sm:$0xff]
  %v285 = vld [vmem:[%s1 + $0x7d0] sm:$0xff]
  %v286 = vld [vmem:[%s1 + $0x7d8] sm:$0xff]
  %v287 = vld [vmem:[%s1 + $0x7e0] sm:$0xff]
  %v288 = vld [vmem:[%s1 + $0x7e8] sm:$0xff]
  %v289 = vld [vmem:[%s1 + $0x7f0] sm:$0xff]
  %v290 = vld [vmem:[%s1 + $0x7f8] sm:$0xff]
  %v291 = vld [vmem:[%s2] sm:$0xff]
  %v293 = vlaneseq
  %v294 = vshrl.u32 %v293, 7
  %v295 = vsub.s32 0, %v294
  %v296 = vrot.slane %v291, %v295
  %v297 = vlaneseq
  %v298 = vshrl.u32 %v297, 7
  %v299 = vsub.s32 1, %v298
  %v300 = vrot.slane %v291, %v299
  %v301 = vlaneseq
  %v302 = vshrl.u32 %v301, 7
  %v303 = vsub.s32 2, %v302
  %v304 = vrot.slane %v291, %v303
  %v305 = vlaneseq
  %v306 = vshrl.u32 %v305, 7
  %v307 = vsub.s32 3, %v306
  %v308 = vrot.slane %v291, %v307
  %v309 = vlaneseq
  %v310 = vshrl.u32 %v309, 7
  %v311 = vsub.s32 4, %v310
  %v312 = vrot.slane %v291, %v311
  %v313 = vlaneseq
  %v314 = vshrl.u32 %v313, 7
  %v315 = vsub.s32 5, %v314
  %v316 = vrot.slane %v291, %v315
  %v317 = vlaneseq
  %v318 = vshrl.u32 %v317, 7
  %v319 = vsub.s32 6, %v318
  %v320 = vrot.slane %v291, %v319
  %v321 = vlaneseq
  %v322 = vshrl.u32 %v321, 7
  %v323 = vsub.s32 7, %v322
  %v324 = vrot.slane %v291, %v323
  %v335 = vunpack.c.l.b16 %v33
  %v336 = vunpack.c.h.b16 %v33
  %v337 = vunpack.c.l.b16 %v34
  %v338 = vunpack.c.h.b16 %v34
  %v339 = vpack.c.b16 %v335, %v335
  %v340 = vpack.c.b16 %v336, %v336
  %v341 = vpack.c.b16 %v337, %v337
  %v342 = vpack.c.b16 %v338, %v338
  %v603 = vunpack.c.l.b16 %v35
  %v604 = vunpack.c.h.b16 %v35
  %v605 = vunpack.c.l.b16 %v36
  %v606 = vunpack.c.h.b16 %v36
  %v607 = vunpack.c.l.b16 %v37
  %v608 = vunpack.c.h.b16 %v37
  %v609 = vunpack.c.l.b16 %v38
  %v610 = vunpack.c.h.b16 %v38
  %v611 = vunpack.c.l.b16 %v39
  %v612 = vunpack.c.h.b16 %v39
  %v613 = vunpack.c.l.b16 %v40
  %v614 = vunpack.c.h.b16 %v40
  %v615 = vunpack.c.l.b16 %v41
  %v616 = vunpack.c.h.b16 %v41
  %v617 = vunpack.c.l.b16 %v42
  %v618 = vunpack.c.h.b16 %v42
  %v619 = vunpack.c.l.b16 %v43
  %v620 = vunpack.c.h.b16 %v43
  %v621 = vunpack.c.l.b16 %v44
  %v622 = vunpack.c.h.b16 %v44
  %v623 = vunpack.c.l.b16 %v45
  %v624 = vunpack.c.h.b16 %v45
  %v625 = vunpack.c.l.b16 %v46
  %v626 = vunpack.c.h.b16 %v46
  %v627 = vunpack.c.l.b16 %v47
  %v628 = vunpack.c.h.b16 %v47
  %v629 = vunpack.c.l.b16 %v48
  %v630 = vunpack.c.h.b16 %v48
  %v631 = vunpack.c.l.b16 %v49
  %v632 = vunpack.c.h.b16 %v49
  %v633 = vunpack.c.l.b16 %v50
  %v634 = vunpack.c.h.b16 %v50
  %v635 = vunpack.c.l.b16 %v51
  %v636 = vunpack.c.h.b16 %v51
  %v637 = vunpack.c.l.b16 %v52
  %v638 = vunpack.c.h.b16 %v52
  %v639 = vunpack.c.l.b16 %v53
  %v640 = vunpack.c.h.b16 %v53
  %v641 = vunpack.c.l.b16 %v54
  %v642 = vunpack.c.h.b16 %v54
  %v643 = vunpack.c.l.b16 %v55
  %v644 = vunpack.c.h.b16 %v55
  %v645 = vunpack.c.l.b16 %v56
  %v646 = vunpack.c.h.b16 %v56
  %v647 = vunpack.c.l.b16 %v57
  %v648 = vunpack.c.h.b16 %v57
  %v649 = vunpack.c.l.b16 %v58
  %v650 = vunpack.c.h.b16 %v58
  %v651 = vunpack.c.l.b16 %v59
  %v652 = vunpack.c.h.b16 %v59
  %v653 = vunpack.c.l.b16 %v60
  %v654 = vunpack.c.h.b16 %v60
  %v655 = vunpack.c.l.b16 %v61
  %v656 = vunpack.c.h.b16 %v61
  %v657 = vunpack.c.l.b16 %v62
  %v658 = vunpack.c.h.b16 %v62
  %v659 = vunpack.c.l.b16 %v63
  %v660 = vunpack.c.h.b16 %v63
  %v661 = vunpack.c.l.b16 %v64
  %v662 = vunpack.c.h.b16 %v64
  %v663 = vunpack.c.l.b16 %v65
  %v664 = vunpack.c.h.b16 %v65
  %v665 = vunpack.c.l.b16 %v66
  %v666 = vunpack.c.h.b16 %v66
  %v667 = vunpack.c.l.b16 %v67
  %v668 = vunpack.c.h.b16 %v67
  %v669 = vunpack.c.l.b16 %v68
  %v670 = vunpack.c.h.b16 %v68
  %v671 = vunpack.c.l.b16 %v69
  %v672 = vunpack.c.h.b16 %v69
  %v673 = vunpack.c.l.b16 %v70
  %v674 = vunpack.c.h.b16 %v70
  %v675 = vunpack.c.l.b16 %v71
  %v676 = vunpack.c.h.b16 %v71
  %v677 = vunpack.c.l.b16 %v72
  %v678 = vunpack.c.h.b16 %v72
  %v679 = vunpack.c.l.b16 %v73
  %v680 = vunpack.c.h.b16 %v73
  %v681 = vunpack.c.l.b16 %v74
  %v682 = vunpack.c.h.b16 %v74
  %v683 = vunpack.c.l.b16 %v75
  %v684 = vunpack.c.h.b16 %v75
  %v685 = vunpack.c.l.b16 %v76
  %v686 = vunpack.c.h.b16 %v76
  %v687 = vunpack.c.l.b16 %v77
  %v688 = vunpack.c.h.b16 %v77
  %v689 = vunpack.c.l.b16 %v78
  %v690 = vunpack.c.h.b16 %v78
  %v691 = vunpack.c.l.b16 %v79
  %v692 = vunpack.c.h.b16 %v79
  %v693 = vunpack.c.l.b16 %v80
  %v694 = vunpack.c.h.b16 %v80
  %v695 = vunpack.c.l.b16 %v81
  %v696 = vunpack.c.h.b16 %v81
  %v697 = vunpack.c.l.b16 %v82
  %v698 = vunpack.c.h.b16 %v82
  %v699 = vunpack.c.l.b16 %v83
  %v700 = vunpack.c.h.b16 %v83
  %v701 = vunpack.c.l.b16 %v84
  %v702 = vunpack.c.h.b16 %v84
  %v703 = vunpack.c.l.b16 %v85
  %v704 = vunpack.c.h.b16 %v85
  %v705 = vunpack.c.l.b16 %v86
  %v706 = vunpack.c.h.b16 %v86
  %v707 = vunpack.c.l.b16 %v87
  %v708 = vunpack.c.h.b16 %v87
  %v709 = vunpack.c.l.b16 %v88
  %v710 = vunpack.c.h.b16 %v88
  %v711 = vunpack.c.l.b16 %v89
  %v712 = vunpack.c.h.b16 %v89
  %v713 = vunpack.c.l.b16 %v90
  %v714 = vunpack.c.h.b16 %v90
  %v715 = vunpack.c.l.b16 %v91
  %v716 = vunpack.c.h.b16 %v91
  %v717 = vunpack.c.l.b16 %v92
  %v718 = vunpack.c.h.b16 %v92
  %v719 = vunpack.c.l.b16 %v93
  %v720 = vunpack.c.h.b16 %v93
  %v721 = vunpack.c.l.b16 %v94
  %v722 = vunpack.c.h.b16 %v94
  %v723 = vunpack.c.l.b16 %v95
  %v724 = vunpack.c.h.b16 %v95
  %v725 = vunpack.c.l.b16 %v96
  %v726 = vunpack.c.h.b16 %v96
  %v727 = vunpack.c.l.b16 %v97
  %v728 = vunpack.c.h.b16 %v97
  %v729 = vunpack.c.l.b16 %v98
  %v730 = vunpack.c.h.b16 %v98
  %v731 = vunpack.c.l.b16 %v99
  %v732 = vunpack.c.h.b16 %v99
  %v733 = vunpack.c.l.b16 %v100
  %v734 = vunpack.c.h.b16 %v100
  %v735 = vunpack.c.l.b16 %v101
  %v736 = vunpack.c.h.b16 %v101
  %v737 = vunpack.c.l.b16 %v102
  %v738 = vunpack.c.h.b16 %v102
  %v739 = vunpack.c.l.b16 %v103
  %v740 = vunpack.c.h.b16 %v103
  %v741 = vunpack.c.l.b16 %v104
  %v742 = vunpack.c.h.b16 %v104
  %v743 = vunpack.c.l.b16 %v105
  %v744 = vunpack.c.h.b16 %v105
  %v745 = vunpack.c.l.b16 %v106
  %v746 = vunpack.c.h.b16 %v106
  %v747 = vunpack.c.l.b16 %v107
  %v748 = vunpack.c.h.b16 %v107
  %v749 = vunpack.c.l.b16 %v108
  %v750 = vunpack.c.h.b16 %v108
  %v751 = vunpack.c.l.b16 %v109
  %v752 = vunpack.c.h.b16 %v109
  %v753 = vunpack.c.l.b16 %v110
  %v754 = vunpack.c.h.b16 %v110
  %v755 = vunpack.c.l.b16 %v111
  %v756 = vunpack.c.h.b16 %v111
  %v757 = vunpack.c.l.b16 %v112
  %v758 = vunpack.c.h.b16 %v112
  %v759 = vunpack.c.l.b16 %v113
  %v760 = vunpack.c.h.b16 %v113
  %v761 = vunpack.c.l.b16 %v114
  %v762 = vunpack.c.h.b16 %v114
  %v763 = vunpack.c.l.b16 %v115
  %v764 = vunpack.c.h.b16 %v115
  %v765 = vunpack.c.l.b16 %v116
  %v766 = vunpack.c.h.b16 %v116
  %v767 = vunpack.c.l.b16 %v117
  %v768 = vunpack.c.h.b16 %v117
  %v769 = vunpack.c.l.b16 %v118
  %v770 = vunpack.c.h.b16 %v118
  %v771 = vunpack.c.l.b16 %v119
  %v772 = vunpack.c.h.b16 %v119
  %v773 = vunpack.c.l.b16 %v120
  %v774 = vunpack.c.h.b16 %v120
  %v775 = vunpack.c.l.b16 %v121
  %v776 = vunpack.c.h.b16 %v121
  %v777 = vunpack.c.l.b16 %v122
  %v778 = vunpack.c.h.b16 %v122
  %v779 = vunpack.c.l.b16 %v123
  %v780 = vunpack.c.h.b16 %v123
  %v781 = vunpack.c.l.b16 %v124
  %v782 = vunpack.c.h.b16 %v124
  %v783 = vunpack.c.l.b16 %v125
  %v784 = vunpack.c.h.b16 %v125
  %v785 = vunpack.c.l.b16 %v126
  %v786 = vunpack.c.h.b16 %v126
  %v787 = vunpack.c.l.b16 %v127
  %v788 = vunpack.c.h.b16 %v127
  %v789 = vunpack.c.l.b16 %v128
  %v790 = vunpack.c.h.b16 %v128
  %v791 = vunpack.c.l.b16 %v129
  %v792 = vunpack.c.h.b16 %v129
  %v793 = vunpack.c.l.b16 %v130
  %v794 = vunpack.c.h.b16 %v130
  %v795 = vunpack.c.l.b16 %v131
  %v796 = vunpack.c.h.b16 %v131
  %v797 = vunpack.c.l.b16 %v132
  %v798 = vunpack.c.h.b16 %v132
  %v799 = vunpack.c.l.b16 %v133
  %v800 = vunpack.c.h.b16 %v133
  %v801 = vunpack.c.l.b16 %v134
  %v802 = vunpack.c.h.b16 %v134
  %v803 = vunpack.c.l.b16 %v135
  %v804 = vunpack.c.h.b16 %v135
  %v805 = vunpack.c.l.b16 %v136
  %v806 = vunpack.c.h.b16 %v136
  %v807 = vunpack.c.l.b16 %v137
  %v808 = vunpack.c.h.b16 %v137
  %v809 = vunpack.c.l.b16 %v138
  %v810 = vunpack.c.h.b16 %v138
  %v811 = vunpack.c.l.b16 %v139
  %v812 = vunpack.c.h.b16 %v139
  %v813 = vunpack.c.l.b16 %v140
  %v814 = vunpack.c.h.b16 %v140
  %v815 = vunpack.c.l.b16 %v141
  %v816 = vunpack.c.h.b16 %v141
  %v817 = vunpack.c.l.b16 %v142
  %v818 = vunpack.c.h.b16 %v142
  %v819 = vunpack.c.l.b16 %v143
  %v820 = vunpack.c.h.b16 %v143
  %v821 = vunpack.c.l.b16 %v144
  %v822 = vunpack.c.h.b16 %v144
  %v823 = vunpack.c.l.b16 %v145
  %v824 = vunpack.c.h.b16 %v145
  %v825 = vunpack.c.l.b16 %v146
  %v826 = vunpack.c.h.b16 %v146
  %v827 = vunpack.c.l.b16 %v147
  %v828 = vunpack.c.h.b16 %v147
  %v829 = vunpack.c.l.b16 %v148
  %v830 = vunpack.c.h.b16 %v148
  %v831 = vunpack.c.l.b16 %v149
  %v832 = vunpack.c.h.b16 %v149
  %v833 = vunpack.c.l.b16 %v150
  %v834 = vunpack.c.h.b16 %v150
  %v835 = vunpack.c.l.b16 %v151
  %v836 = vunpack.c.h.b16 %v151
  %v837 = vunpack.c.l.b16 %v152
  %v838 = vunpack.c.h.b16 %v152
  %v839 = vunpack.c.l.b16 %v153
  %v840 = vunpack.c.h.b16 %v153
  %v841 = vunpack.c.l.b16 %v154
  %v842 = vunpack.c.h.b16 %v154
  %v843 = vunpack.c.l.b16 %v155
  %v844 = vunpack.c.h.b16 %v155
  %v845 = vunpack.c.l.b16 %v156
  %v846 = vunpack.c.h.b16 %v156
  %v847 = vunpack.c.l.b16 %v157
  %v848 = vunpack.c.h.b16 %v157
  %v849 = vunpack.c.l.b16 %v158
  %v850 = vunpack.c.h.b16 %v158
  %v851 = vunpack.c.l.b16 %v159
  %v852 = vunpack.c.h.b16 %v159
  %v853 = vunpack.c.l.b16 %v160
  %v854 = vunpack.c.h.b16 %v160
  %v855 = vunpack.c.l.b16 %v161
  %v856 = vunpack.c.h.b16 %v161
  %v857 = vunpack.c.l.b16 %v162
  %v858 = vunpack.c.h.b16 %v162
  %v859 = vunpack.c.l.b16 %v163
  %v860 = vunpack.c.h.b16 %v163
  %v861 = vunpack.c.l.b16 %v164
  %v862 = vunpack.c.h.b16 %v164
  %v863 = vunpack.c.l.b16 %v165
  %v864 = vunpack.c.h.b16 %v165
  %v865 = vunpack.c.l.b16 %v166
  %v866 = vunpack.c.h.b16 %v166
  %v867 = vunpack.c.l.b16 %v167
  %v868 = vunpack.c.h.b16 %v167
  %v869 = vunpack.c.l.b16 %v168
  %v870 = vunpack.c.h.b16 %v168
  %v871 = vunpack.c.l.b16 %v169
  %v872 = vunpack.c.h.b16 %v169
  %v873 = vunpack.c.l.b16 %v170
  %v874 = vunpack.c.h.b16 %v170
  %v875 = vunpack.c.l.b16 %v171
  %v876 = vunpack.c.h.b16 %v171
  %v877 = vunpack.c.l.b16 %v172
  %v878 = vunpack.c.h.b16 %v172
  %v879 = vunpack.c.l.b16 %v173
  %v880 = vunpack.c.h.b16 %v173
  %v881 = vunpack.c.l.b16 %v174
  %v882 = vunpack.c.h.b16 %v174
  %v883 = vunpack.c.l.b16 %v175
  %v884 = vunpack.c.h.b16 %v175
  %v885 = vunpack.c.l.b16 %v176
  %v886 = vunpack.c.h.b16 %v176
  %v887 = vunpack.c.l.b16 %v177
  %v888 = vunpack.c.h.b16 %v177
  %v889 = vunpack.c.l.b16 %v178
  %v890 = vunpack.c.h.b16 %v178
  %v891 = vunpack.c.l.b16 %v179
  %v892 = vunpack.c.h.b16 %v179
  %v893 = vunpack.c.l.b16 %v180
  %v894 = vunpack.c.h.b16 %v180
  %v895 = vunpack.c.l.b16 %v181
  %v896 = vunpack.c.h.b16 %v181
  %v897 = vunpack.c.l.b16 %v182
  %v898 = vunpack.c.h.b16 %v182
  %v899 = vunpack.c.l.b16 %v183
  %v900 = vunpack.c.h.b16 %v183
  %v901 = vunpack.c.l.b16 %v184
  %v902 = vunpack.c.h.b16 %v184
  %v903 = vunpack.c.l.b16 %v185
  %v904 = vunpack.c.h.b16 %v185
  %v905 = vunpack.c.l.b16 %v186
  %v906 = vunpack.c.h.b16 %v186
  %v907 = vunpack.c.l.b16 %v187
  %v908 = vunpack.c.h.b16 %v187
  %v909 = vunpack.c.l.b16 %v188
  %v910 = vunpack.c.h.b16 %v188
  %v911 = vunpack.c.l.b16 %v189
  %v912 = vunpack.c.h.b16 %v189
  %v913 = vunpack.c.l.b16 %v190
  %v914 = vunpack.c.h.b16 %v190
  %v915 = vunpack.c.l.b16 %v191
  %v916 = vunpack.c.h.b16 %v191
  %v917 = vunpack.c.l.b16 %v192
  %v918 = vunpack.c.h.b16 %v192
  %v919 = vunpack.c.l.b16 %v193
  %v920 = vunpack.c.h.b16 %v193
  %v921 = vunpack.c.l.b16 %v194
  %v922 = vunpack.c.h.b16 %v194
  %v923 = vunpack.c.l.b16 %v195
  %v924 = vunpack.c.h.b16 %v195
  %v925 = vunpack.c.l.b16 %v196
  %v926 = vunpack.c.h.b16 %v196
  %v927 = vunpack.c.l.b16 %v197
  %v928 = vunpack.c.h.b16 %v197
  %v929 = vunpack.c.l.b16 %v198
  %v930 = vunpack.c.h.b16 %v198
  %v931 = vunpack.c.l.b16 %v199
  %v932 = vunpack.c.h.b16 %v199
  %v933 = vunpack.c.l.b16 %v200
  %v934 = vunpack.c.h.b16 %v200
  %v935 = vunpack.c.l.b16 %v201
  %v936 = vunpack.c.h.b16 %v201
  %v937 = vunpack.c.l.b16 %v202
  %v938 = vunpack.c.h.b16 %v202
  %v939 = vunpack.c.l.b16 %v203
  %v940 = vunpack.c.h.b16 %v203
  %v941 = vunpack.c.l.b16 %v204
  %v942 = vunpack.c.h.b16 %v204
  %v943 = vunpack.c.l.b16 %v205
  %v944 = vunpack.c.h.b16 %v205
  %v945 = vunpack.c.l.b16 %v206
  %v946 = vunpack.c.h.b16 %v206
  %v947 = vunpack.c.l.b16 %v207
  %v948 = vunpack.c.h.b16 %v207
  %v949 = vunpack.c.l.b16 %v208
  %v950 = vunpack.c.h.b16 %v208
  %v951 = vunpack.c.l.b16 %v209
  %v952 = vunpack.c.h.b16 %v209
  %v953 = vunpack.c.l.b16 %v210
  %v954 = vunpack.c.h.b16 %v210
  %v955 = vunpack.c.l.b16 %v211
  %v956 = vunpack.c.h.b16 %v211
  %v957 = vunpack.c.l.b16 %v212
  %v958 = vunpack.c.h.b16 %v212
  %v959 = vunpack.c.l.b16 %v213
  %v960 = vunpack.c.h.b16 %v213
  %v961 = vunpack.c.l.b16 %v214
  %v962 = vunpack.c.h.b16 %v214
  %v963 = vunpack.c.l.b16 %v215
  %v964 = vunpack.c.h.b16 %v215
  %v965 = vunpack.c.l.b16 %v216
  %v966 = vunpack.c.h.b16 %v216
  %v967 = vunpack.c.l.b16 %v217
  %v968 = vunpack.c.h.b16 %v217
  %v969 = vunpack.c.l.b16 %v218
  %v970 = vunpack.c.h.b16 %v218
  %v971 = vunpack.c.l.b16 %v219
  %v972 = vunpack.c.h.b16 %v219
  %v973 = vunpack.c.l.b16 %v220
  %v974 = vunpack.c.h.b16 %v220
  %v975 = vunpack.c.l.b16 %v221
  %v976 = vunpack.c.h.b16 %v221
  %v977 = vunpack.c.l.b16 %v222
  %v978 = vunpack.c.h.b16 %v222
  %v979 = vunpack.c.l.b16 %v223
  %v980 = vunpack.c.h.b16 %v223
  %v981 = vunpack.c.l.b16 %v224
  %v982 = vunpack.c.h.b16 %v224
  %v983 = vunpack.c.l.b16 %v225
  %v984 = vunpack.c.h.b16 %v225
  %v985 = vunpack.c.l.b16 %v226
  %v986 = vunpack.c.h.b16 %v226
  %v987 = vunpack.c.l.b16 %v227
  %v988 = vunpack.c.h.b16 %v227
  %v989 = vunpack.c.l.b16 %v228
  %v990 = vunpack.c.h.b16 %v228
  %v991 = vunpack.c.l.b16 %v229
  %v992 = vunpack.c.h.b16 %v229
  %v993 = vunpack.c.l.b16 %v230
  %v994 = vunpack.c.h.b16 %v230
  %v995 = vunpack.c.l.b16 %v231
  %v996 = vunpack.c.h.b16 %v231
  %v997 = vunpack.c.l.b16 %v232
  %v998 = vunpack.c.h.b16 %v232
  %v999 = vunpack.c.l.b16 %v233
  %v1000 = vunpack.c.h.b16 %v233
  %v1001 = vunpack.c.l.b16 %v234
  %v1002 = vunpack.c.h.b16 %v234
  %v1003 = vunpack.c.l.b16 %v235
  %v1004 = vunpack.c.h.b16 %v235
  %v1005 = vunpack.c.l.b16 %v236
  %v1006 = vunpack.c.h.b16 %v236
  %v1007 = vunpack.c.l.b16 %v237
  %v1008 = vunpack.c.h.b16 %v237
  %v1009 = vunpack.c.l.b16 %v238
  %v1010 = vunpack.c.h.b16 %v238
  %v1011 = vunpack.c.l.b16 %v239
  %v1012 = vunpack.c.h.b16 %v239
  %v1013 = vunpack.c.l.b16 %v240
  %v1014 = vunpack.c.h.b16 %v240
  %v1015 = vunpack.c.l.b16 %v241
  %v1016 = vunpack.c.h.b16 %v241
  %v1017 = vunpack.c.l.b16 %v242
  %v1018 = vunpack.c.h.b16 %v242
  %v1019 = vunpack.c.l.b16 %v243
  %v1020 = vunpack.c.h.b16 %v243
  %v1021 = vunpack.c.l.b16 %v244
  %v1022 = vunpack.c.h.b16 %v244
  %v1023 = vunpack.c.l.b16 %v245
  %v1024 = vunpack.c.h.b16 %v245
  %v1025 = vunpack.c.l.b16 %v246
  %v1026 = vunpack.c.h.b16 %v246
  %v1027 = vunpack.c.l.b16 %v247
  %v1028 = vunpack.c.h.b16 %v247
  %v1029 = vunpack.c.l.b16 %v248
  %v1030 = vunpack.c.h.b16 %v248
  %v1031 = vunpack.c.l.b16 %v249
  %v1032 = vunpack.c.h.b16 %v249
  %v1033 = vunpack.c.l.b16 %v250
  %v1034 = vunpack.c.h.b16 %v250
  %v1035 = vunpack.c.l.b16 %v251
  %v1036 = vunpack.c.h.b16 %v251
  %v1037 = vunpack.c.l.b16 %v252
  %v1038 = vunpack.c.h.b16 %v252
  %v1039 = vunpack.c.l.b16 %v253
  %v1040 = vunpack.c.h.b16 %v253
  %v1041 = vunpack.c.l.b16 %v254
  %v1042 = vunpack.c.h.b16 %v254
  %v1043 = vunpack.c.l.b16 %v255
  %v1044 = vunpack.c.h.b16 %v255
  %v1045 = vunpack.c.l.b16 %v256
  %v1046 = vunpack.c.h.b16 %v256
  %v1047 = vunpack.c.l.b16 %v257
  %v1048 = vunpack.c.h.b16 %v257
  %v1049 = vunpack.c.l.b16 %v258
  %v1050 = vunpack.c.h.b16 %v258
  %v1051 = vunpack.c.l.b16 %v259
  %v1052 = vunpack.c.h.b16 %v259
  %v1053 = vunpack.c.l.b16 %v260
  %v1054 = vunpack.c.h.b16 %v260
  %v1055 = vunpack.c.l.b16 %v261
  %v1056 = vunpack.c.h.b16 %v261
  %v1057 = vunpack.c.l.b16 %v262
  %v1058 = vunpack.c.h.b16 %v262
  %v1059 = vunpack.c.l.b16 %v263
  %v1060 = vunpack.c.h.b16 %v263
  %v1061 = vunpack.c.l.b16 %v264
  %v1062 = vunpack.c.h.b16 %v264
  %v1063 = vunpack.c.l.b16 %v265
  %v1064 = vunpack.c.h.b16 %v265
  %v1065 = vunpack.c.l.b16 %v266
  %v1066 = vunpack.c.h.b16 %v266
  %v1067 = vunpack.c.l.b16 %v267
  %v1068 = vunpack.c.h.b16 %v267
  %v1069 = vunpack.c.l.b16 %v268
  %v1070 = vunpack.c.h.b16 %v268
  %v1071 = vunpack.c.l.b16 %v269
  %v1072 = vunpack.c.h.b16 %v269
  %v1073 = vunpack.c.l.b16 %v270
  %v1074 = vunpack.c.h.b16 %v270
  %v1075 = vunpack.c.l.b16 %v271
  %v1076 = vunpack.c.h.b16 %v271
  %v1077 = vunpack.c.l.b16 %v272
  %v1078 = vunpack.c.h.b16 %v272
  %v1079 = vunpack.c.l.b16 %v273
  %v1080 = vunpack.c.h.b16 %v273
  %v1081 = vunpack.c.l.b16 %v274
  %v1082 = vunpack.c.h.b16 %v274
  %v1083 = vunpack.c.l.b16 %v275
  %v1084 = vunpack.c.h.b16 %v275
  %v1085 = vunpack.c.l.b16 %v276
  %v1086 = vunpack.c.h.b16 %v276
  %v1087 = vunpack.c.l.b16 %v277
  %v1088 = vunpack.c.h.b16 %v277
  %v1089 = vunpack.c.l.b16 %v278
  %v1090 = vunpack.c.h.b16 %v278
  %v1091 = vunpack.c.l.b16 %v279
  %v1092 = vunpack.c.h.b16 %v279
  %v1093 = vunpack.c.l.b16 %v280
  %v1094 = vunpack.c.h.b16 %v280
  %v1095 = vunpack.c.l.b16 %v281
  %v1096 = vunpack.c.h.b16 %v281
  %v1097 = vunpack.c.l.b16 %v282
  %v1098 = vunpack.c.h.b16 %v282
  %v1099 = vunpack.c.l.b16 %v283
  %v1100 = vunpack.c.h.b16 %v283
  %v1101 = vunpack.c.l.b16 %v284
  %v1102 = vunpack.c.h.b16 %v284
  %v1103 = vunpack.c.l.b16 %v285
  %v1104 = vunpack.c.h.b16 %v285
  %v1105 = vunpack.c.l.b16 %v286
  %v1106 = vunpack.c.h.b16 %v286
  %v1107 = vunpack.c.l.b16 %v287
  %v1108 = vunpack.c.h.b16 %v287
  %v1109 = vunpack.c.l.b16 %v288
  %v1110 = vunpack.c.h.b16 %v288
  %v1111 = vunpack.c.l.b16 %v289
  %v1112 = vunpack.c.h.b16 %v289
  %v1113 = vunpack.c.l.b16 %v290
  %v1114 = vunpack.c.h.b16 %v290
  %v1115 = vpack.c.b16 %v611, %v603
  %v1116 = vpack.c.b16 %v612, %v604
  %v1117 = vpack.c.b16 %v613, %v605
  %v1118 = vpack.c.b16 %v614, %v606
  %v1119 = vpack.c.b16 %v615, %v607
  %v1120 = vpack.c.b16 %v616, %v608
  %v1121 = vpack.c.b16 %v617, %v609
  %v1122 = vpack.c.b16 %v618, %v610
  %v1123 = vpack.c.b16 %v627, %v619
  %v1124 = vpack.c.b16 %v628, %v620
  %v1125 = vpack.c.b16 %v629, %v621
  %v1126 = vpack.c.b16 %v630, %v622
  %v1127 = vpack.c.b16 %v631, %v623
  %v1128 = vpack.c.b16 %v632, %v624
  %v1129 = vpack.c.b16 %v633, %v625
  %v1130 = vpack.c.b16 %v634, %v626
  %v1131 = vpack.c.b16 %v643, %v635
  %v1132 = vpack.c.b16 %v644, %v636
  %v1133 = vpack.c.b16 %v645, %v637
  %v1134 = vpack.c.b16 %v646, %v638
  %v1135 = vpack.c.b16 %v647, %v639
  %v1136 = vpack.c.b16 %v648, %v640
  %v1137 = vpack.c.b16 %v649, %v641
  %v1138 = vpack.c.b16 %v650, %v642
  %v1139 = vpack.c.b16 %v659, %v651
  %v1140 = vpack.c.b16 %v660, %v652
  %v1141 = vpack.c.b16 %v661, %v653
  %v1142 = vpack.c.b16 %v662, %v654
  %v1143 = vpack.c.b16 %v663, %v655
  %v1144 = vpack.c.b16 %v664, %v656
  %v1145 = vpack.c.b16 %v665, %v657
  %v1146 = vpack.c.b16 %v666, %v658
  %v1147 = vpack.c.b16 %v675, %v667
  %v1148 = vpack.c.b16 %v676, %v668
  %v1149 = vpack.c.b16 %v677, %v669
  %v1150 = vpack.c.b16 %v678, %v670
  %v1151 = vpack.c.b16 %v679, %v671
  %v1152 = vpack.c.b16 %v680, %v672
  %v1153 = vpack.c.b16 %v681, %v673
  %v1154 = vpack.c.b16 %v682, %v674
  %v1155 = vpack.c.b16 %v691, %v683
  %v1156 = vpack.c.b16 %v692, %v684
  %v1157 = vpack.c.b16 %v693, %v685
  %v1158 = vpack.c.b16 %v694, %v686
  %v1159 = vpack.c.b16 %v695, %v687
  %v1160 = vpack.c.b16 %v696, %v688
  %v1161 = vpack.c.b16 %v697, %v689
  %v1162 = vpack.c.b16 %v698, %v690
  %v1163 = vpack.c.b16 %v707, %v699
  %v1164 = vpack.c.b16 %v708, %v700
  %v1165 = vpack.c.b16 %v709, %v701
  %v1166 = vpack.c.b16 %v710, %v702
  %v1167 = vpack.c.b16 %v711, %v703
  %v1168 = vpack.c.b16 %v712, %v704
  %v1169 = vpack.c.b16 %v713, %v705
  %v1170 = vpack.c.b16 %v714, %v706
  %v1171 = vpack.c.b16 %v723, %v715
  %v1172 = vpack.c.b16 %v724, %v716
  %v1173 = vpack.c.b16 %v725, %v717
  %v1174 = vpack.c.b16 %v726, %v718
  %v1175 = vpack.c.b16 %v727, %v719
  %v1176 = vpack.c.b16 %v728, %v720
  %v1177 = vpack.c.b16 %v729, %v721
  %v1178 = vpack.c.b16 %v730, %v722
  %v1179 = vpack.c.b16 %v739, %v731
  %v1180 = vpack.c.b16 %v740, %v732
  %v1181 = vpack.c.b16 %v741, %v733
  %v1182 = vpack.c.b16 %v742, %v734
  %v1183 = vpack.c.b16 %v743, %v735
  %v1184 = vpack.c.b16 %v744, %v736
  %v1185 = vpack.c.b16 %v745, %v737
  %v1186 = vpack.c.b16 %v746, %v738
  %v1187 = vpack.c.b16 %v755, %v747
  %v1188 = vpack.c.b16 %v756, %v748
  %v1189 = vpack.c.b16 %v757, %v749
  %v1190 = vpack.c.b16 %v758, %v750
  %v1191 = vpack.c.b16 %v759, %v751
  %v1192 = vpack.c.b16 %v760, %v752
  %v1193 = vpack.c.b16 %v761, %v753
  %v1194 = vpack.c.b16 %v762, %v754
  %v1195 = vpack.c.b16 %v771, %v763
  %v1196 = vpack.c.b16 %v772, %v764
  %v1197 = vpack.c.b16 %v773, %v765
  %v1198 = vpack.c.b16 %v774, %v766
  %v1199 = vpack.c.b16 %v775, %v767
  %v1200 = vpack.c.b16 %v776, %v768
  %v1201 = vpack.c.b16 %v777, %v769
  %v1202 = vpack.c.b16 %v778, %v770
  %v1203 = vpack.c.b16 %v787, %v779
  %v1204 = vpack.c.b16 %v788, %v780
  %v1205 = vpack.c.b16 %v789, %v781
  %v1206 = vpack.c.b16 %v790, %v782
  %v1207 = vpack.c.b16 %v791, %v783
  %v1208 = vpack.c.b16 %v792, %v784
  %v1209 = vpack.c.b16 %v793, %v785
  %v1210 = vpack.c.b16 %v794, %v786
  %v1211 = vpack.c.b16 %v803, %v795
  %v1212 = vpack.c.b16 %v804, %v796
  %v1213 = vpack.c.b16 %v805, %v797
  %v1214 = vpack.c.b16 %v806, %v798
  %v1215 = vpack.c.b16 %v807, %v799
  %v1216 = vpack.c.b16 %v808, %v800
  %v1217 = vpack.c.b16 %v809, %v801
  %v1218 = vpack.c.b16 %v810, %v802
  %v1219 = vpack.c.b16 %v819, %v811
  %v1220 = vpack.c.b16 %v820, %v812
  %v1221 = vpack.c.b16 %v821, %v813
  %v1222 = vpack.c.b16 %v822, %v814
  %v1223 = vpack.c.b16 %v823, %v815
  %v1224 = vpack.c.b16 %v824, %v816
  %v1225 = vpack.c.b16 %v825, %v817
  %v1226 = vpack.c.b16 %v826, %v818
  %v1227 = vpack.c.b16 %v835, %v827
  %v1228 = vpack.c.b16 %v836, %v828
  %v1229 = vpack.c.b16 %v837, %v829
  %v1230 = vpack.c.b16 %v838, %v830
  %v1231 = vpack.c.b16 %v839, %v831
  %v1232 = vpack.c.b16 %v840, %v832
  %v1233 = vpack.c.b16 %v841, %v833
  %v1234 = vpack.c.b16 %v842, %v834
  %v1235 = vpack.c.b16 %v851, %v843
  %v1236 = vpack.c.b16 %v852, %v844
  %v1237 = vpack.c.b16 %v853, %v845
  %v1238 = vpack.c.b16 %v854, %v846
  %v1239 = vpack.c.b16 %v855, %v847
  %v1240 = vpack.c.b16 %v856, %v848
  %v1241 = vpack.c.b16 %v857, %v849
  %v1242 = vpack.c.b16 %v858, %v850
  %v1243 = vpack.c.b16 %v867, %v859
  %v1244 = vpack.c.b16 %v868, %v860
  %v1245 = vpack.c.b16 %v869, %v861
  %v1246 = vpack.c.b16 %v870, %v862
  %v1247 = vpack.c.b16 %v871, %v863
  %v1248 = vpack.c.b16 %v872, %v864
  %v1249 = vpack.c.b16 %v873, %v865
  %v1250 = vpack.c.b16 %v874, %v866
  %v1251 = vpack.c.b16 %v883, %v875
  %v1252 = vpack.c.b16 %v884, %v876
  %v1253 = vpack.c.b16 %v885, %v877
  %v1254 = vpack.c.b16 %v886, %v878
  %v1255 = vpack.c.b16 %v887, %v879
  %v1256 = vpack.c.b16 %v888, %v880
  %v1257 = vpack.c.b16 %v889, %v881
  %v1258 = vpack.c.b16 %v890, %v882
  %v1259 = vpack.c.b16 %v899, %v891
  %v1260 = vpack.c.b16 %v900, %v892
  %v1261 = vpack.c.b16 %v901, %v893
  %v1262 = vpack.c.b16 %v902, %v894
  %v1263 = vpack.c.b16 %v903, %v895
  %v1264 = vpack.c.b16 %v904, %v896
  %v1265 = vpack.c.b16 %v905, %v897
  %v1266 = vpack.c.b16 %v906, %v898
  %v1267 = vpack.c.b16 %v915, %v907
  %v1268 = vpack.c.b16 %v916, %v908
  %v1269 = vpack.c.b16 %v917, %v909
  %v1270 = vpack.c.b16 %v918, %v910
  %v1271 = vpack.c.b16 %v919, %v911
  %v1272 = vpack.c.b16 %v920, %v912
  %v1273 = vpack.c.b16 %v921, %v913
  %v1274 = vpack.c.b16 %v922, %v914
  %v1275 = vpack.c.b16 %v931, %v923
  %v1276 = vpack.c.b16 %v932, %v924
  %v1277 = vpack.c.b16 %v933, %v925
  %v1278 = vpack.c.b16 %v934, %v926
  %v1279 = vpack.c.b16 %v935, %v927
  %v1280 = vpack.c.b16 %v936, %v928
  %v1281 = vpack.c.b16 %v937, %v929
  %v1282 = vpack.c.b16 %v938, %v930
  %v1283 = vpack.c.b16 %v947, %v939
  %v1284 = vpack.c.b16 %v948, %v940
  %v1285 = vpack.c.b16 %v949, %v941
  %v1286 = vpack.c.b16 %v950, %v942
  %v1287 = vpack.c.b16 %v951, %v943
  %v1288 = vpack.c.b16 %v952, %v944
  %v1289 = vpack.c.b16 %v953, %v945
  %v1290 = vpack.c.b16 %v954, %v946
  %v1291 = vpack.c.b16 %v963, %v955
  %v1292 = vpack.c.b16 %v964, %v956
  %v1293 = vpack.c.b16 %v965, %v957
  %v1294 = vpack.c.b16 %v966, %v958
  %v1295 = vpack.c.b16 %v967, %v959
  %v1296 = vpack.c.b16 %v968, %v960
  %v1297 = vpack.c.b16 %v969, %v961
  %v1298 = vpack.c.b16 %v970, %v962
  %v1299 = vpack.c.b16 %v979, %v971
  %v1300 = vpack.c.b16 %v980, %v972
  %v1301 = vpack.c.b16 %v981, %v973
  %v1302 = vpack.c.b16 %v982, %v974
  %v1303 = vpack.c.b16 %v983, %v975
  %v1304 = vpack.c.b16 %v984, %v976
  %v1305 = vpack.c.b16 %v985, %v977
  %v1306 = vpack.c.b16 %v986, %v978
  %v1307 = vpack.c.b16 %v995, %v987
  %v1308 = vpack.c.b16 %v996, %v988
  %v1309 = vpack.c.b16 %v997, %v989
  %v1310 = vpack.c.b16 %v998, %v990
  %v1311 = vpack.c.b16 %v999, %v991
  %v1312 = vpack.c.b16 %v1000, %v992
  %v1313 = vpack.c.b16 %v1001, %v993
  %v1314 = vpack.c.b16 %v1002, %v994
  %v1315 = vpack.c.b16 %v1011, %v1003
  %v1316 = vpack.c.b16 %v1012, %v1004
  %v1317 = vpack.c.b16 %v1013, %v1005
  %v1318 = vpack.c.b16 %v1014, %v1006
  %v1319 = vpack.c.b16 %v1015, %v1007
  %v1320 = vpack.c.b16 %v1016, %v1008
  %v1321 = vpack.c.b16 %v1017, %v1009
  %v1322 = vpack.c.b16 %v1018, %v1010
  %v1323 = vpack.c.b16 %v1027, %v1019
  %v1324 = vpack.c.b16 %v1028, %v1020
  %v1325 = vpack.c.b16 %v1029, %v1021
  %v1326 = vpack.c.b16 %v1030, %v1022
  %v1327 = vpack.c.b16 %v1031, %v1023
  %v1328 = vpack.c.b16 %v1032, %v1024
  %v1329 = vpack.c.b16 %v1033, %v1025
  %v1330 = vpack.c.b16 %v1034, %v1026
  %v1331 = vpack.c.b16 %v1043, %v1035
  %v1332 = vpack.c.b16 %v1044, %v1036
  %v1333 = vpack.c.b16 %v1045, %v1037
  %v1334 = vpack.c.b16 %v1046, %v1038
  %v1335 = vpack.c.b16 %v1047, %v1039
  %v1336 = vpack.c.b16 %v1048, %v1040
  %v1337 = vpack.c.b16 %v1049, %v1041
  %v1338 = vpack.c.b16 %v1050, %v1042
  %v1339 = vpack.c.b16 %v1059, %v1051
  %v1340 = vpack.c.b16 %v1060, %v1052
  %v1341 = vpack.c.b16 %v1061, %v1053
  %v1342 = vpack.c.b16 %v1062, %v1054
  %v1343 = vpack.c.b16 %v1063, %v1055
  %v1344 = vpack.c.b16 %v1064, %v1056
  %v1345 = vpack.c.b16 %v1065, %v1057
  %v1346 = vpack.c.b16 %v1066, %v1058
  %v1347 = vpack.c.b16 %v1075, %v1067
  %v1348 = vpack.c.b16 %v1076, %v1068
  %v1349 = vpack.c.b16 %v1077, %v1069
  %v1350 = vpack.c.b16 %v1078, %v1070
  %v1351 = vpack.c.b16 %v1079, %v1071
  %v1352 = vpack.c.b16 %v1080, %v1072
  %v1353 = vpack.c.b16 %v1081, %v1073
  %v1354 = vpack.c.b16 %v1082, %v1074
  %v1355 = vpack.c.b16 %v1091, %v1083
  %v1356 = vpack.c.b16 %v1092, %v1084
  %v1357 = vpack.c.b16 %v1093, %v1085
  %v1358 = vpack.c.b16 %v1094, %v1086
  %v1359 = vpack.c.b16 %v1095, %v1087
  %v1360 = vpack.c.b16 %v1096, %v1088
  %v1361 = vpack.c.b16 %v1097, %v1089
  %v1362 = vpack.c.b16 %v1098, %v1090
  %v1363 = vpack.c.b16 %v1107, %v1099
  %v1364 = vpack.c.b16 %v1108, %v1100
  %v1365 = vpack.c.b16 %v1109, %v1101
  %v1366 = vpack.c.b16 %v1110, %v1102
  %v1367 = vpack.c.b16 %v1111, %v1103
  %v1368 = vpack.c.b16 %v1112, %v1104
  %v1369 = vpack.c.b16 %v1113, %v1105
  %v1370 = vpack.c.b16 %v1114, %v1106
  %1627 = vmatprep.subr.bf16.mxu0 %v1172
  %1628 = vmatpush1.bf16.msra.mxu0 %v1171
  %1629 = vmatprep.subr.bf16.mxu0 %v1164
  %1630 = vmatpush1.bf16.msra.mxu0 %v1163
  %1631 = vmatprep.subr.bf16.mxu0 %v1156
  %1632 = vmatpush1.bf16.msra.mxu0 %v1155
  %1633 = vmatprep.subr.bf16.mxu0 %v1148
  %1634 = vmatpush1.bf16.msra.mxu0 %v1147
  %1635 = vmatprep.subr.bf16.mxu0 %v1140
  %1636 = vmatpush1.bf16.msra.mxu0 %v1139
  %1637 = vmatprep.subr.bf16.mxu0 %v1132
  %1638 = vmatpush1.bf16.msra.mxu0 %v1131
  %1639 = vmatprep.subr.bf16.mxu0 %v1124
  %1640 = vmatpush1.bf16.msra.mxu0 %v1123
  %1641 = vmatprep.subr.bf16.mxu0 %v1116
  %1642 = vmatpush1.bf16.msra.mxu0 %v1115
  %1643 = vmatprep.subr.bf16.mxu0 %v1236
  %1644 = vmatpush2.bf16.msra.mxu0 %v1235
  %1645 = vmatprep.subr.bf16.mxu0 %v1228
  %1646 = vmatpush2.bf16.msra.mxu0 %v1227
  %1647 = vmatprep.subr.bf16.mxu0 %v1220
  %1648 = vmatpush2.bf16.msra.mxu0 %v1219
  %1649 = vmatprep.subr.bf16.mxu0 %v1212
  %1650 = vmatpush2.bf16.msra.mxu0 %v1211
  %1651 = vmatprep.subr.bf16.mxu0 %v1204
  %1652 = vmatpush2.bf16.msra.mxu0 %v1203
  %1653 = vmatprep.subr.bf16.mxu0 %v1196
  %1654 = vmatpush2.bf16.msra.mxu0 %v1195
  %1655 = vmatprep.subr.bf16.mxu0 %v1188
  %1656 = vmatpush2.bf16.msra.mxu0 %v1187
  %1657 = vmatprep.subr.bf16.mxu0 %v1180
  %1658 = vmatpush2.bf16.msra.mxu0 %v1179
  %1659 = vmatprep.mubr.bf16.mxu0 %v340
  %1660 = vmatmul.mubr.bf16.gmra.mxu0 %v339
  %v1661 = vpop.f32.mrf.mxu0
  %v1662 = vadd.f32 %v296, %v1661
  %v1663 = vpop.f32.mrf.mxu0
  %v1664 = vadd.f32 %v300, %v1663
  %v1665 = vpop.f32.mrf.mxu0
  %v1666 = vpop.f32.mrf.mxu0
  %1667 = vdwg.mxu0
  %1668 = vmatprep.subr.bf16.mxu0 %v1300
  %1669 = vmatpush1.bf16.msra.mxu0 %v1299
  %1670 = vmatprep.subr.bf16.mxu0 %v1292
  %1671 = vmatpush1.bf16.msra.mxu0 %v1291
  %1672 = vmatprep.subr.bf16.mxu0 %v1284
  %1673 = vmatpush1.bf16.msra.mxu0 %v1283
  %1674 = vmatprep.subr.bf16.mxu0 %v1276
  %1675 = vmatpush1.bf16.msra.mxu0 %v1275
  %1676 = vmatprep.subr.bf16.mxu0 %v1268
  %1677 = vmatpush1.bf16.msra.mxu0 %v1267
  %1678 = vmatprep.subr.bf16.mxu0 %v1260
  %1679 = vmatpush1.bf16.msra.mxu0 %v1259
  %1680 = vmatprep.subr.bf16.mxu0 %v1252
  %1681 = vmatpush1.bf16.msra.mxu0 %v1251
  %1682 = vmatprep.subr.bf16.mxu0 %v1244
  %1683 = vmatpush1.bf16.msra.mxu0 %v1243
  %1684 = vmatprep.subr.bf16.mxu0 %v1364
  %1685 = vmatpush2.bf16.msra.mxu0 %v1363
  %1686 = vmatprep.subr.bf16.mxu0 %v1356
  %1687 = vmatpush2.bf16.msra.mxu0 %v1355
  %1688 = vmatprep.subr.bf16.mxu0 %v1348
  %1689 = vmatpush2.bf16.msra.mxu0 %v1347
  %1690 = vmatprep.subr.bf16.mxu0 %v1340
  %1691 = vmatpush2.bf16.msra.mxu0 %v1339
  %1692 = vmatprep.subr.bf16.mxu0 %v1332
  %1693 = vmatpush2.bf16.msra.mxu0 %v1331
  %1694 = vmatprep.subr.bf16.mxu0 %v1324
  %1695 = vmatpush2.bf16.msra.mxu0 %v1323
  %1696 = vmatprep.subr.bf16.mxu0 %v1316
  %1697 = vmatpush2.bf16.msra.mxu0 %v1315
  %1698 = vmatprep.subr.bf16.mxu0 %v1308
  %1699 = vmatpush2.bf16.msra.mxu0 %v1307
  %1700 = vmatprep.mubr.bf16.mxu0 %v342
  %1701 = vmatmul.mubr.bf16.gmra.mxu0 %v341
  %v1702 = vpop.f32.mrf.mxu0
  %v1703 = vadd.f32 %v1662, %v1702
  %v1704 = vpop.f32.mrf.mxu0
  %v1705 = vadd.f32 %v1664, %v1704
  %v1706 = vpop.f32.mrf.mxu0
  %v1707 = vpop.f32.mrf.mxu0
  %1708 = vdwg.mxu0
  %1709 = vmatprep.subr.bf16.mxu0 %v1174
  %1710 = vmatpush1.bf16.msra.mxu0 %v1173
  %1711 = vmatprep.subr.bf16.mxu0 %v1166
  %1712 = vmatpush1.bf16.msra.mxu0 %v1165
  %1713 = vmatprep.subr.bf16.mxu0 %v1158
  %1714 = vmatpush1.bf16.msra.mxu0 %v1157
  %1715 = vmatprep.subr.bf16.mxu0 %v1150
  %1716 = vmatpush1.bf16.msra.mxu0 %v1149
  %1717 = vmatprep.subr.bf16.mxu0 %v1142
  %1718 = vmatpush1.bf16.msra.mxu0 %v1141
  %1719 = vmatprep.subr.bf16.mxu0 %v1134
  %1720 = vmatpush1.bf16.msra.mxu0 %v1133
  %1721 = vmatprep.subr.bf16.mxu0 %v1126
  %1722 = vmatpush1.bf16.msra.mxu0 %v1125
  %1723 = vmatprep.subr.bf16.mxu0 %v1118
  %1724 = vmatpush1.bf16.msra.mxu0 %v1117
  %1725 = vmatprep.subr.bf16.mxu0 %v1238
  %1726 = vmatpush2.bf16.msra.mxu0 %v1237
  %1727 = vmatprep.subr.bf16.mxu0 %v1230
  %1728 = vmatpush2.bf16.msra.mxu0 %v1229
  %1729 = vmatprep.subr.bf16.mxu0 %v1222
  %1730 = vmatpush2.bf16.msra.mxu0 %v1221
  %1731 = vmatprep.subr.bf16.mxu0 %v1214
  %1732 = vmatpush2.bf16.msra.mxu0 %v1213
  %1733 = vmatprep.subr.bf16.mxu0 %v1206
  %1734 = vmatpush2.bf16.msra.mxu0 %v1205
  %1735 = vmatprep.subr.bf16.mxu0 %v1198
  %1736 = vmatpush2.bf16.msra.mxu0 %v1197
  %1737 = vmatprep.subr.bf16.mxu0 %v1190
  %1738 = vmatpush2.bf16.msra.mxu0 %v1189
  %1739 = vmatprep.subr.bf16.mxu0 %v1182
  %1740 = vmatpush2.bf16.msra.mxu0 %v1181
  %1741 = vmatprep.mubr.bf16.mxu0 %v340
  %1742 = vmatmul.mubr.bf16.gmra.mxu0 %v339
  %v1743 = vpop.f32.mrf.mxu0
  %v1744 = vadd.f32 %v304, %v1743
  %v1745 = vpop.f32.mrf.mxu0
  %v1746 = vadd.f32 %v308, %v1745
  %v1747 = vpop.f32.mrf.mxu0
  %v1748 = vpop.f32.mrf.mxu0
  %1749 = vdwg.mxu0
  %1750 = vmatprep.subr.bf16.mxu0 %v1302
  %1751 = vmatpush1.bf16.msra.mxu0 %v1301
  %1752 = vmatprep.subr.bf16.mxu0 %v1294
  %1753 = vmatpush1.bf16.msra.mxu0 %v1293
  %1754 = vmatprep.subr.bf16.mxu0 %v1286
  %1755 = vmatpush1.bf16.msra.mxu0 %v1285
  %1756 = vmatprep.subr.bf16.mxu0 %v1278
  %1757 = vmatpush1.bf16.msra.mxu0 %v1277
  %1758 = vmatprep.subr.bf16.mxu0 %v1270
  %1759 = vmatpush1.bf16.msra.mxu0 %v1269
  %1760 = vmatprep.subr.bf16.mxu0 %v1262
  %1761 = vmatpush1.bf16.msra.mxu0 %v1261
  %1762 = vmatprep.subr.bf16.mxu0 %v1254
  %1763 = vmatpush1.bf16.msra.mxu0 %v1253
  %1764 = vmatprep.subr.bf16.mxu0 %v1246
  %1765 = vmatpush1.bf16.msra.mxu0 %v1245
  %1766 = vmatprep.subr.bf16.mxu0 %v1366
  %1767 = vmatpush2.bf16.msra.mxu0 %v1365
  %1768 = vmatprep.subr.bf16.mxu0 %v1358
  %1769 = vmatpush2.bf16.msra.mxu0 %v1357
  %1770 = vmatprep.subr.bf16.mxu0 %v1350
  %1771 = vmatpush2.bf16.msra.mxu0 %v1349
  %1772 = vmatprep.subr.bf16.mxu0 %v1342
  %1773 = vmatpush2.bf16.msra.mxu0 %v1341
  %1774 = vmatprep.subr.bf16.mxu0 %v1334
  %1775 = vmatpush2.bf16.msra.mxu0 %v1333
  %1776 = vmatprep.subr.bf16.mxu0 %v1326
  %1777 = vmatpush2.bf16.msra.mxu0 %v1325
  %1778 = vmatprep.subr.bf16.mxu0 %v1318
  %1779 = vmatpush2.bf16.msra.mxu0 %v1317
  %1780 = vmatprep.subr.bf16.mxu0 %v1310
  %1781 = vmatpush2.bf16.msra.mxu0 %v1309
  %1782 = vmatprep.mubr.bf16.mxu0 %v342
  %1783 = vmatmul.mubr.bf16.gmra.mxu0 %v341
  %v1784 = vpop.f32.mrf.mxu0
  %v1785 = vadd.f32 %v1744, %v1784
  %v1786 = vpop.f32.mrf.mxu0
  %v1787 = vadd.f32 %v1746, %v1786
  %v1788 = vpop.f32.mrf.mxu0
  %v1789 = vpop.f32.mrf.mxu0
  %1790 = vdwg.mxu0
  %1791 = vmatprep.subr.bf16.mxu0 %v1176
  %1792 = vmatpush1.bf16.msra.mxu0 %v1175
  %1793 = vmatprep.subr.bf16.mxu0 %v1168
  %1794 = vmatpush1.bf16.msra.mxu0 %v1167
  %1795 = vmatprep.subr.bf16.mxu0 %v1160
  %1796 = vmatpush1.bf16.msra.mxu0 %v1159
  %1797 = vmatprep.subr.bf16.mxu0 %v1152
  %1798 = vmatpush1.bf16.msra.mxu0 %v1151
  %1799 = vmatprep.subr.bf16.mxu0 %v1144
  %1800 = vmatpush1.bf16.msra.mxu0 %v1143
  %1801 = vmatprep.subr.bf16.mxu0 %v1136
  %1802 = vmatpush1.bf16.msra.mxu0 %v1135
  %1803 = vmatprep.subr.bf16.mxu0 %v1128
  %1804 = vmatpush1.bf16.msra.mxu0 %v1127
  %1805 = vmatprep.subr.bf16.mxu0 %v1120
  %1806 = vmatpush1.bf16.msra.mxu0 %v1119
  %1807 = vmatprep.subr.bf16.mxu0 %v1240
  %1808 = vmatpush2.bf16.msra.mxu0 %v1239
  %1809 = vmatprep.subr.bf16.mxu0 %v1232
  %1810 = vmatpush2.bf16.msra.mxu0 %v1231
  %1811 = vmatprep.subr.bf16.mxu0 %v1224
  %1812 = vmatpush2.bf16.msra.mxu0 %v1223
  %1813 = vmatprep.subr.bf16.mxu0 %v1216
  %1814 = vmatpush2.bf16.msra.mxu0 %v1215
  %1815 = vmatprep.subr.bf16.mxu0 %v1208
  %1816 = vmatpush2.bf16.msra.mxu0 %v1207
  %1817 = vmatprep.subr.bf16.mxu0 %v1200
  %1818 = vmatpush2.bf16.msra.mxu0 %v1199
  %1819 = vmatprep.subr.bf16.mxu0 %v1192
  %1820 = vmatpush2.bf16.msra.mxu0 %v1191
  %1821 = vmatprep.subr.bf16.mxu0 %v1184
  %1822 = vmatpush2.bf16.msra.mxu0 %v1183
  %1823 = vmatprep.mubr.bf16.mxu0 %v340
  %1824 = vmatmul.mubr.bf16.gmra.mxu0 %v339
  %v1825 = vpop.f32.mrf.mxu0
  %v1826 = vadd.f32 %v312, %v1825
  %v1827 = vpop.f32.mrf.mxu0
  %v1828 = vadd.f32 %v316, %v1827
  %v1829 = vpop.f32.mrf.mxu0
  %v1830 = vpop.f32.mrf.mxu0
  %1831 = vdwg.mxu0
  %1832 = vmatprep.subr.bf16.mxu0 %v1304
  %1833 = vmatpush1.bf16.msra.mxu0 %v1303
  %1834 = vmatprep.subr.bf16.mxu0 %v1296
  %1835 = vmatpush1.bf16.msra.mxu0 %v1295
  %1836 = vmatprep.subr.bf16.mxu0 %v1288
  %1837 = vmatpush1.bf16.msra.mxu0 %v1287
  %1838 = vmatprep.subr.bf16.mxu0 %v1280
  %1839 = vmatpush1.bf16.msra.mxu0 %v1279
  %1840 = vmatprep.subr.bf16.mxu0 %v1272
  %1841 = vmatpush1.bf16.msra.mxu0 %v1271
  %1842 = vmatprep.subr.bf16.mxu0 %v1264
  %1843 = vmatpush1.bf16.msra.mxu0 %v1263
  %1844 = vmatprep.subr.bf16.mxu0 %v1256
  %1845 = vmatpush1.bf16.msra.mxu0 %v1255
  %1846 = vmatprep.subr.bf16.mxu0 %v1248
  %1847 = vmatpush1.bf16.msra.mxu0 %v1247
  %1848 = vmatprep.subr.bf16.mxu0 %v1368
  %1849 = vmatpush2.bf16.msra.mxu0 %v1367
  %1850 = vmatprep.subr.bf16.mxu0 %v1360
  %1851 = vmatpush2.bf16.msra.mxu0 %v1359
  %1852 = vmatprep.subr.bf16.mxu0 %v1352
  %1853 = vmatpush2.bf16.msra.mxu0 %v1351
  %1854 = vmatprep.subr.bf16.mxu0 %v1344
  %1855 = vmatpush2.bf16.msra.mxu0 %v1343
  %1856 = vmatprep.subr.bf16.mxu0 %v1336
  %1857 = vmatpush2.bf16.msra.mxu0 %v1335
  %1858 = vmatprep.subr.bf16.mxu0 %v1328
  %1859 = vmatpush2.bf16.msra.mxu0 %v1327
  %1860 = vmatprep.subr.bf16.mxu0 %v1320
  %1861 = vmatpush2.bf16.msra.mxu0 %v1319
  %1862 = vmatprep.subr.bf16.mxu0 %v1312
  %1863 = vmatpush2.bf16.msra.mxu0 %v1311
  %1864 = vmatprep.mubr.bf16.mxu0 %v342
  %1865 = vmatmul.mubr.bf16.gmra.mxu0 %v341
  %v1866 = vpop.f32.mrf.mxu0
  %v1867 = vadd.f32 %v1826, %v1866
  %v1868 = vpop.f32.mrf.mxu0
  %v1869 = vadd.f32 %v1828, %v1868
  %v1870 = vpop.f32.mrf.mxu0
  %v1871 = vpop.f32.mrf.mxu0
  %1872 = vdwg.mxu0
  %1873 = vmatprep.subr.bf16.mxu0 %v1178
  %1874 = vmatpush1.bf16.msra.mxu0 %v1177
  %1875 = vmatprep.subr.bf16.mxu0 %v1170
  %1876 = vmatpush1.bf16.msra.mxu0 %v1169
  %1877 = vmatprep.subr.bf16.mxu0 %v1162
  %1878 = vmatpush1.bf16.msra.mxu0 %v1161
  %1879 = vmatprep.subr.bf16.mxu0 %v1154
  %1880 = vmatpush1.bf16.msra.mxu0 %v1153
  %1881 = vmatprep.subr.bf16.mxu0 %v1146
  %1882 = vmatpush1.bf16.msra.mxu0 %v1145
  %1883 = vmatprep.subr.bf16.mxu0 %v1138
  %1884 = vmatpush1.bf16.msra.mxu0 %v1137
  %1885 = vmatprep.subr.bf16.mxu0 %v1130
  %1886 = vmatpush1.bf16.msra.mxu0 %v1129
  %1887 = vmatprep.subr.bf16.mxu0 %v1122
  %1888 = vmatpush1.bf16.msra.mxu0 %v1121
  %1889 = vmatprep.subr.bf16.mxu0 %v1242
  %1890 = vmatpush2.bf16.msra.mxu0 %v1241
  %1891 = vmatprep.subr.bf16.mxu0 %v1234
  %1892 = vmatpush2.bf16.msra.mxu0 %v1233
  %1893 = vmatprep.subr.bf16.mxu0 %v1226
  %1894 = vmatpush2.bf16.msra.mxu0 %v1225
  %1895 = vmatprep.subr.bf16.mxu0 %v1218
  %1896 = vmatpush2.bf16.msra.mxu0 %v1217
  %1897 = vmatprep.subr.bf16.mxu0 %v1210
  %1898 = vmatpush2.bf16.msra.mxu0 %v1209
  %1899 = vmatprep.subr.bf16.mxu0 %v1202
  %1900 = vmatpush2.bf16.msra.mxu0 %v1201
  %1901 = vmatprep.subr.bf16.mxu0 %v1194
  %1902 = vmatpush2.bf16.msra.mxu0 %v1193
  %1903 = vmatprep.subr.bf16.mxu0 %v1186
  %1904 = vmatpush2.bf16.msra.mxu0 %v1185
  %1905 = vmatprep.mubr.bf16.mxu0 %v340
  %1906 = vmatmul.mubr.bf16.gmra.mxu0 %v339
  %v1907 = vpop.f32.mrf.mxu0
  %v1908 = vadd.f32 %v320, %v1907
  %v1909 = vpop.f32.mrf.mxu0
  %v1910 = vadd.f32 %v324, %v1909
  %v1911 = vpop.f32.mrf.mxu0
  %v1912 = vpop.f32.mrf.mxu0
  %1913 = vdwg.mxu0
  %1914 = vmatprep.subr.bf16.mxu0 %v1306
  %1915 = vmatpush1.bf16.msra.mxu0 %v1305
  %1916 = vmatprep.subr.bf16.mxu0 %v1298
  %1917 = vmatpush1.bf16.msra.mxu0 %v1297
  %1918 = vmatprep.subr.bf16.mxu0 %v1290
  %1919 = vmatpush1.bf16.msra.mxu0 %v1289
  %1920 = vmatprep.subr.bf16.mxu0 %v1282
  %1921 = vmatpush1.bf16.msra.mxu0 %v1281
  %1922 = vmatprep.subr.bf16.mxu0 %v1274
  %1923 = vmatpush1.bf16.msra.mxu0 %v1273
  %1924 = vmatprep.subr.bf16.mxu0 %v1266
  %1925 = vmatpush1.bf16.msra.mxu0 %v1265
  %1926 = vmatprep.subr.bf16.mxu0 %v1258
  %1927 = vmatpush1.bf16.msra.mxu0 %v1257
  %1928 = vmatprep.subr.bf16.mxu0 %v1250
  %1929 = vmatpush1.bf16.msra.mxu0 %v1249
  %1930 = vmatprep.subr.bf16.mxu0 %v1370
  %1931 = vmatpush2.bf16.msra.mxu0 %v1369
  %1932 = vmatprep.subr.bf16.mxu0 %v1362
  %1933 = vmatpush2.bf16.msra.mxu0 %v1361
  %1934 = vmatprep.subr.bf16.mxu0 %v1354
  %1935 = vmatpush2.bf16.msra.mxu0 %v1353
  %1936 = vmatprep.subr.bf16.mxu0 %v1346
  %1937 = vmatpush2.bf16.msra.mxu0 %v1345
  %1938 = vmatprep.subr.bf16.mxu0 %v1338
  %1939 = vmatpush2.bf16.msra.mxu0 %v1337
  %1940 = vmatprep.subr.bf16.mxu0 %v1330
  %1941 = vmatpush2.bf16.msra.mxu0 %v1329
  %1942 = vmatprep.subr.bf16.mxu0 %v1322
  %1943 = vmatpush2.bf16.msra.mxu0 %v1321
  %1944 = vmatprep.subr.bf16.mxu0 %v1314
  %1945 = vmatpush2.bf16.msra.mxu0 %v1313
  %1946 = vmatprep.mubr.bf16.mxu0 %v342
  %1947 = vmatmul.mubr.bf16.gmra.mxu0 %v341
  %v1948 = vpop.f32.mrf.mxu0
  %v1949 = vadd.f32 %v1908, %v1948
  %v1950 = vpop.f32.mrf.mxu0
  %v1951 = vadd.f32 %v1910, %v1950
  %v1952 = vpop.f32.mrf.mxu0
  %v1953 = vpop.f32.mrf.mxu0
  %1954 = vdwg.mxu0
  %v1955 = vmax.f32 %v1703, 0.0
  %v1956 = vmax.f32 %v1705, 0.0
  %v1957 = vmax.f32 %v1785, 0.0
  %v1958 = vmax.f32 %v1787, 0.0
  %v1959 = vmax.f32 %v1867, 0.0
  %v1960 = vmax.f32 %v1869, 0.0
  %v1961 = vmax.f32 %v1949, 0.0
  %v1962 = vmax.f32 %v1951, 0.0
  %v1963 = vpack.c.bf16 %v1955, %v1955
  %v1964 = vpack.c.bf16 %v1956, %v1956
  %v1965 = vpack.c.bf16 %v1957, %v1957
  %v1966 = vpack.c.bf16 %v1958, %v1958
  %v1967 = vpack.c.bf16 %v1959, %v1959
  %v1968 = vpack.c.bf16 %v1960, %v1960
  %v1969 = vpack.c.bf16 %v1961, %v1961
  %v1970 = vpack.c.bf16 %v1962, %v1962
  %v1971 = vld [vmem:[%s3] sm:$0xff]
  %v1972 = vld [vmem:[%s3 + $0x8] sm:$0xff]
  %v1973 = vld [vmem:[%s3 + $0x10] sm:$0xff]
  %v1974 = vld [vmem:[%s3 + $0x18] sm:$0xff]
  %v1975 = vld [vmem:[%s3 + $0x20] sm:$0xff]
  %v1976 = vld [vmem:[%s3 + $0x28] sm:$0xff]
  %v1977 = vld [vmem:[%s3 + $0x30] sm:$0xff]
  %v1978 = vld [vmem:[%s3 + $0x38] sm:$0xff]
  %v1979 = vld [vmem:[%s3 + $0x40] sm:$0xff]
  %v1980 = vld [vmem:[%s3 + $0x48] sm:$0xff]
  %v1981 = vld [vmem:[%s3 + $0x50] sm:$0xff]
  %v1982 = vld [vmem:[%s3 + $0x58] sm:$0xff]
  %v1983 = vld [vmem:[%s3 + $0x60] sm:$0xff]
  %v1984 = vld [vmem:[%s3 + $0x68] sm:$0xff]
  %v1985 = vld [vmem:[%s3 + $0x70] sm:$0xff]
  %v1986 = vld [vmem:[%s3 + $0x78] sm:$0xff]
  %v1987 = vld [vmem:[%s3 + $0x80] sm:$0xff]
  %v1988 = vld [vmem:[%s3 + $0x88] sm:$0xff]
  %v1989 = vld [vmem:[%s3 + $0x90] sm:$0xff]
  %v1990 = vld [vmem:[%s3 + $0x98] sm:$0xff]
  %v1991 = vld [vmem:[%s3 + $0xa0] sm:$0xff]
  %v1992 = vld [vmem:[%s3 + $0xa8] sm:$0xff]
  %v1993 = vld [vmem:[%s3 + $0xb0] sm:$0xff]
  %v1994 = vld [vmem:[%s3 + $0xb8] sm:$0xff]
  %v1995 = vld [vmem:[%s3 + $0xc0] sm:$0xff]
  %v1996 = vld [vmem:[%s3 + $0xc8] sm:$0xff]
  %v1997 = vld [vmem:[%s3 + $0xd0] sm:$0xff]
  %v1998 = vld [vmem:[%s3 + $0xd8] sm:$0xff]
  %v1999 = vld [vmem:[%s3 + $0xe0] sm:$0xff]
  %v2000 = vld [vmem:[%s3 + $0xe8] sm:$0xff]
  %v2001 = vld [vmem:[%s3 + $0xf0] sm:$0xff]
  %v2002 = vld [vmem:[%s3 + $0xf8] sm:$0xff]
  %v2003 = vld [vmem:[%s3 + $0x100] sm:$0xff]
  %v2004 = vld [vmem:[%s3 + $0x108] sm:$0xff]
  %v2005 = vld [vmem:[%s3 + $0x110] sm:$0xff]
  %v2006 = vld [vmem:[%s3 + $0x118] sm:$0xff]
  %v2007 = vld [vmem:[%s3 + $0x120] sm:$0xff]
  %v2008 = vld [vmem:[%s3 + $0x128] sm:$0xff]
  %v2009 = vld [vmem:[%s3 + $0x130] sm:$0xff]
  %v2010 = vld [vmem:[%s3 + $0x138] sm:$0xff]
  %v2011 = vld [vmem:[%s3 + $0x140] sm:$0xff]
  %v2012 = vld [vmem:[%s3 + $0x148] sm:$0xff]
  %v2013 = vld [vmem:[%s3 + $0x150] sm:$0xff]
  %v2014 = vld [vmem:[%s3 + $0x158] sm:$0xff]
  %v2015 = vld [vmem:[%s3 + $0x160] sm:$0xff]
  %v2016 = vld [vmem:[%s3 + $0x168] sm:$0xff]
  %v2017 = vld [vmem:[%s3 + $0x170] sm:$0xff]
  %v2018 = vld [vmem:[%s3 + $0x178] sm:$0xff]
  %v2019 = vld [vmem:[%s3 + $0x180] sm:$0xff]
  %v2020 = vld [vmem:[%s3 + $0x188] sm:$0xff]
  %v2021 = vld [vmem:[%s3 + $0x190] sm:$0xff]
  %v2022 = vld [vmem:[%s3 + $0x198] sm:$0xff]
  %v2023 = vld [vmem:[%s3 + $0x1a0] sm:$0xff]
  %v2024 = vld [vmem:[%s3 + $0x1a8] sm:$0xff]
  %v2025 = vld [vmem:[%s3 + $0x1b0] sm:$0xff]
  %v2026 = vld [vmem:[%s3 + $0x1b8] sm:$0xff]
  %v2027 = vld [vmem:[%s3 + $0x1c0] sm:$0xff]
  %v2028 = vld [vmem:[%s3 + $0x1c8] sm:$0xff]
  %v2029 = vld [vmem:[%s3 + $0x1d0] sm:$0xff]
  %v2030 = vld [vmem:[%s3 + $0x1d8] sm:$0xff]
  %v2031 = vld [vmem:[%s3 + $0x1e0] sm:$0xff]
  %v2032 = vld [vmem:[%s3 + $0x1e8] sm:$0xff]
  %v2033 = vld [vmem:[%s3 + $0x1f0] sm:$0xff]
  %v2034 = vld [vmem:[%s3 + $0x1f8] sm:$0xff]
  %v2035 = vld [vmem:[%s3 + $0x200] sm:$0xff]
  %v2036 = vld [vmem:[%s3 + $0x208] sm:$0xff]
  %v2037 = vld [vmem:[%s3 + $0x210] sm:$0xff]
  %v2038 = vld [vmem:[%s3 + $0x218] sm:$0xff]
  %v2039 = vld [vmem:[%s3 + $0x220] sm:$0xff]
  %v2040 = vld [vmem:[%s3 + $0x228] sm:$0xff]
  %v2041 = vld [vmem:[%s3 + $0x230] sm:$0xff]
  %v2042 = vld [vmem:[%s3 + $0x238] sm:$0xff]
  %v2043 = vld [vmem:[%s3 + $0x240] sm:$0xff]
  %v2044 = vld [vmem:[%s3 + $0x248] sm:$0xff]
  %v2045 = vld [vmem:[%s3 + $0x250] sm:$0xff]
  %v2046 = vld [vmem:[%s3 + $0x258] sm:$0xff]
  %v2047 = vld [vmem:[%s3 + $0x260] sm:$0xff]
  %v2048 = vld [vmem:[%s3 + $0x268] sm:$0xff]
  %v2049 = vld [vmem:[%s3 + $0x270] sm:$0xff]
  %v2050 = vld [vmem:[%s3 + $0x278] sm:$0xff]
  %v2051 = vld [vmem:[%s3 + $0x280] sm:$0xff]
  %v2052 = vld [vmem:[%s3 + $0x288] sm:$0xff]
  %v2053 = vld [vmem:[%s3 + $0x290] sm:$0xff]
  %v2054 = vld [vmem:[%s3 + $0x298] sm:$0xff]
  %v2055 = vld [vmem:[%s3 + $0x2a0] sm:$0xff]
  %v2056 = vld [vmem:[%s3 + $0x2a8] sm:$0xff]
  %v2057 = vld [vmem:[%s3 + $0x2b0] sm:$0xff]
  %v2058 = vld [vmem:[%s3 + $0x2b8] sm:$0xff]
  %v2059 = vld [vmem:[%s3 + $0x2c0] sm:$0xff]
  %v2060 = vld [vmem:[%s3 + $0x2c8] sm:$0xff]
  %v2061 = vld [vmem:[%s3 + $0x2d0] sm:$0xff]
  %v2062 = vld [vmem:[%s3 + $0x2d8] sm:$0xff]
  %v2063 = vld [vmem:[%s3 + $0x2e0] sm:$0xff]
  %v2064 = vld [vmem:[%s3 + $0x2e8] sm:$0xff]
  %v2065 = vld [vmem:[%s3 + $0x2f0] sm:$0xff]
  %v2066 = vld [vmem:[%s3 + $0x2f8] sm:$0xff]
  %v2067 = vld [vmem:[%s3 + $0x300] sm:$0xff]
  %v2068 = vld [vmem:[%s3 + $0x308] sm:$0xff]
  %v2069 = vld [vmem:[%s3 + $0x310] sm:$0xff]
  %v2070 = vld [vmem:[%s3 + $0x318] sm:$0xff]
  %v2071 = vld [vmem:[%s3 + $0x320] sm:$0xff]
  %v2072 = vld [vmem:[%s3 + $0x328] sm:$0xff]
  %v2073 = vld [vmem:[%s3 + $0x330] sm:$0xff]
  %v2074 = vld [vmem:[%s3 + $0x338] sm:$0xff]
  %v2075 = vld [vmem:[%s3 + $0x340] sm:$0xff]
  %v2076 = vld [vmem:[%s3 + $0x348] sm:$0xff]
  %v2077 = vld [vmem:[%s3 + $0x350] sm:$0xff]
  %v2078 = vld [vmem:[%s3 + $0x358] sm:$0xff]
  %v2079 = vld [vmem:[%s3 + $0x360] sm:$0xff]
  %v2080 = vld [vmem:[%s3 + $0x368] sm:$0xff]
  %v2081 = vld [vmem:[%s3 + $0x370] sm:$0xff]
  %v2082 = vld [vmem:[%s3 + $0x378] sm:$0xff]
  %v2083 = vld [vmem:[%s3 + $0x380] sm:$0xff]
  %v2084 = vld [vmem:[%s3 + $0x388] sm:$0xff]
  %v2085 = vld [vmem:[%s3 + $0x390] sm:$0xff]
  %v2086 = vld [vmem:[%s3 + $0x398] sm:$0xff]
  %v2087 = vld [vmem:[%s3 + $0x3a0] sm:$0xff]
  %v2088 = vld [vmem:[%s3 + $0x3a8] sm:$0xff]
  %v2089 = vld [vmem:[%s3 + $0x3b0] sm:$0xff]
  %v2090 = vld [vmem:[%s3 + $0x3b8] sm:$0xff]
  %v2091 = vld [vmem:[%s3 + $0x3c0] sm:$0xff]
  %v2092 = vld [vmem:[%s3 + $0x3c8] sm:$0xff]
  %v2093 = vld [vmem:[%s3 + $0x3d0] sm:$0xff]
  %v2094 = vld [vmem:[%s3 + $0x3d8] sm:$0xff]
  %v2095 = vld [vmem:[%s3 + $0x3e0] sm:$0xff]
  %v2096 = vld [vmem:[%s3 + $0x3e8] sm:$0xff]
  %v2097 = vld [vmem:[%s3 + $0x3f0] sm:$0xff]
  %v2098 = vld [vmem:[%s3 + $0x3f8] sm:$0xff]
  %v2099 = vld [vmem:[%s3 + $0x400] sm:$0xff]
  %v2100 = vld [vmem:[%s3 + $0x408] sm:$0xff]
  %v2101 = vld [vmem:[%s3 + $0x410] sm:$0xff]
  %v2102 = vld [vmem:[%s3 + $0x418] sm:$0xff]
  %v2103 = vld [vmem:[%s3 + $0x420] sm:$0xff]
  %v2104 = vld [vmem:[%s3 + $0x428] sm:$0xff]
  %v2105 = vld [vmem:[%s3 + $0x430] sm:$0xff]
  %v2106 = vld [vmem:[%s3 + $0x438] sm:$0xff]
  %v2107 = vld [vmem:[%s3 + $0x440] sm:$0xff]
  %v2108 = vld [vmem:[%s3 + $0x448] sm:$0xff]
  %v2109 = vld [vmem:[%s3 + $0x450] sm:$0xff]
  %v2110 = vld [vmem:[%s3 + $0x458] sm:$0xff]
  %v2111 = vld [vmem:[%s3 + $0x460] sm:$0xff]
  %v2112 = vld [vmem:[%s3 + $0x468] sm:$0xff]
  %v2113 = vld [vmem:[%s3 + $0x470] sm:$0xff]
  %v2114 = vld [vmem:[%s3 + $0x478] sm:$0xff]
  %v2115 = vld [vmem:[%s3 + $0x480] sm:$0xff]
  %v2116 = vld [vmem:[%s3 + $0x488] sm:$0xff]
  %v2117 = vld [vmem:[%s3 + $0x490] sm:$0xff]
  %v2118 = vld [vmem:[%s3 + $0x498] sm:$0xff]
  %v2119 = vld [vmem:[%s3 + $0x4a0] sm:$0xff]
  %v2120 = vld [vmem:[%s3 + $0x4a8] sm:$0xff]
  %v2121 = vld [vmem:[%s3 + $0x4b0] sm:$0xff]
  %v2122 = vld [vmem:[%s3 + $0x4b8] sm:$0xff]
  %v2123 = vld [vmem:[%s3 + $0x4c0] sm:$0xff]
  %v2124 = vld [vmem:[%s3 + $0x4c8] sm:$0xff]
  %v2125 = vld [vmem:[%s3 + $0x4d0] sm:$0xff]
  %v2126 = vld [vmem:[%s3 + $0x4d8] sm:$0xff]
  %v2127 = vld [vmem:[%s3 + $0x4e0] sm:$0xff]
  %v2128 = vld [vmem:[%s3 + $0x4e8] sm:$0xff]
  %v2129 = vld [vmem:[%s3 + $0x4f0] sm:$0xff]
  %v2130 = vld [vmem:[%s3 + $0x4f8] sm:$0xff]
  %v2131 = vld [vmem:[%s3 + $0x500] sm:$0xff]
  %v2132 = vld [vmem:[%s3 + $0x508] sm:$0xff]
  %v2133 = vld [vmem:[%s3 + $0x510] sm:$0xff]
  %v2134 = vld [vmem:[%s3 + $0x518] sm:$0xff]
  %v2135 = vld [vmem:[%s3 + $0x520] sm:$0xff]
  %v2136 = vld [vmem:[%s3 + $0x528] sm:$0xff]
  %v2137 = vld [vmem:[%s3 + $0x530] sm:$0xff]
  %v2138 = vld [vmem:[%s3 + $0x538] sm:$0xff]
  %v2139 = vld [vmem:[%s3 + $0x540] sm:$0xff]
  %v2140 = vld [vmem:[%s3 + $0x548] sm:$0xff]
  %v2141 = vld [vmem:[%s3 + $0x550] sm:$0xff]
  %v2142 = vld [vmem:[%s3 + $0x558] sm:$0xff]
  %v2143 = vld [vmem:[%s3 + $0x560] sm:$0xff]
  %v2144 = vld [vmem:[%s3 + $0x568] sm:$0xff]
  %v2145 = vld [vmem:[%s3 + $0x570] sm:$0xff]
  %v2146 = vld [vmem:[%s3 + $0x578] sm:$0xff]
  %v2147 = vld [vmem:[%s3 + $0x580] sm:$0xff]
  %v2148 = vld [vmem:[%s3 + $0x588] sm:$0xff]
  %v2149 = vld [vmem:[%s3 + $0x590] sm:$0xff]
  %v2150 = vld [vmem:[%s3 + $0x598] sm:$0xff]
  %v2151 = vld [vmem:[%s3 + $0x5a0] sm:$0xff]
  %v2152 = vld [vmem:[%s3 + $0x5a8] sm:$0xff]
  %v2153 = vld [vmem:[%s3 + $0x5b0] sm:$0xff]
  %v2154 = vld [vmem:[%s3 + $0x5b8] sm:$0xff]
  %v2155 = vld [vmem:[%s3 + $0x5c0] sm:$0xff]
  %v2156 = vld [vmem:[%s3 + $0x5c8] sm:$0xff]
  %v2157 = vld [vmem:[%s3 + $0x5d0] sm:$0xff]
  %v2158 = vld [vmem:[%s3 + $0x5d8] sm:$0xff]
  %v2159 = vld [vmem:[%s3 + $0x5e0] sm:$0xff]
  %v2160 = vld [vmem:[%s3 + $0x5e8] sm:$0xff]
  %v2161 = vld [vmem:[%s3 + $0x5f0] sm:$0xff]
  %v2162 = vld [vmem:[%s3 + $0x5f8] sm:$0xff]
  %v2163 = vld [vmem:[%s3 + $0x600] sm:$0xff]
  %v2164 = vld [vmem:[%s3 + $0x608] sm:$0xff]
  %v2165 = vld [vmem:[%s3 + $0x610] sm:$0xff]
  %v2166 = vld [vmem:[%s3 + $0x618] sm:$0xff]
  %v2167 = vld [vmem:[%s3 + $0x620] sm:$0xff]
  %v2168 = vld [vmem:[%s3 + $0x628] sm:$0xff]
  %v2169 = vld [vmem:[%s3 + $0x630] sm:$0xff]
  %v2170 = vld [vmem:[%s3 + $0x638] sm:$0xff]
  %v2171 = vld [vmem:[%s3 + $0x640] sm:$0xff]
  %v2172 = vld [vmem:[%s3 + $0x648] sm:$0xff]
  %v2173 = vld [vmem:[%s3 + $0x650] sm:$0xff]
  %v2174 = vld [vmem:[%s3 + $0x658] sm:$0xff]
  %v2175 = vld [vmem:[%s3 + $0x660] sm:$0xff]
  %v2176 = vld [vmem:[%s3 + $0x668] sm:$0xff]
  %v2177 = vld [vmem:[%s3 + $0x670] sm:$0xff]
  %v2178 = vld [vmem:[%s3 + $0x678] sm:$0xff]
  %v2179 = vld [vmem:[%s3 + $0x680] sm:$0xff]
  %v2180 = vld [vmem:[%s3 + $0x688] sm:$0xff]
  %v2181 = vld [vmem:[%s3 + $0x690] sm:$0xff]
  %v2182 = vld [vmem:[%s3 + $0x698] sm:$0xff]
  %v2183 = vld [vmem:[%s3 + $0x6a0] sm:$0xff]
  %v2184 = vld [vmem:[%s3 + $0x6a8] sm:$0xff]
  %v2185 = vld [vmem:[%s3 + $0x6b0] sm:$0xff]
  %v2186 = vld [vmem:[%s3 + $0x6b8] sm:$0xff]
  %v2187 = vld [vmem:[%s3 + $0x6c0] sm:$0xff]
  %v2188 = vld [vmem:[%s3 + $0x6c8] sm:$0xff]
  %v2189 = vld [vmem:[%s3 + $0x6d0] sm:$0xff]
  %v2190 = vld [vmem:[%s3 + $0x6d8] sm:$0xff]
  %v2191 = vld [vmem:[%s3 + $0x6e0] sm:$0xff]
  %v2192 = vld [vmem:[%s3 + $0x6e8] sm:$0xff]
  %v2193 = vld [vmem:[%s3 + $0x6f0] sm:$0xff]
  %v2194 = vld [vmem:[%s3 + $0x6f8] sm:$0xff]
  %v2195 = vld [vmem:[%s3 + $0x700] sm:$0xff]
  %v2196 = vld [vmem:[%s3 + $0x708] sm:$0xff]
  %v2197 = vld [vmem:[%s3 + $0x710] sm:$0xff]
  %v2198 = vld [vmem:[%s3 + $0x718] sm:$0xff]
  %v2199 = vld [vmem:[%s3 + $0x720] sm:$0xff]
  %v2200 = vld [vmem:[%s3 + $0x728] sm:$0xff]
  %v2201 = vld [vmem:[%s3 + $0x730] sm:$0xff]
  %v2202 = vld [vmem:[%s3 + $0x738] sm:$0xff]
  %v2203 = vld [vmem:[%s3 + $0x740] sm:$0xff]
  %v2204 = vld [vmem:[%s3 + $0x748] sm:$0xff]
  %v2205 = vld [vmem:[%s3 + $0x750] sm:$0xff]
  %v2206 = vld [vmem:[%s3 + $0x758] sm:$0xff]
  %v2207 = vld [vmem:[%s3 + $0x760] sm:$0xff]
  %v2208 = vld [vmem:[%s3 + $0x768] sm:$0xff]
  %v2209 = vld [vmem:[%s3 + $0x770] sm:$0xff]
  %v2210 = vld [vmem:[%s3 + $0x778] sm:$0xff]
  %v2211 = vld [vmem:[%s3 + $0x780] sm:$0xff]
  %v2212 = vld [vmem:[%s3 + $0x788] sm:$0xff]
  %v2213 = vld [vmem:[%s3 + $0x790] sm:$0xff]
  %v2214 = vld [vmem:[%s3 + $0x798] sm:$0xff]
  %v2215 = vld [vmem:[%s3 + $0x7a0] sm:$0xff]
  %v2216 = vld [vmem:[%s3 + $0x7a8] sm:$0xff]
  %v2217 = vld [vmem:[%s3 + $0x7b0] sm:$0xff]
  %v2218 = vld [vmem:[%s3 + $0x7b8] sm:$0xff]
  %v2219 = vld [vmem:[%s3 + $0x7c0] sm:$0xff]
  %v2220 = vld [vmem:[%s3 + $0x7c8] sm:$0xff]
  %v2221 = vld [vmem:[%s3 + $0x7d0] sm:$0xff]
  %v2222 = vld [vmem:[%s3 + $0x7d8] sm:$0xff]
  %v2223 = vld [vmem:[%s3 + $0x7e0] sm:$0xff]
  %v2224 = vld [vmem:[%s3 + $0x7e8] sm:$0xff]
  %v2225 = vld [vmem:[%s3 + $0x7f0] sm:$0xff]
  %v2226 = vld [vmem:[%s3 + $0x7f8] sm:$0xff]
  %v2227 = vld [vmem:[%s4] sm:$0xf]
  %v2229 = vlaneseq
  %v2230 = vshrl.u32 %v2229, 7
  %v2231 = vsub.s32 0, %v2230
  %v2232 = vrot.slane %v2227, %v2231
  %v2233 = vlaneseq
  %v2234 = vshrl.u32 %v2233, 7
  %v2235 = vsub.s32 1, %v2234
  %v2236 = vrot.slane %v2227, %v2235
  %v2237 = vlaneseq
  %v2238 = vshrl.u32 %v2237, 7
  %v2239 = vsub.s32 2, %v2238
  %v2240 = vrot.slane %v2227, %v2239
  %v2241 = vlaneseq
  %v2242 = vshrl.u32 %v2241, 7
  %v2243 = vsub.s32 3, %v2242
  %v2244 = vrot.slane %v2227, %v2243
  %v2505 = vunpack.c.l.b16 %v1971
  %v2506 = vunpack.c.h.b16 %v1971
  %v2507 = vunpack.c.l.b16 %v1972
  %v2508 = vunpack.c.h.b16 %v1972
  %v2509 = vunpack.c.l.b16 %v1973
  %v2510 = vunpack.c.h.b16 %v1973
  %v2511 = vunpack.c.l.b16 %v1974
  %v2512 = vunpack.c.h.b16 %v1974
  %v2513 = vunpack.c.l.b16 %v1975
  %v2514 = vunpack.c.h.b16 %v1975
  %v2515 = vunpack.c.l.b16 %v1976
  %v2516 = vunpack.c.h.b16 %v1976
  %v2517 = vunpack.c.l.b16 %v1977
  %v2518 = vunpack.c.h.b16 %v1977
  %v2519 = vunpack.c.l.b16 %v1978
  %v2520 = vunpack.c.h.b16 %v1978
  %v2521 = vunpack.c.l.b16 %v1979
  %v2522 = vunpack.c.h.b16 %v1979
  %v2523 = vunpack.c.l.b16 %v1980
  %v2524 = vunpack.c.h.b16 %v1980
  %v2525 = vunpack.c.l.b16 %v1981
  %v2526 = vunpack.c.h.b16 %v1981
  %v2527 = vunpack.c.l.b16 %v1982
  %v2528 = vunpack.c.h.b16 %v1982
  %v2529 = vunpack.c.l.b16 %v1983
  %v2530 = vunpack.c.h.b16 %v1983
  %v2531 = vunpack.c.l.b16 %v1984
  %v2532 = vunpack.c.h.b16 %v1984
  %v2533 = vunpack.c.l.b16 %v1985
  %v2534 = vunpack.c.h.b16 %v1985
  %v2535 = vunpack.c.l.b16 %v1986
  %v2536 = vunpack.c.h.b16 %v1986
  %v2537 = vunpack.c.l.b16 %v1987
  %v2538 = vunpack.c.h.b16 %v1987
  %v2539 = vunpack.c.l.b16 %v1988
  %v2540 = vunpack.c.h.b16 %v1988
  %v2541 = vunpack.c.l.b16 %v1989
  %v2542 = vunpack.c.h.b16 %v1989
  %v2543 = vunpack.c.l.b16 %v1990
  %v2544 = vunpack.c.h.b16 %v1990
  %v2545 = vunpack.c.l.b16 %v1991
  %v2546 = vunpack.c.h.b16 %v1991
  %v2547 = vunpack.c.l.b16 %v1992
  %v2548 = vunpack.c.h.b16 %v1992
  %v2549 = vunpack.c.l.b16 %v1993
  %v2550 = vunpack.c.h.b16 %v1993
  %v2551 = vunpack.c.l.b16 %v1994
  %v2552 = vunpack.c.h.b16 %v1994
  %v2553 = vunpack.c.l.b16 %v1995
  %v2554 = vunpack.c.h.b16 %v1995
  %v2555 = vunpack.c.l.b16 %v1996
  %v2556 = vunpack.c.h.b16 %v1996
  %v2557 = vunpack.c.l.b16 %v1997
  %v2558 = vunpack.c.h.b16 %v1997
  %v2559 = vunpack.c.l.b16 %v1998
  %v2560 = vunpack.c.h.b16 %v1998
  %v2561 = vunpack.c.l.b16 %v1999
  %v2562 = vunpack.c.h.b16 %v1999
  %v2563 = vunpack.c.l.b16 %v2000
  %v2564 = vunpack.c.h.b16 %v2000
  %v2565 = vunpack.c.l.b16 %v2001
  %v2566 = vunpack.c.h.b16 %v2001
  %v2567 = vunpack.c.l.b16 %v2002
  %v2568 = vunpack.c.h.b16 %v2002
  %v2569 = vunpack.c.l.b16 %v2003
  %v2570 = vunpack.c.h.b16 %v2003
  %v2571 = vunpack.c.l.b16 %v2004
  %v2572 = vunpack.c.h.b16 %v2004
  %v2573 = vunpack.c.l.b16 %v2005
  %v2574 = vunpack.c.h.b16 %v2005
  %v2575 = vunpack.c.l.b16 %v2006
  %v2576 = vunpack.c.h.b16 %v2006
  %v2577 = vunpack.c.l.b16 %v2007
  %v2578 = vunpack.c.h.b16 %v2007
  %v2579 = vunpack.c.l.b16 %v2008
  %v2580 = vunpack.c.h.b16 %v2008
  %v2581 = vunpack.c.l.b16 %v2009
  %v2582 = vunpack.c.h.b16 %v2009
  %v2583 = vunpack.c.l.b16 %v2010
  %v2584 = vunpack.c.h.b16 %v2010
  %v2585 = vunpack.c.l.b16 %v2011
  %v2586 = vunpack.c.h.b16 %v2011
  %v2587 = vunpack.c.l.b16 %v2012
  %v2588 = vunpack.c.h.b16 %v2012
  %v2589 = vunpack.c.l.b16 %v2013
  %v2590 = vunpack.c.h.b16 %v2013
  %v2591 = vunpack.c.l.b16 %v2014
  %v2592 = vunpack.c.h.b16 %v2014
  %v2593 = vunpack.c.l.b16 %v2015
  %v2594 = vunpack.c.h.b16 %v2015
  %v2595 = vunpack.c.l.b16 %v2016
  %v2596 = vunpack.c.h.b16 %v2016
  %v2597 = vunpack.c.l.b16 %v2017
  %v2598 = vunpack.c.h.b16 %v2017
  %v2599 = vunpack.c.l.b16 %v2018
  %v2600 = vunpack.c.h.b16 %v2018
  %v2601 = vunpack.c.l.b16 %v2019
  %v2602 = vunpack.c.h.b16 %v2019
  %v2603 = vunpack.c.l.b16 %v2020
  %v2604 = vunpack.c.h.b16 %v2020
  %v2605 = vunpack.c.l.b16 %v2021
  %v2606 = vunpack.c.h.b16 %v2021
  %v2607 = vunpack.c.l.b16 %v2022
  %v2608 = vunpack.c.h.b16 %v2022
  %v2609 = vunpack.c.l.b16 %v2023
  %v2610 = vunpack.c.h.b16 %v2023
  %v2611 = vunpack.c.l.b16 %v2024
  %v2612 = vunpack.c.h.b16 %v2024
  %v2613 = vunpack.c.l.b16 %v2025
  %v2614 = vunpack.c.h.b16 %v2025
  %v2615 = vunpack.c.l.b16 %v2026
  %v2616 = vunpack.c.h.b16 %v2026
  %v2617 = vunpack.c.l.b16 %v2027
  %v2618 = vunpack.c.h.b16 %v2027
  %v2619 = vunpack.c.l.b16 %v2028
  %v2620 = vunpack.c.h.b16 %v2028
  %v2621 = vunpack.c.l.b16 %v2029
  %v2622 = vunpack.c.h.b16 %v2029
  %v2623 = vunpack.c.l.b16 %v2030
  %v2624 = vunpack.c.h.b16 %v2030
  %v2625 = vunpack.c.l.b16 %v2031
  %v2626 = vunpack.c.h.b16 %v2031
  %v2627 = vunpack.c.l.b16 %v2032
  %v2628 = vunpack.c.h.b16 %v2032
  %v2629 = vunpack.c.l.b16 %v2033
  %v2630 = vunpack.c.h.b16 %v2033
  %v2631 = vunpack.c.l.b16 %v2034
  %v2632 = vunpack.c.h.b16 %v2034
  %v2633 = vunpack.c.l.b16 %v2035
  %v2634 = vunpack.c.h.b16 %v2035
  %v2635 = vunpack.c.l.b16 %v2036
  %v2636 = vunpack.c.h.b16 %v2036
  %v2637 = vunpack.c.l.b16 %v2037
  %v2638 = vunpack.c.h.b16 %v2037
  %v2639 = vunpack.c.l.b16 %v2038
  %v2640 = vunpack.c.h.b16 %v2038
  %v2641 = vunpack.c.l.b16 %v2039
  %v2642 = vunpack.c.h.b16 %v2039
  %v2643 = vunpack.c.l.b16 %v2040
  %v2644 = vunpack.c.h.b16 %v2040
  %v2645 = vunpack.c.l.b16 %v2041
  %v2646 = vunpack.c.h.b16 %v2041
  %v2647 = vunpack.c.l.b16 %v2042
  %v2648 = vunpack.c.h.b16 %v2042
  %v2649 = vunpack.c.l.b16 %v2043
  %v2650 = vunpack.c.h.b16 %v2043
  %v2651 = vunpack.c.l.b16 %v2044
  %v2652 = vunpack.c.h.b16 %v2044
  %v2653 = vunpack.c.l.b16 %v2045
  %v2654 = vunpack.c.h.b16 %v2045
  %v2655 = vunpack.c.l.b16 %v2046
  %v2656 = vunpack.c.h.b16 %v2046
  %v2657 = vunpack.c.l.b16 %v2047
  %v2658 = vunpack.c.h.b16 %v2047
  %v2659 = vunpack.c.l.b16 %v2048
  %v2660 = vunpack.c.h.b16 %v2048
  %v2661 = vunpack.c.l.b16 %v2049
  %v2662 = vunpack.c.h.b16 %v2049
  %v2663 = vunpack.c.l.b16 %v2050
  %v2664 = vunpack.c.h.b16 %v2050
  %v2665 = vunpack.c.l.b16 %v2051
  %v2666 = vunpack.c.h.b16 %v2051
  %v2667 = vunpack.c.l.b16 %v2052
  %v2668 = vunpack.c.h.b16 %v2052
  %v2669 = vunpack.c.l.b16 %v2053
  %v2670 = vunpack.c.h.b16 %v2053
  %v2671 = vunpack.c.l.b16 %v2054
  %v2672 = vunpack.c.h.b16 %v2054
  %v2673 = vunpack.c.l.b16 %v2055
  %v2674 = vunpack.c.h.b16 %v2055
  %v2675 = vunpack.c.l.b16 %v2056
  %v2676 = vunpack.c.h.b16 %v2056
  %v2677 = vunpack.c.l.b16 %v2057
  %v2678 = vunpack.c.h.b16 %v2057
  %v2679 = vunpack.c.l.b16 %v2058
  %v2680 = vunpack.c.h.b16 %v2058
  %v2681 = vunpack.c.l.b16 %v2059
  %v2682 = vunpack.c.h.b16 %v2059
  %v2683 = vunpack.c.l.b16 %v2060
  %v2684 = vunpack.c.h.b16 %v2060
  %v2685 = vunpack.c.l.b16 %v2061
  %v2686 = vunpack.c.h.b16 %v2061
  %v2687 = vunpack.c.l.b16 %v2062
  %v2688 = vunpack.c.h.b16 %v2062
  %v2689 = vunpack.c.l.b16 %v2063
  %v2690 = vunpack.c.h.b16 %v2063
  %v2691 = vunpack.c.l.b16 %v2064
  %v2692 = vunpack.c.h.b16 %v2064
  %v2693 = vunpack.c.l.b16 %v2065
  %v2694 = vunpack.c.h.b16 %v2065
  %v2695 = vunpack.c.l.b16 %v2066
  %v2696 = vunpack.c.h.b16 %v2066
  %v2697 = vunpack.c.l.b16 %v2067
  %v2698 = vunpack.c.h.b16 %v2067
  %v2699 = vunpack.c.l.b16 %v2068
  %v2700 = vunpack.c.h.b16 %v2068
  %v2701 = vunpack.c.l.b16 %v2069
  %v2702 = vunpack.c.h.b16 %v2069
  %v2703 = vunpack.c.l.b16 %v2070
  %v2704 = vunpack.c.h.b16 %v2070
  %v2705 = vunpack.c.l.b16 %v2071
  %v2706 = vunpack.c.h.b16 %v2071
  %v2707 = vunpack.c.l.b16 %v2072
  %v2708 = vunpack.c.h.b16 %v2072
  %v2709 = vunpack.c.l.b16 %v2073
  %v2710 = vunpack.c.h.b16 %v2073
  %v2711 = vunpack.c.l.b16 %v2074
  %v2712 = vunpack.c.h.b16 %v2074
  %v2713 = vunpack.c.l.b16 %v2075
  %v2714 = vunpack.c.h.b16 %v2075
  %v2715 = vunpack.c.l.b16 %v2076
  %v2716 = vunpack.c.h.b16 %v2076
  %v2717 = vunpack.c.l.b16 %v2077
  %v2718 = vunpack.c.h.b16 %v2077
  %v2719 = vunpack.c.l.b16 %v2078
  %v2720 = vunpack.c.h.b16 %v2078
  %v2721 = vunpack.c.l.b16 %v2079
  %v2722 = vunpack.c.h.b16 %v2079
  %v2723 = vunpack.c.l.b16 %v2080
  %v2724 = vunpack.c.h.b16 %v2080
  %v2725 = vunpack.c.l.b16 %v2081
  %v2726 = vunpack.c.h.b16 %v2081
  %v2727 = vunpack.c.l.b16 %v2082
  %v2728 = vunpack.c.h.b16 %v2082
  %v2729 = vunpack.c.l.b16 %v2083
  %v2730 = vunpack.c.h.b16 %v2083
  %v2731 = vunpack.c.l.b16 %v2084
  %v2732 = vunpack.c.h.b16 %v2084
  %v2733 = vunpack.c.l.b16 %v2085
  %v2734 = vunpack.c.h.b16 %v2085
  %v2735 = vunpack.c.l.b16 %v2086
  %v2736 = vunpack.c.h.b16 %v2086
  %v2737 = vunpack.c.l.b16 %v2087
  %v2738 = vunpack.c.h.b16 %v2087
  %v2739 = vunpack.c.l.b16 %v2088
  %v2740 = vunpack.c.h.b16 %v2088
  %v2741 = vunpack.c.l.b16 %v2089
  %v2742 = vunpack.c.h.b16 %v2089
  %v2743 = vunpack.c.l.b16 %v2090
  %v2744 = vunpack.c.h.b16 %v2090
  %v2745 = vunpack.c.l.b16 %v2091
  %v2746 = vunpack.c.h.b16 %v2091
  %v2747 = vunpack.c.l.b16 %v2092
  %v2748 = vunpack.c.h.b16 %v2092
  %v2749 = vunpack.c.l.b16 %v2093
  %v2750 = vunpack.c.h.b16 %v2093
  %v2751 = vunpack.c.l.b16 %v2094
  %v2752 = vunpack.c.h.b16 %v2094
  %v2753 = vunpack.c.l.b16 %v2095
  %v2754 = vunpack.c.h.b16 %v2095
  %v2755 = vunpack.c.l.b16 %v2096
  %v2756 = vunpack.c.h.b16 %v2096
  %v2757 = vunpack.c.l.b16 %v2097
  %v2758 = vunpack.c.h.b16 %v2097
  %v2759 = vunpack.c.l.b16 %v2098
  %v2760 = vunpack.c.h.b16 %v2098
  %v2761 = vunpack.c.l.b16 %v2099
  %v2762 = vunpack.c.h.b16 %v2099
  %v2763 = vunpack.c.l.b16 %v2100
  %v2764 = vunpack.c.h.b16 %v2100
  %v2765 = vunpack.c.l.b16 %v2101
  %v2766 = vunpack.c.h.b16 %v2101
  %v2767 = vunpack.c.l.b16 %v2102
  %v2768 = vunpack.c.h.b16 %v2102
  %v2769 = vunpack.c.l.b16 %v2103
  %v2770 = vunpack.c.h.b16 %v2103
  %v2771 = vunpack.c.l.b16 %v2104
  %v2772 = vunpack.c.h.b16 %v2104
  %v2773 = vunpack.c.l.b16 %v2105
  %v2774 = vunpack.c.h.b16 %v2105
  %v2775 = vunpack.c.l.b16 %v2106
  %v2776 = vunpack.c.h.b16 %v2106
  %v2777 = vunpack.c.l.b16 %v2107
  %v2778 = vunpack.c.h.b16 %v2107
  %v2779 = vunpack.c.l.b16 %v2108
  %v2780 = vunpack.c.h.b16 %v2108
  %v2781 = vunpack.c.l.b16 %v2109
  %v2782 = vunpack.c.h.b16 %v2109
  %v2783 = vunpack.c.l.b16 %v2110
  %v2784 = vunpack.c.h.b16 %v2110
  %v2785 = vunpack.c.l.b16 %v2111
  %v2786 = vunpack.c.h.b16 %v2111
  %v2787 = vunpack.c.l.b16 %v2112
  %v2788 = vunpack.c.h.b16 %v2112
  %v2789 = vunpack.c.l.b16 %v2113
  %v2790 = vunpack.c.h.b16 %v2113
  %v2791 = vunpack.c.l.b16 %v2114
  %v2792 = vunpack.c.h.b16 %v2114
  %v2793 = vunpack.c.l.b16 %v2115
  %v2794 = vunpack.c.h.b16 %v2115
  %v2795 = vunpack.c.l.b16 %v2116
  %v2796 = vunpack.c.h.b16 %v2116
  %v2797 = vunpack.c.l.b16 %v2117
  %v2798 = vunpack.c.h.b16 %v2117
  %v2799 = vunpack.c.l.b16 %v2118
  %v2800 = vunpack.c.h.b16 %v2118
  %v2801 = vunpack.c.l.b16 %v2119
  %v2802 = vunpack.c.h.b16 %v2119
  %v2803 = vunpack.c.l.b16 %v2120
  %v2804 = vunpack.c.h.b16 %v2120
  %v2805 = vunpack.c.l.b16 %v2121
  %v2806 = vunpack.c.h.b16 %v2121
  %v2807 = vunpack.c.l.b16 %v2122
  %v2808 = vunpack.c.h.b16 %v2122
  %v2809 = vunpack.c.l.b16 %v2123
  %v2810 = vunpack.c.h.b16 %v2123
  %v2811 = vunpack.c.l.b16 %v2124
  %v2812 = vunpack.c.h.b16 %v2124
  %v2813 = vunpack.c.l.b16 %v2125
  %v2814 = vunpack.c.h.b16 %v2125
  %v2815 = vunpack.c.l.b16 %v2126
  %v2816 = vunpack.c.h.b16 %v2126
  %v2817 = vunpack.c.l.b16 %v2127
  %v2818 = vunpack.c.h.b16 %v2127
  %v2819 = vunpack.c.l.b16 %v2128
  %v2820 = vunpack.c.h.b16 %v2128
  %v2821 = vunpack.c.l.b16 %v2129
  %v2822 = vunpack.c.h.b16 %v2129
  %v2823 = vunpack.c.l.b16 %v2130
  %v2824 = vunpack.c.h.b16 %v2130
  %v2825 = vunpack.c.l.b16 %v2131
  %v2826 = vunpack.c.h.b16 %v2131
  %v2827 = vunpack.c.l.b16 %v2132
  %v2828 = vunpack.c.h.b16 %v2132
  %v2829 = vunpack.c.l.b16 %v2133
  %v2830 = vunpack.c.h.b16 %v2133
  %v2831 = vunpack.c.l.b16 %v2134
  %v2832 = vunpack.c.h.b16 %v2134
  %v2833 = vunpack.c.l.b16 %v2135
  %v2834 = vunpack.c.h.b16 %v2135
  %v2835 = vunpack.c.l.b16 %v2136
  %v2836 = vunpack.c.h.b16 %v2136
  %v2837 = vunpack.c.l.b16 %v2137
  %v2838 = vunpack.c.h.b16 %v2137
  %v2839 = vunpack.c.l.b16 %v2138
  %v2840 = vunpack.c.h.b16 %v2138
  %v2841 = vunpack.c.l.b16 %v2139
  %v2842 = vunpack.c.h.b16 %v2139
  %v2843 = vunpack.c.l.b16 %v2140
  %v2844 = vunpack.c.h.b16 %v2140
  %v2845 = vunpack.c.l.b16 %v2141
  %v2846 = vunpack.c.h.b16 %v2141
  %v2847 = vunpack.c.l.b16 %v2142
  %v2848 = vunpack.c.h.b16 %v2142
  %v2849 = vunpack.c.l.b16 %v2143
  %v2850 = vunpack.c.h.b16 %v2143
  %v2851 = vunpack.c.l.b16 %v2144
  %v2852 = vunpack.c.h.b16 %v2144
  %v2853 = vunpack.c.l.b16 %v2145
  %v2854 = vunpack.c.h.b16 %v2145
  %v2855 = vunpack.c.l.b16 %v2146
  %v2856 = vunpack.c.h.b16 %v2146
  %v2857 = vunpack.c.l.b16 %v2147
  %v2858 = vunpack.c.h.b16 %v2147
  %v2859 = vunpack.c.l.b16 %v2148
  %v2860 = vunpack.c.h.b16 %v2148
  %v2861 = vunpack.c.l.b16 %v2149
  %v2862 = vunpack.c.h.b16 %v2149
  %v2863 = vunpack.c.l.b16 %v2150
  %v2864 = vunpack.c.h.b16 %v2150
  %v2865 = vunpack.c.l.b16 %v2151
  %v2866 = vunpack.c.h.b16 %v2151
  %v2867 = vunpack.c.l.b16 %v2152
  %v2868 = vunpack.c.h.b16 %v2152
  %v2869 = vunpack.c.l.b16 %v2153
  %v2870 = vunpack.c.h.b16 %v2153
  %v2871 = vunpack.c.l.b16 %v2154
  %v2872 = vunpack.c.h.b16 %v2154
  %v2873 = vunpack.c.l.b16 %v2155
  %v2874 = vunpack.c.h.b16 %v2155
  %v2875 = vunpack.c.l.b16 %v2156
  %v2876 = vunpack.c.h.b16 %v2156
  %v2877 = vunpack.c.l.b16 %v2157
  %v2878 = vunpack.c.h.b16 %v2157
  %v2879 = vunpack.c.l.b16 %v2158
  %v2880 = vunpack.c.h.b16 %v2158
  %v2881 = vunpack.c.l.b16 %v2159
  %v2882 = vunpack.c.h.b16 %v2159
  %v2883 = vunpack.c.l.b16 %v2160
  %v2884 = vunpack.c.h.b16 %v2160
  %v2885 = vunpack.c.l.b16 %v2161
  %v2886 = vunpack.c.h.b16 %v2161
  %v2887 = vunpack.c.l.b16 %v2162
  %v2888 = vunpack.c.h.b16 %v2162
  %v2889 = vunpack.c.l.b16 %v2163
  %v2890 = vunpack.c.h.b16 %v2163
  %v2891 = vunpack.c.l.b16 %v2164
  %v2892 = vunpack.c.h.b16 %v2164
  %v2893 = vunpack.c.l.b16 %v2165
  %v2894 = vunpack.c.h.b16 %v2165
  %v2895 = vunpack.c.l.b16 %v2166
  %v2896 = vunpack.c.h.b16 %v2166
  %v2897 = vunpack.c.l.b16 %v2167
  %v2898 = vunpack.c.h.b16 %v2167
  %v2899 = vunpack.c.l.b16 %v2168
  %v2900 = vunpack.c.h.b16 %v2168
  %v2901 = vunpack.c.l.b16 %v2169
  %v2902 = vunpack.c.h.b16 %v2169
  %v2903 = vunpack.c.l.b16 %v2170
  %v2904 = vunpack.c.h.b16 %v2170
  %v2905 = vunpack.c.l.b16 %v2171
  %v2906 = vunpack.c.h.b16 %v2171
  %v2907 = vunpack.c.l.b16 %v2172
  %v2908 = vunpack.c.h.b16 %v2172
  %v2909 = vunpack.c.l.b16 %v2173
  %v2910 = vunpack.c.h.b16 %v2173
  %v2911 = vunpack.c.l.b16 %v2174
  %v2912 = vunpack.c.h.b16 %v2174
  %v2913 = vunpack.c.l.b16 %v2175
  %v2914 = vunpack.c.h.b16 %v2175
  %v2915 = vunpack.c.l.b16 %v2176
  %v2916 = vunpack.c.h.b16 %v2176
  %v2917 = vunpack.c.l.b16 %v2177
  %v2918 = vunpack.c.h.b16 %v2177
  %v2919 = vunpack.c.l.b16 %v2178
  %v2920 = vunpack.c.h.b16 %v2178
  %v2921 = vunpack.c.l.b16 %v2179
  %v2922 = vunpack.c.h.b16 %v2179
  %v2923 = vunpack.c.l.b16 %v2180
  %v2924 = vunpack.c.h.b16 %v2180
  %v2925 = vunpack.c.l.b16 %v2181
  %v2926 = vunpack.c.h.b16 %v2181
  %v2927 = vunpack.c.l.b16 %v2182
  %v2928 = vunpack.c.h.b16 %v2182
  %v2929 = vunpack.c.l.b16 %v2183
  %v2930 = vunpack.c.h.b16 %v2183
  %v2931 = vunpack.c.l.b16 %v2184
  %v2932 = vunpack.c.h.b16 %v2184
  %v2933 = vunpack.c.l.b16 %v2185
  %v2934 = vunpack.c.h.b16 %v2185
  %v2935 = vunpack.c.l.b16 %v2186
  %v2936 = vunpack.c.h.b16 %v2186
  %v2937 = vunpack.c.l.b16 %v2187
  %v2938 = vunpack.c.h.b16 %v2187
  %v2939 = vunpack.c.l.b16 %v2188
  %v2940 = vunpack.c.h.b16 %v2188
  %v2941 = vunpack.c.l.b16 %v2189
  %v2942 = vunpack.c.h.b16 %v2189
  %v2943 = vunpack.c.l.b16 %v2190
  %v2944 = vunpack.c.h.b16 %v2190
  %v2945 = vunpack.c.l.b16 %v2191
  %v2946 = vunpack.c.h.b16 %v2191
  %v2947 = vunpack.c.l.b16 %v2192
  %v2948 = vunpack.c.h.b16 %v2192
  %v2949 = vunpack.c.l.b16 %v2193
  %v2950 = vunpack.c.h.b16 %v2193
  %v2951 = vunpack.c.l.b16 %v2194
  %v2952 = vunpack.c.h.b16 %v2194
  %v2953 = vunpack.c.l.b16 %v2195
  %v2954 = vunpack.c.h.b16 %v2195
  %v2955 = vunpack.c.l.b16 %v2196
  %v2956 = vunpack.c.h.b16 %v2196
  %v2957 = vunpack.c.l.b16 %v2197
  %v2958 = vunpack.c.h.b16 %v2197
  %v2959 = vunpack.c.l.b16 %v2198
  %v2960 = vunpack.c.h.b16 %v2198
  %v2961 = vunpack.c.l.b16 %v2199
  %v2962 = vunpack.c.h.b16 %v2199
  %v2963 = vunpack.c.l.b16 %v2200
  %v2964 = vunpack.c.h.b16 %v2200
  %v2965 = vunpack.c.l.b16 %v2201
  %v2966 = vunpack.c.h.b16 %v2201
  %v2967 = vunpack.c.l.b16 %v2202
  %v2968 = vunpack.c.h.b16 %v2202
  %v2969 = vunpack.c.l.b16 %v2203
  %v2970 = vunpack.c.h.b16 %v2203
  %v2971 = vunpack.c.l.b16 %v2204
  %v2972 = vunpack.c.h.b16 %v2204
  %v2973 = vunpack.c.l.b16 %v2205
  %v2974 = vunpack.c.h.b16 %v2205
  %v2975 = vunpack.c.l.b16 %v2206
  %v2976 = vunpack.c.h.b16 %v2206
  %v2977 = vunpack.c.l.b16 %v2207
  %v2978 = vunpack.c.h.b16 %v2207
  %v2979 = vunpack.c.l.b16 %v2208
  %v2980 = vunpack.c.h.b16 %v2208
  %v2981 = vunpack.c.l.b16 %v2209
  %v2982 = vunpack.c.h.b16 %v2209
  %v2983 = vunpack.c.l.b16 %v2210
  %v2984 = vunpack.c.h.b16 %v2210
  %v2985 = vunpack.c.l.b16 %v2211
  %v2986 = vunpack.c.h.b16 %v2211
  %v2987 = vunpack.c.l.b16 %v2212
  %v2988 = vunpack.c.h.b16 %v2212
  %v2989 = vunpack.c.l.b16 %v2213
  %v2990 = vunpack.c.h.b16 %v2213
  %v2991 = vunpack.c.l.b16 %v2214
  %v2992 = vunpack.c.h.b16 %v2214
  %v2993 = vunpack.c.l.b16 %v2215
  %v2994 = vunpack.c.h.b16 %v2215
  %v2995 = vunpack.c.l.b16 %v2216
  %v2996 = vunpack.c.h.b16 %v2216
  %v2997 = vunpack.c.l.b16 %v2217
  %v2998 = vunpack.c.h.b16 %v2217
  %v2999 = vunpack.c.l.b16 %v2218
  %v3000 = vunpack.c.h.b16 %v2218
  %v3001 = vunpack.c.l.b16 %v2219
  %v3002 = vunpack.c.h.b16 %v2219
  %v3003 = vunpack.c.l.b16 %v2220
  %v3004 = vunpack.c.h.b16 %v2220
  %v3005 = vunpack.c.l.b16 %v2221
  %v3006 = vunpack.c.h.b16 %v2221
  %v3007 = vunpack.c.l.b16 %v2222
  %v3008 = vunpack.c.h.b16 %v2222
  %v3009 = vunpack.c.l.b16 %v2223
  %v3010 = vunpack.c.h.b16 %v2223
  %v3011 = vunpack.c.l.b16 %v2224
  %v3012 = vunpack.c.h.b16 %v2224
  %v3013 = vunpack.c.l.b16 %v2225
  %v3014 = vunpack.c.h.b16 %v2225
  %v3015 = vunpack.c.l.b16 %v2226
  %v3016 = vunpack.c.h.b16 %v2226
  %v3017 = vpack.c.b16 %v2509, %v2505
  %v3018 = vpack.c.b16 %v2510, %v2506
  %v3019 = vpack.c.b16 %v2511, %v2507
  %v3020 = vpack.c.b16 %v2512, %v2508
  %v3021 = vpack.c.b16 %v2517, %v2513
  %v3022 = vpack.c.b16 %v2518, %v2514
  %v3023 = vpack.c.b16 %v2519, %v2515
  %v3024 = vpack.c.b16 %v2520, %v2516
  %v3025 = vpack.c.b16 %v2525, %v2521
  %v3026 = vpack.c.b16 %v2526, %v2522
  %v3027 = vpack.c.b16 %v2527, %v2523
  %v3028 = vpack.c.b16 %v2528, %v2524
  %v3029 = vpack.c.b16 %v2533, %v2529
  %v3030 = vpack.c.b16 %v2534, %v2530
  %v3031 = vpack.c.b16 %v2535, %v2531
  %v3032 = vpack.c.b16 %v2536, %v2532
  %v3033 = vpack.c.b16 %v2541, %v2537
  %v3034 = vpack.c.b16 %v2542, %v2538
  %v3035 = vpack.c.b16 %v2543, %v2539
  %v3036 = vpack.c.b16 %v2544, %v2540
  %v3037 = vpack.c.b16 %v2549, %v2545
  %v3038 = vpack.c.b16 %v2550, %v2546
  %v3039 = vpack.c.b16 %v2551, %v2547
  %v3040 = vpack.c.b16 %v2552, %v2548
  %v3041 = vpack.c.b16 %v2557, %v2553
  %v3042 = vpack.c.b16 %v2558, %v2554
  %v3043 = vpack.c.b16 %v2559, %v2555
  %v3044 = vpack.c.b16 %v2560, %v2556
  %v3045 = vpack.c.b16 %v2565, %v2561
  %v3046 = vpack.c.b16 %v2566, %v2562
  %v3047 = vpack.c.b16 %v2567, %v2563
  %v3048 = vpack.c.b16 %v2568, %v2564
  %v3049 = vpack.c.b16 %v2573, %v2569
  %v3050 = vpack.c.b16 %v2574, %v2570
  %v3051 = vpack.c.b16 %v2575, %v2571
  %v3052 = vpack.c.b16 %v2576, %v2572
  %v3053 = vpack.c.b16 %v2581, %v2577
  %v3054 = vpack.c.b16 %v2582, %v2578
  %v3055 = vpack.c.b16 %v2583, %v2579
  %v3056 = vpack.c.b16 %v2584, %v2580
  %v3057 = vpack.c.b16 %v2589, %v2585
  %v3058 = vpack.c.b16 %v2590, %v2586
  %v3059 = vpack.c.b16 %v2591, %v2587
  %v3060 = vpack.c.b16 %v2592, %v2588
  %v3061 = vpack.c.b16 %v2597, %v2593
  %v3062 = vpack.c.b16 %v2598, %v2594
  %v3063 = vpack.c.b16 %v2599, %v2595
  %v3064 = vpack.c.b16 %v2600, %v2596
  %v3065 = vpack.c.b16 %v2605, %v2601
  %v3066 = vpack.c.b16 %v2606, %v2602
  %v3067 = vpack.c.b16 %v2607, %v2603
  %v3068 = vpack.c.b16 %v2608, %v2604
  %v3069 = vpack.c.b16 %v2613, %v2609
  %v3070 = vpack.c.b16 %v2614, %v2610
  %v3071 = vpack.c.b16 %v2615, %v2611
  %v3072 = vpack.c.b16 %v2616, %v2612
  %v3073 = vpack.c.b16 %v2621, %v2617
  %v3074 = vpack.c.b16 %v2622, %v2618
  %v3075 = vpack.c.b16 %v2623, %v2619
  %v3076 = vpack.c.b16 %v2624, %v2620
  %v3077 = vpack.c.b16 %v2629, %v2625
  %v3078 = vpack.c.b16 %v2630, %v2626
  %v3079 = vpack.c.b16 %v2631, %v2627
  %v3080 = vpack.c.b16 %v2632, %v2628
  %v3081 = vpack.c.b16 %v2637, %v2633
  %v3082 = vpack.c.b16 %v2638, %v2634
  %v3083 = vpack.c.b16 %v2639, %v2635
  %v3084 = vpack.c.b16 %v2640, %v2636
  %v3085 = vpack.c.b16 %v2645, %v2641
  %v3086 = vpack.c.b16 %v2646, %v2642
  %v3087 = vpack.c.b16 %v2647, %v2643
  %v3088 = vpack.c.b16 %v2648, %v2644
  %v3089 = vpack.c.b16 %v2653, %v2649
  %v3090 = vpack.c.b16 %v2654, %v2650
  %v3091 = vpack.c.b16 %v2655, %v2651
  %v3092 = vpack.c.b16 %v2656, %v2652
  %v3093 = vpack.c.b16 %v2661, %v2657
  %v3094 = vpack.c.b16 %v2662, %v2658
  %v3095 = vpack.c.b16 %v2663, %v2659
  %v3096 = vpack.c.b16 %v2664, %v2660
  %v3097 = vpack.c.b16 %v2669, %v2665
  %v3098 = vpack.c.b16 %v2670, %v2666
  %v3099 = vpack.c.b16 %v2671, %v2667
  %v3100 = vpack.c.b16 %v2672, %v2668
  %v3101 = vpack.c.b16 %v2677, %v2673
  %v3102 = vpack.c.b16 %v2678, %v2674
  %v3103 = vpack.c.b16 %v2679, %v2675
  %v3104 = vpack.c.b16 %v2680, %v2676
  %v3105 = vpack.c.b16 %v2685, %v2681
  %v3106 = vpack.c.b16 %v2686, %v2682
  %v3107 = vpack.c.b16 %v2687, %v2683
  %v3108 = vpack.c.b16 %v2688, %v2684
  %v3109 = vpack.c.b16 %v2693, %v2689
  %v3110 = vpack.c.b16 %v2694, %v2690
  %v3111 = vpack.c.b16 %v2695, %v2691
  %v3112 = vpack.c.b16 %v2696, %v2692
  %v3113 = vpack.c.b16 %v2701, %v2697
  %v3114 = vpack.c.b16 %v2702, %v2698
  %v3115 = vpack.c.b16 %v2703, %v2699
  %v3116 = vpack.c.b16 %v2704, %v2700
  %v3117 = vpack.c.b16 %v2709, %v2705
  %v3118 = vpack.c.b16 %v2710, %v2706
  %v3119 = vpack.c.b16 %v2711, %v2707
  %v3120 = vpack.c.b16 %v2712, %v2708
  %v3121 = vpack.c.b16 %v2717, %v2713
  %v3122 = vpack.c.b16 %v2718, %v2714
  %v3123 = vpack.c.b16 %v2719, %v2715
  %v3124 = vpack.c.b16 %v2720, %v2716
  %v3125 = vpack.c.b16 %v2725, %v2721
  %v3126 = vpack.c.b16 %v2726, %v2722
  %v3127 = vpack.c.b16 %v2727, %v2723
  %v3128 = vpack.c.b16 %v2728, %v2724
  %v3129 = vpack.c.b16 %v2733, %v2729
  %v3130 = vpack.c.b16 %v2734, %v2730
  %v3131 = vpack.c.b16 %v2735, %v2731
  %v3132 = vpack.c.b16 %v2736, %v2732
  %v3133 = vpack.c.b16 %v2741, %v2737
  %v3134 = vpack.c.b16 %v2742, %v2738
  %v3135 = vpack.c.b16 %v2743, %v2739
  %v3136 = vpack.c.b16 %v2744, %v2740
  %v3137 = vpack.c.b16 %v2749, %v2745
  %v3138 = vpack.c.b16 %v2750, %v2746
  %v3139 = vpack.c.b16 %v2751, %v2747
  %v3140 = vpack.c.b16 %v2752, %v2748
  %v3141 = vpack.c.b16 %v2757, %v2753
  %v3142 = vpack.c.b16 %v2758, %v2754
  %v3143 = vpack.c.b16 %v2759, %v2755
  %v3144 = vpack.c.b16 %v2760, %v2756
  %v3145 = vpack.c.b16 %v2765, %v2761
  %v3146 = vpack.c.b16 %v2766, %v2762
  %v3147 = vpack.c.b16 %v2767, %v2763
  %v3148 = vpack.c.b16 %v2768, %v2764
  %v3149 = vpack.c.b16 %v2773, %v2769
  %v3150 = vpack.c.b16 %v2774, %v2770
  %v3151 = vpack.c.b16 %v2775, %v2771
  %v3152 = vpack.c.b16 %v2776, %v2772
  %v3153 = vpack.c.b16 %v2781, %v2777
  %v3154 = vpack.c.b16 %v2782, %v2778
  %v3155 = vpack.c.b16 %v2783, %v2779
  %v3156 = vpack.c.b16 %v2784, %v2780
  %v3157 = vpack.c.b16 %v2789, %v2785
  %v3158 = vpack.c.b16 %v2790, %v2786
  %v3159 = vpack.c.b16 %v2791, %v2787
  %v3160 = vpack.c.b16 %v2792, %v2788
  %v3161 = vpack.c.b16 %v2797, %v2793
  %v3162 = vpack.c.b16 %v2798, %v2794
  %v3163 = vpack.c.b16 %v2799, %v2795
  %v3164 = vpack.c.b16 %v2800, %v2796
  %v3165 = vpack.c.b16 %v2805, %v2801
  %v3166 = vpack.c.b16 %v2806, %v2802
  %v3167 = vpack.c.b16 %v2807, %v2803
  %v3168 = vpack.c.b16 %v2808, %v2804
  %v3169 = vpack.c.b16 %v2813, %v2809
  %v3170 = vpack.c.b16 %v2814, %v2810
  %v3171 = vpack.c.b16 %v2815, %v2811
  %v3172 = vpack.c.b16 %v2816, %v2812
  %v3173 = vpack.c.b16 %v2821, %v2817
  %v3174 = vpack.c.b16 %v2822, %v2818
  %v3175 = vpack.c.b16 %v2823, %v2819
  %v3176 = vpack.c.b16 %v2824, %v2820
  %v3177 = vpack.c.b16 %v2829, %v2825
  %v3178 = vpack.c.b16 %v2830, %v2826
  %v3179 = vpack.c.b16 %v2831, %v2827
  %v3180 = vpack.c.b16 %v2832, %v2828
  %v3181 = vpack.c.b16 %v2837, %v2833
  %v3182 = vpack.c.b16 %v2838, %v2834
  %v3183 = vpack.c.b16 %v2839, %v2835
  %v3184 = vpack.c.b16 %v2840, %v2836
  %v3185 = vpack.c.b16 %v2845, %v2841
  %v3186 = vpack.c.b16 %v2846, %v2842
  %v3187 = vpack.c.b16 %v2847, %v2843
  %v3188 = vpack.c.b16 %v2848, %v2844
  %v3189 = vpack.c.b16 %v2853, %v2849
  %v3190 = vpack.c.b16 %v2854, %v2850
  %v3191 = vpack.c.b16 %v2855, %v2851
  %v3192 = vpack.c.b16 %v2856, %v2852
  %v3193 = vpack.c.b16 %v2861, %v2857
  %v3194 = vpack.c.b16 %v2862, %v2858
  %v3195 = vpack.c.b16 %v2863, %v2859
  %v3196 = vpack.c.b16 %v2864, %v2860
  %v3197 = vpack.c.b16 %v2869, %v2865
  %v3198 = vpack.c.b16 %v2870, %v2866
  %v3199 = vpack.c.b16 %v2871, %v2867
  %v3200 = vpack.c.b16 %v2872, %v2868
  %v3201 = vpack.c.b16 %v2877, %v2873
  %v3202 = vpack.c.b16 %v2878, %v2874
  %v3203 = vpack.c.b16 %v2879, %v2875
  %v3204 = vpack.c.b16 %v2880, %v2876
  %v3205 = vpack.c.b16 %v2885, %v2881
  %v3206 = vpack.c.b16 %v2886, %v2882
  %v3207 = vpack.c.b16 %v2887, %v2883
  %v3208 = vpack.c.b16 %v2888, %v2884
  %v3209 = vpack.c.b16 %v2893, %v2889
  %v3210 = vpack.c.b16 %v2894, %v2890
  %v3211 = vpack.c.b16 %v2895, %v2891
  %v3212 = vpack.c.b16 %v2896, %v2892
  %v3213 = vpack.c.b16 %v2901, %v2897
  %v3214 = vpack.c.b16 %v2902, %v2898
  %v3215 = vpack.c.b16 %v2903, %v2899
  %v3216 = vpack.c.b16 %v2904, %v2900
  %v3217 = vpack.c.b16 %v2909, %v2905
  %v3218 = vpack.c.b16 %v2910, %v2906
  %v3219 = vpack.c.b16 %v2911, %v2907
  %v3220 = vpack.c.b16 %v2912, %v2908
  %v3221 = vpack.c.b16 %v2917, %v2913
  %v3222 = vpack.c.b16 %v2918, %v2914
  %v3223 = vpack.c.b16 %v2919, %v2915
  %v3224 = vpack.c.b16 %v2920, %v2916
  %v3225 = vpack.c.b16 %v2925, %v2921
  %v3226 = vpack.c.b16 %v2926, %v2922
  %v3227 = vpack.c.b16 %v2927, %v2923
  %v3228 = vpack.c.b16 %v2928, %v2924
  %v3229 = vpack.c.b16 %v2933, %v2929
  %v3230 = vpack.c.b16 %v2934, %v2930
  %v3231 = vpack.c.b16 %v2935, %v2931
  %v3232 = vpack.c.b16 %v2936, %v2932
  %v3233 = vpack.c.b16 %v2941, %v2937
  %v3234 = vpack.c.b16 %v2942, %v2938
  %v3235 = vpack.c.b16 %v2943, %v2939
  %v3236 = vpack.c.b16 %v2944, %v2940
  %v3237 = vpack.c.b16 %v2949, %v2945
  %v3238 = vpack.c.b16 %v2950, %v2946
  %v3239 = vpack.c.b16 %v2951, %v2947
  %v3240 = vpack.c.b16 %v2952, %v2948
  %v3241 = vpack.c.b16 %v2957, %v2953
  %v3242 = vpack.c.b16 %v2958, %v2954
  %v3243 = vpack.c.b16 %v2959, %v2955
  %v3244 = vpack.c.b16 %v2960, %v2956
  %v3245 = vpack.c.b16 %v2965, %v2961
  %v3246 = vpack.c.b16 %v2966, %v2962
  %v3247 = vpack.c.b16 %v2967, %v2963
  %v3248 = vpack.c.b16 %v2968, %v2964
  %v3249 = vpack.c.b16 %v2973, %v2969
  %v3250 = vpack.c.b16 %v2974, %v2970
  %v3251 = vpack.c.b16 %v2975, %v2971
  %v3252 = vpack.c.b16 %v2976, %v2972
  %v3253 = vpack.c.b16 %v2981, %v2977
  %v3254 = vpack.c.b16 %v2982, %v2978
  %v3255 = vpack.c.b16 %v2983, %v2979
  %v3256 = vpack.c.b16 %v2984, %v2980
  %v3257 = vpack.c.b16 %v2989, %v2985
  %v3258 = vpack.c.b16 %v2990, %v2986
  %v3259 = vpack.c.b16 %v2991, %v2987
  %v3260 = vpack.c.b16 %v2992, %v2988
  %v3261 = vpack.c.b16 %v2997, %v2993
  %v3262 = vpack.c.b16 %v2998, %v2994
  %v3263 = vpack.c.b16 %v2999, %v2995
  %v3264 = vpack.c.b16 %v3000, %v2996
  %v3265 = vpack.c.b16 %v3005, %v3001
  %v3266 = vpack.c.b16 %v3006, %v3002
  %v3267 = vpack.c.b16 %v3007, %v3003
  %v3268 = vpack.c.b16 %v3008, %v3004
  %v3269 = vpack.c.b16 %v3013, %v3009
  %v3270 = vpack.c.b16 %v3014, %v3010
  %v3271 = vpack.c.b16 %v3015, %v3011
  %v3272 = vpack.c.b16 %v3016, %v3012
  %3529 = vmatprep.subr.bf16.mxu0 %v3046
  %3530 = vmatpush1.bf16.msra.mxu0 %v3045
  %3531 = vmatprep.subr.bf16.mxu0 %v3042
  %3532 = vmatpush1.bf16.msra.mxu0 %v3041
  %3533 = vmatprep.subr.bf16.mxu0 %v3038
  %3534 = vmatpush1.bf16.msra.mxu0 %v3037
  %3535 = vmatprep.subr.bf16.mxu0 %v3034
  %3536 = vmatpush1.bf16.msra.mxu0 %v3033
  %3537 = vmatprep.subr.bf16.mxu0 %v3030
  %3538 = vmatpush1.bf16.msra.mxu0 %v3029
  %3539 = vmatprep.subr.bf16.mxu0 %v3026
  %3540 = vmatpush1.bf16.msra.mxu0 %v3025
  %3541 = vmatprep.subr.bf16.mxu0 %v3022
  %3542 = vmatpush1.bf16.msra.mxu0 %v3021
  %3543 = vmatprep.subr.bf16.mxu0 %v3018
  %3544 = vmatpush1.bf16.msra.mxu0 %v3017
  %3545 = vmatprep.subr.bf16.mxu0 %v3078
  %3546 = vmatpush2.bf16.msra.mxu0 %v3077
  %3547 = vmatprep.subr.bf16.mxu0 %v3074
  %3548 = vmatpush2.bf16.msra.mxu0 %v3073
  %3549 = vmatprep.subr.bf16.mxu0 %v3070
  %3550 = vmatpush2.bf16.msra.mxu0 %v3069
  %3551 = vmatprep.subr.bf16.mxu0 %v3066
  %3552 = vmatpush2.bf16.msra.mxu0 %v3065
  %3553 = vmatprep.subr.bf16.mxu0 %v3062
  %3554 = vmatpush2.bf16.msra.mxu0 %v3061
  %3555 = vmatprep.subr.bf16.mxu0 %v3058
  %3556 = vmatpush2.bf16.msra.mxu0 %v3057
  %3557 = vmatprep.subr.bf16.mxu0 %v3054
  %3558 = vmatpush2.bf16.msra.mxu0 %v3053
  %3559 = vmatprep.subr.bf16.mxu0 %v3050
  %3560 = vmatpush2.bf16.msra.mxu0 %v3049
  %3561 = vmatprep.mubr.bf16.mxu0 %v1964
  %3562 = vmatmul.mubr.bf16.gmra.mxu0 %v1963
  %v3563 = vpop.f32.mrf.mxu0
  %v3564 = vadd.f32 %v2232, %v3563
  %v3565 = vpop.f32.mrf.mxu0
  %v3566 = vadd.f32 %v2236, %v3565
  %v3567 = vpop.f32.mrf.mxu0
  %v3568 = vpop.f32.mrf.mxu0
  %3569 = vdwg.mxu0
  %3570 = vmatprep.subr.bf16.mxu0 %v3110
  %3571 = vmatpush1.bf16.msra.mxu0 %v3109
  %3572 = vmatprep.subr.bf16.mxu0 %v3106
  %3573 = vmatpush1.bf16.msra.mxu0 %v3105
  %3574 = vmatprep.subr.bf16.mxu0 %v3102
  %3575 = vmatpush1.bf16.msra.mxu0 %v3101
  %3576 = vmatprep.subr.bf16.mxu0 %v3098
  %3577 = vmatpush1.bf16.msra.mxu0 %v3097
  %3578 = vmatprep.subr.bf16.mxu0 %v3094
  %3579 = vmatpush1.bf16.msra.mxu0 %v3093
  %3580 = vmatprep.subr.bf16.mxu0 %v3090
  %3581 = vmatpush1.bf16.msra.mxu0 %v3089
  %3582 = vmatprep.subr.bf16.mxu0 %v3086
  %3583 = vmatpush1.bf16.msra.mxu0 %v3085
  %3584 = vmatprep.subr.bf16.mxu0 %v3082
  %3585 = vmatpush1.bf16.msra.mxu0 %v3081
  %3586 = vmatprep.subr.bf16.mxu0 %v3142
  %3587 = vmatpush2.bf16.msra.mxu0 %v3141
  %3588 = vmatprep.subr.bf16.mxu0 %v3138
  %3589 = vmatpush2.bf16.msra.mxu0 %v3137
  %3590 = vmatprep.subr.bf16.mxu0 %v3134
  %3591 = vmatpush2.bf16.msra.mxu0 %v3133
  %3592 = vmatprep.subr.bf16.mxu0 %v3130
  %3593 = vmatpush2.bf16.msra.mxu0 %v3129
  %3594 = vmatprep.subr.bf16.mxu0 %v3126
  %3595 = vmatpush2.bf16.msra.mxu0 %v3125
  %3596 = vmatprep.subr.bf16.mxu0 %v3122
  %3597 = vmatpush2.bf16.msra.mxu0 %v3121
  %3598 = vmatprep.subr.bf16.mxu0 %v3118
  %3599 = vmatpush2.bf16.msra.mxu0 %v3117
  %3600 = vmatprep.subr.bf16.mxu0 %v3114
  %3601 = vmatpush2.bf16.msra.mxu0 %v3113
  %3602 = vmatprep.mubr.bf16.mxu0 %v1966
  %3603 = vmatmul.mubr.bf16.gmra.mxu0 %v1965
  %v3604 = vpop.f32.mrf.mxu0
  %v3605 = vadd.f32 %v3564, %v3604
  %v3606 = vpop.f32.mrf.mxu0
  %v3607 = vadd.f32 %v3566, %v3606
  %v3608 = vpop.f32.mrf.mxu0
  %v3609 = vpop.f32.mrf.mxu0
  %3610 = vdwg.mxu0
  %3611 = vmatprep.subr.bf16.mxu0 %v3174
  %3612 = vmatpush1.bf16.msra.mxu0 %v3173
  %3613 = vmatprep.subr.bf16.mxu0 %v3170
  %3614 = vmatpush1.bf16.msra.mxu0 %v3169
  %3615 = vmatprep.subr.bf16.mxu0 %v3166
  %3616 = vmatpush1.bf16.msra.mxu0 %v3165
  %3617 = vmatprep.subr.bf16.mxu0 %v3162
  %3618 = vmatpush1.bf16.msra.mxu0 %v3161
  %3619 = vmatprep.subr.bf16.mxu0 %v3158
  %3620 = vmatpush1.bf16.msra.mxu0 %v3157
  %3621 = vmatprep.subr.bf16.mxu0 %v3154
  %3622 = vmatpush1.bf16.msra.mxu0 %v3153
  %3623 = vmatprep.subr.bf16.mxu0 %v3150
  %3624 = vmatpush1.bf16.msra.mxu0 %v3149
  %3625 = vmatprep.subr.bf16.mxu0 %v3146
  %3626 = vmatpush1.bf16.msra.mxu0 %v3145
  %3627 = vmatprep.subr.bf16.mxu0 %v3206
  %3628 = vmatpush2.bf16.msra.mxu0 %v3205
  %3629 = vmatprep.subr.bf16.mxu0 %v3202
  %3630 = vmatpush2.bf16.msra.mxu0 %v3201
  %3631 = vmatprep.subr.bf16.mxu0 %v3198
  %3632 = vmatpush2.bf16.msra.mxu0 %v3197
  %3633 = vmatprep.subr.bf16.mxu0 %v3194
  %3634 = vmatpush2.bf16.msra.mxu0 %v3193
  %3635 = vmatprep.subr.bf16.mxu0 %v3190
  %3636 = vmatpush2.bf16.msra.mxu0 %v3189
  %3637 = vmatprep.subr.bf16.mxu0 %v3186
  %3638 = vmatpush2.bf16.msra.mxu0 %v3185
  %3639 = vmatprep.subr.bf16.mxu0 %v3182
  %3640 = vmatpush2.bf16.msra.mxu0 %v3181
  %3641 = vmatprep.subr.bf16.mxu0 %v3178
  %3642 = vmatpush2.bf16.msra.mxu0 %v3177
  %3643 = vmatprep.mubr.bf16.mxu0 %v1968
  %3644 = vmatmul.mubr.bf16.gmra.mxu0 %v1967
  %v3645 = vpop.f32.mrf.mxu0
  %v3646 = vadd.f32 %v3605, %v3645
  %v3647 = vpop.f32.mrf.mxu0
  %v3648 = vadd.f32 %v3607, %v3647
  %v3649 = vpop.f32.mrf.mxu0
  %v3650 = vpop.f32.mrf.mxu0
  %3651 = vdwg.mxu0
  %3652 = vmatprep.subr.bf16.mxu0 %v3238
  %3653 = vmatpush1.bf16.msra.mxu0 %v3237
  %3654 = vmatprep.subr.bf16.mxu0 %v3234
  %3655 = vmatpush1.bf16.msra.mxu0 %v3233
  %3656 = vmatprep.subr.bf16.mxu0 %v3230
  %3657 = vmatpush1.bf16.msra.mxu0 %v3229
  %3658 = vmatprep.subr.bf16.mxu0 %v3226
  %3659 = vmatpush1.bf16.msra.mxu0 %v3225
  %3660 = vmatprep.subr.bf16.mxu0 %v3222
  %3661 = vmatpush1.bf16.msra.mxu0 %v3221
  %3662 = vmatprep.subr.bf16.mxu0 %v3218
  %3663 = vmatpush1.bf16.msra.mxu0 %v3217
  %3664 = vmatprep.subr.bf16.mxu0 %v3214
  %3665 = vmatpush1.bf16.msra.mxu0 %v3213
  %3666 = vmatprep.subr.bf16.mxu0 %v3210
  %3667 = vmatpush1.bf16.msra.mxu0 %v3209
  %3668 = vmatprep.subr.bf16.mxu0 %v3270
  %3669 = vmatpush2.bf16.msra.mxu0 %v3269
  %3670 = vmatprep.subr.bf16.mxu0 %v3266
  %3671 = vmatpush2.bf16.msra.mxu0 %v3265
  %3672 = vmatprep.subr.bf16.mxu0 %v3262
  %3673 = vmatpush2.bf16.msra.mxu0 %v3261
  %3674 = vmatprep.subr.bf16.mxu0 %v3258
  %3675 = vmatpush2.bf16.msra.mxu0 %v3257
  %3676 = vmatprep.subr.bf16.mxu0 %v3254
  %3677 = vmatpush2.bf16.msra.mxu0 %v3253
  %3678 = vmatprep.subr.bf16.mxu0 %v3250
  %3679 = vmatpush2.bf16.msra.mxu0 %v3249
  %3680 = vmatprep.subr.bf16.mxu0 %v3246
  %3681 = vmatpush2.bf16.msra.mxu0 %v3245
  %3682 = vmatprep.subr.bf16.mxu0 %v3242
  %3683 = vmatpush2.bf16.msra.mxu0 %v3241
  %3684 = vmatprep.mubr.bf16.mxu0 %v1970
  %3685 = vmatmul.mubr.bf16.gmra.mxu0 %v1969
  %v3686 = vpop.f32.mrf.mxu0
  %v3687 = vadd.f32 %v3646, %v3686
  %v3688 = vpop.f32.mrf.mxu0
  %v3689 = vadd.f32 %v3648, %v3688
  %v3690 = vpop.f32.mrf.mxu0
  %v3691 = vpop.f32.mrf.mxu0
  %3692 = vdwg.mxu0
  %3693 = vmatprep.subr.bf16.mxu0 %v3048
  %3694 = vmatpush1.bf16.msra.mxu0 %v3047
  %3695 = vmatprep.subr.bf16.mxu0 %v3044
  %3696 = vmatpush1.bf16.msra.mxu0 %v3043
  %3697 = vmatprep.subr.bf16.mxu0 %v3040
  %3698 = vmatpush1.bf16.msra.mxu0 %v3039
  %3699 = vmatprep.subr.bf16.mxu0 %v3036
  %3700 = vmatpush1.bf16.msra.mxu0 %v3035
  %3701 = vmatprep.subr.bf16.mxu0 %v3032
  %3702 = vmatpush1.bf16.msra.mxu0 %v3031
  %3703 = vmatprep.subr.bf16.mxu0 %v3028
  %3704 = vmatpush1.bf16.msra.mxu0 %v3027
  %3705 = vmatprep.subr.bf16.mxu0 %v3024
  %3706 = vmatpush1.bf16.msra.mxu0 %v3023
  %3707 = vmatprep.subr.bf16.mxu0 %v3020
  %3708 = vmatpush1.bf16.msra.mxu0 %v3019
  %3709 = vmatprep.subr.bf16.mxu0 %v3080
  %3710 = vmatpush2.bf16.msra.mxu0 %v3079
  %3711 = vmatprep.subr.bf16.mxu0 %v3076
  %3712 = vmatpush2.bf16.msra.mxu0 %v3075
  %3713 = vmatprep.subr.bf16.mxu0 %v3072
  %3714 = vmatpush2.bf16.msra.mxu0 %v3071
  %3715 = vmatprep.subr.bf16.mxu0 %v3068
  %3716 = vmatpush2.bf16.msra.mxu0 %v3067
  %3717 = vmatprep.subr.bf16.mxu0 %v3064
  %3718 = vmatpush2.bf16.msra.mxu0 %v3063
  %3719 = vmatprep.subr.bf16.mxu0 %v3060
  %3720 = vmatpush2.bf16.msra.mxu0 %v3059
  %3721 = vmatprep.subr.bf16.mxu0 %v3056
  %3722 = vmatpush2.bf16.msra.mxu0 %v3055
  %3723 = vmatprep.subr.bf16.mxu0 %v3052
  %3724 = vmatpush2.bf16.msra.mxu0 %v3051
  %3725 = vmatprep.mubr.bf16.mxu0 %v1964
  %3726 = vmatmul.mubr.bf16.gmra.mxu0 %v1963
  %v3727 = vpop.f32.mrf.mxu0
  %v3728 = vadd.f32 %v2240, %v3727
  %v3729 = vpop.f32.mrf.mxu0
  %v3730 = vadd.f32 %v2244, %v3729
  %v3731 = vpop.f32.mrf.mxu0
  %v3732 = vpop.f32.mrf.mxu0
  %3733 = vdwg.mxu0
  %3734 = vmatprep.subr.bf16.mxu0 %v3112
  %3735 = vmatpush1.bf16.msra.mxu0 %v3111
  %3736 = vmatprep.subr.bf16.mxu0 %v3108
  %3737 = vmatpush1.bf16.msra.mxu0 %v3107
  %3738 = vmatprep.subr.bf16.mxu0 %v3104
  %3739 = vmatpush1.bf16.msra.mxu0 %v3103
  %3740 = vmatprep.subr.bf16.mxu0 %v3100
  %3741 = vmatpush1.bf16.msra.mxu0 %v3099
  %3742 = vmatprep.subr.bf16.mxu0 %v3096
  %3743 = vmatpush1.bf16.msra.mxu0 %v3095
  %3744 = vmatprep.subr.bf16.mxu0 %v3092
  %3745 = vmatpush1.bf16.msra.mxu0 %v3091
  %3746 = vmatprep.subr.bf16.mxu0 %v3088
  %3747 = vmatpush1.bf16.msra.mxu0 %v3087
  %3748 = vmatprep.subr.bf16.mxu0 %v3084
  %3749 = vmatpush1.bf16.msra.mxu0 %v3083
  %3750 = vmatprep.subr.bf16.mxu0 %v3144
  %3751 = vmatpush2.bf16.msra.mxu0 %v3143
  %3752 = vmatprep.subr.bf16.mxu0 %v3140
  %3753 = vmatpush2.bf16.msra.mxu0 %v3139
  %3754 = vmatprep.subr.bf16.mxu0 %v3136
  %3755 = vmatpush2.bf16.msra.mxu0 %v3135
  %3756 = vmatprep.subr.bf16.mxu0 %v3132
  %3757 = vmatpush2.bf16.msra.mxu0 %v3131
  %3758 = vmatprep.subr.bf16.mxu0 %v3128
  %3759 = vmatpush2.bf16.msra.mxu0 %v3127
  %3760 = vmatprep.subr.bf16.mxu0 %v3124
  %3761 = vmatpush2.bf16.msra.mxu0 %v3123
  %3762 = vmatprep.subr.bf16.mxu0 %v3120
  %3763 = vmatpush2.bf16.msra.mxu0 %v3119
  %3764 = vmatprep.subr.bf16.mxu0 %v3116
  %3765 = vmatpush2.bf16.msra.mxu0 %v3115
  %3766 = vmatprep.mubr.bf16.mxu0 %v1966
  %3767 = vmatmul.mubr.bf16.gmra.mxu0 %v1965
  %v3768 = vpop.f32.mrf.mxu0
  %v3769 = vadd.f32 %v3728, %v3768
  %v3770 = vpop.f32.mrf.mxu0
  %v3771 = vadd.f32 %v3730, %v3770
  %v3772 = vpop.f32.mrf.mxu0
  %v3773 = vpop.f32.mrf.mxu0
  %3774 = vdwg.mxu0
  %3775 = vmatprep.subr.bf16.mxu0 %v3176
  %3776 = vmatpush1.bf16.msra.mxu0 %v3175
  %3777 = vmatprep.subr.bf16.mxu0 %v3172
  %3778 = vmatpush1.bf16.msra.mxu0 %v3171
  %3779 = vmatprep.subr.bf16.mxu0 %v3168
  %3780 = vmatpush1.bf16.msra.mxu0 %v3167
  %3781 = vmatprep.subr.bf16.mxu0 %v3164
  %3782 = vmatpush1.bf16.msra.mxu0 %v3163
  %3783 = vmatprep.subr.bf16.mxu0 %v3160
  %3784 = vmatpush1.bf16.msra.mxu0 %v3159
  %3785 = vmatprep.subr.bf16.mxu0 %v3156
  %3786 = vmatpush1.bf16.msra.mxu0 %v3155
  %3787 = vmatprep.subr.bf16.mxu0 %v3152
  %3788 = vmatpush1.bf16.msra.mxu0 %v3151
  %3789 = vmatprep.subr.bf16.mxu0 %v3148
  %3790 = vmatpush1.bf16.msra.mxu0 %v3147
  %3791 = vmatprep.subr.bf16.mxu0 %v3208
  %3792 = vmatpush2.bf16.msra.mxu0 %v3207
  %3793 = vmatprep.subr.bf16.mxu0 %v3204
  %3794 = vmatpush2.bf16.msra.mxu0 %v3203
  %3795 = vmatprep.subr.bf16.mxu0 %v3200
  %3796 = vmatpush2.bf16.msra.mxu0 %v3199
  %3797 = vmatprep.subr.bf16.mxu0 %v3196
  %3798 = vmatpush2.bf16.msra.mxu0 %v3195
  %3799 = vmatprep.subr.bf16.mxu0 %v3192
  %3800 = vmatpush2.bf16.msra.mxu0 %v3191
  %3801 = vmatprep.subr.bf16.mxu0 %v3188
  %3802 = vmatpush2.bf16.msra.mxu0 %v3187
  %3803 = vmatprep.subr.bf16.mxu0 %v3184
  %3804 = vmatpush2.bf16.msra.mxu0 %v3183
  %3805 = vmatprep.subr.bf16.mxu0 %v3180
  %3806 = vmatpush2.bf16.msra.mxu0 %v3179
  %3807 = vmatprep.mubr.bf16.mxu0 %v1968
  %3808 = vmatmul.mubr.bf16.gmra.mxu0 %v1967
  %v3809 = vpop.f32.mrf.mxu0
  %v3810 = vadd.f32 %v3769, %v3809
  %v3811 = vpop.f32.mrf.mxu0
  %v3812 = vadd.f32 %v3771, %v3811
  %v3813 = vpop.f32.mrf.mxu0
  %v3814 = vpop.f32.mrf.mxu0
  %3815 = vdwg.mxu0
  %3816 = vmatprep.subr.bf16.mxu0 %v3240
  %3817 = vmatpush1.bf16.msra.mxu0 %v3239
  %3818 = vmatprep.subr.bf16.mxu0 %v3236
  %3819 = vmatpush1.bf16.msra.mxu0 %v3235
  %3820 = vmatprep.subr.bf16.mxu0 %v3232
  %3821 = vmatpush1.bf16.msra.mxu0 %v3231
  %3822 = vmatprep.subr.bf16.mxu0 %v3228
  %3823 = vmatpush1.bf16.msra.mxu0 %v3227
  %3824 = vmatprep.subr.bf16.mxu0 %v3224
  %3825 = vmatpush1.bf16.msra.mxu0 %v3223
  %3826 = vmatprep.subr.bf16.mxu0 %v3220
  %3827 = vmatpush1.bf16.msra.mxu0 %v3219
  %3828 = vmatprep.subr.bf16.mxu0 %v3216
  %3829 = vmatpush1.bf16.msra.mxu0 %v3215
  %3830 = vmatprep.subr.bf16.mxu0 %v3212
  %3831 = vmatpush1.bf16.msra.mxu0 %v3211
  %3832 = vmatprep.subr.bf16.mxu0 %v3272
  %3833 = vmatpush2.bf16.msra.mxu0 %v3271
  %3834 = vmatprep.subr.bf16.mxu0 %v3268
  %3835 = vmatpush2.bf16.msra.mxu0 %v3267
  %3836 = vmatprep.subr.bf16.mxu0 %v3264
  %3837 = vmatpush2.bf16.msra.mxu0 %v3263
  %3838 = vmatprep.subr.bf16.mxu0 %v3260
  %3839 = vmatpush2.bf16.msra.mxu0 %v3259
  %3840 = vmatprep.subr.bf16.mxu0 %v3256
  %3841 = vmatpush2.bf16.msra.mxu0 %v3255
  %3842 = vmatprep.subr.bf16.mxu0 %v3252
  %3843 = vmatpush2.bf16.msra.mxu0 %v3251
  %3844 = vmatprep.subr.bf16.mxu0 %v3248
  %3845 = vmatpush2.bf16.msra.mxu0 %v3247
  %3846 = vmatprep.subr.bf16.mxu0 %v3244
  %3847 = vmatpush2.bf16.msra.mxu0 %v3243
  %3848 = vmatprep.mubr.bf16.mxu0 %v1970
  %3849 = vmatmul.mubr.bf16.gmra.mxu0 %v1969
  %v3850 = vpop.f32.mrf.mxu0
  %v3851 = vadd.f32 %v3810, %v3850
  %v3852 = vpop.f32.mrf.mxu0
  %v3853 = vadd.f32 %v3812, %v3852
  %v3854 = vpop.f32.mrf.mxu0
  %v3855 = vpop.f32.mrf.mxu0
  %3856 = vdwg.mxu0
  %v3857 = vmax.f32 %v3687, 0.0
  %v3858 = vmax.f32 %v3689, 0.0
  %v3859 = vmax.f32 %v3851, 0.0
  %v3860 = vmax.f32 %v3853, 0.0
  %v3861 = vpack.c.bf16 %v3857, %v3857
  %v3862 = vpack.c.bf16 %v3858, %v3858
  %v3863 = vpack.c.bf16 %v3859, %v3859
  %v3864 = vpack.c.bf16 %v3860, %v3860
  %v3865 = vld [vmem:[%s5] sm:$0xff]
  %v3866 = vld [vmem:[%s5 + $0x8] sm:$0xff]
  %v3867 = vld [vmem:[%s5 + $0x10] sm:$0xff]
  %v3868 = vld [vmem:[%s5 + $0x18] sm:$0xff]
  %v3869 = vld [vmem:[%s5 + $0x20] sm:$0xff]
  %v3870 = vld [vmem:[%s5 + $0x28] sm:$0xff]
  %v3871 = vld [vmem:[%s5 + $0x30] sm:$0xff]
  %v3872 = vld [vmem:[%s5 + $0x38] sm:$0xff]
  %v3873 = vld [vmem:[%s5 + $0x40] sm:$0xff]
  %v3874 = vld [vmem:[%s5 + $0x48] sm:$0xff]
  %v3875 = vld [vmem:[%s5 + $0x50] sm:$0xff]
  %v3876 = vld [vmem:[%s5 + $0x58] sm:$0xff]
  %v3877 = vld [vmem:[%s5 + $0x60] sm:$0xff]
  %v3878 = vld [vmem:[%s5 + $0x68] sm:$0xff]
  %v3879 = vld [vmem:[%s5 + $0x70] sm:$0xff]
  %v3880 = vld [vmem:[%s5 + $0x78] sm:$0xff]
  %v3881 = vld [vmem:[%s5 + $0x80] sm:$0xff]
  %v3882 = vld [vmem:[%s5 + $0x88] sm:$0xff]
  %v3883 = vld [vmem:[%s5 + $0x90] sm:$0xff]
  %v3884 = vld [vmem:[%s5 + $0x98] sm:$0xff]
  %v3885 = vld [vmem:[%s5 + $0xa0] sm:$0xff]
  %v3886 = vld [vmem:[%s5 + $0xa8] sm:$0xff]
  %v3887 = vld [vmem:[%s5 + $0xb0] sm:$0xff]
  %v3888 = vld [vmem:[%s5 + $0xb8] sm:$0xff]
  %v3889 = vld [vmem:[%s5 + $0xc0] sm:$0xff]
  %v3890 = vld [vmem:[%s5 + $0xc8] sm:$0xff]
  %v3891 = vld [vmem:[%s5 + $0xd0] sm:$0xff]
  %v3892 = vld [vmem:[%s5 + $0xd8] sm:$0xff]
  %v3893 = vld [vmem:[%s5 + $0xe0] sm:$0xff]
  %v3894 = vld [vmem:[%s5 + $0xe8] sm:$0xff]
  %v3895 = vld [vmem:[%s5 + $0xf0] sm:$0xff]
  %v3896 = vld [vmem:[%s5 + $0xf8] sm:$0xff]
  %v3897 = vld [vmem:[%s5 + $0x100] sm:$0xff]
  %v3898 = vld [vmem:[%s5 + $0x108] sm:$0xff]
  %v3899 = vld [vmem:[%s5 + $0x110] sm:$0xff]
  %v3900 = vld [vmem:[%s5 + $0x118] sm:$0xff]
  %v3901 = vld [vmem:[%s5 + $0x120] sm:$0xff]
  %v3902 = vld [vmem:[%s5 + $0x128] sm:$0xff]
  %v3903 = vld [vmem:[%s5 + $0x130] sm:$0xff]
  %v3904 = vld [vmem:[%s5 + $0x138] sm:$0xff]
  %v3905 = vld [vmem:[%s5 + $0x140] sm:$0xff]
  %v3906 = vld [vmem:[%s5 + $0x148] sm:$0xff]
  %v3907 = vld [vmem:[%s5 + $0x150] sm:$0xff]
  %v3908 = vld [vmem:[%s5 + $0x158] sm:$0xff]
  %v3909 = vld [vmem:[%s5 + $0x160] sm:$0xff]
  %v3910 = vld [vmem:[%s5 + $0x168] sm:$0xff]
  %v3911 = vld [vmem:[%s5 + $0x170] sm:$0xff]
  %v3912 = vld [vmem:[%s5 + $0x178] sm:$0xff]
  %v3913 = vld [vmem:[%s5 + $0x180] sm:$0xff]
  %v3914 = vld [vmem:[%s5 + $0x188] sm:$0xff]
  %v3915 = vld [vmem:[%s5 + $0x190] sm:$0xff]
  %v3916 = vld [vmem:[%s5 + $0x198] sm:$0xff]
  %v3917 = vld [vmem:[%s5 + $0x1a0] sm:$0xff]
  %v3918 = vld [vmem:[%s5 + $0x1a8] sm:$0xff]
  %v3919 = vld [vmem:[%s5 + $0x1b0] sm:$0xff]
  %v3920 = vld [vmem:[%s5 + $0x1b8] sm:$0xff]
  %v3921 = vld [vmem:[%s5 + $0x1c0] sm:$0xff]
  %v3922 = vld [vmem:[%s5 + $0x1c8] sm:$0xff]
  %v3923 = vld [vmem:[%s5 + $0x1d0] sm:$0xff]
  %v3924 = vld [vmem:[%s5 + $0x1d8] sm:$0xff]
  %v3925 = vld [vmem:[%s5 + $0x1e0] sm:$0xff]
  %v3926 = vld [vmem:[%s5 + $0x1e8] sm:$0xff]
  %v3927 = vld [vmem:[%s5 + $0x1f0] sm:$0xff]
  %v3928 = vld [vmem:[%s5 + $0x1f8] sm:$0xff]
  %v3929 = vld [vmem:[%s6] sm:$0x3]
  %v3931 = vlaneseq
  %v3932 = vshrl.u32 %v3931, 7
  %v3933 = vsub.s32 0, %v3932
  %v3934 = vrot.slane %v3929, %v3933
  %v3935 = vlaneseq
  %v3936 = vshrl.u32 %v3935, 7
  %v3937 = vsub.s32 1, %v3936
  %v3938 = vrot.slane %v3929, %v3937
  %v4005 = vunpack.c.l.b16 %v3865
  %v4006 = vunpack.c.h.b16 %v3865
  %v4007 = vunpack.c.l.b16 %v3866
  %v4008 = vunpack.c.h.b16 %v3866
  %v4009 = vunpack.c.l.b16 %v3867
  %v4010 = vunpack.c.h.b16 %v3867
  %v4011 = vunpack.c.l.b16 %v3868
  %v4012 = vunpack.c.h.b16 %v3868
  %v4013 = vunpack.c.l.b16 %v3869
  %v4014 = vunpack.c.h.b16 %v3869
  %v4015 = vunpack.c.l.b16 %v3870
  %v4016 = vunpack.c.h.b16 %v3870
  %v4017 = vunpack.c.l.b16 %v3871
  %v4018 = vunpack.c.h.b16 %v3871
  %v4019 = vunpack.c.l.b16 %v3872
  %v4020 = vunpack.c.h.b16 %v3872
  %v4021 = vunpack.c.l.b16 %v3873
  %v4022 = vunpack.c.h.b16 %v3873
  %v4023 = vunpack.c.l.b16 %v3874
  %v4024 = vunpack.c.h.b16 %v3874
  %v4025 = vunpack.c.l.b16 %v3875
  %v4026 = vunpack.c.h.b16 %v3875
  %v4027 = vunpack.c.l.b16 %v3876
  %v4028 = vunpack.c.h.b16 %v3876
  %v4029 = vunpack.c.l.b16 %v3877
  %v4030 = vunpack.c.h.b16 %v3877
  %v4031 = vunpack.c.l.b16 %v3878
  %v4032 = vunpack.c.h.b16 %v3878
  %v4033 = vunpack.c.l.b16 %v3879
  %v4034 = vunpack.c.h.b16 %v3879
  %v4035 = vunpack.c.l.b16 %v3880
  %v4036 = vunpack.c.h.b16 %v3880
  %v4037 = vunpack.c.l.b16 %v3881
  %v4038 = vunpack.c.h.b16 %v3881
  %v4039 = vunpack.c.l.b16 %v3882
  %v4040 = vunpack.c.h.b16 %v3882
  %v4041 = vunpack.c.l.b16 %v3883
  %v4042 = vunpack.c.h.b16 %v3883
  %v4043 = vunpack.c.l.b16 %v3884
  %v4044 = vunpack.c.h.b16 %v3884
  %v4045 = vunpack.c.l.b16 %v3885
  %v4046 = vunpack.c.h.b16 %v3885
  %v4047 = vunpack.c.l.b16 %v3886
  %v4048 = vunpack.c.h.b16 %v3886
  %v4049 = vunpack.c.l.b16 %v3887
  %v4050 = vunpack.c.h.b16 %v3887
  %v4051 = vunpack.c.l.b16 %v3888
  %v4052 = vunpack.c.h.b16 %v3888
  %v4053 = vunpack.c.l.b16 %v3889
  %v4054 = vunpack.c.h.b16 %v3889
  %v4055 = vunpack.c.l.b16 %v3890
  %v4056 = vunpack.c.h.b16 %v3890
  %v4057 = vunpack.c.l.b16 %v3891
  %v4058 = vunpack.c.h.b16 %v3891
  %v4059 = vunpack.c.l.b16 %v3892
  %v4060 = vunpack.c.h.b16 %v3892
  %v4061 = vunpack.c.l.b16 %v3893
  %v4062 = vunpack.c.h.b16 %v3893
  %v4063 = vunpack.c.l.b16 %v3894
  %v4064 = vunpack.c.h.b16 %v3894
  %v4065 = vunpack.c.l.b16 %v3895
  %v4066 = vunpack.c.h.b16 %v3895
  %v4067 = vunpack.c.l.b16 %v3896
  %v4068 = vunpack.c.h.b16 %v3896
  %v4069 = vunpack.c.l.b16 %v3897
  %v4070 = vunpack.c.h.b16 %v3897
  %v4071 = vunpack.c.l.b16 %v3898
  %v4072 = vunpack.c.h.b16 %v3898
  %v4073 = vunpack.c.l.b16 %v3899
  %v4074 = vunpack.c.h.b16 %v3899
  %v4075 = vunpack.c.l.b16 %v3900
  %v4076 = vunpack.c.h.b16 %v3900
  %v4077 = vunpack.c.l.b16 %v3901
  %v4078 = vunpack.c.h.b16 %v3901
  %v4079 = vunpack.c.l.b16 %v3902
  %v4080 = vunpack.c.h.b16 %v3902
  %v4081 = vunpack.c.l.b16 %v3903
  %v4082 = vunpack.c.h.b16 %v3903
  %v4083 = vunpack.c.l.b16 %v3904
  %v4084 = vunpack.c.h.b16 %v3904
  %v4085 = vunpack.c.l.b16 %v3905
  %v4086 = vunpack.c.h.b16 %v3905
  %v4087 = vunpack.c.l.b16 %v3906
  %v4088 = vunpack.c.h.b16 %v3906
  %v4089 = vunpack.c.l.b16 %v3907
  %v4090 = vunpack.c.h.b16 %v3907
  %v4091 = vunpack.c.l.b16 %v3908
  %v4092 = vunpack.c.h.b16 %v3908
  %v4093 = vunpack.c.l.b16 %v3909
  %v4094 = vunpack.c.h.b16 %v3909
  %v4095 = vunpack.c.l.b16 %v3910
  %v4096 = vunpack.c.h.b16 %v3910
  %v4097 = vunpack.c.l.b16 %v3911
  %v4098 = vunpack.c.h.b16 %v3911
  %v4099 = vunpack.c.l.b16 %v3912
  %v4100 = vunpack.c.h.b16 %v3912
  %v4101 = vunpack.c.l.b16 %v3913
  %v4102 = vunpack.c.h.b16 %v3913
  %v4103 = vunpack.c.l.b16 %v3914
  %v4104 = vunpack.c.h.b16 %v3914
  %v4105 = vunpack.c.l.b16 %v3915
  %v4106 = vunpack.c.h.b16 %v3915
  %v4107 = vunpack.c.l.b16 %v3916
  %v4108 = vunpack.c.h.b16 %v3916
  %v4109 = vunpack.c.l.b16 %v3917
  %v4110 = vunpack.c.h.b16 %v3917
  %v4111 = vunpack.c.l.b16 %v3918
  %v4112 = vunpack.c.h.b16 %v3918
  %v4113 = vunpack.c.l.b16 %v3919
  %v4114 = vunpack.c.h.b16 %v3919
  %v4115 = vunpack.c.l.b16 %v3920
  %v4116 = vunpack.c.h.b16 %v3920
  %v4117 = vunpack.c.l.b16 %v3921
  %v4118 = vunpack.c.h.b16 %v3921
  %v4119 = vunpack.c.l.b16 %v3922
  %v4120 = vunpack.c.h.b16 %v3922
  %v4121 = vunpack.c.l.b16 %v3923
  %v4122 = vunpack.c.h.b16 %v3923
  %v4123 = vunpack.c.l.b16 %v3924
  %v4124 = vunpack.c.h.b16 %v3924
  %v4125 = vunpack.c.l.b16 %v3925
  %v4126 = vunpack.c.h.b16 %v3925
  %v4127 = vunpack.c.l.b16 %v3926
  %v4128 = vunpack.c.h.b16 %v3926
  %v4129 = vunpack.c.l.b16 %v3927
  %v4130 = vunpack.c.h.b16 %v3927
  %v4131 = vunpack.c.l.b16 %v3928
  %v4132 = vunpack.c.h.b16 %v3928
  %v4133 = vpack.c.b16 %v4007, %v4005
  %v4134 = vpack.c.b16 %v4008, %v4006
  %v4135 = vpack.c.b16 %v4011, %v4009
  %v4136 = vpack.c.b16 %v4012, %v4010
  %v4137 = vpack.c.b16 %v4015, %v4013
  %v4138 = vpack.c.b16 %v4016, %v4014
  %v4139 = vpack.c.b16 %v4019, %v4017
  %v4140 = vpack.c.b16 %v4020, %v4018
  %v4141 = vpack.c.b16 %v4023, %v4021
  %v4142 = vpack.c.b16 %v4024, %v4022
  %v4143 = vpack.c.b16 %v4027, %v4025
  %v4144 = vpack.c.b16 %v4028, %v4026
  %v4145 = vpack.c.b16 %v4031, %v4029
  %v4146 = vpack.c.b16 %v4032, %v4030
  %v4147 = vpack.c.b16 %v4035, %v4033
  %v4148 = vpack.c.b16 %v4036, %v4034
  %v4149 = vpack.c.b16 %v4039, %v4037
  %v4150 = vpack.c.b16 %v4040, %v4038
  %v4151 = vpack.c.b16 %v4043, %v4041
  %v4152 = vpack.c.b16 %v4044, %v4042
  %v4153 = vpack.c.b16 %v4047, %v4045
  %v4154 = vpack.c.b16 %v4048, %v4046
  %v4155 = vpack.c.b16 %v4051, %v4049
  %v4156 = vpack.c.b16 %v4052, %v4050
  %v4157 = vpack.c.b16 %v4055, %v4053
  %v4158 = vpack.c.b16 %v4056, %v4054
  %v4159 = vpack.c.b16 %v4059, %v4057
  %v4160 = vpack.c.b16 %v4060, %v4058
  %v4161 = vpack.c.b16 %v4063, %v4061
  %v4162 = vpack.c.b16 %v4064, %v4062
  %v4163 = vpack.c.b16 %v4067, %v4065
  %v4164 = vpack.c.b16 %v4068, %v4066
  %v4165 = vpack.c.b16 %v4071, %v4069
  %v4166 = vpack.c.b16 %v4072, %v4070
  %v4167 = vpack.c.b16 %v4075, %v4073
  %v4168 = vpack.c.b16 %v4076, %v4074
  %v4169 = vpack.c.b16 %v4079, %v4077
  %v4170 = vpack.c.b16 %v4080, %v4078
  %v4171 = vpack.c.b16 %v4083, %v4081
  %v4172 = vpack.c.b16 %v4084, %v4082
  %v4173 = vpack.c.b16 %v4087, %v4085
  %v4174 = vpack.c.b16 %v4088, %v4086
  %v4175 = vpack.c.b16 %v4091, %v4089
  %v4176 = vpack.c.b16 %v4092, %v4090
  %v4177 = vpack.c.b16 %v4095, %v4093
  %v4178 = vpack.c.b16 %v4096, %v4094
  %v4179 = vpack.c.b16 %v4099, %v4097
  %v4180 = vpack.c.b16 %v4100, %v4098
  %v4181 = vpack.c.b16 %v4103, %v4101
  %v4182 = vpack.c.b16 %v4104, %v4102
  %v4183 = vpack.c.b16 %v4107, %v4105
  %v4184 = vpack.c.b16 %v4108, %v4106
  %v4185 = vpack.c.b16 %v4111, %v4109
  %v4186 = vpack.c.b16 %v4112, %v4110
  %v4187 = vpack.c.b16 %v4115, %v4113
  %v4188 = vpack.c.b16 %v4116, %v4114
  %v4189 = vpack.c.b16 %v4119, %v4117
  %v4190 = vpack.c.b16 %v4120, %v4118
  %v4191 = vpack.c.b16 %v4123, %v4121
  %v4192 = vpack.c.b16 %v4124, %v4122
  %v4193 = vpack.c.b16 %v4127, %v4125
  %v4194 = vpack.c.b16 %v4128, %v4126
  %v4195 = vpack.c.b16 %v4131, %v4129
  %v4196 = vpack.c.b16 %v4132, %v4130
  %4261 = vmatprep.subr.bf16.mxu0 %v4148
  %4262 = vmatpush1.bf16.msra.mxu0 %v4147
  %4263 = vmatprep.subr.bf16.mxu0 %v4146
  %4264 = vmatpush1.bf16.msra.mxu0 %v4145
  %4265 = vmatprep.subr.bf16.mxu0 %v4144
  %4266 = vmatpush1.bf16.msra.mxu0 %v4143
  %4267 = vmatprep.subr.bf16.mxu0 %v4142
  %4268 = vmatpush1.bf16.msra.mxu0 %v4141
  %4269 = vmatprep.subr.bf16.mxu0 %v4140
  %4270 = vmatpush1.bf16.msra.mxu0 %v4139
  %4271 = vmatprep.subr.bf16.mxu0 %v4138
  %4272 = vmatpush1.bf16.msra.mxu0 %v4137
  %4273 = vmatprep.subr.bf16.mxu0 %v4136
  %4274 = vmatpush1.bf16.msra.mxu0 %v4135
  %4275 = vmatprep.subr.bf16.mxu0 %v4134
  %4276 = vmatpush1.bf16.msra.mxu0 %v4133
  %4277 = vmatprep.subr.bf16.mxu0 %v4164
  %4278 = vmatpush2.bf16.msra.mxu0 %v4163
  %4279 = vmatprep.subr.bf16.mxu0 %v4162
  %4280 = vmatpush2.bf16.msra.mxu0 %v4161
  %4281 = vmatprep.subr.bf16.mxu0 %v4160
  %4282 = vmatpush2.bf16.msra.mxu0 %v4159
  %4283 = vmatprep.subr.bf16.mxu0 %v4158
  %4284 = vmatpush2.bf16.msra.mxu0 %v4157
  %4285 = vmatprep.subr.bf16.mxu0 %v4156
  %4286 = vmatpush2.bf16.msra.mxu0 %v4155
  %4287 = vmatprep.subr.bf16.mxu0 %v4154
  %4288 = vmatpush2.bf16.msra.mxu0 %v4153
  %4289 = vmatprep.subr.bf16.mxu0 %v4152
  %4290 = vmatpush2.bf16.msra.mxu0 %v4151
  %4291 = vmatprep.subr.bf16.mxu0 %v4150
  %4292 = vmatpush2.bf16.msra.mxu0 %v4149
  %4293 = vmatprep.mubr.bf16.mxu0 %v3862
  %4294 = vmatmul.mubr.bf16.gmra.mxu0 %v3861
  %v4295 = vpop.f32.mrf.mxu0
  %v4296 = vadd.f32 %v3934, %v4295
  %v4297 = vpop.f32.mrf.mxu0
  %v4298 = vadd.f32 %v3938, %v4297
  %v4299 = vpop.f32.mrf.mxu0
  %v4300 = vpop.f32.mrf.mxu0
  %4301 = vdwg.mxu0
  %4302 = vmatprep.subr.bf16.mxu0 %v4180
  %4303 = vmatpush1.bf16.msra.mxu0 %v4179
  %4304 = vmatprep.subr.bf16.mxu0 %v4178
  %4305 = vmatpush1.bf16.msra.mxu0 %v4177
  %4306 = vmatprep.subr.bf16.mxu0 %v4176
  %4307 = vmatpush1.bf16.msra.mxu0 %v4175
  %4308 = vmatprep.subr.bf16.mxu0 %v4174
  %4309 = vmatpush1.bf16.msra.mxu0 %v4173
  %4310 = vmatprep.subr.bf16.mxu0 %v4172
  %4311 = vmatpush1.bf16.msra.mxu0 %v4171
  %4312 = vmatprep.subr.bf16.mxu0 %v4170
  %4313 = vmatpush1.bf16.msra.mxu0 %v4169
  %4314 = vmatprep.subr.bf16.mxu0 %v4168
  %4315 = vmatpush1.bf16.msra.mxu0 %v4167
  %4316 = vmatprep.subr.bf16.mxu0 %v4166
  %4317 = vmatpush1.bf16.msra.mxu0 %v4165
  %4318 = vmatprep.subr.bf16.mxu0 %v4196
  %4319 = vmatpush2.bf16.msra.mxu0 %v4195
  %4320 = vmatprep.subr.bf16.mxu0 %v4194
  %4321 = vmatpush2.bf16.msra.mxu0 %v4193
  %4322 = vmatprep.subr.bf16.mxu0 %v4192
  %4323 = vmatpush2.bf16.msra.mxu0 %v4191
  %4324 = vmatprep.subr.bf16.mxu0 %v4190
  %4325 = vmatpush2.bf16.msra.mxu0 %v4189
  %4326 = vmatprep.subr.bf16.mxu0 %v4188
  %4327 = vmatpush2.bf16.msra.mxu0 %v4187
  %4328 = vmatprep.subr.bf16.mxu0 %v4186
  %4329 = vmatpush2.bf16.msra.mxu0 %v4185
  %4330 = vmatprep.subr.bf16.mxu0 %v4184
  %4331 = vmatpush2.bf16.msra.mxu0 %v4183
  %4332 = vmatprep.subr.bf16.mxu0 %v4182
  %4333 = vmatpush2.bf16.msra.mxu0 %v4181
  %4334 = vmatprep.mubr.bf16.mxu0 %v3864
  %4335 = vmatmul.mubr.bf16.gmra.mxu0 %v3863
  %v4336 = vpop.f32.mrf.mxu0
  %v4337 = vadd.f32 %v4296, %v4336
  %v4338 = vpop.f32.mrf.mxu0
  %v4339 = vadd.f32 %v4298, %v4338
  %v4340 = vpop.f32.mrf.mxu0
  %v4341 = vpop.f32.mrf.mxu0
  %4342 = vdwg.mxu0
  %v4343 = vmax.f32 %v4337, 0.0
  %v4344 = vmax.f32 %v4339, 0.0
  %v4345 = vpack.c.bf16 %v4343, %v4343
  %v4346 = vpack.c.bf16 %v4344, %v4344
  %v4347 = vld [vmem:[%s7] sm:$0xf]
  %v4348 = vld [vmem:[%s7 + $0x4] sm:$0xf]
  %v4349 = vld [vmem:[%s7 + $0x8] sm:$0xf]
  %v4350 = vld [vmem:[%s7 + $0xc] sm:$0xf]
  %v4351 = vld [vmem:[%s7 + $0x10] sm:$0xf]
  %v4352 = vld [vmem:[%s7 + $0x14] sm:$0xf]
  %v4353 = vld [vmem:[%s7 + $0x18] sm:$0xf]
  %v4354 = vld [vmem:[%s7 + $0x1c] sm:$0xf]
  %v4355 = vld [vmem:[%s7 + $0x20] sm:$0xf]
  %v4356 = vld [vmem:[%s7 + $0x24] sm:$0xf]
  %v4357 = vld [vmem:[%s7 + $0x28] sm:$0xf]
  %v4358 = vld [vmem:[%s7 + $0x2c] sm:$0xf]
  %v4359 = vld [vmem:[%s7 + $0x30] sm:$0xf]
  %v4360 = vld [vmem:[%s7 + $0x34] sm:$0xf]
  %v4361 = vld [vmem:[%s7 + $0x38] sm:$0xf]
  %v4362 = vld [vmem:[%s7 + $0x3c] sm:$0xf]
  %v4363 = vld [vmem:[%s7 + $0x40] sm:$0xf]
  %v4364 = vld [vmem:[%s7 + $0x44] sm:$0xf]
  %v4365 = vld [vmem:[%s7 + $0x48] sm:$0xf]
  %v4366 = vld [vmem:[%s7 + $0x4c] sm:$0xf]
  %v4367 = vld [vmem:[%s7 + $0x50] sm:$0xf]
  %v4368 = vld [vmem:[%s7 + $0x54] sm:$0xf]
  %v4369 = vld [vmem:[%s7 + $0x58] sm:$0xf]
  %v4370 = vld [vmem:[%s7 + $0x5c] sm:$0xf]
  %v4371 = vld [vmem:[%s7 + $0x60] sm:$0xf]
  %v4372 = vld [vmem:[%s7 + $0x64] sm:$0xf]
  %v4373 = vld [vmem:[%s7 + $0x68] sm:$0xf]
  %v4374 = vld [vmem:[%s7 + $0x6c] sm:$0xf]
  %v4375 = vld [vmem:[%s7 + $0x70] sm:$0xf]
  %v4376 = vld [vmem:[%s7 + $0x74] sm:$0xf]
  %v4377 = vld [vmem:[%s7 + $0x78] sm:$0xf]
  %v4378 = vld [vmem:[%s7 + $0x7c] sm:$0xf]
  %v4379 = vld [vmem:[%s8] sm:$0x1]
  %v4381 = vlaneseq
  %v4382 = vshrl.u32 %v4381, 7
  %v4383 = vsub.s32 0, %v4382
  %v4384 = vrot.slane %v4379, %v4383
  %v4418 = vunpack.c.l.b16 %v4347
  %v4419 = vunpack.c.l.b16 %v4348
  %v4420 = vunpack.c.l.b16 %v4349
  %v4421 = vunpack.c.l.b16 %v4350
  %v4422 = vunpack.c.l.b16 %v4351
  %v4423 = vunpack.c.l.b16 %v4352
  %v4424 = vunpack.c.l.b16 %v4353
  %v4425 = vunpack.c.l.b16 %v4354
  %v4426 = vunpack.c.l.b16 %v4355
  %v4427 = vunpack.c.l.b16 %v4356
  %v4428 = vunpack.c.l.b16 %v4357
  %v4429 = vunpack.c.l.b16 %v4358
  %v4430 = vunpack.c.l.b16 %v4359
  %v4431 = vunpack.c.l.b16 %v4360
  %v4432 = vunpack.c.l.b16 %v4361
  %v4433 = vunpack.c.l.b16 %v4362
  %v4434 = vunpack.c.l.b16 %v4363
  %v4435 = vunpack.c.l.b16 %v4364
  %v4436 = vunpack.c.l.b16 %v4365
  %v4437 = vunpack.c.l.b16 %v4366
  %v4438 = vunpack.c.l.b16 %v4367
  %v4439 = vunpack.c.l.b16 %v4368
  %v4440 = vunpack.c.l.b16 %v4369
  %v4441 = vunpack.c.l.b16 %v4370
  %v4442 = vunpack.c.l.b16 %v4371
  %v4443 = vunpack.c.l.b16 %v4372
  %v4444 = vunpack.c.l.b16 %v4373
  %v4445 = vunpack.c.l.b16 %v4374
  %v4446 = vunpack.c.l.b16 %v4375
  %v4447 = vunpack.c.l.b16 %v4376
  %v4448 = vunpack.c.l.b16 %v4377
  %v4449 = vunpack.c.l.b16 %v4378
  %v4450 = vpack.c.b16 %v4419, %v4418
  %v4451 = vpack.c.b16 %v4421, %v4420
  %v4452 = vpack.c.b16 %v4423, %v4422
  %v4453 = vpack.c.b16 %v4425, %v4424
  %v4454 = vpack.c.b16 %v4427, %v4426
  %v4455 = vpack.c.b16 %v4429, %v4428
  %v4456 = vpack.c.b16 %v4431, %v4430
  %v4457 = vpack.c.b16 %v4433, %v4432
  %v4458 = vpack.c.b16 %v4435, %v4434
  %v4459 = vpack.c.b16 %v4437, %v4436
  %v4460 = vpack.c.b16 %v4439, %v4438
  %v4461 = vpack.c.b16 %v4441, %v4440
  %v4462 = vpack.c.b16 %v4443, %v4442
  %v4463 = vpack.c.b16 %v4445, %v4444
  %v4464 = vpack.c.b16 %v4447, %v4446
  %v4465 = vpack.c.b16 %v4449, %v4448
  %4482 = vmatprep.subr.bf16.mxu0 0
  %4483 = vmatpush1.bf16.msra.mxu0 %v4457
  %4484 = vmatprep.subr.bf16.mxu0 0
  %4485 = vmatpush1.bf16.msra.mxu0 %v4456
  %4486 = vmatprep.subr.bf16.mxu0 0
  %4487 = vmatpush1.bf16.msra.mxu0 %v4455
  %4488 = vmatprep.subr.bf16.mxu0 0
  %4489 = vmatpush1.bf16.msra.mxu0 %v4454
  %4490 = vmatprep.subr.bf16.mxu0 0
  %4491 = vmatpush1.bf16.msra.mxu0 %v4453
  %4492 = vmatprep.subr.bf16.mxu0 0
  %4493 = vmatpush1.bf16.msra.mxu0 %v4452
  %4494 = vmatprep.subr.bf16.mxu0 0
  %4495 = vmatpush1.bf16.msra.mxu0 %v4451
  %4496 = vmatprep.subr.bf16.mxu0 0
  %4497 = vmatpush1.bf16.msra.mxu0 %v4450
  %4498 = vmatprep.subr.bf16.mxu0 0
  %4499 = vmatpush2.bf16.msra.mxu0 %v4465
  %4500 = vmatprep.subr.bf16.mxu0 0
  %4501 = vmatpush2.bf16.msra.mxu0 %v4464
  %4502 = vmatprep.subr.bf16.mxu0 0
  %4503 = vmatpush2.bf16.msra.mxu0 %v4463
  %4504 = vmatprep.subr.bf16.mxu0 0
  %4505 = vmatpush2.bf16.msra.mxu0 %v4462
  %4506 = vmatprep.subr.bf16.mxu0 0
  %4507 = vmatpush2.bf16.msra.mxu0 %v4461
  %4508 = vmatprep.subr.bf16.mxu0 0
  %4509 = vmatpush2.bf16.msra.mxu0 %v4460
  %4510 = vmatprep.subr.bf16.mxu0 0
  %4511 = vmatpush2.bf16.msra.mxu0 %v4459
  %4512 = vmatprep.subr.bf16.mxu0 0
  %4513 = vmatpush2.bf16.msra.mxu0 %v4458
  %4514 = vmatprep.mubr.bf16.mxu0 %v4346
  %4515 = vmatmul.mubr.bf16.gmra.mxu0 %v4345
  %v4516 = vpop.f32.mrf.mxu0
  %v4517 = vadd.f32 %v4384, %v4516
  %v4518 = vpop.f32.mrf.mxu0
  %v4519 = vpop.f32.mrf.mxu0
  %v4520 = vpop.f32.mrf.mxu0
  %4521 = vdwg.mxu0
  %4522 = vst [vmem:[%s9] sm:$0xff] %v4517
  // Predicated region
  $region38: #{qnetwork_forward.9} parent=0 // pred_check
    _
  $region39: #{qnetwork_forward.9} parent=0 // pred_check_branch
    %4524 = sbr.rel (0) target = $region41
  $region40: #{qnetwork_forward.9} parent=0 // pred_region
    _
  $region41: #{qnetwork_forward.9} parent=0 // pred_fallthru
    _
  // Predicated region
  $region42: #{qnetwork_forward.9} parent=0 // pred_check
    _
  $region43: #{qnetwork_forward.9} parent=0 // pred_check_branch
    %4526 = sbr.rel (0) target = $region45
  $region44: #{qnetwork_forward.9} parent=0 // pred_region
    _
  $region45: #{qnetwork_forward.9} parent=0 // pred_fallthru
    _

</llo_original>
